<compile_context>
chip_gen: v6e
topology: v6e:2x2x1
jax: 0.10.0
libtpu: 0.0.40
codegen_flags: <defaults>
</compile_context>

<pallas_src>
import functools

import jax
import jax.numpy as jnp
from jax.experimental import pallas as pl
from jax.experimental.pallas import tpu as pltpu


def _pick_tile(n, candidates=(1024, 640, 512, 384, 256, 128)):
    """Largest lane tile (multiple of 128) dividing n (n is a multiple of 128)."""
    for c in candidates:
        if n % c == 0:
            return c
    return n


def _cp(*semantics, vmem_mb=None):
    kw = {}
    if vmem_mb is not None:
        kw["vmem_limit_bytes"] = vmem_mb * 1024 * 1024
    return pltpu.CompilerParams(dimension_semantics=semantics, **kw)


def _bn_scale_shift(total_sum, total_sq, count, eps=1e-5):
    """Training-mode BN (gamma=1, beta=0) as a fused scale/shift."""
    mean = total_sum / count
    var = jnp.maximum(total_sq / count - mean * mean, 0.0)
    scale = jax.lax.rsqrt(var + eps)
    return scale, -mean * scale


# --------------------------------------------------------------------------
# Reflection-padded k*k window extraction on the flattened lane axis.
# x: (C, Lp) with H*W (+ dead padding lanes) flattened on lanes.
# Returns x at spatial offset (a, b) for every lane, reflect-padded, using
# static lane rolls + boundary-row/col fix-ups (all lane-dense VPU/XLU work).
# --------------------------------------------------------------------------
def _shift_targets(a, n):
    t = [(None, a)]                      # interior rows/cols use offset a
    if a < 0:
        for i in range(-a):              # i + a < 0  -> reflected
            t.append((i, -2 * i - a))
    elif a > 0:
        for i in range(n - a, n):        # i + a >= n -> reflected
            t.append((i, 2 * (n - 1 - i) - a))
    return t


def _refl_window(x, a, b, H, W, Lp, hi, wi):
    def rolled(tr, tc):
        s = tr * W + tc
        if s % Lp == 0:
            return x
        return pltpu.roll(x, (-s) % Lp, axis=1)   # out[l] = x[l + s]

    rows = _shift_targets(a, H)
    cols = _shift_targets(b, W)
    val = rolled(a, b)
    for (r, tr) in rows:
        for (c, tc) in cols:
            if r is None and c is None:
                continue
            if r is None:
                m = (wi == c)
            elif c is None:
                m = (hi == r)
            else:
                m = (hi == r) & (wi == c)
            val = jnp.where(m, rolled(tr, tc), val)
    return val


# --------------------------------------------------------------------------
# Kernel 0: per-batch per-channel (sum, sumsq) for bn1 (padding lanes are 0).
# --------------------------------------------------------------------------
def _xstats_kernel(x_ref, o_ref):
    v = x_ref[0]                                           # (C, Lp)
    o_ref[0, :, 0:1] = jnp.sum(v, axis=-1, keepdims=True)
    o_ref[0, :, 1:2] = jnp.sum(v * v, axis=-1, keepdims=True)


def channel_stats(x3d):
    N, C, Lp = x3d.shape
    return pl.pallas_call(
        _xstats_kernel,
        out_shape=jax.ShapeDtypeStruct((N, C, 2), jnp.float32),
        grid=(N,),
        in_specs=[pl.BlockSpec((1, C, Lp), lambda n: (n, 0, 0))],
        out_specs=pl.BlockSpec((1, C, 2), lambda n: (n, 0, 0)),
        compiler_params=_cp("parallel"),
    )(x3d)


# --------------------------------------------------------------------------
# Kernel 1: bn1 -> ReLU -> fused conv1|conv2|conv3 (one bf16 MXU pass).
# --------------------------------------------------------------------------
def _conv123_kernel(x_ref, s_ref, t_ref, w_ref, b_ref, x1_ref, x2_ref, x3_ref,
                    *, rel):
    h = jnp.maximum(x_ref[0] * s_ref[...] + t_ref[...], 0.0)
    y = jnp.dot(w_ref[...], h.astype(jnp.bfloat16),
                preferred_element_type=jnp.float32) + b_ref[...]
    x1_ref[0] = y[:rel]
    x2_ref[0] = y[rel:2 * rel]
    x3_ref[0] = y[2 * rel:]


def conv123(x_pad, scale, shift, wcat_t, bcat, rel, mid):
    N, Cin, Lp = x_pad.shape
    Ctot = wcat_t.shape[0]
    TL = _pick_tile(Lp)
    s = scale.reshape(Cin, 1).astype(jnp.float32)
    t = shift.reshape(Cin, 1).astype(jnp.float32)
    w = wcat_t.astype(jnp.bfloat16)
    b = bcat.reshape(Ctot, 1).astype(jnp.float32)
    kern = functools.partial(_conv123_kernel, rel=rel)
    return pl.pallas_call(
        kern,
        out_shape=(jax.ShapeDtypeStruct((N, rel, Lp), jnp.float32),
                   jax.ShapeDtypeStruct((N, rel, Lp), jnp.float32),
                   jax.ShapeDtypeStruct((N, mid, Lp), jnp.float32)),
        grid=(N, Lp // TL),
        in_specs=[pl.BlockSpec((1, Cin, TL), lambda n, j: (n, 0, j)),
                  pl.BlockSpec((Cin, 1), lambda n, j: (0, 0)),
                  pl.BlockSpec((Cin, 1), lambda n, j: (0, 0)),
                  pl.BlockSpec((Ctot, Cin), lambda n, j: (0, 0)),
                  pl.BlockSpec((Ctot, 1), lambda n, j: (0, 0))],
        out_specs=(pl.BlockSpec((1, rel, TL), lambda n, j: (n, 0, j)),
                   pl.BlockSpec((1, rel, TL), lambda n, j: (n, 0, j)),
                   pl.BlockSpec((1, mid, TL), lambda n, j: (n, 0, j))),
        compiler_params=_cp("parallel", "parallel", vmem_mb=48),
    )(x_pad, s, t, w, b)


# --------------------------------------------------------------------------
# Kernel 2: BN stats of the pairwise attention tensor (never materialized).
# --------------------------------------------------------------------------
def _att_stats_kernel(x1_ref, x2_ref, hw_ref, st_ref, *, ksize, pad, H, W, Lp):
    hi = hw_ref[0:1, :]
    wi = hw_ref[1:2, :]
    vmask = (hi >= 0).astype(jnp.float32)                  # real-lane mask
    x1 = x1_ref[0]
    x2 = x2_ref[0]
    rel = x1.shape[0]
    ssum = jnp.zeros((rel, 1), jnp.float32)
    qsum = jnp.zeros((rel, 1), jnp.float32)
    for dh in range(ksize):
        for dw in range(ksize):
            win = _refl_window(x2, dh - pad, dw - pad, H, W, Lp, hi, wi)
            d = (x1 - win) * vmask
            ssum = ssum + jnp.sum(d, axis=-1, keepdims=True)
            qsum = qsum + jnp.sum(d * d, axis=-1, keepdims=True)
    st_ref[0, :, 0:1] = ssum
    st_ref[0, :, 1:2] = qsum


def att_stats(x1, x2, hw, ksize, pad, H, W):
    N, rel, Lp = x1.shape
    kern = functools.partial(_att_stats_kernel, ksize=ksize, pad=pad,
                             H=H, W=W, Lp=Lp)
    return pl.pallas_call(
        kern,
        out_shape=jax.ShapeDtypeStruct((N, rel, 2), jnp.float32),
        grid=(N,),
        in_specs=[pl.BlockSpec((1, rel, Lp), lambda n: (n, 0, 0)),
                  pl.BlockSpec((1, rel, Lp), lambda n: (n, 0, 0)),
                  pl.BlockSpec((2, Lp), lambda n: (0, 0))],
        out_specs=pl.BlockSpec((1, rel, 2), lambda n: (n, 0, 0)),
        compiler_params=_cp("parallel", vmem_mb=48),
    )(x1, x2, hw)


# --------------------------------------------------------------------------
# Kernel 3: conv_w[0:3] = BN -> ReLU -> 1x1 (no bias), attention recomputed on
# the fly from x1/x2 + position diffs; writes y1 (bf16) + its BN partial stats.
# --------------------------------------------------------------------------
def _att_convw1_kernel(x1_ref, x2_ref, pd_ref, hw_ref, sx_ref, tx_ref,
                       sp_ref, tp_ref, wa_ref, wb_ref, y_ref, st_ref,
                       *, ksize, pad, H, W, Lp):
    hi = hw_ref[0:1, :]
    wi = hw_ref[1:2, :]
    vmask = (hi >= 0).astype(jnp.float32)
    x1 = x1_ref[0]
    x2 = x2_ref[0]
    rel = x1.shape[0]
    wa = wa_ref[...]                                       # (rel, rel) bf16
    wb = wb_ref[...]                                       # (rel, 2)   f32
    ssum = jnp.zeros((rel, 1), jnp.float32)
    qsum = jnp.zeros((rel, 1), jnp.float32)
    for dh in range(ksize):
        for dw in range(ksize):
            k = dh * ksize + dw
            win = _refl_window(x2, dh - pad, dw - pad, H, W, Lp, hi, wi)
            hx = jnp.maximum((x1 - win) * sx_ref[...] + tx_ref[...], 0.0)
            hp = jnp.maximum(pd_ref[k] * sp_ref[...] + tp_ref[...], 0.0)
            y = jnp.dot(wa, hx.astype(jnp.bfloat16),
                        preferred_element_type=jnp.float32)
            y = y + wb[:, 0:1] * hp[0:1, :] + wb[:, 1:2] * hp[1:2, :]
            y_ref[0, k] = y.astype(jnp.bfloat16)
            ym = y * vmask
            ssum = ssum + jnp.sum(ym, axis=-1, keepdims=True)
            qsum = qsum + jnp.sum(ym * ym, axis=-1, keepdims=True)
    st_ref[0, :, 0:1] = ssum
    st_ref[0, :, 1:2] = qsum


def att_convw1(x1, x2, pd_pad, hw, s_att, t_att, w1t, ksize, pad, H, W):
    N, rel, Lp = x1.shape
    K2 = ksize * ksize
    sx = s_att[:rel].reshape(rel, 1).astype(jnp.float32)
    tx = t_att[:rel].reshape(rel, 1).astype(jnp.float32)
    sp = s_att[rel:].reshape(2, 1).astype(jnp.float32)
    tp = t_att[rel:].reshape(2, 1).astype(jnp.float32)
    wa = w1t[:, :rel].astype(jnp.bfloat16)                 # subtraction channels
    wb = w1t[:, rel:].astype(jnp.float32)                  # position channels
    kern = functools.partial(_att_convw1_kernel, ksize=ksize, pad=pad,
                             H=H, W=W, Lp=Lp)
    return pl.pallas_call(
        kern,
        out_shape=(jax.ShapeDtypeStruct((N, K2, rel, Lp), jnp.bfloat16),
                   jax.ShapeDtypeStruct((N, rel, 2), jnp.float32)),
        grid=(N,),
        in_specs=[pl.BlockSpec((1, rel, Lp), lambda n: (n, 0, 0)),
                  pl.BlockSpec((1, rel, Lp), lambda n: (n, 0, 0)),
                  pl.BlockSpec((K2, 2, Lp), lambda n: (0, 0, 0)),
                  pl.BlockSpec((2, Lp), lambda n: (0, 0)),
                  pl.BlockSpec((rel, 1), lambda n: (0, 0)),
                  pl.BlockSpec((rel, 1), lambda n: (0, 0)),
                  pl.BlockSpec((2, 1), lambda n: (0, 0)),
                  pl.BlockSpec((2, 1), lambda n: (0, 0)),
                  pl.BlockSpec((rel, rel), lambda n: (0, 0)),
                  pl.BlockSpec((rel, 2), lambda n: (0, 0))],
        out_specs=(pl.BlockSpec((1, K2, rel, Lp), lambda n: (n, 0, 0, 0)),
                   pl.BlockSpec((1, rel, 2), lambda n: (n, 0, 0))),
        compiler_params=_cp("parallel", vmem_mb=48),
    )(x1, x2, pd_pad, hw, sx, tx, sp, tp, wa, wb)


# --------------------------------------------------------------------------
# Kernel 4: conv_w[3:] (BN -> ReLU -> 1x1 + bias) + softmax over k^2 + SAN
# aggregation as a streaming online-softmax over the k^2 windows.
# --------------------------------------------------------------------------
def _attn_agg_kernel(y_ref, x3_ref, hw_ref, s_ref, t_ref, w2_ref, b2_ref,
                     o_ref, st_ref, *, ksize, pad, H, W, Lp, share, cw):
    hi = hw_ref[0:1, :]
    wi = hw_ref[1:2, :]
    vmask = (hi >= 0).astype(jnp.float32)
    x3 = x3_ref[0]                                         # (mid, Lp) f32
    mid = x3.shape[0]
    w2 = w2_ref[...]                                       # (cw, rel) bf16
    b2 = b2_ref[...]                                       # (cw, 1)   f32
    m = jnp.full((cw, Lp), -jnp.inf, jnp.float32)
    den = jnp.zeros((cw, Lp), jnp.float32)
    acc = jnp.zeros((share, cw, Lp), jnp.float32)
    for dh in range(ksize):
        for dw in range(ksize):
            k = dh * ksize + dw
            yk = y_ref[0, k].astype(jnp.float32)           # (rel, Lp)
            h = jnp.maximum(yk * s_ref[...] + t_ref[...], 0.0)
            emb = jnp.dot(w2, h.astype(jnp.bfloat16),
                          preferred_element_type=jnp.float32) + b2
            m_new = jnp.maximum(m, emb)
            alpha = jnp.exp(m - m_new)
            p = jnp.exp(emb - m_new)
            win = _refl_window(x3, dh - pad, dw - pad, H, W, Lp, hi, wi)
            # output channel c uses attention channel c % cw (SAN aggregation)
            acc = acc * alpha[None] + win.reshape(share, cw, Lp) * p[None]
            den = den * alpha + p
            m = m_new
    out = (acc * (1.0 / den)[None]).reshape(mid, Lp)
    o_ref[0] = out
    om = out * vmask
    st_ref[0, :, 0:1] = jnp.sum(om, axis=-1, keepdims=True)
    st_ref[0, :, 1:2] = jnp.sum(om * om, axis=-1, keepdims=True)


def attention_aggregation(y1, x3, hw, s_y, t_y, w2t, b2, ksize, pad, H, W, share):
    N, K2, rel, Lp = y1.shape
    mid = x3.shape[1]
    cw = w2t.shape[0]
    assert mid == share * cw
    s = s_y.reshape(rel, 1).astype(jnp.float32)
    t = t_y.reshape(rel, 1).astype(jnp.float32)
    w = w2t.astype(jnp.bfloat16)
    b = b2.reshape(cw, 1).astype(jnp.float32)
    kern = functools.partial(_attn_agg_kernel, ksize=ksize, pad=pad, H=H, W=W,
                             Lp=Lp, share=share, cw=cw)
    return pl.pallas_call(
        kern,
        out_shape=(jax.ShapeDtypeStruct((N, mid, Lp), jnp.float32),
                   jax.ShapeDtypeStruct((N, mid, 2), jnp.float32)),
        grid=(N,),
        in_specs=[pl.BlockSpec((1, K2, rel, Lp), lambda n: (n, 0, 0, 0)),
                  pl.BlockSpec((1, mid, Lp), lambda n: (n, 0, 0)),
                  pl.BlockSpec((2, Lp), lambda n: (0, 0)),
                  pl.BlockSpec((rel, 1), lambda n: (0, 0)),
                  pl.BlockSpec((rel, 1), lambda n: (0, 0)),
                  pl.BlockSpec((cw, rel), lambda n: (0, 0)),
                  pl.BlockSpec((cw, 1), lambda n: (0, 0))],
        out_specs=(pl.BlockSpec((1, mid, Lp), lambda n: (n, 0, 0)),
                   pl.BlockSpec((1, mid, 2), lambda n: (n, 0, 0))),
        compiler_params=_cp("parallel", vmem_mb=48),
    )(y1, x3, hw, s, t, w, b)


# --------------------------------------------------------------------------
# Kernel 5: bn2 -> ReLU -> final 1x1 conv -> + identity.
# --------------------------------------------------------------------------
def _bn_mm_res_kernel(x_ref, s_ref, t_ref, w_ref, b_ref, r_ref, o_ref):
    h = jnp.maximum(x_ref[0] * s_ref[...] + t_ref[...], 0.0)
    o_ref[0] = (jnp.dot(w_ref[...], h.astype(jnp.bfloat16),
                        preferred_element_type=jnp.float32)
                + b_ref[...] + r_ref[0])


def bn_relu_conv_residual(a, scale, shift, wf_t, bf, resid):
    N, mid, Lp = a.shape
    out_p = wf_t.shape[0]
    TL = _pick_tile(Lp)
    s = scale.reshape(mid, 1).astype(jnp.float32)
    t = shift.reshape(mid, 1).astype(jnp.float32)
    w = wf_t.astype(jnp.bfloat16)
    b = bf.reshape(out_p, 1).astype(jnp.float32)
    return pl.pallas_call(
        _bn_mm_res_kernel,
        out_shape=jax.ShapeDtypeStruct((N, out_p, Lp), jnp.float32),
        grid=(N, Lp // TL),
        in_specs=[pl.BlockSpec((1, mid, TL), lambda n, j: (n, 0, j)),
                  pl.BlockSpec((mid, 1), lambda n, j: (0, 0)),
                  pl.BlockSpec((mid, 1), lambda n, j: (0, 0)),
                  pl.BlockSpec((out_p, mid), lambda n, j: (0, 0)),
                  pl.BlockSpec((out_p, 1), lambda n, j: (0, 0)),
                  pl.BlockSpec((1, out_p, TL), lambda n, j: (n, 0, j))],
        out_specs=pl.BlockSpec((1, out_p, TL), lambda n, j: (n, 0, j)),
        compiler_params=_cp("parallel", "parallel", vmem_mb=48),
    )(a, s, t, w, b, resid)


# --------------------------------------------------------------------------
# Glue: batch-invariant position channels (conv_p + Subtraction(position)).
# --------------------------------------------------------------------------
def _position_diff(H, W, wp, bp, ksize, pad):
    loc_w = jnp.broadcast_to(jnp.linspace(-1.0, 1.0, W)[None, :], (H, W))
    loc_h = jnp.broadcast_to(jnp.linspace(-1.0, 1.0, H)[:, None], (H, W))
    pos = jnp.stack([loc_w, loc_h], axis=0).astype(jnp.float32)        # (2,H,W)
    posc = jnp.einsum("ihw,io->ohw", pos, wp) + bp[:, None, None]      # conv_p
    pp = jnp.pad(posc, ((0, 0), (pad, pad), (pad, pad)), mode="reflect")
    wins = [pp[:, dh:dh + H, dw:dw + W]
            for dh in range(ksize) for dw in range(ksize)]
    pd = posc[:, None, :, :] - jnp.stack(wins, axis=1)                 # (2,K2,H,W)
    return pd.reshape(2, ksize * ksize, H * W)


# --------------------------------------------------------------------------
# Bottleneck forward (sa_type = 0)
# --------------------------------------------------------------------------
def bottleneck_forward(x, params, *, ksize=3, dilation=1, share=8):
    assert dilation == 1, "TODO(synk): only dilation == 1 implemented"
    N, C_in, H, W = x.shape
    pad = (dilation * (ksize - 1) + 1) // 2
    L = H * W
    K2 = ksize * ksize
    Lp = ((L + 127) // 128) * 128                       # lane-dense padded length
    rel = params["w1"].shape[1]
    mid = params["w3"].shape[1]
    out_p = params["wf"].shape[1]
    cw = params["wc2"].shape[1]
    assert out_p == C_in and mid == share * cw

    x_flat = x.reshape(N, C_in, L).astype(jnp.float32)
    x_pad = jnp.pad(x_flat, ((0, 0), (0, 0), (0, Lp - L)))

    # lane -> (row, col) table; -1 marks dead padding lanes
    lane = jnp.arange(Lp)
    hw = jnp.stack([jnp.where(lane < L, lane // W, -1),
                    jnp.where(lane < L, lane % W, -1)]).astype(jnp.int32)

    # bn1 (training-mode batch stats); padded lanes are zero -> exact sums
    st_x = channel_stats(x_pad)
    s1, t1 = _bn_scale_shift(jnp.sum(st_x[:, :, 0], 0),
                             jnp.sum(st_x[:, :, 1], 0), N * L)

    # conv1|conv2|conv3 fused into one bf16 MXU pass (x read once)
    wcat_t = jnp.concatenate([params["w1"], params["w2"], params["w3"]], axis=1).T
    bcat = jnp.concatenate([params["b1"], params["b2"], params["b3"]])
    x1, x2, x3 = conv123(x_pad, s1, t1, wcat_t, bcat, rel, mid)

    # position channels (batch invariant, tiny) computed once in glue
    pd = _position_diff(H, W, params["wp"], params["bp"], ksize, pad)  # (2,K2,L)
    pd_pad = jnp.pad(pd, ((0, 0), (0, 0), (0, Lp - L))).transpose(1, 0, 2)

    # BN stats of the (never-materialized) attention tensor
    st_a = att_stats(x1, x2, hw, ksize, pad, H, W)                     # (N,rel,2)
    sum_a = jnp.concatenate([jnp.sum(st_a[:, :, 0], 0), N * jnp.sum(pd, (1, 2))])
    sq_a = jnp.concatenate([jnp.sum(st_a[:, :, 1], 0),
                            N * jnp.sum(pd * pd, (1, 2))])
    sa, ta = _bn_scale_shift(sum_a, sq_a, N * K2 * L)

    # conv_w[0:3]: BN -> ReLU -> 1x1; att recomputed on the fly, y1 stored bf16
    w1t = params["wc1"].T                                              # (rel, rel+2)
    y1, st_y = att_convw1(x1, x2, pd_pad, hw, sa, ta, w1t, ksize, pad, H, W)
    sb, tb = _bn_scale_shift(jnp.sum(st_y[:, :, 0], 0),
                             jnp.sum(st_y[:, :, 1], 0), N * K2 * L)

    # conv_w[3:] + softmax over k^2 + aggregation (streaming online softmax)
    agg, st_g = attention_aggregation(y1, x3, hw, sb, tb, params["wc2"].T,
                                      params["bc2"], ksize, pad, H, W, share)
    s2, t2 = _bn_scale_shift(jnp.sum(st_g[:, :, 0], 0),
                             jnp.sum(st_g[:, :, 1], 0), N * L)

    # bn2 -> relu -> final conv -> + identity
    out = bn_relu_conv_residual(agg, s2, t2, params["wf"].T, params["bf"], x_pad)
    return out[:, :, :L].reshape(N, out_p, H, W)


# --------------------------------------------------------------------------
if __name__ == "__main__":
    key = jax.random.PRNGKey(0)
    N, C_in, H, W = 2, 16, 16, 16
    rel, mid, out_p, share, ksize = 4, 16, 16, 8, 3     # out_planes == in_planes
    cw = mid // share

    ks = jax.random.split(key, 16)

    def rn(k, shape, s=0.1):
        return s * jax.random.normal(k, shape, jnp.float32)

    params = {
        "w1": rn(ks[0], (C_in, rel)), "b1": rn(ks[1], (rel,)),
        "w2": rn(ks[2], (C_in, rel)), "b2": rn(ks[3], (rel,)),
        "w3": rn(ks[4], (C_in, mid)), "b3": rn(ks[5], (mid,)),
        "wp": rn(ks[6], (2, 2)), "bp": rn(ks[7], (2,)),
        "wc1": rn(ks[8], (rel + 2, rel)),                        # conv_w[2], no bias
        "wc2": rn(ks[9], (rel, cw)), "bc2": rn(ks[10], (cw,)),   # conv_w[5]
        "wf": rn(ks[11], (mid, out_p)), "bf": rn(ks[12], (out_p,)),
    }

    x = jax.random.normal(ks[15], (N, C_in, H, W), jnp.float32)

    fwd = jax.jit(functools.partial(bottleneck_forward, ksize=ksize, share=share))
    y = jax.block_until_ready(fwd(x, params))
    assert y.shape == (N, out_p, H, W)
    assert bool(jnp.isfinite(y).all())
    print("KERNEL_OK")
</pallas_src>

<mosaic_0001>
module attributes {stable_mosaic.version = 11 : i64} {
  func.func @_xstats_kernel(%arg0: i32, %arg1: memref<1x16x256xf32, #tpu.memory_space<vmem>>, %arg2: memref<1x16x2xf32, #tpu.memory_space<vmem>>) attributes {dimension_semantics = [#tpu.dimension_semantics<parallel>], iteration_bounds = array<i64: 2>, scalar_prefetch = 0 : i64, scratch_operands = 0 : i64, tpu.core_type = #tpu.core_type<tc>, window_params = [{transform_indices = @transform_0, window_bounds = array<i64: 1, 16, 256>}, {transform_indices = @transform_1, window_bounds = array<i64: 1, 16, 2>}]} {
    %c0 = arith.constant 0 : index
    %c0_0 = arith.constant 0 : index
    %c0_1 = arith.constant 0 : index
    %0 = vector.load %arg1[%c0, %c0_0, %c0_1] : memref<1x16x256xf32, #tpu.memory_space<vmem>>, vector<1x16x256xf32>
    %1 = vector.shape_cast %0 : vector<1x16x256xf32> to vector<16x256xf32>
    %cst = arith.constant dense<0.000000e+00> : vector<16xf32>
    %2 = vector.multi_reduction <add>, %1, %cst [1] : vector<16x256xf32> to vector<16xf32>
    %3 = vector.shape_cast %2 : vector<16xf32> to vector<16x1xf32>
    %c0_2 = arith.constant 0 : index
    %c0_3 = arith.constant 0 : index
    %c0_4 = arith.constant 0 : index
    %4 = vector.load %arg2[%c0_2, %c0_3, %c0_4] : memref<1x16x2xf32, #tpu.memory_space<vmem>>, vector<1x16x1xf32>
    %5 = vector.shape_cast %4 : vector<1x16x1xf32> to vector<16x1xf32>
    %6 = vector.shape_cast %3 : vector<16x1xf32> to vector<1x16x1xf32>
    tpu.vector_store %arg2[%c0_2, %c0_3, %c0_4], %6 {strides = array<i32>} : memref<1x16x2xf32, #tpu.memory_space<vmem>>, vector<1x16x1xf32>,
    %7 = arith.mulf %1, %1 : vector<16x256xf32>
    %cst_5 = arith.constant dense<0.000000e+00> : vector<16xf32>
    %8 = vector.multi_reduction <add>, %7, %cst_5 [1] : vector<16x256xf32> to vector<16xf32>
    %9 = vector.shape_cast %8 : vector<16xf32> to vector<16x1xf32>
    %c0_6 = arith.constant 0 : index
    %c0_7 = arith.constant 0 : index
    %c1 = arith.constant 1 : index
    %10 = vector.load %arg2[%c0_6, %c0_7, %c1] : memref<1x16x2xf32, #tpu.memory_space<vmem>>, vector<1x16x1xf32>
    %11 = vector.shape_cast %10 : vector<1x16x1xf32> to vector<16x1xf32>
    %12 = vector.shape_cast %9 : vector<16x1xf32> to vector<1x16x1xf32>
    tpu.vector_store %arg2[%c0_6, %c0_7, %c1], %12 {strides = array<i32>} : memref<1x16x2xf32, #tpu.memory_space<vmem>>, vector<1x16x1xf32>,
    return
  }
  func.func @transform_0(%arg0: i32) -> (i32, i32, i32) {
    %c0_i32 = arith.constant 0 : i32
    %c0_i32_0 = arith.constant 0 : i32
    %c0_i32_1 = arith.constant 0 : i32
    return %arg0, %c0_i32, %c0_i32_0 : i32, i32, i32
  }
  func.func @transform_1(%arg0: i32) -> (i32, i32, i32) {
    %c0_i32 = arith.constant 0 : i32
    %c0_i32_0 = arith.constant 0 : i32
    %c0_i32_1 = arith.constant 0 : i32
    return %arg0, %c0_i32, %c0_i32_0 : i32, i32, i32
  }
}

module attributes {stable_mosaic.version = 11 : i64} {
  func.func @_conv123_kernel(%arg0: i32, %arg1: i32, %arg2: memref<1x16x256xf32, #tpu.memory_space<vmem>>, %arg3: memref<16x1xf32, #tpu.memory_space<vmem>>, %arg4: memref<16x1xf32, #tpu.memory_space<vmem>>, %arg5: memref<24x16xbf16, #tpu.memory_space<vmem>>, %arg6: memref<24x1xf32, #tpu.memory_space<vmem>>, %arg7: memref<1x4x256xf32, #tpu.memory_space<vmem>>, %arg8: memref<1x4x256xf32, #tpu.memory_space<vmem>>, %arg9: memref<1x16x256xf32, #tpu.memory_space<vmem>>) attributes {dimension_semantics = [#tpu.dimension_semantics<parallel>, #tpu.dimension_semantics<parallel>], iteration_bounds = array<i64: 2, 1>, scalar_prefetch = 0 : i64, scratch_operands = 0 : i64, tpu.core_type = #tpu.core_type<tc>, window_params = [{transform_indices = @transform_0, window_bounds = array<i64: 1, 16, 256>}, {pipeline_mode = #tpu.pipeline_mode<synchronous>, transform_indices = @transform_1, window_bounds = array<i64: 16, 1>}, {pipeline_mode = #tpu.pipeline_mode<synchronous>, transform_indices = @transform_2, window_bounds = array<i64: 16, 1>}, {pipeline_mode = #tpu.pipeline_mode<synchronous>, transform_indices = @transform_3, window_bounds = array<i64: 24, 16>}, {pipeline_mode = #tpu.pipeline_mode<synchronous>, transform_indices = @transform_4, window_bounds = array<i64: 24, 1>}, {transform_indices = @transform_5, window_bounds = array<i64: 1, 4, 256>}, {transform_indices = @transform_6, window_bounds = array<i64: 1, 4, 256>}, {transform_indices = @transform_7, window_bounds = array<i64: 1, 16, 256>}]} {
    %c0 = arith.constant 0 : index
    %c0_0 = arith.constant 0 : index
    %c0_1 = arith.constant 0 : index
    %0 = vector.load %arg2[%c0, %c0_0, %c0_1] : memref<1x16x256xf32, #tpu.memory_space<vmem>>, vector<1x16x256xf32>
    %1 = vector.shape_cast %0 : vector<1x16x256xf32> to vector<16x256xf32>
    %c0_2 = arith.constant 0 : index
    %c0_3 = arith.constant 0 : index
    %2 = vector.load %arg3[%c0_2, %c0_3] : memref<16x1xf32, #tpu.memory_space<vmem>>, vector<16x1xf32>
    %3 = vector.broadcast %2 : vector<16x1xf32> to vector<16x256xf32>
    %4 = arith.mulf %1, %3 : vector<16x256xf32>
    %c0_4 = arith.constant 0 : index
    %c0_5 = arith.constant 0 : index
    %5 = vector.load %arg4[%c0_4, %c0_5] : memref<16x1xf32, #tpu.memory_space<vmem>>, vector<16x1xf32>
    %6 = vector.broadcast %5 : vector<16x1xf32> to vector<16x256xf32>
    %7 = arith.addf %4, %6 : vector<16x256xf32>
    %cst = arith.constant 0.000000e+00 : f32
    %8 = vector.broadcast %cst : f32 to vector<16x256xf32>
    %9 = arith.maximumf %7, %8 : vector<16x256xf32>
    %c0_6 = arith.constant 0 : index
    %c0_7 = arith.constant 0 : index
    %10 = vector.load %arg5[%c0_6, %c0_7] : memref<24x16xbf16, #tpu.memory_space<vmem>>, vector<24x16xbf16>
    %11 = arith.truncf %9 : vector<16x256xf32> to vector<16x256xbf16>
    %cst_8 = arith.constant dense<0.000000e+00> : vector<24x256xf32>
    %12 = tpu.matmul %10, %11, %cst_8 {dimension_numbers = #tpu.dot_dimension_numbers<[1], [0], [0], [1], [0, 0, 1, 1], [], []>} : vector<24x16xbf16>, vector<16x256xbf16>, vector<24x256xf32> -> vector<24x256xf32>
    %c0_9 = arith.constant 0 : index
    %c0_10 = arith.constant 0 : index
    %13 = vector.load %arg6[%c0_9, %c0_10] : memref<24x1xf32, #tpu.memory_space<vmem>>, vector<24x1xf32>
    %14 = vector.broadcast %13 : vector<24x1xf32> to vector<24x256xf32>
    %15 = arith.addf %12, %14 : vector<24x256xf32>
    %16 = vector.extract_strided_slice %15 {offsets = [0, 0], sizes = [4, 256], strides = [1, 1]} : vector<24x256xf32> to vector<4x256xf32>
    %c0_11 = arith.constant 0 : index
    %c0_12 = arith.constant 0 : index
    %c0_13 = arith.constant 0 : index
    %17 = vector.load %arg7[%c0_11, %c0_12, %c0_13] : memref<1x4x256xf32, #tpu.memory_space<vmem>>, vector<1x4x256xf32>
    %18 = vector.shape_cast %17 : vector<1x4x256xf32> to vector<4x256xf32>
    %19 = vector.shape_cast %16 : vector<4x256xf32> to vector<1x4x256xf32>
    tpu.vector_store %arg7[%c0_11, %c0_12, %c0_13], %19 {strides = array<i32>} : memref<1x4x256xf32, #tpu.memory_space<vmem>>, vector<1x4x256xf32>,
    %20 = vector.extract_strided_slice %15 {offsets = [4, 0], sizes = [4, 256], strides = [1, 1]} : vector<24x256xf32> to vector<4x256xf32>
    %c0_14 = arith.constant 0 : index
    %c0_15 = arith.constant 0 : index
    %c0_16 = arith.constant 0 : index
    %21 = vector.load %arg8[%c0_14, %c0_15, %c0_16] : memref<1x4x256xf32, #tpu.memory_space<vmem>>, vector<1x4x256xf32>
    %22 = vector.shape_cast %21 : vector<1x4x256xf32> to vector<4x256xf32>
    %23 = vector.shape_cast %20 : vector<4x256xf32> to vector<1x4x256xf32>
    tpu.vector_store %arg8[%c0_14, %c0_15, %c0_16], %23 {strides = array<i32>} : memref<1x4x256xf32, #tpu.memory_space<vmem>>, vector<1x4x256xf32>,
    %24 = vector.extract_strided_slice %15 {offsets = [8, 0], sizes = [16, 256], strides = [1, 1]} : vector<24x256xf32> to vector<16x256xf32>
    %c0_17 = arith.constant 0 : index
    %c0_18 = arith.constant 0 : index
    %c0_19 = arith.constant 0 : index
    %25 = vector.load %arg9[%c0_17, %c0_18, %c0_19] : memref<1x16x256xf32, #tpu.memory_space<vmem>>, vector<1x16x256xf32>
    %26 = vector.shape_cast %25 : vector<1x16x256xf32> to vector<16x256xf32>
    %27 = vector.shape_cast %24 : vector<16x256xf32> to vector<1x16x256xf32>
    tpu.vector_store %arg9[%c0_17, %c0_18, %c0_19], %27 {strides = array<i32>} : memref<1x16x256xf32, #tpu.memory_space<vmem>>, vector<1x16x256xf32>,
    return
  }
  func.func @transform_0(%arg0: i32, %arg1: i32) -> (i32, i32, i32) {
    %c0_i32 = arith.constant 0 : i32
    %c0_i32_0 = arith.constant 0 : i32
    return %arg0, %c0_i32, %arg1 : i32, i32, i32
  }
  func.func @transform_1(%arg0: i32, %arg1: i32) -> (i32, i32) {
    %c0_i32 = arith.constant 0 : i32
    %c0_i32_0 = arith.constant 0 : i32
    %c0_i32_1 = arith.constant 0 : i32
    return %c0_i32, %c0_i32_0 : i32, i32
  }
  func.func @transform_2(%arg0: i32, %arg1: i32) -> (i32, i32) {
    %c0_i32 = arith.constant 0 : i32
    %c0_i32_0 = arith.constant 0 : i32
    %c0_i32_1 = arith.constant 0 : i32
    return %c0_i32, %c0_i32_0 : i32, i32
  }
  func.func @transform_3(%arg0: i32, %arg1: i32) -> (i32, i32) {
    %c0_i32 = arith.constant 0 : i32
    %c0_i32_0 = arith.constant 0 : i32
    %c0_i32_1 = arith.constant 0 : i32
    return %c0_i32, %c0_i32_0 : i32, i32
  }
  func.func @transform_4(%arg0: i32, %arg1: i32) -> (i32, i32) {
    %c0_i32 = arith.constant 0 : i32
    %c0_i32_0 = arith.constant 0 : i32
    %c0_i32_1 = arith.constant 0 : i32
    return %c0_i32, %c0_i32_0 : i32, i32
  }
  func.func @transform_5(%arg0: i32, %arg1: i32) -> (i32, i32, i32) {
    %c0_i32 = arith.constant 0 : i32
    %c0_i32_0 = arith.constant 0 : i32
    return %arg0, %c0_i32, %arg1 : i32, i32, i32
  }
  func.func @transform_6(%arg0: i32, %arg1: i32) -> (i32, i32, i32) {
    %c0_i32 = arith.constant 0 : i32
    %c0_i32_0 = arith.constant 0 : i32
    return %arg0, %c0_i32, %arg1 : i32, i32, i32
  }
  func.func @transform_7(%arg0: i32, %arg1: i32) -> (i32, i32, i32) {
    %c0_i32 = arith.constant 0 : i32
    %c0_i32_0 = arith.constant 0 : i32
    return %arg0, %c0_i32, %arg1 : i32, i32, i32
  }
}

module attributes {stable_mosaic.version = 11 : i64} {
  func.func @_att_stats_kernel(%arg0: i32, %arg1: memref<1x4x256xf32, #tpu.memory_space<vmem>>, %arg2: memref<1x4x256xf32, #tpu.memory_space<vmem>>, %arg3: memref<2x256xi32, #tpu.memory_space<vmem>>, %arg4: memref<1x4x2xf32, #tpu.memory_space<vmem>>) attributes {dimension_semantics = [#tpu.dimension_semantics<parallel>], iteration_bounds = array<i64: 2>, scalar_prefetch = 0 : i64, scratch_operands = 0 : i64, tpu.core_type = #tpu.core_type<tc>, window_params = [{transform_indices = @transform_0, window_bounds = array<i64: 1, 4, 256>}, {transform_indices = @transform_1, window_bounds = array<i64: 1, 4, 256>}, {pipeline_mode = #tpu.pipeline_mode<synchronous>, transform_indices = @transform_2, window_bounds = array<i64: 2, 256>}, {transform_indices = @transform_3, window_bounds = array<i64: 1, 4, 2>}]} {
    %c0 = arith.constant 0 : index
    %c0_0 = arith.constant 0 : index
    %0 = vector.load %arg3[%c0, %c0_0] : memref<2x256xi32, #tpu.memory_space<vmem>>, vector<1x256xi32>
    %c1 = arith.constant 1 : index
    %c0_1 = arith.constant 0 : index
    %1 = vector.load %arg3[%c1, %c0_1] : memref<2x256xi32, #tpu.memory_space<vmem>>, vector<1x256xi32>
    %c0_i32 = arith.constant 0 : i32
    %2 = vector.broadcast %c0_i32 : i32 to vector<1x256xi32>
    %3 = arith.cmpi sge, %0, %2 : vector<1x256xi32>
    %4 = arith.extui %3 : vector<1x256xi1> to vector<1x256xi32>
    %5 = arith.sitofp %4 : vector<1x256xi32> to vector<1x256xf32>
    %c0_2 = arith.constant 0 : index
    %c0_3 = arith.constant 0 : index
    %c0_4 = arith.constant 0 : index
    %6 = vector.load %arg1[%c0_2, %c0_3, %c0_4] : memref<1x4x256xf32, #tpu.memory_space<vmem>>, vector<1x4x256xf32>
    %7 = vector.shape_cast %6 : vector<1x4x256xf32> to vector<4x256xf32>
    %c0_5 = arith.constant 0 : index
    %c0_6 = arith.constant 0 : index
    %c0_7 = arith.constant 0 : index
    %8 = vector.load %arg2[%c0_5, %c0_6, %c0_7] : memref<1x4x256xf32, #tpu.memory_space<vmem>>, vector<1x4x256xf32>
    %9 = vector.shape_cast %8 : vector<1x4x256xf32> to vector<4x256xf32>
    %cst = arith.constant 0.000000e+00 : f32
    %10 = vector.broadcast %cst : f32 to vector<4x1xf32>
    %cst_8 = arith.constant 0.000000e+00 : f32
    %11 = vector.broadcast %cst_8 : f32 to vector<4x1xf32>
    %c17_i32 = arith.constant 17 : i32
    %12 = tpu.dynamic_rotate %9 by %c17_i32 dim 1 : vector<4x256xf32>, i32 -> vector<4x256xf32>
    %c0_i32_9 = arith.constant 0 : i32
    %13 = vector.broadcast %c0_i32_9 : i32 to vector<1x256xi32>
    %14 = arith.cmpi eq, %1, %13 : vector<1x256xi32>
    %c15_i32 = arith.constant 15 : i32
    %15 = tpu.dynamic_rotate %9 by %c15_i32 dim 1 : vector<4x256xf32>, i32 -> vector<4x256xf32>
    %16 = vector.shape_cast %14 : vector<1x256xi1> to vector<1x256xi1>
    %17 = vector.broadcast %16 : vector<1x256xi1> to vector<4x256xi1>
    %18 = arith.select %17, %15, %12 : vector<4x256xi1>, vector<4x256xf32>
    %c0_i32_10 = arith.constant 0 : i32
    %19 = vector.broadcast %c0_i32_10 : i32 to vector<1x256xi32>
    %20 = arith.cmpi eq, %0, %19 : vector<1x256xi32>
    %c241_i32 = arith.constant 241 : i32
    %21 = tpu.dynamic_rotate %9 by %c241_i32 dim 1 : vector<4x256xf32>, i32 -> vector<4x256xf32>
    %22 = vector.shape_cast %20 : vector<1x256xi1> to vector<1x256xi1>
    %23 = vector.broadcast %22 : vector<1x256xi1> to vector<4x256xi1>
    %24 = arith.select %23, %21, %18 : vector<4x256xi1>, vector<4x256xf32>
    %c0_i32_11 = arith.constant 0 : i32
    %25 = vector.broadcast %c0_i32_11 : i32 to vector<1x256xi32>
    %26 = arith.cmpi eq, %0, %25 : vector<1x256xi32>
    %c0_i32_12 = arith.constant 0 : i32
    %27 = vector.broadcast %c0_i32_12 : i32 to vector<1x256xi32>
    %28 = arith.cmpi eq, %1, %27 : vector<1x256xi32>
    %29 = arith.andi %26, %28 : vector<1x256xi1>
    %c239_i32 = arith.constant 239 : i32
    %30 = tpu.dynamic_rotate %9 by %c239_i32 dim 1 : vector<4x256xf32>, i32 -> vector<4x256xf32>
    %31 = vector.shape_cast %29 : vector<1x256xi1> to vector<1x256xi1>
    %32 = vector.broadcast %31 : vector<1x256xi1> to vector<4x256xi1>
    %33 = arith.select %32, %30, %24 : vector<4x256xi1>, vector<4x256xf32>
    %34 = arith.subf %7, %33 : vector<4x256xf32>
    %35 = vector.broadcast %5 : vector<1x256xf32> to vector<4x256xf32>
    %36 = arith.mulf %34, %35 : vector<4x256xf32>
    %cst_13 = arith.constant dense<0.000000e+00> : vector<4xf32>
    %37 = vector.multi_reduction <add>, %36, %cst_13 [1] : vector<4x256xf32> to vector<4xf32>
    %38 = vector.shape_cast %37 : vector<4xf32> to vector<4x1xf32>
    %39 = arith.addf %10, %38 : vector<4x1xf32>
    %40 = arith.mulf %36, %36 : vector<4x256xf32>
    %cst_14 = arith.constant dense<0.000000e+00> : vector<4xf32>
    %41 = vector.multi_reduction <add>, %40, %cst_14 [1] : vector<4x256xf32> to vector<4xf32>
    %42 = vector.shape_cast %41 : vector<4xf32> to vector<4x1xf32>
    %43 = arith.addf %11, %42 : vector<4x1xf32>
    %c16_i32 = arith.constant 16 : i32
    %44 = tpu.dynamic_rotate %9 by %c16_i32 dim 1 : vector<4x256xf32>, i32 -> vector<4x256xf32>
    %c0_i32_15 = arith.constant 0 : i32
    %45 = vector.broadcast %c0_i32_15 : i32 to vector<1x256xi32>
    %46 = arith.cmpi eq, %0, %45 : vector<1x256xi32>
    %c240_i32 = arith.constant 240 : i32
    %47 = tpu.dynamic_rotate %9 by %c240_i32 dim 1 : vector<4x256xf32>, i32 -> vector<4x256xf32>
    %48 = vector.shape_cast %46 : vector<1x256xi1> to vector<1x256xi1>
    %49 = vector.broadcast %48 : vector<1x256xi1> to vector<4x256xi1>
    %50 = arith.select %49, %47, %44 : vector<4x256xi1>, vector<4x256xf32>
    %51 = arith.subf %7, %50 : vector<4x256xf32>
    %52 = vector.broadcast %5 : vector<1x256xf32> to vector<4x256xf32>
    %53 = arith.mulf %51, %52 : vector<4x256xf32>
    %cst_16 = arith.constant dense<0.000000e+00> : vector<4xf32>
    %54 = vector.multi_reduction <add>, %53, %cst_16 [1] : vector<4x256xf32> to vector<4xf32>
    %55 = vector.shape_cast %54 : vector<4xf32> to vector<4x1xf32>
    %56 = arith.addf %39, %55 : vector<4x1xf32>
    %57 = arith.mulf %53, %53 : vector<4x256xf32>
    %cst_17 = arith.constant dense<0.000000e+00> : vector<4xf32>
    %58 = vector.multi_reduction <add>, %57, %cst_17 [1] : vector<4x256xf32> to vector<4xf32>
    %59 = vector.shape_cast %58 : vector<4xf32> to vector<4x1xf32>
    %60 = arith.addf %43, %59 : vector<4x1xf32>
    %c15_i32_18 = arith.constant 15 : i32
    %61 = tpu.dynamic_rotate %9 by %c15_i32_18 dim 1 : vector<4x256xf32>, i32 -> vector<4x256xf32>
    %c15_i32_19 = arith.constant 15 : i32
    %62 = vector.broadcast %c15_i32_19 : i32 to vector<1x256xi32>
    %63 = arith.cmpi eq, %1, %62 : vector<1x256xi32>
    %c17_i32_20 = arith.constant 17 : i32
    %64 = tpu.dynamic_rotate %9 by %c17_i32_20 dim 1 : vector<4x256xf32>, i32 -> vector<4x256xf32>
    %65 = vector.shape_cast %63 : vector<1x256xi1> to vector<1x256xi1>
    %66 = vector.broadcast %65 : vector<1x256xi1> to vector<4x256xi1>
    %67 = arith.select %66, %64, %61 : vector<4x256xi1>, vector<4x256xf32>
    %c0_i32_21 = arith.constant 0 : i32
    %68 = vector.broadcast %c0_i32_21 : i32 to vector<1x256xi32>
    %69 = arith.cmpi eq, %0, %68 : vector<1x256xi32>
    %c239_i32_22 = arith.constant 239 : i32
    %70 = tpu.dynamic_rotate %9 by %c239_i32_22 dim 1 : vector<4x256xf32>, i32 -> vector<4x256xf32>
    %71 = vector.shape_cast %69 : vector<1x256xi1> to vector<1x256xi1>
    %72 = vector.broadcast %71 : vector<1x256xi1> to vector<4x256xi1>
    %73 = arith.select %72, %70, %67 : vector<4x256xi1>, vector<4x256xf32>
    %c0_i32_23 = arith.constant 0 : i32
    %74 = vector.broadcast %c0_i32_23 : i32 to vector<1x256xi32>
    %75 = arith.cmpi eq, %0, %74 : vector<1x256xi32>
    %c15_i32_24 = arith.constant 15 : i32
    %76 = vector.broadcast %c15_i32_24 : i32 to vector<1x256xi32>
    %77 = arith.cmpi eq, %1, %76 : vector<1x256xi32>
    %78 = arith.andi %75, %77 : vector<1x256xi1>
    %c241_i32_25 = arith.constant 241 : i32
    %79 = tpu.dynamic_rotate %9 by %c241_i32_25 dim 1 : vector<4x256xf32>, i32 -> vector<4x256xf32>
    %80 = vector.shape_cast %78 : vector<1x256xi1> to vector<1x256xi1>
    %81 = vector.broadcast %80 : vector<1x256xi1> to vector<4x256xi1>
    %82 = arith.select %81, %79, %73 : vector<4x256xi1>, vector<4x256xf32>
    %83 = arith.subf %7, %82 : vector<4x256xf32>
    %84 = vector.broadcast %5 : vector<1x256xf32> to vector<4x256xf32>
    %85 = arith.mulf %83, %84 : vector<4x256xf32>
    %cst_26 = arith.constant dense<0.000000e+00> : vector<4xf32>
    %86 = vector.multi_reduction <add>, %85, %cst_26 [1] : vector<4x256xf32> to vector<4xf32>
    %87 = vector.shape_cast %86 : vector<4xf32> to vector<4x1xf32>
    %88 = arith.addf %56, %87 : vector<4x1xf32>
    %89 = arith.mulf %85, %85 : vector<4x256xf32>
    %cst_27 = arith.constant dense<0.000000e+00> : vector<4xf32>
    %90 = vector.multi_reduction <add>, %89, %cst_27 [1] : vector<4x256xf32> to vector<4xf32>
    %91 = vector.shape_cast %90 : vector<4xf32> to vector<4x1xf32>
    %92 = arith.addf %60, %91 : vector<4x1xf32>
    %c1_i32 = arith.constant 1 : i32
    %93 = tpu.dynamic_rotate %9 by %c1_i32 dim 1 : vector<4x256xf32>, i32 -> vector<4x256xf32>
    %c0_i32_28 = arith.constant 0 : i32
    %94 = vector.broadcast %c0_i32_28 : i32 to vector<1x256xi32>
    %95 = arith.cmpi eq, %1, %94 : vector<1x256xi32>
    %c255_i32 = arith.constant 255 : i32
    %96 = tpu.dynamic_rotate %9 by %c255_i32 dim 1 : vector<4x256xf32>, i32 -> vector<4x256xf32>
    %97 = vector.shape_cast %95 : vector<1x256xi1> to vector<1x256xi1>
    %98 = vector.broadcast %97 : vector<1x256xi1> to vector<4x256xi1>
    %99 = arith.select %98, %96, %93 : vector<4x256xi1>, vector<4x256xf32>
    %100 = arith.subf %7, %99 : vector<4x256xf32>
    %101 = vector.broadcast %5 : vector<1x256xf32> to vector<4x256xf32>
    %102 = arith.mulf %100, %101 : vector<4x256xf32>
    %cst_29 = arith.constant dense<0.000000e+00> : vector<4xf32>
    %103 = vector.multi_reduction <add>, %102, %cst_29 [1] : vector<4x256xf32> to vector<4xf32>
    %104 = vector.shape_cast %103 : vector<4xf32> to vector<4x1xf32>
    %105 = arith.addf %88, %104 : vector<4x1xf32>
    %106 = arith.mulf %102, %102 : vector<4x256xf32>
    %cst_30 = arith.constant dense<0.000000e+00> : vector<4xf32>
    %107 = vector.multi_reduction <add>, %106, %cst_30 [1] : vector<4x256xf32> to vector<4xf32>
    %108 = vector.shape_cast %107 : vector<4xf32> to vector<4x1xf32>
    %109 = arith.addf %92, %108 : vector<4x1xf32>
    %110 = arith.subf %7, %9 : vector<4x256xf32>
    %111 = vector.broadcast %5 : vector<1x256xf32> to vector<4x256xf32>
    %112 = arith.mulf %110, %111 : vector<4x256xf32>
    %cst_31 = arith.constant dense<0.000000e+00> : vector<4xf32>
    %113 = vector.multi_reduction <add>, %112, %cst_31 [1] : vector<4x256xf32> to vector<4xf32>
    %114 = vector.shape_cast %113 : vector<4xf32> to vector<4x1xf32>
    %115 = arith.addf %105, %114 : vector<4x1xf32>
    %116 = arith.mulf %112, %112 : vector<4x256xf32>
    %cst_32 = arith.constant dense<0.000000e+00> : vector<4xf32>
    %117 = vector.multi_reduction <add>, %116, %cst_32 [1] : vector<4x256xf32> to vector<4xf32>
    %118 = vector.shape_cast %117 : vector<4xf32> to vector<4x1xf32>
    %119 = arith.addf %109, %118 : vector<4x1xf32>
    %c255_i32_33 = arith.constant 255 : i32
    %120 = tpu.dynamic_rotate %9 by %c255_i32_33 dim 1 : vector<4x256xf32>, i32 -> vector<4x256xf32>
    %c15_i32_34 = arith.constant 15 : i32
    %121 = vector.broadcast %c15_i32_34 : i32 to vector<1x256xi32>
    %122 = arith.cmpi eq, %1, %121 : vector<1x256xi32>
    %c1_i32_35 = arith.constant 1 : i32
    %123 = tpu.dynamic_rotate %9 by %c1_i32_35 dim 1 : vector<4x256xf32>, i32 -> vector<4x256xf32>
    %124 = vector.shape_cast %122 : vector<1x256xi1> to vector<1x256xi1>
    %125 = vector.broadcast %124 : vector<1x256xi1> to vector<4x256xi1>
    %126 = arith.select %125, %123, %120 : vector<4x256xi1>, vector<4x256xf32>
    %127 = arith.subf %7, %126 : vector<4x256xf32>
    %128 = vector.broadcast %5 : vector<1x256xf32> to vector<4x256xf32>
    %129 = arith.mulf %127, %128 : vector<4x256xf32>
    %cst_36 = arith.constant dense<0.000000e+00> : vector<4xf32>
    %130 = vector.multi_reduction <add>, %129, %cst_36 [1] : vector<4x256xf32> to vector<4xf32>
    %131 = vector.shape_cast %130 : vector<4xf32> to vector<4x1xf32>
    %132 = arith.addf %115, %131 : vector<4x1xf32>
    %133 = arith.mulf %129, %129 : vector<4x256xf32>
    %cst_37 = arith.constant dense<0.000000e+00> : vector<4xf32>
    %134 = vector.multi_reduction <add>, %133, %cst_37 [1] : vector<4x256xf32> to vector<4xf32>
    %135 = vector.shape_cast %134 : vector<4xf32> to vector<4x1xf32>
    %136 = arith.addf %119, %135 : vector<4x1xf32>
    %c241_i32_38 = arith.constant 241 : i32
    %137 = tpu.dynamic_rotate %9 by %c241_i32_38 dim 1 : vector<4x256xf32>, i32 -> vector<4x256xf32>
    %c0_i32_39 = arith.constant 0 : i32
    %138 = vector.broadcast %c0_i32_39 : i32 to vector<1x256xi32>
    %139 = arith.cmpi eq, %1, %138 : vector<1x256xi32>
    %c239_i32_40 = arith.constant 239 : i32
    %140 = tpu.dynamic_rotate %9 by %c239_i32_40 dim 1 : vector<4x256xf32>, i32 -> vector<4x256xf32>
    %141 = vector.shape_cast %139 : vector<1x256xi1> to vector<1x256xi1>
    %142 = vector.broadcast %141 : vector<1x256xi1> to vector<4x256xi1>
    %143 = arith.select %142, %140, %137 : vector<4x256xi1>, vector<4x256xf32>
    %c15_i32_41 = arith.constant 15 : i32
    %144 = vector.broadcast %c15_i32_41 : i32 to vector<1x256xi32>
    %145 = arith.cmpi eq, %0, %144 : vector<1x256xi32>
    %c17_i32_42 = arith.constant 17 : i32
    %146 = tpu.dynamic_rotate %9 by %c17_i32_42 dim 1 : vector<4x256xf32>, i32 -> vector<4x256xf32>
    %147 = vector.shape_cast %145 : vector<1x256xi1> to vector<1x256xi1>
    %148 = vector.broadcast %147 : vector<1x256xi1> to vector<4x256xi1>
    %149 = arith.select %148, %146, %143 : vector<4x256xi1>, vector<4x256xf32>
    %c15_i32_43 = arith.constant 15 : i32
    %150 = vector.broadcast %c15_i32_43 : i32 to vector<1x256xi32>
    %151 = arith.cmpi eq, %0, %150 : vector<1x256xi32>
    %c0_i32_44 = arith.constant 0 : i32
    %152 = vector.broadcast %c0_i32_44 : i32 to vector<1x256xi32>
    %153 = arith.cmpi eq, %1, %152 : vector<1x256xi32>
    %154 = arith.andi %151, %153 : vector<1x256xi1>
    %c15_i32_45 = arith.constant 15 : i32
    %155 = tpu.dynamic_rotate %9 by %c15_i32_45 dim 1 : vector<4x256xf32>, i32 -> vector<4x256xf32>
    %156 = vector.shape_cast %154 : vector<1x256xi1> to vector<1x256xi1>
    %157 = vector.broadcast %156 : vector<1x256xi1> to vector<4x256xi1>
    %158 = arith.select %157, %155, %149 : vector<4x256xi1>, vector<4x256xf32>
    %159 = arith.subf %7, %158 : vector<4x256xf32>
    %160 = vector.broadcast %5 : vector<1x256xf32> to vector<4x256xf32>
    %161 = arith.mulf %159, %160 : vector<4x256xf32>
    %cst_46 = arith.constant dense<0.000000e+00> : vector<4xf32>
    %162 = vector.multi_reduction <add>, %161, %cst_46 [1] : vector<4x256xf32> to vector<4xf32>
    %163 = vector.shape_cast %162 : vector<4xf32> to vector<4x1xf32>
    %164 = arith.addf %132, %163 : vector<4x1xf32>
    %165 = arith.mulf %161, %161 : vector<4x256xf32>
    %cst_47 = arith.constant dense<0.000000e+00> : vector<4xf32>
    %166 = vector.multi_reduction <add>, %165, %cst_47 [1] : vector<4x256xf32> to vector<4xf32>
    %167 = vector.shape_cast %166 : vector<4xf32> to vector<4x1xf32>
    %168 = arith.addf %136, %167 : vector<4x1xf32>
    %c240_i32_48 = arith.constant 240 : i32
    %169 = tpu.dynamic_rotate %9 by %c240_i32_48 dim 1 : vector<4x256xf32>, i32 -> vector<4x256xf32>
    %c15_i32_49 = arith.constant 15 : i32
    %170 = vector.broadcast %c15_i32_49 : i32 to vector<1x256xi32>
    %171 = arith.cmpi eq, %0, %170 : vector<1x256xi32>
    %c16_i32_50 = arith.constant 16 : i32
    %172 = tpu.dynamic_rotate %9 by %c16_i32_50 dim 1 : vector<4x256xf32>, i32 -> vector<4x256xf32>
    %173 = vector.shape_cast %171 : vector<1x256xi1> to vector<1x256xi1>
    %174 = vector.broadcast %173 : vector<1x256xi1> to vector<4x256xi1>
    %175 = arith.select %174, %172, %169 : vector<4x256xi1>, vector<4x256xf32>
    %176 = arith.subf %7, %175 : vector<4x256xf32>
    %177 = vector.broadcast %5 : vector<1x256xf32> to vector<4x256xf32>
    %178 = arith.mulf %176, %177 : vector<4x256xf32>
    %cst_51 = arith.constant dense<0.000000e+00> : vector<4xf32>
    %179 = vector.multi_reduction <add>, %178, %cst_51 [1] : vector<4x256xf32> to vector<4xf32>
    %180 = vector.shape_cast %179 : vector<4xf32> to vector<4x1xf32>
    %181 = arith.addf %164, %180 : vector<4x1xf32>
    %182 = arith.mulf %178, %178 : vector<4x256xf32>
    %cst_52 = arith.constant dense<0.000000e+00> : vector<4xf32>
    %183 = vector.multi_reduction <add>, %182, %cst_52 [1] : vector<4x256xf32> to vector<4xf32>
    %184 = vector.shape_cast %183 : vector<4xf32> to vector<4x1xf32>
    %185 = arith.addf %168, %184 : vector<4x1xf32>
    %c239_i32_53 = arith.constant 239 : i32
    %186 = tpu.dynamic_rotate %9 by %c239_i32_53 dim 1 : vector<4x256xf32>, i32 -> vector<4x256xf32>
    %c15_i32_54 = arith.constant 15 : i32
    %187 = vector.broadcast %c15_i32_54 : i32 to vector<1x256xi32>
    %188 = arith.cmpi eq, %1, %187 : vector<1x256xi32>
    %c241_i32_55 = arith.constant 241 : i32
    %189 = tpu.dynamic_rotate %9 by %c241_i32_55 dim 1 : vector<4x256xf32>, i32 -> vector<4x256xf32>
    %190 = vector.shape_cast %188 : vector<1x256xi1> to vector<1x256xi1>
    %191 = vector.broadcast %190 : vector<1x256xi1> to vector<4x256xi1>
    %192 = arith.select %191, %189, %186 : vector<4x256xi1>, vector<4x256xf32>
    %c15_i32_56 = arith.constant 15 : i32
    %193 = vector.broadcast %c15_i32_56 : i32 to vector<1x256xi32>
    %194 = arith.cmpi eq, %0, %193 : vector<1x256xi32>
    %c15_i32_57 = arith.constant 15 : i32
    %195 = tpu.dynamic_rotate %9 by %c15_i32_57 dim 1 : vector<4x256xf32>, i32 -> vector<4x256xf32>
    %196 = vector.shape_cast %194 : vector<1x256xi1> to vector<1x256xi1>
    %197 = vector.broadcast %196 : vector<1x256xi1> to vector<4x256xi1>
    %198 = arith.select %197, %195, %192 : vector<4x256xi1>, vector<4x256xf32>
    %c15_i32_58 = arith.constant 15 : i32
    %199 = vector.broadcast %c15_i32_58 : i32 to vector<1x256xi32>
    %200 = arith.cmpi eq, %0, %199 : vector<1x256xi32>
    %c15_i32_59 = arith.constant 15 : i32
    %201 = vector.broadcast %c15_i32_59 : i32 to vector<1x256xi32>
    %202 = arith.cmpi eq, %1, %201 : vector<1x256xi32>
    %203 = arith.andi %200, %202 : vector<1x256xi1>
    %c17_i32_60 = arith.constant 17 : i32
    %204 = tpu.dynamic_rotate %9 by %c17_i32_60 dim 1 : vector<4x256xf32>, i32 -> vector<4x256xf32>
    %205 = vector.shape_cast %203 : vector<1x256xi1> to vector<1x256xi1>
    %206 = vector.broadcast %205 : vector<1x256xi1> to vector<4x256xi1>
    %207 = arith.select %206, %204, %198 : vector<4x256xi1>, vector<4x256xf32>
    %208 = arith.subf %7, %207 : vector<4x256xf32>
    %209 = vector.broadcast %5 : vector<1x256xf32> to vector<4x256xf32>
    %210 = arith.mulf %208, %209 : vector<4x256xf32>
    %cst_61 = arith.constant dense<0.000000e+00> : vector<4xf32>
    %211 = vector.multi_reduction <add>, %210, %cst_61 [1] : vector<4x256xf32> to vector<4xf32>
    %212 = vector.shape_cast %211 : vector<4xf32> to vector<4x1xf32>
    %213 = arith.addf %181, %212 : vector<4x1xf32>
    %214 = arith.mulf %210, %210 : vector<4x256xf32>
    %cst_62 = arith.constant dense<0.000000e+00> : vector<4xf32>
    %215 = vector.multi_reduction <add>, %214, %cst_62 [1] : vector<4x256xf32> to vector<4xf32>
    %216 = vector.shape_cast %215 : vector<4xf32> to vector<4x1xf32>
    %217 = arith.addf %185, %216 : vector<4x1xf32>
    %c0_63 = arith.constant 0 : index
    %c0_64 = arith.constant 0 : index
    %c0_65 = arith.constant 0 : index
    %218 = vector.load %arg4[%c0_63, %c0_64, %c0_65] : memref<1x4x2xf32, #tpu.memory_space<vmem>>, vector<1x4x1xf32>
    %219 = vector.shape_cast %218 : vector<1x4x1xf32> to vector<4x1xf32>
    %220 = vector.shape_cast %213 : vector<4x1xf32> to vector<1x4x1xf32>
    tpu.vector_store %arg4[%c0_63, %c0_64, %c0_65], %220 {strides = array<i32>} : memref<1x4x2xf32, #tpu.memory_space<vmem>>, vector<1x4x1xf32>,
    %c0_66 = arith.constant 0 : index
    %c0_67 = arith.constant 0 : index
    %c1_68 = arith.constant 1 : index
    %221 = vector.load %arg4[%c0_66, %c0_67, %c1_68] : memref<1x4x2xf32, #tpu.memory_space<vmem>>, vector<1x4x1xf32>
    %222 = vector.shape_cast %221 : vector<1x4x1xf32> to vector<4x1xf32>
    %223 = vector.shape_cast %217 : vector<4x1xf32> to vector<1x4x1xf32>
    tpu.vector_store %arg4[%c0_66, %c0_67, %c1_68], %223 {strides = array<i32>} : memref<1x4x2xf32, #tpu.memory_space<vmem>>, vector<1x4x1xf32>,
    return
  }
  func.func @transform_0(%arg0: i32) -> (i32, i32, i32) {
    %c0_i32 = arith.constant 0 : i32
    %c0_i32_0 = arith.constant 0 : i32
    %c0_i32_1 = arith.constant 0 : i32
    return %arg0, %c0_i32, %c0_i32_0 : i32, i32, i32
  }
  func.func @transform_1(%arg0: i32) -> (i32, i32, i32) {
    %c0_i32 = arith.constant 0 : i32
    %c0_i32_0 = arith.constant 0 : i32
    %c0_i32_1 = arith.constant 0 : i32
    return %arg0, %c0_i32, %c0_i32_0 : i32, i32, i32
  }
  func.func @transform_2(%arg0: i32) -> (i32, i32) {
    %c0_i32 = arith.constant 0 : i32
    %c0_i32_0 = arith.constant 0 : i32
    %c0_i32_1 = arith.constant 0 : i32
    return %c0_i32, %c0_i32_0 : i32, i32
  }
  func.func @transform_3(%arg0: i32) -> (i32, i32, i32) {
    %c0_i32 = arith.constant 0 : i32
    %c0_i32_0 = arith.constant 0 : i32
    %c0_i32_1 = arith.constant 0 : i32
    return %arg0, %c0_i32, %c0_i32_0 : i32, i32, i32
  }
}

module attributes {stable_mosaic.version = 11 : i64} {
  func.func @_bn_mm_res_kernel(%arg0: i32, %arg1: i32, %arg2: memref<1x16x256xf32, #tpu.memory_space<vmem>>, %arg3: memref<16x1xf32, #tpu.memory_space<vmem>>, %arg4: memref<16x1xf32, #tpu.memory_space<vmem>>, %arg5: memref<16x16xbf16, #tpu.memory_space<vmem>>, %arg6: memref<16x1xf32, #tpu.memory_space<vmem>>, %arg7: memref<1x16x256xf32, #tpu.memory_space<vmem>>, %arg8: memref<1x16x256xf32, #tpu.memory_space<vmem>>) attributes {dimension_semantics = [#tpu.dimension_semantics<parallel>, #tpu.dimension_semantics<parallel>], iteration_bounds = array<i64: 2, 1>, scalar_prefetch = 0 : i64, scratch_operands = 0 : i64, tpu.core_type = #tpu.core_type<tc>, window_params = [{transform_indices = @transform_0, window_bounds = array<i64: 1, 16, 256>}, {pipeline_mode = #tpu.pipeline_mode<synchronous>, transform_indices = @transform_1, window_bounds = array<i64: 16, 1>}, {pipeline_mode = #tpu.pipeline_mode<synchronous>, transform_indices = @transform_2, window_bounds = array<i64: 16, 1>}, {pipeline_mode = #tpu.pipeline_mode<synchronous>, transform_indices = @transform_3, window_bounds = array<i64: 16, 16>}, {pipeline_mode = #tpu.pipeline_mode<synchronous>, transform_indices = @transform_4, window_bounds = array<i64: 16, 1>}, {transform_indices = @transform_5, window_bounds = array<i64: 1, 16, 256>}, {transform_indices = @transform_6, window_bounds = array<i64: 1, 16, 256>}]} {
    %c0 = arith.constant 0 : index
    %c0_0 = arith.constant 0 : index
    %c0_1 = arith.constant 0 : index
    %0 = vector.load %arg2[%c0, %c0_0, %c0_1] : memref<1x16x256xf32, #tpu.memory_space<vmem>>, vector<1x16x256xf32>
    %1 = vector.shape_cast %0 : vector<1x16x256xf32> to vector<16x256xf32>
    %c0_2 = arith.constant 0 : index
    %c0_3 = arith.constant 0 : index
    %2 = vector.load %arg3[%c0_2, %c0_3] : memref<16x1xf32, #tpu.memory_space<vmem>>, vector<16x1xf32>
    %3 = vector.broadcast %2 : vector<16x1xf32> to vector<16x256xf32>
    %4 = arith.mulf %1, %3 : vector<16x256xf32>
    %c0_4 = arith.constant 0 : index
    %c0_5 = arith.constant 0 : index
    %5 = vector.load %arg4[%c0_4, %c0_5] : memref<16x1xf32, #tpu.memory_space<vmem>>, vector<16x1xf32>
    %6 = vector.broadcast %5 : vector<16x1xf32> to vector<16x256xf32>
    %7 = arith.addf %4, %6 : vector<16x256xf32>
    %cst = arith.constant 0.000000e+00 : f32
    %8 = vector.broadcast %cst : f32 to vector<16x256xf32>
    %9 = arith.maximumf %7, %8 : vector<16x256xf32>
    %c0_6 = arith.constant 0 : index
    %c0_7 = arith.constant 0 : index
    %10 = vector.load %arg5[%c0_6, %c0_7] : memref<16x16xbf16, #tpu.memory_space<vmem>>, vector<16x16xbf16>
    %11 = arith.truncf %9 : vector<16x256xf32> to vector<16x256xbf16>
    %cst_8 = arith.constant dense<0.000000e+00> : vector<16x256xf32>
    %12 = tpu.matmul %10, %11, %cst_8 {dimension_numbers = #tpu.dot_dimension_numbers<[1], [0], [0], [1], [0, 0, 1, 1], [], []>} : vector<16x16xbf16>, vector<16x256xbf16>, vector<16x256xf32> -> vector<16x256xf32>
    %c0_9 = arith.constant 0 : index
    %c0_10 = arith.constant 0 : index
    %13 = vector.load %arg6[%c0_9, %c0_10] : memref<16x1xf32, #tpu.memory_space<vmem>>, vector<16x1xf32>
    %14 = vector.broadcast %13 : vector<16x1xf32> to vector<16x256xf32>
    %15 = arith.addf %12, %14 : vector<16x256xf32>
    %c0_11 = arith.constant 0 : index
    %c0_12 = arith.constant 0 : index
    %c0_13 = arith.constant 0 : index
    %16 = vector.load %arg7[%c0_11, %c0_12, %c0_13] : memref<1x16x256xf32, #tpu.memory_space<vmem>>, vector<1x16x256xf32>
    %17 = vector.shape_cast %16 : vector<1x16x256xf32> to vector<16x256xf32>
    %18 = arith.addf %15, %17 : vector<16x256xf32>
    %c0_14 = arith.constant 0 : index
    %c0_15 = arith.constant 0 : index
    %c0_16 = arith.constant 0 : index
    %19 = vector.load %arg8[%c0_14, %c0_15, %c0_16] : memref<1x16x256xf32, #tpu.memory_space<vmem>>, vector<1x16x256xf32>
    %20 = vector.shape_cast %19 : vector<1x16x256xf32> to vector<16x256xf32>
    %21 = vector.shape_cast %18 : vector<16x256xf32> to vector<1x16x256xf32>
    tpu.vector_store %arg8[%c0_14, %c0_15, %c0_16], %21 {strides = array<i32>} : memref<1x16x256xf32, #tpu.memory_space<vmem>>, vector<1x16x256xf32>,
    return
  }
  func.func @transform_0(%arg0: i32, %arg1: i32) -> (i32, i32, i32) {
    %c0_i32 = arith.constant 0 : i32
    %c0_i32_0 = arith.constant 0 : i32
    return %arg0, %c0_i32, %arg1 : i32, i32, i32
  }
  func.func @transform_1(%arg0: i32, %arg1: i32) -> (i32, i32) {
    %c0_i32 = arith.constant 0 : i32
    %c0_i32_0 = arith.constant 0 : i32
    %c0_i32_1 = arith.constant 0 : i32
    return %c0_i32, %c0_i32_0 : i32, i32
  }
  func.func @transform_2(%arg0: i32, %arg1: i32) -> (i32, i32) {
    %c0_i32 = arith.constant 0 : i32
    %c0_i32_0 = arith.constant 0 : i32
    %c0_i32_1 = arith.constant 0 : i32
    return %c0_i32, %c0_i32_0 : i32, i32
  }
  func.func @transform_3(%arg0: i32, %arg1: i32) -> (i32, i32) {
    %c0_i32 = arith.constant 0 : i32
    %c0_i32_0 = arith.constant 0 : i32
    %c0_i32_1 = arith.constant 0 : i32
    return %c0_i32, %c0_i32_0 : i32, i32
  }
  func.func @transform_4(%arg0: i32, %arg1: i32) -> (i32, i32) {
    %c0_i32 = arith.constant 0 : i32
    %c0_i32_0 = arith.constant 0 : i32
    %c0_i32_1 = arith.constant 0 : i32
    return %c0_i32, %c0_i32_0 : i32, i32
  }
  func.func @transform_5(%arg0: i32, %arg1: i32) -> (i32, i32, i32) {
    %c0_i32 = arith.constant 0 : i32
    %c0_i32_0 = arith.constant 0 : i32
    return %arg0, %c0_i32, %arg1 : i32, i32, i32
  }
  func.func @transform_6(%arg0: i32, %arg1: i32) -> (i32, i32, i32) {
    %c0_i32 = arith.constant 0 : i32
    %c0_i32_0 = arith.constant 0 : i32
    return %arg0, %c0_i32, %arg1 : i32, i32, i32
  }
}

module attributes {stable_mosaic.version = 11 : i64} {
  func.func @_att_convw1_kernel(%arg0: i32, %arg1: memref<1x4x256xf32, #tpu.memory_space<vmem>>, %arg2: memref<1x4x256xf32, #tpu.memory_space<vmem>>, %arg3: memref<9x2x256xf32, #tpu.memory_space<vmem>>, %arg4: memref<2x256xi32, #tpu.memory_space<vmem>>, %arg5: memref<4x1xf32, #tpu.memory_space<vmem>>, %arg6: memref<4x1xf32, #tpu.memory_space<vmem>>, %arg7: memref<2x1xf32, #tpu.memory_space<vmem>>, %arg8: memref<2x1xf32, #tpu.memory_space<vmem>>, %arg9: memref<4x4xbf16, #tpu.memory_space<vmem>>, %arg10: memref<4x2xf32, #tpu.memory_space<vmem>>, %arg11: memref<1x9x4x256xbf16, #tpu.memory_space<vmem>>, %arg12: memref<1x4x2xf32, #tpu.memory_space<vmem>>) attributes {dimension_semantics = [#tpu.dimension_semantics<parallel>], iteration_bounds = array<i64: 2>, scalar_prefetch = 0 : i64, scratch_operands = 0 : i64, tpu.core_type = #tpu.core_type<tc>, window_params = [{transform_indices = @transform_0, window_bounds = array<i64: 1, 4, 256>}, {transform_indices = @transform_1, window_bounds = array<i64: 1, 4, 256>}, {pipeline_mode = #tpu.pipeline_mode<synchronous>, transform_indices = @transform_2, window_bounds = array<i64: 9, 2, 256>}, {pipeline_mode = #tpu.pipeline_mode<synchronous>, transform_indices = @transform_3, window_bounds = array<i64: 2, 256>}, {pipeline_mode = #tpu.pipeline_mode<synchronous>, transform_indices = @transform_4, window_bounds = array<i64: 4, 1>}, {pipeline_mode = #tpu.pipeline_mode<synchronous>, transform_indices = @transform_5, window_bounds = array<i64: 4, 1>}, {pipeline_mode = #tpu.pipeline_mode<synchronous>, transform_indices = @transform_6, window_bounds = array<i64: 2, 1>}, {pipeline_mode = #tpu.pipeline_mode<synchronous>, transform_indices = @transform_7, window_bounds = array<i64: 2, 1>}, {pipeline_mode = #tpu.pipeline_mode<synchronous>, transform_indices = @transform_8, window_bounds = array<i64: 4, 4>}, {pipeline_mode = #tpu.pipeline_mode<synchronous>, transform_indices = @transform_9, window_bounds = array<i64: 4, 2>}, {transform_indices = @transform_10, window_bounds = array<i64: 1, 9, 4, 256>}, {transform_indices = @transform_11, window_bounds = array<i64: 1, 4, 2>}]} {
    %c0 = arith.constant 0 : index
    %c0_0 = arith.constant 0 : index
    %0 = vector.load %arg4[%c0, %c0_0] : memref<2x256xi32, #tpu.memory_space<vmem>>, vector<1x256xi32>
    %c1 = arith.constant 1 : index
    %c0_1 = arith.constant 0 : index
    %1 = vector.load %arg4[%c1, %c0_1] : memref<2x256xi32, #tpu.memory_space<vmem>>, vector<1x256xi32>
    %c0_i32 = arith.constant 0 : i32
    %2 = vector.broadcast %c0_i32 : i32 to vector<1x256xi32>
    %3 = arith.cmpi sge, %0, %2 : vector<1x256xi32>
    %4 = arith.extui %3 : vector<1x256xi1> to vector<1x256xi32>
    %5 = arith.sitofp %4 : vector<1x256xi32> to vector<1x256xf32>
    %c0_2 = arith.constant 0 : index
    %c0_3 = arith.constant 0 : index
    %c0_4 = arith.constant 0 : index
    %6 = vector.load %arg1[%c0_2, %c0_3, %c0_4] : memref<1x4x256xf32, #tpu.memory_space<vmem>>, vector<1x4x256xf32>
    %7 = vector.shape_cast %6 : vector<1x4x256xf32> to vector<4x256xf32>
    %c0_5 = arith.constant 0 : index
    %c0_6 = arith.constant 0 : index
    %c0_7 = arith.constant 0 : index
    %8 = vector.load %arg2[%c0_5, %c0_6, %c0_7] : memref<1x4x256xf32, #tpu.memory_space<vmem>>, vector<1x4x256xf32>
    %9 = vector.shape_cast %8 : vector<1x4x256xf32> to vector<4x256xf32>
    %c0_8 = arith.constant 0 : index
    %c0_9 = arith.constant 0 : index
    %10 = vector.load %arg9[%c0_8, %c0_9] : memref<4x4xbf16, #tpu.memory_space<vmem>>, vector<4x4xbf16>
    %c0_10 = arith.constant 0 : index
    %c0_11 = arith.constant 0 : index
    %11 = vector.load %arg10[%c0_10, %c0_11] : memref<4x2xf32, #tpu.memory_space<vmem>>, vector<4x2xf32>
    %cst = arith.constant 0.000000e+00 : f32
    %12 = vector.broadcast %cst : f32 to vector<4x1xf32>
    %cst_12 = arith.constant 0.000000e+00 : f32
    %13 = vector.broadcast %cst_12 : f32 to vector<4x1xf32>
    %c17_i32 = arith.constant 17 : i32
    %14 = tpu.dynamic_rotate %9 by %c17_i32 dim 1 : vector<4x256xf32>, i32 -> vector<4x256xf32>
    %c0_i32_13 = arith.constant 0 : i32
    %15 = vector.broadcast %c0_i32_13 : i32 to vector<1x256xi32>
    %16 = arith.cmpi eq, %1, %15 : vector<1x256xi32>
    %c15_i32 = arith.constant 15 : i32
    %17 = tpu.dynamic_rotate %9 by %c15_i32 dim 1 : vector<4x256xf32>, i32 -> vector<4x256xf32>
    %18 = vector.shape_cast %16 : vector<1x256xi1> to vector<1x256xi1>
    %19 = vector.broadcast %18 : vector<1x256xi1> to vector<4x256xi1>
    %20 = arith.select %19, %17, %14 : vector<4x256xi1>, vector<4x256xf32>
    %c0_i32_14 = arith.constant 0 : i32
    %21 = vector.broadcast %c0_i32_14 : i32 to vector<1x256xi32>
    %22 = arith.cmpi eq, %0, %21 : vector<1x256xi32>
    %c241_i32 = arith.constant 241 : i32
    %23 = tpu.dynamic_rotate %9 by %c241_i32 dim 1 : vector<4x256xf32>, i32 -> vector<4x256xf32>
    %24 = vector.shape_cast %22 : vector<1x256xi1> to vector<1x256xi1>
    %25 = vector.broadcast %24 : vector<1x256xi1> to vector<4x256xi1>
    %26 = arith.select %25, %23, %20 : vector<4x256xi1>, vector<4x256xf32>
    %c0_i32_15 = arith.constant 0 : i32
    %27 = vector.broadcast %c0_i32_15 : i32 to vector<1x256xi32>
    %28 = arith.cmpi eq, %0, %27 : vector<1x256xi32>
    %c0_i32_16 = arith.constant 0 : i32
    %29 = vector.broadcast %c0_i32_16 : i32 to vector<1x256xi32>
    %30 = arith.cmpi eq, %1, %29 : vector<1x256xi32>
    %31 = arith.andi %28, %30 : vector<1x256xi1>
    %c239_i32 = arith.constant 239 : i32
    %32 = tpu.dynamic_rotate %9 by %c239_i32 dim 1 : vector<4x256xf32>, i32 -> vector<4x256xf32>
    %33 = vector.shape_cast %31 : vector<1x256xi1> to vector<1x256xi1>
    %34 = vector.broadcast %33 : vector<1x256xi1> to vector<4x256xi1>
    %35 = arith.select %34, %32, %26 : vector<4x256xi1>, vector<4x256xf32>
    %36 = arith.subf %7, %35 : vector<4x256xf32>
    %c0_17 = arith.constant 0 : index
    %c0_18 = arith.constant 0 : index
    %37 = vector.load %arg5[%c0_17, %c0_18] : memref<4x1xf32, #tpu.memory_space<vmem>>, vector<4x1xf32>
    %38 = vector.broadcast %37 : vector<4x1xf32> to vector<4x256xf32>
    %39 = arith.mulf %36, %38 : vector<4x256xf32>
    %c0_19 = arith.constant 0 : index
    %c0_20 = arith.constant 0 : index
    %40 = vector.load %arg6[%c0_19, %c0_20] : memref<4x1xf32, #tpu.memory_space<vmem>>, vector<4x1xf32>
    %41 = vector.broadcast %40 : vector<4x1xf32> to vector<4x256xf32>
    %42 = arith.addf %39, %41 : vector<4x256xf32>
    %cst_21 = arith.constant 0.000000e+00 : f32
    %43 = vector.broadcast %cst_21 : f32 to vector<4x256xf32>
    %44 = arith.maximumf %42, %43 : vector<4x256xf32>
    %c0_22 = arith.constant 0 : index
    %c0_23 = arith.constant 0 : index
    %c0_24 = arith.constant 0 : index
    %45 = vector.load %arg3[%c0_22, %c0_23, %c0_24] : memref<9x2x256xf32, #tpu.memory_space<vmem>>, vector<1x2x256xf32>
    %46 = vector.shape_cast %45 : vector<1x2x256xf32> to vector<2x256xf32>
    %c0_25 = arith.constant 0 : index
    %c0_26 = arith.constant 0 : index
    %47 = vector.load %arg7[%c0_25, %c0_26] : memref<2x1xf32, #tpu.memory_space<vmem>>, vector<2x1xf32>
    %48 = vector.broadcast %47 : vector<2x1xf32> to vector<2x256xf32>
    %49 = arith.mulf %46, %48 : vector<2x256xf32>
    %c0_27 = arith.constant 0 : index
    %c0_28 = arith.constant 0 : index
    %50 = vector.load %arg8[%c0_27, %c0_28] : memref<2x1xf32, #tpu.memory_space<vmem>>, vector<2x1xf32>
    %51 = vector.broadcast %50 : vector<2x1xf32> to vector<2x256xf32>
    %52 = arith.addf %49, %51 : vector<2x256xf32>
    %cst_29 = arith.constant 0.000000e+00 : f32
    %53 = vector.broadcast %cst_29 : f32 to vector<2x256xf32>
    %54 = arith.maximumf %52, %53 : vector<2x256xf32>
    %55 = arith.truncf %44 : vector<4x256xf32> to vector<4x256xbf16>
    %cst_30 = arith.constant dense<0.000000e+00> : vector<4x256xf32>
    %56 = tpu.matmul %10, %55, %cst_30 {dimension_numbers = #tpu.dot_dimension_numbers<[1], [0], [0], [1], [0, 0, 1, 1], [], []>} : vector<4x4xbf16>, vector<4x256xbf16>, vector<4x256xf32> -> vector<4x256xf32>
    %57 = vector.extract_strided_slice %11 {offsets = [0, 0], sizes = [4, 1], strides = [1, 1]} : vector<4x2xf32> to vector<4x1xf32>
    %58 = vector.extract_strided_slice %54 {offsets = [0, 0], sizes = [1, 256], strides = [1, 1]} : vector<2x256xf32> to vector<1x256xf32>
    %59 = vector.broadcast %57 : vector<4x1xf32> to vector<4x256xf32>
    %60 = vector.broadcast %58 : vector<1x256xf32> to vector<4x256xf32>
    %61 = arith.mulf %59, %60 : vector<4x256xf32>
    %62 = arith.addf %56, %61 : vector<4x256xf32>
    %63 = vector.extract_strided_slice %11 {offsets = [0, 1], sizes = [4, 1], strides = [1, 1]} : vector<4x2xf32> to vector<4x1xf32>
    %64 = vector.extract_strided_slice %54 {offsets = [1, 0], sizes = [1, 256], strides = [1, 1]} : vector<2x256xf32> to vector<1x256xf32>
    %65 = vector.broadcast %63 : vector<4x1xf32> to vector<4x256xf32>
    %66 = vector.broadcast %64 : vector<1x256xf32> to vector<4x256xf32>
    %67 = arith.mulf %65, %66 : vector<4x256xf32>
    %68 = arith.addf %62, %67 : vector<4x256xf32>
    %69 = arith.truncf %68 : vector<4x256xf32> to vector<4x256xbf16>
    %c0_31 = arith.constant 0 : index
    %c0_32 = arith.constant 0 : index
    %c0_33 = arith.constant 0 : index
    %c0_34 = arith.constant 0 : index
    %70 = vector.load %arg11[%c0_31, %c0_32, %c0_33, %c0_34] : memref<1x9x4x256xbf16, #tpu.memory_space<vmem>>, vector<1x1x4x256xbf16>
    %71 = vector.shape_cast %70 : vector<1x1x4x256xbf16> to vector<4x256xbf16>
    %72 = vector.shape_cast %69 : vector<4x256xbf16> to vector<1x1x4x256xbf16>
    tpu.vector_store %arg11[%c0_31, %c0_32, %c0_33, %c0_34], %72 {strides = array<i32>} : memref<1x9x4x256xbf16, #tpu.memory_space<vmem>>, vector<1x1x4x256xbf16>,
    %73 = vector.broadcast %5 : vector<1x256xf32> to vector<4x256xf32>
    %74 = arith.mulf %68, %73 : vector<4x256xf32>
    %cst_35 = arith.constant dense<0.000000e+00> : vector<4xf32>
    %75 = vector.multi_reduction <add>, %74, %cst_35 [1] : vector<4x256xf32> to vector<4xf32>
    %76 = vector.shape_cast %75 : vector<4xf32> to vector<4x1xf32>
    %77 = arith.addf %12, %76 : vector<4x1xf32>
    %78 = arith.mulf %74, %74 : vector<4x256xf32>
    %cst_36 = arith.constant dense<0.000000e+00> : vector<4xf32>
    %79 = vector.multi_reduction <add>, %78, %cst_36 [1] : vector<4x256xf32> to vector<4xf32>
    %80 = vector.shape_cast %79 : vector<4xf32> to vector<4x1xf32>
    %81 = arith.addf %13, %80 : vector<4x1xf32>
    %c16_i32 = arith.constant 16 : i32
    %82 = tpu.dynamic_rotate %9 by %c16_i32 dim 1 : vector<4x256xf32>, i32 -> vector<4x256xf32>
    %c0_i32_37 = arith.constant 0 : i32
    %83 = vector.broadcast %c0_i32_37 : i32 to vector<1x256xi32>
    %84 = arith.cmpi eq, %0, %83 : vector<1x256xi32>
    %c240_i32 = arith.constant 240 : i32
    %85 = tpu.dynamic_rotate %9 by %c240_i32 dim 1 : vector<4x256xf32>, i32 -> vector<4x256xf32>
    %86 = vector.shape_cast %84 : vector<1x256xi1> to vector<1x256xi1>
    %87 = vector.broadcast %86 : vector<1x256xi1> to vector<4x256xi1>
    %88 = arith.select %87, %85, %82 : vector<4x256xi1>, vector<4x256xf32>
    %89 = arith.subf %7, %88 : vector<4x256xf32>
    %c0_38 = arith.constant 0 : index
    %c0_39 = arith.constant 0 : index
    %90 = vector.load %arg5[%c0_38, %c0_39] : memref<4x1xf32, #tpu.memory_space<vmem>>, vector<4x1xf32>
    %91 = vector.broadcast %90 : vector<4x1xf32> to vector<4x256xf32>
    %92 = arith.mulf %89, %91 : vector<4x256xf32>
    %c0_40 = arith.constant 0 : index
    %c0_41 = arith.constant 0 : index
    %93 = vector.load %arg6[%c0_40, %c0_41] : memref<4x1xf32, #tpu.memory_space<vmem>>, vector<4x1xf32>
    %94 = vector.broadcast %93 : vector<4x1xf32> to vector<4x256xf32>
    %95 = arith.addf %92, %94 : vector<4x256xf32>
    %cst_42 = arith.constant 0.000000e+00 : f32
    %96 = vector.broadcast %cst_42 : f32 to vector<4x256xf32>
    %97 = arith.maximumf %95, %96 : vector<4x256xf32>
    %c1_43 = arith.constant 1 : index
    %c0_44 = arith.constant 0 : index
    %c0_45 = arith.constant 0 : index
    %98 = vector.load %arg3[%c1_43, %c0_44, %c0_45] : memref<9x2x256xf32, #tpu.memory_space<vmem>>, vector<1x2x256xf32>
    %99 = vector.shape_cast %98 : vector<1x2x256xf32> to vector<2x256xf32>
    %c0_46 = arith.constant 0 : index
    %c0_47 = arith.constant 0 : index
    %100 = vector.load %arg7[%c0_46, %c0_47] : memref<2x1xf32, #tpu.memory_space<vmem>>, vector<2x1xf32>
    %101 = vector.broadcast %100 : vector<2x1xf32> to vector<2x256xf32>
    %102 = arith.mulf %99, %101 : vector<2x256xf32>
    %c0_48 = arith.constant 0 : index
    %c0_49 = arith.constant 0 : index
    %103 = vector.load %arg8[%c0_48, %c0_49] : memref<2x1xf32, #tpu.memory_space<vmem>>, vector<2x1xf32>
    %104 = vector.broadcast %103 : vector<2x1xf32> to vector<2x256xf32>
    %105 = arith.addf %102, %104 : vector<2x256xf32>
    %cst_50 = arith.constant 0.000000e+00 : f32
    %106 = vector.broadcast %cst_50 : f32 to vector<2x256xf32>
    %107 = arith.maximumf %105, %106 : vector<2x256xf32>
    %108 = arith.truncf %97 : vector<4x256xf32> to vector<4x256xbf16>
    %cst_51 = arith.constant dense<0.000000e+00> : vector<4x256xf32>
    %109 = tpu.matmul %10, %108, %cst_51 {dimension_numbers = #tpu.dot_dimension_numbers<[1], [0], [0], [1], [0, 0, 1, 1], [], []>} : vector<4x4xbf16>, vector<4x256xbf16>, vector<4x256xf32> -> vector<4x256xf32>
    %110 = vector.extract_strided_slice %11 {offsets = [0, 0], sizes = [4, 1], strides = [1, 1]} : vector<4x2xf32> to vector<4x1xf32>
    %111 = vector.extract_strided_slice %107 {offsets = [0, 0], sizes = [1, 256], strides = [1, 1]} : vector<2x256xf32> to vector<1x256xf32>
    %112 = vector.broadcast %110 : vector<4x1xf32> to vector<4x256xf32>
    %113 = vector.broadcast %111 : vector<1x256xf32> to vector<4x256xf32>
    %114 = arith.mulf %112, %113 : vector<4x256xf32>
    %115 = arith.addf %109, %114 : vector<4x256xf32>
    %116 = vector.extract_strided_slice %11 {offsets = [0, 1], sizes = [4, 1], strides = [1, 1]} : vector<4x2xf32> to vector<4x1xf32>
    %117 = vector.extract_strided_slice %107 {offsets = [1, 0], sizes = [1, 256], strides = [1, 1]} : vector<2x256xf32> to vector<1x256xf32>
    %118 = vector.broadcast %116 : vector<4x1xf32> to vector<4x256xf32>
    %119 = vector.broadcast %117 : vector<1x256xf32> to vector<4x256xf32>
    %120 = arith.mulf %118, %119 : vector<4x256xf32>
    %121 = arith.addf %115, %120 : vector<4x256xf32>
    %122 = arith.truncf %121 : vector<4x256xf32> to vector<4x256xbf16>
    %c0_52 = arith.constant 0 : index
    %c1_53 = arith.constant 1 : index
    %c0_54 = arith.constant 0 : index
    %c0_55 = arith.constant 0 : index
    %123 = vector.load %arg11[%c0_52, %c1_53, %c0_54, %c0_55] : memref<1x9x4x256xbf16, #tpu.memory_space<vmem>>, vector<1x1x4x256xbf16>
    %124 = vector.shape_cast %123 : vector<1x1x4x256xbf16> to vector<4x256xbf16>
    %125 = vector.shape_cast %122 : vector<4x256xbf16> to vector<1x1x4x256xbf16>
    tpu.vector_store %arg11[%c0_52, %c1_53, %c0_54, %c0_55], %125 {strides = array<i32>} : memref<1x9x4x256xbf16, #tpu.memory_space<vmem>>, vector<1x1x4x256xbf16>,
    %126 = vector.broadcast %5 : vector<1x256xf32> to vector<4x256xf32>
    %127 = arith.mulf %121, %126 : vector<4x256xf32>
    %cst_56 = arith.constant dense<0.000000e+00> : vector<4xf32>
    %128 = vector.multi_reduction <add>, %127, %cst_56 [1] : vector<4x256xf32> to vector<4xf32>
    %129 = vector.shape_cast %128 : vector<4xf32> to vector<4x1xf32>
    %130 = arith.addf %77, %129 : vector<4x1xf32>
    %131 = arith.mulf %127, %127 : vector<4x256xf32>
    %cst_57 = arith.constant dense<0.000000e+00> : vector<4xf32>
    %132 = vector.multi_reduction <add>, %131, %cst_57 [1] : vector<4x256xf32> to vector<4xf32>
    %133 = vector.shape_cast %132 : vector<4xf32> to vector<4x1xf32>
    %134 = arith.addf %81, %133 : vector<4x1xf32>
    %c15_i32_58 = arith.constant 15 : i32
    %135 = tpu.dynamic_rotate %9 by %c15_i32_58 dim 1 : vector<4x256xf32>, i32 -> vector<4x256xf32>
    %c15_i32_59 = arith.constant 15 : i32
    %136 = vector.broadcast %c15_i32_59 : i32 to vector<1x256xi32>
    %137 = arith.cmpi eq, %1, %136 : vector<1x256xi32>
    %c17_i32_60 = arith.constant 17 : i32
    %138 = tpu.dynamic_rotate %9 by %c17_i32_60 dim 1 : vector<4x256xf32>, i32 -> vector<4x256xf32>
    %139 = vector.shape_cast %137 : vector<1x256xi1> to vector<1x256xi1>
    %140 = vector.broadcast %139 : vector<1x256xi1> to vector<4x256xi1>
    %141 = arith.select %140, %138, %135 : vector<4x256xi1>, vector<4x256xf32>
    %c0_i32_61 = arith.constant 0 : i32
    %142 = vector.broadcast %c0_i32_61 : i32 to vector<1x256xi32>
    %143 = arith.cmpi eq, %0, %142 : vector<1x256xi32>
    %c239_i32_62 = arith.constant 239 : i32
    %144 = tpu.dynamic_rotate %9 by %c239_i32_62 dim 1 : vector<4x256xf32>, i32 -> vector<4x256xf32>
    %145 = vector.shape_cast %143 : vector<1x256xi1> to vector<1x256xi1>
    %146 = vector.broadcast %145 : vector<1x256xi1> to vector<4x256xi1>
    %147 = arith.select %146, %144, %141 : vector<4x256xi1>, vector<4x256xf32>
    %c0_i32_63 = arith.constant 0 : i32
    %148 = vector.broadcast %c0_i32_63 : i32 to vector<1x256xi32>
    %149 = arith.cmpi eq, %0, %148 : vector<1x256xi32>
    %c15_i32_64 = arith.constant 15 : i32
    %150 = vector.broadcast %c15_i32_64 : i32 to vector<1x256xi32>
    %151 = arith.cmpi eq, %1, %150 : vector<1x256xi32>
    %152 = arith.andi %149, %151 : vector<1x256xi1>
    %c241_i32_65 = arith.constant 241 : i32
    %153 = tpu.dynamic_rotate %9 by %c241_i32_65 dim 1 : vector<4x256xf32>, i32 -> vector<4x256xf32>
    %154 = vector.shape_cast %152 : vector<1x256xi1> to vector<1x256xi1>
    %155 = vector.broadcast %154 : vector<1x256xi1> to vector<4x256xi1>
    %156 = arith.select %155, %153, %147 : vector<4x256xi1>, vector<4x256xf32>
    %157 = arith.subf %7, %156 : vector<4x256xf32>
    %c0_66 = arith.constant 0 : index
    %c0_67 = arith.constant 0 : index
    %158 = vector.load %arg5[%c0_66, %c0_67] : memref<4x1xf32, #tpu.memory_space<vmem>>, vector<4x1xf32>
    %159 = vector.broadcast %158 : vector<4x1xf32> to vector<4x256xf32>
    %160 = arith.mulf %157, %159 : vector<4x256xf32>
    %c0_68 = arith.constant 0 : index
    %c0_69 = arith.constant 0 : index
    %161 = vector.load %arg6[%c0_68, %c0_69] : memref<4x1xf32, #tpu.memory_space<vmem>>, vector<4x1xf32>
    %162 = vector.broadcast %161 : vector<4x1xf32> to vector<4x256xf32>
    %163 = arith.addf %160, %162 : vector<4x256xf32>
    %cst_70 = arith.constant 0.000000e+00 : f32
    %164 = vector.broadcast %cst_70 : f32 to vector<4x256xf32>
    %165 = arith.maximumf %163, %164 : vector<4x256xf32>
    %c2 = arith.constant 2 : index
    %c0_71 = arith.constant 0 : index
    %c0_72 = arith.constant 0 : index
    %166 = vector.load %arg3[%c2, %c0_71, %c0_72] : memref<9x2x256xf32, #tpu.memory_space<vmem>>, vector<1x2x256xf32>
    %167 = vector.shape_cast %166 : vector<1x2x256xf32> to vector<2x256xf32>
    %c0_73 = arith.constant 0 : index
    %c0_74 = arith.constant 0 : index
    %168 = vector.load %arg7[%c0_73, %c0_74] : memref<2x1xf32, #tpu.memory_space<vmem>>, vector<2x1xf32>
    %169 = vector.broadcast %168 : vector<2x1xf32> to vector<2x256xf32>
    %170 = arith.mulf %167, %169 : vector<2x256xf32>
    %c0_75 = arith.constant 0 : index
    %c0_76 = arith.constant 0 : index
    %171 = vector.load %arg8[%c0_75, %c0_76] : memref<2x1xf32, #tpu.memory_space<vmem>>, vector<2x1xf32>
    %172 = vector.broadcast %171 : vector<2x1xf32> to vector<2x256xf32>
    %173 = arith.addf %170, %172 : vector<2x256xf32>
    %cst_77 = arith.constant 0.000000e+00 : f32
    %174 = vector.broadcast %cst_77 : f32 to vector<2x256xf32>
    %175 = arith.maximumf %173, %174 : vector<2x256xf32>
    %176 = arith.truncf %165 : vector<4x256xf32> to vector<4x256xbf16>
    %cst_78 = arith.constant dense<0.000000e+00> : vector<4x256xf32>
    %177 = tpu.matmul %10, %176, %cst_78 {dimension_numbers = #tpu.dot_dimension_numbers<[1], [0], [0], [1], [0, 0, 1, 1], [], []>} : vector<4x4xbf16>, vector<4x256xbf16>, vector<4x256xf32> -> vector<4x256xf32>
    %178 = vector.extract_strided_slice %11 {offsets = [0, 0], sizes = [4, 1], strides = [1, 1]} : vector<4x2xf32> to vector<4x1xf32>
    %179 = vector.extract_strided_slice %175 {offsets = [0, 0], sizes = [1, 256], strides = [1, 1]} : vector<2x256xf32> to vector<1x256xf32>
    %180 = vector.broadcast %178 : vector<4x1xf32> to vector<4x256xf32>
    %181 = vector.broadcast %179 : vector<1x256xf32> to vector<4x256xf32>
    %182 = arith.mulf %180, %181 : vector<4x256xf32>
    %183 = arith.addf %177, %182 : vector<4x256xf32>
    %184 = vector.extract_strided_slice %11 {offsets = [0, 1], sizes = [4, 1], strides = [1, 1]} : vector<4x2xf32> to vector<4x1xf32>
    %185 = vector.extract_strided_slice %175 {offsets = [1, 0], sizes = [1, 256], strides = [1, 1]} : vector<2x256xf32> to vector<1x256xf32>
    %186 = vector.broadcast %184 : vector<4x1xf32> to vector<4x256xf32>
    %187 = vector.broadcast %185 : vector<1x256xf32> to vector<4x256xf32>
    %188 = arith.mulf %186, %187 : vector<4x256xf32>
    %189 = arith.addf %183, %188 : vector<4x256xf32>
    %190 = arith.truncf %189 : vector<4x256xf32> to vector<4x256xbf16>
    %c0_79 = arith.constant 0 : index
    %c2_80 = arith.constant 2 : index
    %c0_81 = arith.constant 0 : index
    %c0_82 = arith.constant 0 : index
    %191 = vector.load %arg11[%c0_79, %c2_80, %c0_81, %c0_82] : memref<1x9x4x256xbf16, #tpu.memory_space<vmem>>, vector<1x1x4x256xbf16>
    %192 = vector.shape_cast %191 : vector<1x1x4x256xbf16> to vector<4x256xbf16>
    %193 = vector.shape_cast %190 : vector<4x256xbf16> to vector<1x1x4x256xbf16>
    tpu.vector_store %arg11[%c0_79, %c2_80, %c0_81, %c0_82], %193 {strides = array<i32>} : memref<1x9x4x256xbf16, #tpu.memory_space<vmem>>, vector<1x1x4x256xbf16>,
    %194 = vector.broadcast %5 : vector<1x256xf32> to vector<4x256xf32>
    %195 = arith.mulf %189, %194 : vector<4x256xf32>
    %cst_83 = arith.constant dense<0.000000e+00> : vector<4xf32>
    %196 = vector.multi_reduction <add>, %195, %cst_83 [1] : vector<4x256xf32> to vector<4xf32>
    %197 = vector.shape_cast %196 : vector<4xf32> to vector<4x1xf32>
    %198 = arith.addf %130, %197 : vector<4x1xf32>
    %199 = arith.mulf %195, %195 : vector<4x256xf32>
    %cst_84 = arith.constant dense<0.000000e+00> : vector<4xf32>
    %200 = vector.multi_reduction <add>, %199, %cst_84 [1] : vector<4x256xf32> to vector<4xf32>
    %201 = vector.shape_cast %200 : vector<4xf32> to vector<4x1xf32>
    %202 = arith.addf %134, %201 : vector<4x1xf32>
    %c1_i32 = arith.constant 1 : i32
    %203 = tpu.dynamic_rotate %9 by %c1_i32 dim 1 : vector<4x256xf32>, i32 -> vector<4x256xf32>
    %c0_i32_85 = arith.constant 0 : i32
    %204 = vector.broadcast %c0_i32_85 : i32 to vector<1x256xi32>
    %205 = arith.cmpi eq, %1, %204 : vector<1x256xi32>
    %c255_i32 = arith.constant 255 : i32
    %206 = tpu.dynamic_rotate %9 by %c255_i32 dim 1 : vector<4x256xf32>, i32 -> vector<4x256xf32>
    %207 = vector.shape_cast %205 : vector<1x256xi1> to vector<1x256xi1>
    %208 = vector.broadcast %207 : vector<1x256xi1> to vector<4x256xi1>
    %209 = arith.select %208, %206, %203 : vector<4x256xi1>, vector<4x256xf32>
    %210 = arith.subf %7, %209 : vector<4x256xf32>
    %c0_86 = arith.constant 0 : index
    %c0_87 = arith.constant 0 : index
    %211 = vector.load %arg5[%c0_86, %c0_87] : memref<4x1xf32, #tpu.memory_space<vmem>>, vector<4x1xf32>
    %212 = vector.broadcast %211 : vector<4x1xf32> to vector<4x256xf32>
    %213 = arith.mulf %210, %212 : vector<4x256xf32>
    %c0_88 = arith.constant 0 : index
    %c0_89 = arith.constant 0 : index
    %214 = vector.load %arg6[%c0_88, %c0_89] : memref<4x1xf32, #tpu.memory_space<vmem>>, vector<4x1xf32>
    %215 = vector.broadcast %214 : vector<4x1xf32> to vector<4x256xf32>
    %216 = arith.addf %213, %215 : vector<4x256xf32>
    %cst_90 = arith.constant 0.000000e+00 : f32
    %217 = vector.broadcast %cst_90 : f32 to vector<4x256xf32>
    %218 = arith.maximumf %216, %217 : vector<4x256xf32>
    %c3 = arith.constant 3 : index
    %c0_91 = arith.constant 0 : index
    %c0_92 = arith.constant 0 : index
    %219 = vector.load %arg3[%c3, %c0_91, %c0_92] : memref<9x2x256xf32, #tpu.memory_space<vmem>>, vector<1x2x256xf32>
    %220 = vector.shape_cast %219 : vector<1x2x256xf32> to vector<2x256xf32>
    %c0_93 = arith.constant 0 : index
    %c0_94 = arith.constant 0 : index
    %221 = vector.load %arg7[%c0_93, %c0_94] : memref<2x1xf32, #tpu.memory_space<vmem>>, vector<2x1xf32>
    %222 = vector.broadcast %221 : vector<2x1xf32> to vector<2x256xf32>
    %223 = arith.mulf %220, %222 : vector<2x256xf32>
    %c0_95 = arith.constant 0 : index
    %c0_96 = arith.constant 0 : index
    %224 = vector.load %arg8[%c0_95, %c0_96] : memref<2x1xf32, #tpu.memory_space<vmem>>, vector<2x1xf32>
    %225 = vector.broadcast %224 : vector<2x1xf32> to vector<2x256xf32>
    %226 = arith.addf %223, %225 : vector<2x256xf32>
    %cst_97 = arith.constant 0.000000e+00 : f32
    %227 = vector.broadcast %cst_97 : f32 to vector<2x256xf32>
    %228 = arith.maximumf %226, %227 : vector<2x256xf32>
    %229 = arith.truncf %218 : vector<4x256xf32> to vector<4x256xbf16>
    %cst_98 = arith.constant dense<0.000000e+00> : vector<4x256xf32>
    %230 = tpu.matmul %10, %229, %cst_98 {dimension_numbers = #tpu.dot_dimension_numbers<[1], [0], [0], [1], [0, 0, 1, 1], [], []>} : vector<4x4xbf16>, vector<4x256xbf16>, vector<4x256xf32> -> vector<4x256xf32>
    %231 = vector.extract_strided_slice %11 {offsets = [0, 0], sizes = [4, 1], strides = [1, 1]} : vector<4x2xf32> to vector<4x1xf32>
    %232 = vector.extract_strided_slice %228 {offsets = [0, 0], sizes = [1, 256], strides = [1, 1]} : vector<2x256xf32> to vector<1x256xf32>
    %233 = vector.broadcast %231 : vector<4x1xf32> to vector<4x256xf32>
    %234 = vector.broadcast %232 : vector<1x256xf32> to vector<4x256xf32>
    %235 = arith.mulf %233, %234 : vector<4x256xf32>
    %236 = arith.addf %230, %235 : vector<4x256xf32>
    %237 = vector.extract_strided_slice %11 {offsets = [0, 1], sizes = [4, 1], strides = [1, 1]} : vector<4x2xf32> to vector<4x1xf32>
    %238 = vector.extract_strided_slice %228 {offsets = [1, 0], sizes = [1, 256], strides = [1, 1]} : vector<2x256xf32> to vector<1x256xf32>
    %239 = vector.broadcast %237 : vector<4x1xf32> to vector<4x256xf32>
    %240 = vector.broadcast %238 : vector<1x256xf32> to vector<4x256xf32>
    %241 = arith.mulf %239, %240 : vector<4x256xf32>
    %242 = arith.addf %236, %241 : vector<4x256xf32>
    %243 = arith.truncf %242 : vector<4x256xf32> to vector<4x256xbf16>
    %c0_99 = arith.constant 0 : index
    %c3_100 = arith.constant 3 : index
    %c0_101 = arith.constant 0 : index
    %c0_102 = arith.constant 0 : index
    %244 = vector.load %arg11[%c0_99, %c3_100, %c0_101, %c0_102] : memref<1x9x4x256xbf16, #tpu.memory_space<vmem>>, vector<1x1x4x256xbf16>
    %245 = vector.shape_cast %244 : vector<1x1x4x256xbf16> to vector<4x256xbf16>
    %246 = vector.shape_cast %243 : vector<4x256xbf16> to vector<1x1x4x256xbf16>
    tpu.vector_store %arg11[%c0_99, %c3_100, %c0_101, %c0_102], %246 {strides = array<i32>} : memref<1x9x4x256xbf16, #tpu.memory_space<vmem>>, vector<1x1x4x256xbf16>,
    %247 = vector.broadcast %5 : vector<1x256xf32> to vector<4x256xf32>
    %248 = arith.mulf %242, %247 : vector<4x256xf32>
    %cst_103 = arith.constant dense<0.000000e+00> : vector<4xf32>
    %249 = vector.multi_reduction <add>, %248, %cst_103 [1] : vector<4x256xf32> to vector<4xf32>
    %250 = vector.shape_cast %249 : vector<4xf32> to vector<4x1xf32>
    %251 = arith.addf %198, %250 : vector<4x1xf32>
    %252 = arith.mulf %248, %248 : vector<4x256xf32>
    %cst_104 = arith.constant dense<0.000000e+00> : vector<4xf32>
    %253 = vector.multi_reduction <add>, %252, %cst_104 [1] : vector<4x256xf32> to vector<4xf32>
    %254 = vector.shape_cast %253 : vector<4xf32> to vector<4x1xf32>
    %255 = arith.addf %202, %254 : vector<4x1xf32>
    %256 = arith.subf %7, %9 : vector<4x256xf32>
    %c0_105 = arith.constant 0 : index
    %c0_106 = arith.constant 0 : index
    %257 = vector.load %arg5[%c0_105, %c0_106] : memref<4x1xf32, #tpu.memory_space<vmem>>, vector<4x1xf32>
    %258 = vector.broadcast %257 : vector<4x1xf32> to vector<4x256xf32>
    %259 = arith.mulf %256, %258 : vector<4x256xf32>
    %c0_107 = arith.constant 0 : index
    %c0_108 = arith.constant 0 : index
    %260 = vector.load %arg6[%c0_107, %c0_108] : memref<4x1xf32, #tpu.memory_space<vmem>>, vector<4x1xf32>
    %261 = vector.broadcast %260 : vector<4x1xf32> to vector<4x256xf32>
    %262 = arith.addf %259, %261 : vector<4x256xf32>
    %cst_109 = arith.constant 0.000000e+00 : f32
    %263 = vector.broadcast %cst_109 : f32 to vector<4x256xf32>
    %264 = arith.maximumf %262, %263 : vector<4x256xf32>
    %c4 = arith.constant 4 : index
    %c0_110 = arith.constant 0 : index
    %c0_111 = arith.constant 0 : index
    %265 = vector.load %arg3[%c4, %c0_110, %c0_111] : memref<9x2x256xf32, #tpu.memory_space<vmem>>, vector<1x2x256xf32>
    %266 = vector.shape_cast %265 : vector<1x2x256xf32> to vector<2x256xf32>
    %c0_112 = arith.constant 0 : index
    %c0_113 = arith.constant 0 : index
    %267 = vector.load %arg7[%c0_112, %c0_113] : memref<2x1xf32, #tpu.memory_space<vmem>>, vector<2x1xf32>
    %268 = vector.broadcast %267 : vector<2x1xf32> to vector<2x256xf32>
    %269 = arith.mulf %266, %268 : vector<2x256xf32>
    %c0_114 = arith.constant 0 : index
    %c0_115 = arith.constant 0 : index
    %270 = vector.load %arg8[%c0_114, %c0_115] : memref<2x1xf32, #tpu.memory_space<vmem>>, vector<2x1xf32>
    %271 = vector.broadcast %270 : vector<2x1xf32> to vector<2x256xf32>
    %272 = arith.addf %269, %271 : vector<2x256xf32>
    %cst_116 = arith.constant 0.000000e+00 : f32
    %273 = vector.broadcast %cst_116 : f32 to vector<2x256xf32>
    %274 = arith.maximumf %272, %273 : vector<2x256xf32>
    %275 = arith.truncf %264 : vector<4x256xf32> to vector<4x256xbf16>
    %cst_117 = arith.constant dense<0.000000e+00> : vector<4x256xf32>
    %276 = tpu.matmul %10, %275, %cst_117 {dimension_numbers = #tpu.dot_dimension_numbers<[1], [0], [0], [1], [0, 0, 1, 1], [], []>} : vector<4x4xbf16>, vector<4x256xbf16>, vector<4x256xf32> -> vector<4x256xf32>
    %277 = vector.extract_strided_slice %11 {offsets = [0, 0], sizes = [4, 1], strides = [1, 1]} : vector<4x2xf32> to vector<4x1xf32>
    %278 = vector.extract_strided_slice %274 {offsets = [0, 0], sizes = [1, 256], strides = [1, 1]} : vector<2x256xf32> to vector<1x256xf32>
    %279 = vector.broadcast %277 : vector<4x1xf32> to vector<4x256xf32>
    %280 = vector.broadcast %278 : vector<1x256xf32> to vector<4x256xf32>
    %281 = arith.mulf %279, %280 : vector<4x256xf32>
    %282 = arith.addf %276, %281 : vector<4x256xf32>
    %283 = vector.extract_strided_slice %11 {offsets = [0, 1], sizes = [4, 1], strides = [1, 1]} : vector<4x2xf32> to vector<4x1xf32>
    %284 = vector.extract_strided_slice %274 {offsets = [1, 0], sizes = [1, 256], strides = [1, 1]} : vector<2x256xf32> to vector<1x256xf32>
    %285 = vector.broadcast %283 : vector<4x1xf32> to vector<4x256xf32>
    %286 = vector.broadcast %284 : vector<1x256xf32> to vector<4x256xf32>
    %287 = arith.mulf %285, %286 : vector<4x256xf32>
    %288 = arith.addf %282, %287 : vector<4x256xf32>
    %289 = arith.truncf %288 : vector<4x256xf32> to vector<4x256xbf16>
    %c0_118 = arith.constant 0 : index
    %c4_119 = arith.constant 4 : index
    %c0_120 = arith.constant 0 : index
    %c0_121 = arith.constant 0 : index
    %290 = vector.load %arg11[%c0_118, %c4_119, %c0_120, %c0_121] : memref<1x9x4x256xbf16, #tpu.memory_space<vmem>>, vector<1x1x4x256xbf16>
    %291 = vector.shape_cast %290 : vector<1x1x4x256xbf16> to vector<4x256xbf16>
    %292 = vector.shape_cast %289 : vector<4x256xbf16> to vector<1x1x4x256xbf16>
    tpu.vector_store %arg11[%c0_118, %c4_119, %c0_120, %c0_121], %292 {strides = array<i32>} : memref<1x9x4x256xbf16, #tpu.memory_space<vmem>>, vector<1x1x4x256xbf16>,
    %293 = vector.broadcast %5 : vector<1x256xf32> to vector<4x256xf32>
    %294 = arith.mulf %288, %293 : vector<4x256xf32>
    %cst_122 = arith.constant dense<0.000000e+00> : vector<4xf32>
    %295 = vector.multi_reduction <add>, %294, %cst_122 [1] : vector<4x256xf32> to vector<4xf32>
    %296 = vector.shape_cast %295 : vector<4xf32> to vector<4x1xf32>
    %297 = arith.addf %251, %296 : vector<4x1xf32>
    %298 = arith.mulf %294, %294 : vector<4x256xf32>
    %cst_123 = arith.constant dense<0.000000e+00> : vector<4xf32>
    %299 = vector.multi_reduction <add>, %298, %cst_123 [1] : vector<4x256xf32> to vector<4xf32>
    %300 = vector.shape_cast %299 : vector<4xf32> to vector<4x1xf32>
    %301 = arith.addf %255, %300 : vector<4x1xf32>
    %c255_i32_124 = arith.constant 255 : i32
    %302 = tpu.dynamic_rotate %9 by %c255_i32_124 dim 1 : vector<4x256xf32>, i32 -> vector<4x256xf32>
    %c15_i32_125 = arith.constant 15 : i32
    %303 = vector.broadcast %c15_i32_125 : i32 to vector<1x256xi32>
    %304 = arith.cmpi eq, %1, %303 : vector<1x256xi32>
    %c1_i32_126 = arith.constant 1 : i32
    %305 = tpu.dynamic_rotate %9 by %c1_i32_126 dim 1 : vector<4x256xf32>, i32 -> vector<4x256xf32>
    %306 = vector.shape_cast %304 : vector<1x256xi1> to vector<1x256xi1>
    %307 = vector.broadcast %306 : vector<1x256xi1> to vector<4x256xi1>
    %308 = arith.select %307, %305, %302 : vector<4x256xi1>, vector<4x256xf32>
    %309 = arith.subf %7, %308 : vector<4x256xf32>
    %c0_127 = arith.constant 0 : index
    %c0_128 = arith.constant 0 : index
    %310 = vector.load %arg5[%c0_127, %c0_128] : memref<4x1xf32, #tpu.memory_space<vmem>>, vector<4x1xf32>
    %311 = vector.broadcast %310 : vector<4x1xf32> to vector<4x256xf32>
    %312 = arith.mulf %309, %311 : vector<4x256xf32>
    %c0_129 = arith.constant 0 : index
    %c0_130 = arith.constant 0 : index
    %313 = vector.load %arg6[%c0_129, %c0_130] : memref<4x1xf32, #tpu.memory_space<vmem>>, vector<4x1xf32>
    %314 = vector.broadcast %313 : vector<4x1xf32> to vector<4x256xf32>
    %315 = arith.addf %312, %314 : vector<4x256xf32>
    %cst_131 = arith.constant 0.000000e+00 : f32
    %316 = vector.broadcast %cst_131 : f32 to vector<4x256xf32>
    %317 = arith.maximumf %315, %316 : vector<4x256xf32>
    %c5 = arith.constant 5 : index
    %c0_132 = arith.constant 0 : index
    %c0_133 = arith.constant 0 : index
    %318 = vector.load %arg3[%c5, %c0_132, %c0_133] : memref<9x2x256xf32, #tpu.memory_space<vmem>>, vector<1x2x256xf32>
    %319 = vector.shape_cast %318 : vector<1x2x256xf32> to vector<2x256xf32>
    %c0_134 = arith.constant 0 : index
    %c0_135 = arith.constant 0 : index
    %320 = vector.load %arg7[%c0_134, %c0_135] : memref<2x1xf32, #tpu.memory_space<vmem>>, vector<2x1xf32>
    %321 = vector.broadcast %320 : vector<2x1xf32> to vector<2x256xf32>
    %322 = arith.mulf %319, %321 : vector<2x256xf32>
    %c0_136 = arith.constant 0 : index
    %c0_137 = arith.constant 0 : index
    %323 = vector.load %arg8[%c0_136, %c0_137] : memref<2x1xf32, #tpu.memory_space<vmem>>, vector<2x1xf32>
    %324 = vector.broadcast %323 : vector<2x1xf32> to vector<2x256xf32>
    %325 = arith.addf %322, %324 : vector<2x256xf32>
    %cst_138 = arith.constant 0.000000e+00 : f32
    %326 = vector.broadcast %cst_138 : f32 to vector<2x256xf32>
    %327 = arith.maximumf %325, %326 : vector<2x256xf32>
    %328 = arith.truncf %317 : vector<4x256xf32> to vector<4x256xbf16>
    %cst_139 = arith.constant dense<0.000000e+00> : vector<4x256xf32>
    %329 = tpu.matmul %10, %328, %cst_139 {dimension_numbers = #tpu.dot_dimension_numbers<[1], [0], [0], [1], [0, 0, 1, 1], [], []>} : vector<4x4xbf16>, vector<4x256xbf16>, vector<4x256xf32> -> vector<4x256xf32>
    %330 = vector.extract_strided_slice %11 {offsets = [0, 0], sizes = [4, 1], strides = [1, 1]} : vector<4x2xf32> to vector<4x1xf32>
    %331 = vector.extract_strided_slice %327 {offsets = [0, 0], sizes = [1, 256], strides = [1, 1]} : vector<2x256xf32> to vector<1x256xf32>
    %332 = vector.broadcast %330 : vector<4x1xf32> to vector<4x256xf32>
    %333 = vector.broadcast %331 : vector<1x256xf32> to vector<4x256xf32>
    %334 = arith.mulf %332, %333 : vector<4x256xf32>
    %335 = arith.addf %329, %334 : vector<4x256xf32>
    %336 = vector.extract_strided_slice %11 {offsets = [0, 1], sizes = [4, 1], strides = [1, 1]} : vector<4x2xf32> to vector<4x1xf32>
    %337 = vector.extract_strided_slice %327 {offsets = [1, 0], sizes = [1, 256], strides = [1, 1]} : vector<2x256xf32> to vector<1x256xf32>
    %338 = vector.broadcast %336 : vector<4x1xf32> to vector<4x256xf32>
    %339 = vector.broadcast %337 : vector<1x256xf32> to vector<4x256xf32>
    %340 = arith.mulf %338, %339 : vector<4x256xf32>
    %341 = arith.addf %335, %340 : vector<4x256xf32>
    %342 = arith.truncf %341 : vector<4x256xf32> to vector<4x256xbf16>
    %c0_140 = arith.constant 0 : index
    %c5_141 = arith.constant 5 : index
    %c0_142 = arith.constant 0 : index
    %c0_143 = arith.constant 0 : index
    %343 = vector.load %arg11[%c0_140, %c5_141, %c0_142, %c0_143] : memref<1x9x4x256xbf16, #tpu.memory_space<vmem>>, vector<1x1x4x256xbf16>
    %344 = vector.shape_cast %343 : vector<1x1x4x256xbf16> to vector<4x256xbf16>
    %345 = vector.shape_cast %342 : vector<4x256xbf16> to vector<1x1x4x256xbf16>
    tpu.vector_store %arg11[%c0_140, %c5_141, %c0_142, %c0_143], %345 {strides = array<i32>} : memref<1x9x4x256xbf16, #tpu.memory_space<vmem>>, vector<1x1x4x256xbf16>,
    %346 = vector.broadcast %5 : vector<1x256xf32> to vector<4x256xf32>
    %347 = arith.mulf %341, %346 : vector<4x256xf32>
    %cst_144 = arith.constant dense<0.000000e+00> : vector<4xf32>
    %348 = vector.multi_reduction <add>, %347, %cst_144 [1] : vector<4x256xf32> to vector<4xf32>
    %349 = vector.shape_cast %348 : vector<4xf32> to vector<4x1xf32>
    %350 = arith.addf %297, %349 : vector<4x1xf32>
    %351 = arith.mulf %347, %347 : vector<4x256xf32>
    %cst_145 = arith.constant dense<0.000000e+00> : vector<4xf32>
    %352 = vector.multi_reduction <add>, %351, %cst_145 [1] : vector<4x256xf32> to vector<4xf32>
    %353 = vector.shape_cast %352 : vector<4xf32> to vector<4x1xf32>
    %354 = arith.addf %301, %353 : vector<4x1xf32>
    %c241_i32_146 = arith.constant 241 : i32
    %355 = tpu.dynamic_rotate %9 by %c241_i32_146 dim 1 : vector<4x256xf32>, i32 -> vector<4x256xf32>
    %c0_i32_147 = arith.constant 0 : i32
    %356 = vector.broadcast %c0_i32_147 : i32 to vector<1x256xi32>
    %357 = arith.cmpi eq, %1, %356 : vector<1x256xi32>
    %c239_i32_148 = arith.constant 239 : i32
    %358 = tpu.dynamic_rotate %9 by %c239_i32_148 dim 1 : vector<4x256xf32>, i32 -> vector<4x256xf32>
    %359 = vector.shape_cast %357 : vector<1x256xi1> to vector<1x256xi1>
    %360 = vector.broadcast %359 : vector<1x256xi1> to vector<4x256xi1>
    %361 = arith.select %360, %358, %355 : vector<4x256xi1>, vector<4x256xf32>
    %c15_i32_149 = arith.constant 15 : i32
    %362 = vector.broadcast %c15_i32_149 : i32 to vector<1x256xi32>
    %363 = arith.cmpi eq, %0, %362 : vector<1x256xi32>
    %c17_i32_150 = arith.constant 17 : i32
    %364 = tpu.dynamic_rotate %9 by %c17_i32_150 dim 1 : vector<4x256xf32>, i32 -> vector<4x256xf32>
    %365 = vector.shape_cast %363 : vector<1x256xi1> to vector<1x256xi1>
    %366 = vector.broadcast %365 : vector<1x256xi1> to vector<4x256xi1>
    %367 = arith.select %366, %364, %361 : vector<4x256xi1>, vector<4x256xf32>
    %c15_i32_151 = arith.constant 15 : i32
    %368 = vector.broadcast %c15_i32_151 : i32 to vector<1x256xi32>
    %369 = arith.cmpi eq, %0, %368 : vector<1x256xi32>
    %c0_i32_152 = arith.constant 0 : i32
    %370 = vector.broadcast %c0_i32_152 : i32 to vector<1x256xi32>
    %371 = arith.cmpi eq, %1, %370 : vector<1x256xi32>
    %372 = arith.andi %369, %371 : vector<1x256xi1>
    %c15_i32_153 = arith.constant 15 : i32
    %373 = tpu.dynamic_rotate %9 by %c15_i32_153 dim 1 : vector<4x256xf32>, i32 -> vector<4x256xf32>
    %374 = vector.shape_cast %372 : vector<1x256xi1> to vector<1x256xi1>
    %375 = vector.broadcast %374 : vector<1x256xi1> to vector<4x256xi1>
    %376 = arith.select %375, %373, %367 : vector<4x256xi1>, vector<4x256xf32>
    %377 = arith.subf %7, %376 : vector<4x256xf32>
    %c0_154 = arith.constant 0 : index
    %c0_155 = arith.constant 0 : index
    %378 = vector.load %arg5[%c0_154, %c0_155] : memref<4x1xf32, #tpu.memory_space<vmem>>, vector<4x1xf32>
    %379 = vector.broadcast %378 : vector<4x1xf32> to vector<4x256xf32>
    %380 = arith.mulf %377, %379 : vector<4x256xf32>
    %c0_156 = arith.constant 0 : index
    %c0_157 = arith.constant 0 : index
    %381 = vector.load %arg6[%c0_156, %c0_157] : memref<4x1xf32, #tpu.memory_space<vmem>>, vector<4x1xf32>
    %382 = vector.broadcast %381 : vector<4x1xf32> to vector<4x256xf32>
    %383 = arith.addf %380, %382 : vector<4x256xf32>
    %cst_158 = arith.constant 0.000000e+00 : f32
    %384 = vector.broadcast %cst_158 : f32 to vector<4x256xf32>
    %385 = arith.maximumf %383, %384 : vector<4x256xf32>
    %c6 = arith.constant 6 : index
    %c0_159 = arith.constant 0 : index
    %c0_160 = arith.constant 0 : index
    %386 = vector.load %arg3[%c6, %c0_159, %c0_160] : memref<9x2x256xf32, #tpu.memory_space<vmem>>, vector<1x2x256xf32>
    %387 = vector.shape_cast %386 : vector<1x2x256xf32> to vector<2x256xf32>
    %c0_161 = arith.constant 0 : index
    %c0_162 = arith.constant 0 : index
    %388 = vector.load %arg7[%c0_161, %c0_162] : memref<2x1xf32, #tpu.memory_space<vmem>>, vector<2x1xf32>
    %389 = vector.broadcast %388 : vector<2x1xf32> to vector<2x256xf32>
    %390 = arith.mulf %387, %389 : vector<2x256xf32>
    %c0_163 = arith.constant 0 : index
    %c0_164 = arith.constant 0 : index
    %391 = vector.load %arg8[%c0_163, %c0_164] : memref<2x1xf32, #tpu.memory_space<vmem>>, vector<2x1xf32>
    %392 = vector.broadcast %391 : vector<2x1xf32> to vector<2x256xf32>
    %393 = arith.addf %390, %392 : vector<2x256xf32>
    %cst_165 = arith.constant 0.000000e+00 : f32
    %394 = vector.broadcast %cst_165 : f32 to vector<2x256xf32>
    %395 = arith.maximumf %393, %394 : vector<2x256xf32>
    %396 = arith.truncf %385 : vector<4x256xf32> to vector<4x256xbf16>
    %cst_166 = arith.constant dense<0.000000e+00> : vector<4x256xf32>
    %397 = tpu.matmul %10, %396, %cst_166 {dimension_numbers = #tpu.dot_dimension_numbers<[1], [0], [0], [1], [0, 0, 1, 1], [], []>} : vector<4x4xbf16>, vector<4x256xbf16>, vector<4x256xf32> -> vector<4x256xf32>
    %398 = vector.extract_strided_slice %11 {offsets = [0, 0], sizes = [4, 1], strides = [1, 1]} : vector<4x2xf32> to vector<4x1xf32>
    %399 = vector.extract_strided_slice %395 {offsets = [0, 0], sizes = [1, 256], strides = [1, 1]} : vector<2x256xf32> to vector<1x256xf32>
    %400 = vector.broadcast %398 : vector<4x1xf32> to vector<4x256xf32>
    %401 = vector.broadcast %399 : vector<1x256xf32> to vector<4x256xf32>
    %402 = arith.mulf %400, %401 : vector<4x256xf32>
    %403 = arith.addf %397, %402 : vector<4x256xf32>
    %404 = vector.extract_strided_slice %11 {offsets = [0, 1], sizes = [4, 1], strides = [1, 1]} : vector<4x2xf32> to vector<4x1xf32>
    %405 = vector.extract_strided_slice %395 {offsets = [1, 0], sizes = [1, 256], strides = [1, 1]} : vector<2x256xf32> to vector<1x256xf32>
    %406 = vector.broadcast %404 : vector<4x1xf32> to vector<4x256xf32>
    %407 = vector.broadcast %405 : vector<1x256xf32> to vector<4x256xf32>
    %408 = arith.mulf %406, %407 : vector<4x256xf32>
    %409 = arith.addf %403, %408 : vector<4x256xf32>
    %410 = arith.truncf %409 : vector<4x256xf32> to vector<4x256xbf16>
    %c0_167 = arith.constant 0 : index
    %c6_168 = arith.constant 6 : index
    %c0_169 = arith.constant 0 : index
    %c0_170 = arith.constant 0 : index
    %411 = vector.load %arg11[%c0_167, %c6_168, %c0_169, %c0_170] : memref<1x9x4x256xbf16, #tpu.memory_space<vmem>>, vector<1x1x4x256xbf16>
    %412 = vector.shape_cast %411 : vector<1x1x4x256xbf16> to vector<4x256xbf16>
    %413 = vector.shape_cast %410 : vector<4x256xbf16> to vector<1x1x4x256xbf16>
    tpu.vector_store %arg11[%c0_167, %c6_168, %c0_169, %c0_170], %413 {strides = array<i32>} : memref<1x9x4x256xbf16, #tpu.memory_space<vmem>>, vector<1x1x4x256xbf16>,
    %414 = vector.broadcast %5 : vector<1x256xf32> to vector<4x256xf32>
    %415 = arith.mulf %409, %414 : vector<4x256xf32>
    %cst_171 = arith.constant dense<0.000000e+00> : vector<4xf32>
    %416 = vector.multi_reduction <add>, %415, %cst_171 [1] : vector<4x256xf32> to vector<4xf32>
    %417 = vector.shape_cast %416 : vector<4xf32> to vector<4x1xf32>
    %418 = arith.addf %350, %417 : vector<4x1xf32>
    %419 = arith.mulf %415, %415 : vector<4x256xf32>
    %cst_172 = arith.constant dense<0.000000e+00> : vector<4xf32>
    %420 = vector.multi_reduction <add>, %419, %cst_172 [1] : vector<4x256xf32> to vector<4xf32>
    %421 = vector.shape_cast %420 : vector<4xf32> to vector<4x1xf32>
    %422 = arith.addf %354, %421 : vector<4x1xf32>
    %c240_i32_173 = arith.constant 240 : i32
    %423 = tpu.dynamic_rotate %9 by %c240_i32_173 dim 1 : vector<4x256xf32>, i32 -> vector<4x256xf32>
    %c15_i32_174 = arith.constant 15 : i32
    %424 = vector.broadcast %c15_i32_174 : i32 to vector<1x256xi32>
    %425 = arith.cmpi eq, %0, %424 : vector<1x256xi32>
    %c16_i32_175 = arith.constant 16 : i32
    %426 = tpu.dynamic_rotate %9 by %c16_i32_175 dim 1 : vector<4x256xf32>, i32 -> vector<4x256xf32>
    %427 = vector.shape_cast %425 : vector<1x256xi1> to vector<1x256xi1>
    %428 = vector.broadcast %427 : vector<1x256xi1> to vector<4x256xi1>
    %429 = arith.select %428, %426, %423 : vector<4x256xi1>, vector<4x256xf32>
    %430 = arith.subf %7, %429 : vector<4x256xf32>
    %c0_176 = arith.constant 0 : index
    %c0_177 = arith.constant 0 : index
    %431 = vector.load %arg5[%c0_176, %c0_177] : memref<4x1xf32, #tpu.memory_space<vmem>>, vector<4x1xf32>
    %432 = vector.broadcast %431 : vector<4x1xf32> to vector<4x256xf32>
    %433 = arith.mulf %430, %432 : vector<4x256xf32>
    %c0_178 = arith.constant 0 : index
    %c0_179 = arith.constant 0 : index
    %434 = vector.load %arg6[%c0_178, %c0_179] : memref<4x1xf32, #tpu.memory_space<vmem>>, vector<4x1xf32>
    %435 = vector.broadcast %434 : vector<4x1xf32> to vector<4x256xf32>
    %436 = arith.addf %433, %435 : vector<4x256xf32>
    %cst_180 = arith.constant 0.000000e+00 : f32
    %437 = vector.broadcast %cst_180 : f32 to vector<4x256xf32>
    %438 = arith.maximumf %436, %437 : vector<4x256xf32>
    %c7 = arith.constant 7 : index
    %c0_181 = arith.constant 0 : index
    %c0_182 = arith.constant 0 : index
    %439 = vector.load %arg3[%c7, %c0_181, %c0_182] : memref<9x2x256xf32, #tpu.memory_space<vmem>>, vector<1x2x256xf32>
    %440 = vector.shape_cast %439 : vector<1x2x256xf32> to vector<2x256xf32>
    %c0_183 = arith.constant 0 : index
    %c0_184 = arith.constant 0 : index
    %441 = vector.load %arg7[%c0_183, %c0_184] : memref<2x1xf32, #tpu.memory_space<vmem>>, vector<2x1xf32>
    %442 = vector.broadcast %441 : vector<2x1xf32> to vector<2x256xf32>
    %443 = arith.mulf %440, %442 : vector<2x256xf32>
    %c0_185 = arith.constant 0 : index
    %c0_186 = arith.constant 0 : index
    %444 = vector.load %arg8[%c0_185, %c0_186] : memref<2x1xf32, #tpu.memory_space<vmem>>, vector<2x1xf32>
    %445 = vector.broadcast %444 : vector<2x1xf32> to vector<2x256xf32>
    %446 = arith.addf %443, %445 : vector<2x256xf32>
    %cst_187 = arith.constant 0.000000e+00 : f32
    %447 = vector.broadcast %cst_187 : f32 to vector<2x256xf32>
    %448 = arith.maximumf %446, %447 : vector<2x256xf32>
    %449 = arith.truncf %438 : vector<4x256xf32> to vector<4x256xbf16>
    %cst_188 = arith.constant dense<0.000000e+00> : vector<4x256xf32>
    %450 = tpu.matmul %10, %449, %cst_188 {dimension_numbers = #tpu.dot_dimension_numbers<[1], [0], [0], [1], [0, 0, 1, 1], [], []>} : vector<4x4xbf16>, vector<4x256xbf16>, vector<4x256xf32> -> vector<4x256xf32>
    %451 = vector.extract_strided_slice %11 {offsets = [0, 0], sizes = [4, 1], strides = [1, 1]} : vector<4x2xf32> to vector<4x1xf32>
    %452 = vector.extract_strided_slice %448 {offsets = [0, 0], sizes = [1, 256], strides = [1, 1]} : vector<2x256xf32> to vector<1x256xf32>
    %453 = vector.broadcast %451 : vector<4x1xf32> to vector<4x256xf32>
    %454 = vector.broadcast %452 : vector<1x256xf32> to vector<4x256xf32>
    %455 = arith.mulf %453, %454 : vector<4x256xf32>
    %456 = arith.addf %450, %455 : vector<4x256xf32>
    %457 = vector.extract_strided_slice %11 {offsets = [0, 1], sizes = [4, 1], strides = [1, 1]} : vector<4x2xf32> to vector<4x1xf32>
    %458 = vector.extract_strided_slice %448 {offsets = [1, 0], sizes = [1, 256], strides = [1, 1]} : vector<2x256xf32> to vector<1x256xf32>
    %459 = vector.broadcast %457 : vector<4x1xf32> to vector<4x256xf32>
    %460 = vector.broadcast %458 : vector<1x256xf32> to vector<4x256xf32>
    %461 = arith.mulf %459, %460 : vector<4x256xf32>
    %462 = arith.addf %456, %461 : vector<4x256xf32>
    %463 = arith.truncf %462 : vector<4x256xf32> to vector<4x256xbf16>
    %c0_189 = arith.constant 0 : index
    %c7_190 = arith.constant 7 : index
    %c0_191 = arith.constant 0 : index
    %c0_192 = arith.constant 0 : index
    %464 = vector.load %arg11[%c0_189, %c7_190, %c0_191, %c0_192] : memref<1x9x4x256xbf16, #tpu.memory_space<vmem>>, vector<1x1x4x256xbf16>
    %465 = vector.shape_cast %464 : vector<1x1x4x256xbf16> to vector<4x256xbf16>
    %466 = vector.shape_cast %463 : vector<4x256xbf16> to vector<1x1x4x256xbf16>
    tpu.vector_store %arg11[%c0_189, %c7_190, %c0_191, %c0_192], %466 {strides = array<i32>} : memref<1x9x4x256xbf16, #tpu.memory_space<vmem>>, vector<1x1x4x256xbf16>,
    %467 = vector.broadcast %5 : vector<1x256xf32> to vector<4x256xf32>
    %468 = arith.mulf %462, %467 : vector<4x256xf32>
    %cst_193 = arith.constant dense<0.000000e+00> : vector<4xf32>
    %469 = vector.multi_reduction <add>, %468, %cst_193 [1] : vector<4x256xf32> to vector<4xf32>
    %470 = vector.shape_cast %469 : vector<4xf32> to vector<4x1xf32>
    %471 = arith.addf %418, %470 : vector<4x1xf32>
    %472 = arith.mulf %468, %468 : vector<4x256xf32>
    %cst_194 = arith.constant dense<0.000000e+00> : vector<4xf32>
    %473 = vector.multi_reduction <add>, %472, %cst_194 [1] : vector<4x256xf32> to vector<4xf32>
    %474 = vector.shape_cast %473 : vector<4xf32> to vector<4x1xf32>
    %475 = arith.addf %422, %474 : vector<4x1xf32>
    %c239_i32_195 = arith.constant 239 : i32
    %476 = tpu.dynamic_rotate %9 by %c239_i32_195 dim 1 : vector<4x256xf32>, i32 -> vector<4x256xf32>
    %c15_i32_196 = arith.constant 15 : i32
    %477 = vector.broadcast %c15_i32_196 : i32 to vector<1x256xi32>
    %478 = arith.cmpi eq, %1, %477 : vector<1x256xi32>
    %c241_i32_197 = arith.constant 241 : i32
    %479 = tpu.dynamic_rotate %9 by %c241_i32_197 dim 1 : vector<4x256xf32>, i32 -> vector<4x256xf32>
    %480 = vector.shape_cast %478 : vector<1x256xi1> to vector<1x256xi1>
    %481 = vector.broadcast %480 : vector<1x256xi1> to vector<4x256xi1>
    %482 = arith.select %481, %479, %476 : vector<4x256xi1>, vector<4x256xf32>
    %c15_i32_198 = arith.constant 15 : i32
    %483 = vector.broadcast %c15_i32_198 : i32 to vector<1x256xi32>
    %484 = arith.cmpi eq, %0, %483 : vector<1x256xi32>
    %c15_i32_199 = arith.constant 15 : i32
    %485 = tpu.dynamic_rotate %9 by %c15_i32_199 dim 1 : vector<4x256xf32>, i32 -> vector<4x256xf32>
    %486 = vector.shape_cast %484 : vector<1x256xi1> to vector<1x256xi1>
    %487 = vector.broadcast %486 : vector<1x256xi1> to vector<4x256xi1>
    %488 = arith.select %487, %485, %482 : vector<4x256xi1>, vector<4x256xf32>
    %c15_i32_200 = arith.constant 15 : i32
    %489 = vector.broadcast %c15_i32_200 : i32 to vector<1x256xi32>
    %490 = arith.cmpi eq, %0, %489 : vector<1x256xi32>
    %c15_i32_201 = arith.constant 15 : i32
    %491 = vector.broadcast %c15_i32_201 : i32 to vector<1x256xi32>
    %492 = arith.cmpi eq, %1, %491 : vector<1x256xi32>
    %493 = arith.andi %490, %492 : vector<1x256xi1>
    %c17_i32_202 = arith.constant 17 : i32
    %494 = tpu.dynamic_rotate %9 by %c17_i32_202 dim 1 : vector<4x256xf32>, i32 -> vector<4x256xf32>
    %495 = vector.shape_cast %493 : vector<1x256xi1> to vector<1x256xi1>
    %496 = vector.broadcast %495 : vector<1x256xi1> to vector<4x256xi1>
    %497 = arith.select %496, %494, %488 : vector<4x256xi1>, vector<4x256xf32>
    %498 = arith.subf %7, %497 : vector<4x256xf32>
    %c0_203 = arith.constant 0 : index
    %c0_204 = arith.constant 0 : index
    %499 = vector.load %arg5[%c0_203, %c0_204] : memref<4x1xf32, #tpu.memory_space<vmem>>, vector<4x1xf32>
    %500 = vector.broadcast %499 : vector<4x1xf32> to vector<4x256xf32>
    %501 = arith.mulf %498, %500 : vector<4x256xf32>
    %c0_205 = arith.constant 0 : index
    %c0_206 = arith.constant 0 : index
    %502 = vector.load %arg6[%c0_205, %c0_206] : memref<4x1xf32, #tpu.memory_space<vmem>>, vector<4x1xf32>
    %503 = vector.broadcast %502 : vector<4x1xf32> to vector<4x256xf32>
    %504 = arith.addf %501, %503 : vector<4x256xf32>
    %cst_207 = arith.constant 0.000000e+00 : f32
    %505 = vector.broadcast %cst_207 : f32 to vector<4x256xf32>
    %506 = arith.maximumf %504, %505 : vector<4x256xf32>
    %c8 = arith.constant 8 : index
    %c0_208 = arith.constant 0 : index
    %c0_209 = arith.constant 0 : index
    %507 = vector.load %arg3[%c8, %c0_208, %c0_209] : memref<9x2x256xf32, #tpu.memory_space<vmem>>, vector<1x2x256xf32>
    %508 = vector.shape_cast %507 : vector<1x2x256xf32> to vector<2x256xf32>
    %c0_210 = arith.constant 0 : index
    %c0_211 = arith.constant 0 : index
    %509 = vector.load %arg7[%c0_210, %c0_211] : memref<2x1xf32, #tpu.memory_space<vmem>>, vector<2x1xf32>
    %510 = vector.broadcast %509 : vector<2x1xf32> to vector<2x256xf32>
    %511 = arith.mulf %508, %510 : vector<2x256xf32>
    %c0_212 = arith.constant 0 : index
    %c0_213 = arith.constant 0 : index
    %512 = vector.load %arg8[%c0_212, %c0_213] : memref<2x1xf32, #tpu.memory_space<vmem>>, vector<2x1xf32>
    %513 = vector.broadcast %512 : vector<2x1xf32> to vector<2x256xf32>
    %514 = arith.addf %511, %513 : vector<2x256xf32>
    %cst_214 = arith.constant 0.000000e+00 : f32
    %515 = vector.broadcast %cst_214 : f32 to vector<2x256xf32>
    %516 = arith.maximumf %514, %515 : vector<2x256xf32>
    %517 = arith.truncf %506 : vector<4x256xf32> to vector<4x256xbf16>
    %cst_215 = arith.constant dense<0.000000e+00> : vector<4x256xf32>
    %518 = tpu.matmul %10, %517, %cst_215 {dimension_numbers = #tpu.dot_dimension_numbers<[1], [0], [0], [1], [0, 0, 1, 1], [], []>} : vector<4x4xbf16>, vector<4x256xbf16>, vector<4x256xf32> -> vector<4x256xf32>
    %519 = vector.extract_strided_slice %11 {offsets = [0, 0], sizes = [4, 1], strides = [1, 1]} : vector<4x2xf32> to vector<4x1xf32>
    %520 = vector.extract_strided_slice %516 {offsets = [0, 0], sizes = [1, 256], strides = [1, 1]} : vector<2x256xf32> to vector<1x256xf32>
    %521 = vector.broadcast %519 : vector<4x1xf32> to vector<4x256xf32>
    %522 = vector.broadcast %520 : vector<1x256xf32> to vector<4x256xf32>
    %523 = arith.mulf %521, %522 : vector<4x256xf32>
    %524 = arith.addf %518, %523 : vector<4x256xf32>
    %525 = vector.extract_strided_slice %11 {offsets = [0, 1], sizes = [4, 1], strides = [1, 1]} : vector<4x2xf32> to vector<4x1xf32>
    %526 = vector.extract_strided_slice %516 {offsets = [1, 0], sizes = [1, 256], strides = [1, 1]} : vector<2x256xf32> to vector<1x256xf32>
    %527 = vector.broadcast %525 : vector<4x1xf32> to vector<4x256xf32>
    %528 = vector.broadcast %526 : vector<1x256xf32> to vector<4x256xf32>
    %529 = arith.mulf %527, %528 : vector<4x256xf32>
    %530 = arith.addf %524, %529 : vector<4x256xf32>
    %531 = arith.truncf %530 : vector<4x256xf32> to vector<4x256xbf16>
    %c0_216 = arith.constant 0 : index
    %c8_217 = arith.constant 8 : index
    %c0_218 = arith.constant 0 : index
    %c0_219 = arith.constant 0 : index
    %532 = vector.load %arg11[%c0_216, %c8_217, %c0_218, %c0_219] : memref<1x9x4x256xbf16, #tpu.memory_space<vmem>>, vector<1x1x4x256xbf16>
    %533 = vector.shape_cast %532 : vector<1x1x4x256xbf16> to vector<4x256xbf16>
    %534 = vector.shape_cast %531 : vector<4x256xbf16> to vector<1x1x4x256xbf16>
    tpu.vector_store %arg11[%c0_216, %c8_217, %c0_218, %c0_219], %534 {strides = array<i32>} : memref<1x9x4x256xbf16, #tpu.memory_space<vmem>>, vector<1x1x4x256xbf16>,
    %535 = vector.broadcast %5 : vector<1x256xf32> to vector<4x256xf32>
    %536 = arith.mulf %530, %535 : vector<4x256xf32>
    %cst_220 = arith.constant dense<0.000000e+00> : vector<4xf32>
    %537 = vector.multi_reduction <add>, %536, %cst_220 [1] : vector<4x256xf32> to vector<4xf32>
    %538 = vector.shape_cast %537 : vector<4xf32> to vector<4x1xf32>
    %539 = arith.addf %471, %538 : vector<4x1xf32>
    %540 = arith.mulf %536, %536 : vector<4x256xf32>
    %cst_221 = arith.constant dense<0.000000e+00> : vector<4xf32>
    %541 = vector.multi_reduction <add>, %540, %cst_221 [1] : vector<4x256xf32> to vector<4xf32>
    %542 = vector.shape_cast %541 : vector<4xf32> to vector<4x1xf32>
    %543 = arith.addf %475, %542 : vector<4x1xf32>
    %c0_222 = arith.constant 0 : index
    %c0_223 = arith.constant 0 : index
    %c0_224 = arith.constant 0 : index
    %544 = vector.load %arg12[%c0_222, %c0_223, %c0_224] : memref<1x4x2xf32, #tpu.memory_space<vmem>>, vector<1x4x1xf32>
    %545 = vector.shape_cast %544 : vector<1x4x1xf32> to vector<4x1xf32>
    %546 = vector.shape_cast %539 : vector<4x1xf32> to vector<1x4x1xf32>
    tpu.vector_store %arg12[%c0_222, %c0_223, %c0_224], %546 {strides = array<i32>} : memref<1x4x2xf32, #tpu.memory_space<vmem>>, vector<1x4x1xf32>,
    %c0_225 = arith.constant 0 : index
    %c0_226 = arith.constant 0 : index
    %c1_227 = arith.constant 1 : index
    %547 = vector.load %arg12[%c0_225, %c0_226, %c1_227] : memref<1x4x2xf32, #tpu.memory_space<vmem>>, vector<1x4x1xf32>
    %548 = vector.shape_cast %547 : vector<1x4x1xf32> to vector<4x1xf32>
    %549 = vector.shape_cast %543 : vector<4x1xf32> to vector<1x4x1xf32>
    tpu.vector_store %arg12[%c0_225, %c0_226, %c1_227], %549 {strides = array<i32>} : memref<1x4x2xf32, #tpu.memory_space<vmem>>, vector<1x4x1xf32>,
    return
  }
  func.func @transform_0(%arg0: i32) -> (i32, i32, i32) {
    %c0_i32 = arith.constant 0 : i32
    %c0_i32_0 = arith.constant 0 : i32
    %c0_i32_1 = arith.constant 0 : i32
    return %arg0, %c0_i32, %c0_i32_0 : i32, i32, i32
  }
  func.func @transform_1(%arg0: i32) -> (i32, i32, i32) {
    %c0_i32 = arith.constant 0 : i32
    %c0_i32_0 = arith.constant 0 : i32
    %c0_i32_1 = arith.constant 0 : i32
    return %arg0, %c0_i32, %c0_i32_0 : i32, i32, i32
  }
  func.func @transform_2(%arg0: i32) -> (i32, i32, i32) {
    %c0_i32 = arith.constant 0 : i32
    %c0_i32_0 = arith.constant 0 : i32
    %c0_i32_1 = arith.constant 0 : i32
    %c0_i32_2 = arith.constant 0 : i32
    return %c0_i32, %c0_i32_0, %c0_i32_1 : i32, i32, i32
  }
  func.func @transform_3(%arg0: i32) -> (i32, i32) {
    %c0_i32 = arith.constant 0 : i32
    %c0_i32_0 = arith.constant 0 : i32
    %c0_i32_1 = arith.constant 0 : i32
    return %c0_i32, %c0_i32_0 : i32, i32
  }
  func.func @transform_4(%arg0: i32) -> (i32, i32) {
    %c0_i32 = arith.constant 0 : i32
    %c0_i32_0 = arith.constant 0 : i32
    %c0_i32_1 = arith.constant 0 : i32
    return %c0_i32, %c0_i32_0 : i32, i32
  }
  func.func @transform_5(%arg0: i32) -> (i32, i32) {
    %c0_i32 = arith.constant 0 : i32
    %c0_i32_0 = arith.constant 0 : i32
    %c0_i32_1 = arith.constant 0 : i32
    return %c0_i32, %c0_i32_0 : i32, i32
  }
  func.func @transform_6(%arg0: i32) -> (i32, i32) {
    %c0_i32 = arith.constant 0 : i32
    %c0_i32_0 = arith.constant 0 : i32
    %c0_i32_1 = arith.constant 0 : i32
    return %c0_i32, %c0_i32_0 : i32, i32
  }
  func.func @transform_7(%arg0: i32) -> (i32, i32) {
    %c0_i32 = arith.constant 0 : i32
    %c0_i32_0 = arith.constant 0 : i32
    %c0_i32_1 = arith.constant 0 : i32
    return %c0_i32, %c0_i32_0 : i32, i32
  }
  func.func @transform_8(%arg0: i32) -> (i32, i32) {
    %c0_i32 = arith.constant 0 : i32
    %c0_i32_0 = arith.constant 0 : i32
    %c0_i32_1 = arith.constant 0 : i32
    return %c0_i32, %c0_i32_0 : i32, i32
  }
  func.func @transform_9(%arg0: i32) -> (i32, i32) {
    %c0_i32 = arith.constant 0 : i32
    %c0_i32_0 = arith.constant 0 : i32
    %c0_i32_1 = arith.constant 0 : i32
    return %c0_i32, %c0_i32_0 : i32, i32
  }
  func.func @transform_10(%arg0: i32) -> (i32, i32, i32, i32) {
    %c0_i32 = arith.constant 0 : i32
    %c0_i32_0 = arith.constant 0 : i32
    %c0_i32_1 = arith.constant 0 : i32
    %c0_i32_2 = arith.constant 0 : i32
    return %arg0, %c0_i32, %c0_i32_0, %c0_i32_1 : i32, i32, i32, i32
  }
  func.func @transform_11(%arg0: i32) -> (i32, i32, i32) {
    %c0_i32 = arith.constant 0 : i32
    %c0_i32_0 = arith.constant 0 : i32
    %c0_i32_1 = arith.constant 0 : i32
    return %arg0, %c0_i32, %c0_i32_0 : i32, i32, i32
  }
}

module attributes {stable_mosaic.version = 11 : i64} {
  func.func @_attn_agg_kernel(%arg0: i32, %arg1: memref<1x9x4x256xbf16, #tpu.memory_space<vmem>>, %arg2: memref<1x16x256xf32, #tpu.memory_space<vmem>>, %arg3: memref<2x256xi32, #tpu.memory_space<vmem>>, %arg4: memref<4x1xf32, #tpu.memory_space<vmem>>, %arg5: memref<4x1xf32, #tpu.memory_space<vmem>>, %arg6: memref<2x4xbf16, #tpu.memory_space<vmem>>, %arg7: memref<2x1xf32, #tpu.memory_space<vmem>>, %arg8: memref<1x16x256xf32, #tpu.memory_space<vmem>>, %arg9: memref<1x16x2xf32, #tpu.memory_space<vmem>>) attributes {dimension_semantics = [#tpu.dimension_semantics<parallel>], iteration_bounds = array<i64: 2>, scalar_prefetch = 0 : i64, scratch_operands = 0 : i64, tpu.core_type = #tpu.core_type<tc>, window_params = [{transform_indices = @transform_0, window_bounds = array<i64: 1, 9, 4, 256>}, {transform_indices = @transform_1, window_bounds = array<i64: 1, 16, 256>}, {pipeline_mode = #tpu.pipeline_mode<synchronous>, transform_indices = @transform_2, window_bounds = array<i64: 2, 256>}, {pipeline_mode = #tpu.pipeline_mode<synchronous>, transform_indices = @transform_3, window_bounds = array<i64: 4, 1>}, {pipeline_mode = #tpu.pipeline_mode<synchronous>, transform_indices = @transform_4, window_bounds = array<i64: 4, 1>}, {pipeline_mode = #tpu.pipeline_mode<synchronous>, transform_indices = @transform_5, window_bounds = array<i64: 2, 4>}, {pipeline_mode = #tpu.pipeline_mode<synchronous>, transform_indices = @transform_6, window_bounds = array<i64: 2, 1>}, {transform_indices = @transform_7, window_bounds = array<i64: 1, 16, 256>}, {transform_indices = @transform_8, window_bounds = array<i64: 1, 16, 2>}]} {
    %c0 = arith.constant 0 : index
    %c0_0 = arith.constant 0 : index
    %0 = vector.load %arg3[%c0, %c0_0] : memref<2x256xi32, #tpu.memory_space<vmem>>, vector<1x256xi32>
    %c1 = arith.constant 1 : index
    %c0_1 = arith.constant 0 : index
    %1 = vector.load %arg3[%c1, %c0_1] : memref<2x256xi32, #tpu.memory_space<vmem>>, vector<1x256xi32>
    %c0_i32 = arith.constant 0 : i32
    %2 = vector.broadcast %c0_i32 : i32 to vector<1x256xi32>
    %3 = arith.cmpi sge, %0, %2 : vector<1x256xi32>
    %4 = arith.extui %3 : vector<1x256xi1> to vector<1x256xi32>
    %5 = arith.sitofp %4 : vector<1x256xi32> to vector<1x256xf32>
    %c0_2 = arith.constant 0 : index
    %c0_3 = arith.constant 0 : index
    %c0_4 = arith.constant 0 : index
    %6 = vector.load %arg2[%c0_2, %c0_3, %c0_4] : memref<1x16x256xf32, #tpu.memory_space<vmem>>, vector<1x16x256xf32>
    %7 = vector.shape_cast %6 : vector<1x16x256xf32> to vector<16x256xf32>
    %c0_5 = arith.constant 0 : index
    %c0_6 = arith.constant 0 : index
    %8 = vector.load %arg6[%c0_5, %c0_6] : memref<2x4xbf16, #tpu.memory_space<vmem>>, vector<2x4xbf16>
    %c0_7 = arith.constant 0 : index
    %c0_8 = arith.constant 0 : index
    %9 = vector.load %arg7[%c0_7, %c0_8] : memref<2x1xf32, #tpu.memory_space<vmem>>, vector<2x1xf32>
    %cst = arith.constant 0xFF800000 : f32
    %10 = vector.broadcast %cst : f32 to vector<2x256xf32>
    %cst_9 = arith.constant 0.000000e+00 : f32
    %11 = vector.broadcast %cst_9 : f32 to vector<2x256xf32>
    %cst_10 = arith.constant 0.000000e+00 : f32
    %12 = vector.broadcast %cst_10 : f32 to vector<8x2x256xf32>
    %c0_11 = arith.constant 0 : index
    %c0_12 = arith.constant 0 : index
    %c0_13 = arith.constant 0 : index
    %c0_14 = arith.constant 0 : index
    %13 = vector.load %arg1[%c0_11, %c0_12, %c0_13, %c0_14] : memref<1x9x4x256xbf16, #tpu.memory_space<vmem>>, vector<1x1x4x256xbf16>
    %14 = vector.shape_cast %13 : vector<1x1x4x256xbf16> to vector<4x256xbf16>
    %15 = arith.extf %14 : vector<4x256xbf16> to vector<4x256xf32>
    %c0_15 = arith.constant 0 : index
    %c0_16 = arith.constant 0 : index
    %16 = vector.load %arg4[%c0_15, %c0_16] : memref<4x1xf32, #tpu.memory_space<vmem>>, vector<4x1xf32>
    %17 = vector.broadcast %16 : vector<4x1xf32> to vector<4x256xf32>
    %18 = arith.mulf %15, %17 : vector<4x256xf32>
    %c0_17 = arith.constant 0 : index
    %c0_18 = arith.constant 0 : index
    %19 = vector.load %arg5[%c0_17, %c0_18] : memref<4x1xf32, #tpu.memory_space<vmem>>, vector<4x1xf32>
    %20 = vector.broadcast %19 : vector<4x1xf32> to vector<4x256xf32>
    %21 = arith.addf %18, %20 : vector<4x256xf32>
    %cst_19 = arith.constant 0.000000e+00 : f32
    %22 = vector.broadcast %cst_19 : f32 to vector<4x256xf32>
    %23 = arith.maximumf %21, %22 : vector<4x256xf32>
    %24 = arith.truncf %23 : vector<4x256xf32> to vector<4x256xbf16>
    %cst_20 = arith.constant dense<0.000000e+00> : vector<2x256xf32>
    %25 = tpu.matmul %8, %24, %cst_20 {dimension_numbers = #tpu.dot_dimension_numbers<[1], [0], [0], [1], [0, 0, 1, 1], [], []>} : vector<2x4xbf16>, vector<4x256xbf16>, vector<2x256xf32> -> vector<2x256xf32>
    %26 = vector.broadcast %9 : vector<2x1xf32> to vector<2x256xf32>
    %27 = arith.addf %25, %26 : vector<2x256xf32>
    %28 = arith.maximumf %10, %27 : vector<2x256xf32>
    %29 = arith.subf %10, %28 : vector<2x256xf32>
    %30 = math.exp %29 : vector<2x256xf32>
    %31 = arith.subf %27, %28 : vector<2x256xf32>
    %32 = math.exp %31 : vector<2x256xf32>
    %c17_i32 = arith.constant 17 : i32
    %33 = tpu.dynamic_rotate %7 by %c17_i32 dim 1 : vector<16x256xf32>, i32 -> vector<16x256xf32>
    %c0_i32_21 = arith.constant 0 : i32
    %34 = vector.broadcast %c0_i32_21 : i32 to vector<1x256xi32>
    %35 = arith.cmpi eq, %1, %34 : vector<1x256xi32>
    %c15_i32 = arith.constant 15 : i32
    %36 = tpu.dynamic_rotate %7 by %c15_i32 dim 1 : vector<16x256xf32>, i32 -> vector<16x256xf32>
    %37 = vector.shape_cast %35 : vector<1x256xi1> to vector<1x256xi1>
    %38 = vector.broadcast %37 : vector<1x256xi1> to vector<16x256xi1>
    %39 = arith.select %38, %36, %33 : vector<16x256xi1>, vector<16x256xf32>
    %c0_i32_22 = arith.constant 0 : i32
    %40 = vector.broadcast %c0_i32_22 : i32 to vector<1x256xi32>
    %41 = arith.cmpi eq, %0, %40 : vector<1x256xi32>
    %c241_i32 = arith.constant 241 : i32
    %42 = tpu.dynamic_rotate %7 by %c241_i32 dim 1 : vector<16x256xf32>, i32 -> vector<16x256xf32>
    %43 = vector.shape_cast %41 : vector<1x256xi1> to vector<1x256xi1>
    %44 = vector.broadcast %43 : vector<1x256xi1> to vector<16x256xi1>
    %45 = arith.select %44, %42, %39 : vector<16x256xi1>, vector<16x256xf32>
    %c0_i32_23 = arith.constant 0 : i32
    %46 = vector.broadcast %c0_i32_23 : i32 to vector<1x256xi32>
    %47 = arith.cmpi eq, %0, %46 : vector<1x256xi32>
    %c0_i32_24 = arith.constant 0 : i32
    %48 = vector.broadcast %c0_i32_24 : i32 to vector<1x256xi32>
    %49 = arith.cmpi eq, %1, %48 : vector<1x256xi32>
    %50 = arith.andi %47, %49 : vector<1x256xi1>
    %c239_i32 = arith.constant 239 : i32
    %51 = tpu.dynamic_rotate %7 by %c239_i32 dim 1 : vector<16x256xf32>, i32 -> vector<16x256xf32>
    %52 = vector.shape_cast %50 : vector<1x256xi1> to vector<1x256xi1>
    %53 = vector.broadcast %52 : vector<1x256xi1> to vector<16x256xi1>
    %54 = arith.select %53, %51, %45 : vector<16x256xi1>, vector<16x256xf32>
    %55 = vector.shape_cast %30 : vector<2x256xf32> to vector<1x2x256xf32>
    %56 = vector.broadcast %55 : vector<1x2x256xf32> to vector<8x2x256xf32>
    %57 = arith.mulf %12, %56 : vector<8x2x256xf32>
    %58 = vector.shape_cast %54 : vector<16x256xf32> to vector<8x2x256xf32>
    %59 = vector.shape_cast %32 : vector<2x256xf32> to vector<1x2x256xf32>
    %60 = vector.broadcast %59 : vector<1x2x256xf32> to vector<8x2x256xf32>
    %61 = arith.mulf %58, %60 : vector<8x2x256xf32>
    %62 = arith.addf %57, %61 : vector<8x2x256xf32>
    %63 = arith.mulf %11, %30 : vector<2x256xf32>
    %64 = arith.addf %63, %32 : vector<2x256xf32>
    %c0_25 = arith.constant 0 : index
    %c1_26 = arith.constant 1 : index
    %c0_27 = arith.constant 0 : index
    %c0_28 = arith.constant 0 : index
    %65 = vector.load %arg1[%c0_25, %c1_26, %c0_27, %c0_28] : memref<1x9x4x256xbf16, #tpu.memory_space<vmem>>, vector<1x1x4x256xbf16>
    %66 = vector.shape_cast %65 : vector<1x1x4x256xbf16> to vector<4x256xbf16>
    %67 = arith.extf %66 : vector<4x256xbf16> to vector<4x256xf32>
    %c0_29 = arith.constant 0 : index
    %c0_30 = arith.constant 0 : index
    %68 = vector.load %arg4[%c0_29, %c0_30] : memref<4x1xf32, #tpu.memory_space<vmem>>, vector<4x1xf32>
    %69 = vector.broadcast %68 : vector<4x1xf32> to vector<4x256xf32>
    %70 = arith.mulf %67, %69 : vector<4x256xf32>
    %c0_31 = arith.constant 0 : index
    %c0_32 = arith.constant 0 : index
    %71 = vector.load %arg5[%c0_31, %c0_32] : memref<4x1xf32, #tpu.memory_space<vmem>>, vector<4x1xf32>
    %72 = vector.broadcast %71 : vector<4x1xf32> to vector<4x256xf32>
    %73 = arith.addf %70, %72 : vector<4x256xf32>
    %cst_33 = arith.constant 0.000000e+00 : f32
    %74 = vector.broadcast %cst_33 : f32 to vector<4x256xf32>
    %75 = arith.maximumf %73, %74 : vector<4x256xf32>
    %76 = arith.truncf %75 : vector<4x256xf32> to vector<4x256xbf16>
    %cst_34 = arith.constant dense<0.000000e+00> : vector<2x256xf32>
    %77 = tpu.matmul %8, %76, %cst_34 {dimension_numbers = #tpu.dot_dimension_numbers<[1], [0], [0], [1], [0, 0, 1, 1], [], []>} : vector<2x4xbf16>, vector<4x256xbf16>, vector<2x256xf32> -> vector<2x256xf32>
    %78 = vector.broadcast %9 : vector<2x1xf32> to vector<2x256xf32>
    %79 = arith.addf %77, %78 : vector<2x256xf32>
    %80 = arith.maximumf %28, %79 : vector<2x256xf32>
    %81 = arith.subf %28, %80 : vector<2x256xf32>
    %82 = math.exp %81 : vector<2x256xf32>
    %83 = arith.subf %79, %80 : vector<2x256xf32>
    %84 = math.exp %83 : vector<2x256xf32>
    %c16_i32 = arith.constant 16 : i32
    %85 = tpu.dynamic_rotate %7 by %c16_i32 dim 1 : vector<16x256xf32>, i32 -> vector<16x256xf32>
    %c0_i32_35 = arith.constant 0 : i32
    %86 = vector.broadcast %c0_i32_35 : i32 to vector<1x256xi32>
    %87 = arith.cmpi eq, %0, %86 : vector<1x256xi32>
    %c240_i32 = arith.constant 240 : i32
    %88 = tpu.dynamic_rotate %7 by %c240_i32 dim 1 : vector<16x256xf32>, i32 -> vector<16x256xf32>
    %89 = vector.shape_cast %87 : vector<1x256xi1> to vector<1x256xi1>
    %90 = vector.broadcast %89 : vector<1x256xi1> to vector<16x256xi1>
    %91 = arith.select %90, %88, %85 : vector<16x256xi1>, vector<16x256xf32>
    %92 = vector.shape_cast %82 : vector<2x256xf32> to vector<1x2x256xf32>
    %93 = vector.broadcast %92 : vector<1x2x256xf32> to vector<8x2x256xf32>
    %94 = arith.mulf %62, %93 : vector<8x2x256xf32>
    %95 = vector.shape_cast %91 : vector<16x256xf32> to vector<8x2x256xf32>
    %96 = vector.shape_cast %84 : vector<2x256xf32> to vector<1x2x256xf32>
    %97 = vector.broadcast %96 : vector<1x2x256xf32> to vector<8x2x256xf32>
    %98 = arith.mulf %95, %97 : vector<8x2x256xf32>
    %99 = arith.addf %94, %98 : vector<8x2x256xf32>
    %100 = arith.mulf %64, %82 : vector<2x256xf32>
    %101 = arith.addf %100, %84 : vector<2x256xf32>
    %c0_36 = arith.constant 0 : index
    %c2 = arith.constant 2 : index
    %c0_37 = arith.constant 0 : index
    %c0_38 = arith.constant 0 : index
    %102 = vector.load %arg1[%c0_36, %c2, %c0_37, %c0_38] : memref<1x9x4x256xbf16, #tpu.memory_space<vmem>>, vector<1x1x4x256xbf16>
    %103 = vector.shape_cast %102 : vector<1x1x4x256xbf16> to vector<4x256xbf16>
    %104 = arith.extf %103 : vector<4x256xbf16> to vector<4x256xf32>
    %c0_39 = arith.constant 0 : index
    %c0_40 = arith.constant 0 : index
    %105 = vector.load %arg4[%c0_39, %c0_40] : memref<4x1xf32, #tpu.memory_space<vmem>>, vector<4x1xf32>
    %106 = vector.broadcast %105 : vector<4x1xf32> to vector<4x256xf32>
    %107 = arith.mulf %104, %106 : vector<4x256xf32>
    %c0_41 = arith.constant 0 : index
    %c0_42 = arith.constant 0 : index
    %108 = vector.load %arg5[%c0_41, %c0_42] : memref<4x1xf32, #tpu.memory_space<vmem>>, vector<4x1xf32>
    %109 = vector.broadcast %108 : vector<4x1xf32> to vector<4x256xf32>
    %110 = arith.addf %107, %109 : vector<4x256xf32>
    %cst_43 = arith.constant 0.000000e+00 : f32
    %111 = vector.broadcast %cst_43 : f32 to vector<4x256xf32>
    %112 = arith.maximumf %110, %111 : vector<4x256xf32>
    %113 = arith.truncf %112 : vector<4x256xf32> to vector<4x256xbf16>
    %cst_44 = arith.constant dense<0.000000e+00> : vector<2x256xf32>
    %114 = tpu.matmul %8, %113, %cst_44 {dimension_numbers = #tpu.dot_dimension_numbers<[1], [0], [0], [1], [0, 0, 1, 1], [], []>} : vector<2x4xbf16>, vector<4x256xbf16>, vector<2x256xf32> -> vector<2x256xf32>
    %115 = vector.broadcast %9 : vector<2x1xf32> to vector<2x256xf32>
    %116 = arith.addf %114, %115 : vector<2x256xf32>
    %117 = arith.maximumf %80, %116 : vector<2x256xf32>
    %118 = arith.subf %80, %117 : vector<2x256xf32>
    %119 = math.exp %118 : vector<2x256xf32>
    %120 = arith.subf %116, %117 : vector<2x256xf32>
    %121 = math.exp %120 : vector<2x256xf32>
    %c15_i32_45 = arith.constant 15 : i32
    %122 = tpu.dynamic_rotate %7 by %c15_i32_45 dim 1 : vector<16x256xf32>, i32 -> vector<16x256xf32>
    %c15_i32_46 = arith.constant 15 : i32
    %123 = vector.broadcast %c15_i32_46 : i32 to vector<1x256xi32>
    %124 = arith.cmpi eq, %1, %123 : vector<1x256xi32>
    %c17_i32_47 = arith.constant 17 : i32
    %125 = tpu.dynamic_rotate %7 by %c17_i32_47 dim 1 : vector<16x256xf32>, i32 -> vector<16x256xf32>
    %126 = vector.shape_cast %124 : vector<1x256xi1> to vector<1x256xi1>
    %127 = vector.broadcast %126 : vector<1x256xi1> to vector<16x256xi1>
    %128 = arith.select %127, %125, %122 : vector<16x256xi1>, vector<16x256xf32>
    %c0_i32_48 = arith.constant 0 : i32
    %129 = vector.broadcast %c0_i32_48 : i32 to vector<1x256xi32>
    %130 = arith.cmpi eq, %0, %129 : vector<1x256xi32>
    %c239_i32_49 = arith.constant 239 : i32
    %131 = tpu.dynamic_rotate %7 by %c239_i32_49 dim 1 : vector<16x256xf32>, i32 -> vector<16x256xf32>
    %132 = vector.shape_cast %130 : vector<1x256xi1> to vector<1x256xi1>
    %133 = vector.broadcast %132 : vector<1x256xi1> to vector<16x256xi1>
    %134 = arith.select %133, %131, %128 : vector<16x256xi1>, vector<16x256xf32>
    %c0_i32_50 = arith.constant 0 : i32
    %135 = vector.broadcast %c0_i32_50 : i32 to vector<1x256xi32>
    %136 = arith.cmpi eq, %0, %135 : vector<1x256xi32>
    %c15_i32_51 = arith.constant 15 : i32
    %137 = vector.broadcast %c15_i32_51 : i32 to vector<1x256xi32>
    %138 = arith.cmpi eq, %1, %137 : vector<1x256xi32>
    %139 = arith.andi %136, %138 : vector<1x256xi1>
    %c241_i32_52 = arith.constant 241 : i32
    %140 = tpu.dynamic_rotate %7 by %c241_i32_52 dim 1 : vector<16x256xf32>, i32 -> vector<16x256xf32>
    %141 = vector.shape_cast %139 : vector<1x256xi1> to vector<1x256xi1>
    %142 = vector.broadcast %141 : vector<1x256xi1> to vector<16x256xi1>
    %143 = arith.select %142, %140, %134 : vector<16x256xi1>, vector<16x256xf32>
    %144 = vector.shape_cast %119 : vector<2x256xf32> to vector<1x2x256xf32>
    %145 = vector.broadcast %144 : vector<1x2x256xf32> to vector<8x2x256xf32>
    %146 = arith.mulf %99, %145 : vector<8x2x256xf32>
    %147 = vector.shape_cast %143 : vector<16x256xf32> to vector<8x2x256xf32>
    %148 = vector.shape_cast %121 : vector<2x256xf32> to vector<1x2x256xf32>
    %149 = vector.broadcast %148 : vector<1x2x256xf32> to vector<8x2x256xf32>
    %150 = arith.mulf %147, %149 : vector<8x2x256xf32>
    %151 = arith.addf %146, %150 : vector<8x2x256xf32>
    %152 = arith.mulf %101, %119 : vector<2x256xf32>
    %153 = arith.addf %152, %121 : vector<2x256xf32>
    %c0_53 = arith.constant 0 : index
    %c3 = arith.constant 3 : index
    %c0_54 = arith.constant 0 : index
    %c0_55 = arith.constant 0 : index
    %154 = vector.load %arg1[%c0_53, %c3, %c0_54, %c0_55] : memref<1x9x4x256xbf16, #tpu.memory_space<vmem>>, vector<1x1x4x256xbf16>
    %155 = vector.shape_cast %154 : vector<1x1x4x256xbf16> to vector<4x256xbf16>
    %156 = arith.extf %155 : vector<4x256xbf16> to vector<4x256xf32>
    %c0_56 = arith.constant 0 : index
    %c0_57 = arith.constant 0 : index
    %157 = vector.load %arg4[%c0_56, %c0_57] : memref<4x1xf32, #tpu.memory_space<vmem>>, vector<4x1xf32>
    %158 = vector.broadcast %157 : vector<4x1xf32> to vector<4x256xf32>
    %159 = arith.mulf %156, %158 : vector<4x256xf32>
    %c0_58 = arith.constant 0 : index
    %c0_59 = arith.constant 0 : index
    %160 = vector.load %arg5[%c0_58, %c0_59] : memref<4x1xf32, #tpu.memory_space<vmem>>, vector<4x1xf32>
    %161 = vector.broadcast %160 : vector<4x1xf32> to vector<4x256xf32>
    %162 = arith.addf %159, %161 : vector<4x256xf32>
    %cst_60 = arith.constant 0.000000e+00 : f32
    %163 = vector.broadcast %cst_60 : f32 to vector<4x256xf32>
    %164 = arith.maximumf %162, %163 : vector<4x256xf32>
    %165 = arith.truncf %164 : vector<4x256xf32> to vector<4x256xbf16>
    %cst_61 = arith.constant dense<0.000000e+00> : vector<2x256xf32>
    %166 = tpu.matmul %8, %165, %cst_61 {dimension_numbers = #tpu.dot_dimension_numbers<[1], [0], [0], [1], [0, 0, 1, 1], [], []>} : vector<2x4xbf16>, vector<4x256xbf16>, vector<2x256xf32> -> vector<2x256xf32>
    %167 = vector.broadcast %9 : vector<2x1xf32> to vector<2x256xf32>
    %168 = arith.addf %166, %167 : vector<2x256xf32>
    %169 = arith.maximumf %117, %168 : vector<2x256xf32>
    %170 = arith.subf %117, %169 : vector<2x256xf32>
    %171 = math.exp %170 : vector<2x256xf32>
    %172 = arith.subf %168, %169 : vector<2x256xf32>
    %173 = math.exp %172 : vector<2x256xf32>
    %c1_i32 = arith.constant 1 : i32
    %174 = tpu.dynamic_rotate %7 by %c1_i32 dim 1 : vector<16x256xf32>, i32 -> vector<16x256xf32>
    %c0_i32_62 = arith.constant 0 : i32
    %175 = vector.broadcast %c0_i32_62 : i32 to vector<1x256xi32>
    %176 = arith.cmpi eq, %1, %175 : vector<1x256xi32>
    %c255_i32 = arith.constant 255 : i32
    %177 = tpu.dynamic_rotate %7 by %c255_i32 dim 1 : vector<16x256xf32>, i32 -> vector<16x256xf32>
    %178 = vector.shape_cast %176 : vector<1x256xi1> to vector<1x256xi1>
    %179 = vector.broadcast %178 : vector<1x256xi1> to vector<16x256xi1>
    %180 = arith.select %179, %177, %174 : vector<16x256xi1>, vector<16x256xf32>
    %181 = vector.shape_cast %171 : vector<2x256xf32> to vector<1x2x256xf32>
    %182 = vector.broadcast %181 : vector<1x2x256xf32> to vector<8x2x256xf32>
    %183 = arith.mulf %151, %182 : vector<8x2x256xf32>
    %184 = vector.shape_cast %180 : vector<16x256xf32> to vector<8x2x256xf32>
    %185 = vector.shape_cast %173 : vector<2x256xf32> to vector<1x2x256xf32>
    %186 = vector.broadcast %185 : vector<1x2x256xf32> to vector<8x2x256xf32>
    %187 = arith.mulf %184, %186 : vector<8x2x256xf32>
    %188 = arith.addf %183, %187 : vector<8x2x256xf32>
    %189 = arith.mulf %153, %171 : vector<2x256xf32>
    %190 = arith.addf %189, %173 : vector<2x256xf32>
    %c0_63 = arith.constant 0 : index
    %c4 = arith.constant 4 : index
    %c0_64 = arith.constant 0 : index
    %c0_65 = arith.constant 0 : index
    %191 = vector.load %arg1[%c0_63, %c4, %c0_64, %c0_65] : memref<1x9x4x256xbf16, #tpu.memory_space<vmem>>, vector<1x1x4x256xbf16>
    %192 = vector.shape_cast %191 : vector<1x1x4x256xbf16> to vector<4x256xbf16>
    %193 = arith.extf %192 : vector<4x256xbf16> to vector<4x256xf32>
    %c0_66 = arith.constant 0 : index
    %c0_67 = arith.constant 0 : index
    %194 = vector.load %arg4[%c0_66, %c0_67] : memref<4x1xf32, #tpu.memory_space<vmem>>, vector<4x1xf32>
    %195 = vector.broadcast %194 : vector<4x1xf32> to vector<4x256xf32>
    %196 = arith.mulf %193, %195 : vector<4x256xf32>
    %c0_68 = arith.constant 0 : index
    %c0_69 = arith.constant 0 : index
    %197 = vector.load %arg5[%c0_68, %c0_69] : memref<4x1xf32, #tpu.memory_space<vmem>>, vector<4x1xf32>
    %198 = vector.broadcast %197 : vector<4x1xf32> to vector<4x256xf32>
    %199 = arith.addf %196, %198 : vector<4x256xf32>
    %cst_70 = arith.constant 0.000000e+00 : f32
    %200 = vector.broadcast %cst_70 : f32 to vector<4x256xf32>
    %201 = arith.maximumf %199, %200 : vector<4x256xf32>
    %202 = arith.truncf %201 : vector<4x256xf32> to vector<4x256xbf16>
    %cst_71 = arith.constant dense<0.000000e+00> : vector<2x256xf32>
    %203 = tpu.matmul %8, %202, %cst_71 {dimension_numbers = #tpu.dot_dimension_numbers<[1], [0], [0], [1], [0, 0, 1, 1], [], []>} : vector<2x4xbf16>, vector<4x256xbf16>, vector<2x256xf32> -> vector<2x256xf32>
    %204 = vector.broadcast %9 : vector<2x1xf32> to vector<2x256xf32>
    %205 = arith.addf %203, %204 : vector<2x256xf32>
    %206 = arith.maximumf %169, %205 : vector<2x256xf32>
    %207 = arith.subf %169, %206 : vector<2x256xf32>
    %208 = math.exp %207 : vector<2x256xf32>
    %209 = arith.subf %205, %206 : vector<2x256xf32>
    %210 = math.exp %209 : vector<2x256xf32>
    %211 = vector.shape_cast %208 : vector<2x256xf32> to vector<1x2x256xf32>
    %212 = vector.broadcast %211 : vector<1x2x256xf32> to vector<8x2x256xf32>
    %213 = arith.mulf %188, %212 : vector<8x2x256xf32>
    %214 = vector.shape_cast %7 : vector<16x256xf32> to vector<8x2x256xf32>
    %215 = vector.shape_cast %210 : vector<2x256xf32> to vector<1x2x256xf32>
    %216 = vector.broadcast %215 : vector<1x2x256xf32> to vector<8x2x256xf32>
    %217 = arith.mulf %214, %216 : vector<8x2x256xf32>
    %218 = arith.addf %213, %217 : vector<8x2x256xf32>
    %219 = arith.mulf %190, %208 : vector<2x256xf32>
    %220 = arith.addf %219, %210 : vector<2x256xf32>
    %c0_72 = arith.constant 0 : index
    %c5 = arith.constant 5 : index
    %c0_73 = arith.constant 0 : index
    %c0_74 = arith.constant 0 : index
    %221 = vector.load %arg1[%c0_72, %c5, %c0_73, %c0_74] : memref<1x9x4x256xbf16, #tpu.memory_space<vmem>>, vector<1x1x4x256xbf16>
    %222 = vector.shape_cast %221 : vector<1x1x4x256xbf16> to vector<4x256xbf16>
    %223 = arith.extf %222 : vector<4x256xbf16> to vector<4x256xf32>
    %c0_75 = arith.constant 0 : index
    %c0_76 = arith.constant 0 : index
    %224 = vector.load %arg4[%c0_75, %c0_76] : memref<4x1xf32, #tpu.memory_space<vmem>>, vector<4x1xf32>
    %225 = vector.broadcast %224 : vector<4x1xf32> to vector<4x256xf32>
    %226 = arith.mulf %223, %225 : vector<4x256xf32>
    %c0_77 = arith.constant 0 : index
    %c0_78 = arith.constant 0 : index
    %227 = vector.load %arg5[%c0_77, %c0_78] : memref<4x1xf32, #tpu.memory_space<vmem>>, vector<4x1xf32>
    %228 = vector.broadcast %227 : vector<4x1xf32> to vector<4x256xf32>
    %229 = arith.addf %226, %228 : vector<4x256xf32>
    %cst_79 = arith.constant 0.000000e+00 : f32
    %230 = vector.broadcast %cst_79 : f32 to vector<4x256xf32>
    %231 = arith.maximumf %229, %230 : vector<4x256xf32>
    %232 = arith.truncf %231 : vector<4x256xf32> to vector<4x256xbf16>
    %cst_80 = arith.constant dense<0.000000e+00> : vector<2x256xf32>
    %233 = tpu.matmul %8, %232, %cst_80 {dimension_numbers = #tpu.dot_dimension_numbers<[1], [0], [0], [1], [0, 0, 1, 1], [], []>} : vector<2x4xbf16>, vector<4x256xbf16>, vector<2x256xf32> -> vector<2x256xf32>
    %234 = vector.broadcast %9 : vector<2x1xf32> to vector<2x256xf32>
    %235 = arith.addf %233, %234 : vector<2x256xf32>
    %236 = arith.maximumf %206, %235 : vector<2x256xf32>
    %237 = arith.subf %206, %236 : vector<2x256xf32>
    %238 = math.exp %237 : vector<2x256xf32>
    %239 = arith.subf %235, %236 : vector<2x256xf32>
    %240 = math.exp %239 : vector<2x256xf32>
    %c255_i32_81 = arith.constant 255 : i32
    %241 = tpu.dynamic_rotate %7 by %c255_i32_81 dim 1 : vector<16x256xf32>, i32 -> vector<16x256xf32>
    %c15_i32_82 = arith.constant 15 : i32
    %242 = vector.broadcast %c15_i32_82 : i32 to vector<1x256xi32>
    %243 = arith.cmpi eq, %1, %242 : vector<1x256xi32>
    %c1_i32_83 = arith.constant 1 : i32
    %244 = tpu.dynamic_rotate %7 by %c1_i32_83 dim 1 : vector<16x256xf32>, i32 -> vector<16x256xf32>
    %245 = vector.shape_cast %243 : vector<1x256xi1> to vector<1x256xi1>
    %246 = vector.broadcast %245 : vector<1x256xi1> to vector<16x256xi1>
    %247 = arith.select %246, %244, %241 : vector<16x256xi1>, vector<16x256xf32>
    %248 = vector.shape_cast %238 : vector<2x256xf32> to vector<1x2x256xf32>
    %249 = vector.broadcast %248 : vector<1x2x256xf32> to vector<8x2x256xf32>
    %250 = arith.mulf %218, %249 : vector<8x2x256xf32>
    %251 = vector.shape_cast %247 : vector<16x256xf32> to vector<8x2x256xf32>
    %252 = vector.shape_cast %240 : vector<2x256xf32> to vector<1x2x256xf32>
    %253 = vector.broadcast %252 : vector<1x2x256xf32> to vector<8x2x256xf32>
    %254 = arith.mulf %251, %253 : vector<8x2x256xf32>
    %255 = arith.addf %250, %254 : vector<8x2x256xf32>
    %256 = arith.mulf %220, %238 : vector<2x256xf32>
    %257 = arith.addf %256, %240 : vector<2x256xf32>
    %c0_84 = arith.constant 0 : index
    %c6 = arith.constant 6 : index
    %c0_85 = arith.constant 0 : index
    %c0_86 = arith.constant 0 : index
    %258 = vector.load %arg1[%c0_84, %c6, %c0_85, %c0_86] : memref<1x9x4x256xbf16, #tpu.memory_space<vmem>>, vector<1x1x4x256xbf16>
    %259 = vector.shape_cast %258 : vector<1x1x4x256xbf16> to vector<4x256xbf16>
    %260 = arith.extf %259 : vector<4x256xbf16> to vector<4x256xf32>
    %c0_87 = arith.constant 0 : index
    %c0_88 = arith.constant 0 : index
    %261 = vector.load %arg4[%c0_87, %c0_88] : memref<4x1xf32, #tpu.memory_space<vmem>>, vector<4x1xf32>
    %262 = vector.broadcast %261 : vector<4x1xf32> to vector<4x256xf32>
    %263 = arith.mulf %260, %262 : vector<4x256xf32>
    %c0_89 = arith.constant 0 : index
    %c0_90 = arith.constant 0 : index
    %264 = vector.load %arg5[%c0_89, %c0_90] : memref<4x1xf32, #tpu.memory_space<vmem>>, vector<4x1xf32>
    %265 = vector.broadcast %264 : vector<4x1xf32> to vector<4x256xf32>
    %266 = arith.addf %263, %265 : vector<4x256xf32>
    %cst_91 = arith.constant 0.000000e+00 : f32
    %267 = vector.broadcast %cst_91 : f32 to vector<4x256xf32>
    %268 = arith.maximumf %266, %267 : vector<4x256xf32>
    %269 = arith.truncf %268 : vector<4x256xf32> to vector<4x256xbf16>
    %cst_92 = arith.constant dense<0.000000e+00> : vector<2x256xf32>
    %270 = tpu.matmul %8, %269, %cst_92 {dimension_numbers = #tpu.dot_dimension_numbers<[1], [0], [0], [1], [0, 0, 1, 1], [], []>} : vector<2x4xbf16>, vector<4x256xbf16>, vector<2x256xf32> -> vector<2x256xf32>
    %271 = vector.broadcast %9 : vector<2x1xf32> to vector<2x256xf32>
    %272 = arith.addf %270, %271 : vector<2x256xf32>
    %273 = arith.maximumf %236, %272 : vector<2x256xf32>
    %274 = arith.subf %236, %273 : vector<2x256xf32>
    %275 = math.exp %274 : vector<2x256xf32>
    %276 = arith.subf %272, %273 : vector<2x256xf32>
    %277 = math.exp %276 : vector<2x256xf32>
    %c241_i32_93 = arith.constant 241 : i32
    %278 = tpu.dynamic_rotate %7 by %c241_i32_93 dim 1 : vector<16x256xf32>, i32 -> vector<16x256xf32>
    %c0_i32_94 = arith.constant 0 : i32
    %279 = vector.broadcast %c0_i32_94 : i32 to vector<1x256xi32>
    %280 = arith.cmpi eq, %1, %279 : vector<1x256xi32>
    %c239_i32_95 = arith.constant 239 : i32
    %281 = tpu.dynamic_rotate %7 by %c239_i32_95 dim 1 : vector<16x256xf32>, i32 -> vector<16x256xf32>
    %282 = vector.shape_cast %280 : vector<1x256xi1> to vector<1x256xi1>
    %283 = vector.broadcast %282 : vector<1x256xi1> to vector<16x256xi1>
    %284 = arith.select %283, %281, %278 : vector<16x256xi1>, vector<16x256xf32>
    %c15_i32_96 = arith.constant 15 : i32
    %285 = vector.broadcast %c15_i32_96 : i32 to vector<1x256xi32>
    %286 = arith.cmpi eq, %0, %285 : vector<1x256xi32>
    %c17_i32_97 = arith.constant 17 : i32
    %287 = tpu.dynamic_rotate %7 by %c17_i32_97 dim 1 : vector<16x256xf32>, i32 -> vector<16x256xf32>
    %288 = vector.shape_cast %286 : vector<1x256xi1> to vector<1x256xi1>
    %289 = vector.broadcast %288 : vector<1x256xi1> to vector<16x256xi1>
    %290 = arith.select %289, %287, %284 : vector<16x256xi1>, vector<16x256xf32>
    %c15_i32_98 = arith.constant 15 : i32
    %291 = vector.broadcast %c15_i32_98 : i32 to vector<1x256xi32>
    %292 = arith.cmpi eq, %0, %291 : vector<1x256xi32>
    %c0_i32_99 = arith.constant 0 : i32
    %293 = vector.broadcast %c0_i32_99 : i32 to vector<1x256xi32>
    %294 = arith.cmpi eq, %1, %293 : vector<1x256xi32>
    %295 = arith.andi %292, %294 : vector<1x256xi1>
    %c15_i32_100 = arith.constant 15 : i32
    %296 = tpu.dynamic_rotate %7 by %c15_i32_100 dim 1 : vector<16x256xf32>, i32 -> vector<16x256xf32>
    %297 = vector.shape_cast %295 : vector<1x256xi1> to vector<1x256xi1>
    %298 = vector.broadcast %297 : vector<1x256xi1> to vector<16x256xi1>
    %299 = arith.select %298, %296, %290 : vector<16x256xi1>, vector<16x256xf32>
    %300 = vector.shape_cast %275 : vector<2x256xf32> to vector<1x2x256xf32>
    %301 = vector.broadcast %300 : vector<1x2x256xf32> to vector<8x2x256xf32>
    %302 = arith.mulf %255, %301 : vector<8x2x256xf32>
    %303 = vector.shape_cast %299 : vector<16x256xf32> to vector<8x2x256xf32>
    %304 = vector.shape_cast %277 : vector<2x256xf32> to vector<1x2x256xf32>
    %305 = vector.broadcast %304 : vector<1x2x256xf32> to vector<8x2x256xf32>
    %306 = arith.mulf %303, %305 : vector<8x2x256xf32>
    %307 = arith.addf %302, %306 : vector<8x2x256xf32>
    %308 = arith.mulf %257, %275 : vector<2x256xf32>
    %309 = arith.addf %308, %277 : vector<2x256xf32>
    %c0_101 = arith.constant 0 : index
    %c7 = arith.constant 7 : index
    %c0_102 = arith.constant 0 : index
    %c0_103 = arith.constant 0 : index
    %310 = vector.load %arg1[%c0_101, %c7, %c0_102, %c0_103] : memref<1x9x4x256xbf16, #tpu.memory_space<vmem>>, vector<1x1x4x256xbf16>
    %311 = vector.shape_cast %310 : vector<1x1x4x256xbf16> to vector<4x256xbf16>
    %312 = arith.extf %311 : vector<4x256xbf16> to vector<4x256xf32>
    %c0_104 = arith.constant 0 : index
    %c0_105 = arith.constant 0 : index
    %313 = vector.load %arg4[%c0_104, %c0_105] : memref<4x1xf32, #tpu.memory_space<vmem>>, vector<4x1xf32>
    %314 = vector.broadcast %313 : vector<4x1xf32> to vector<4x256xf32>
    %315 = arith.mulf %312, %314 : vector<4x256xf32>
    %c0_106 = arith.constant 0 : index
    %c0_107 = arith.constant 0 : index
    %316 = vector.load %arg5[%c0_106, %c0_107] : memref<4x1xf32, #tpu.memory_space<vmem>>, vector<4x1xf32>
    %317 = vector.broadcast %316 : vector<4x1xf32> to vector<4x256xf32>
    %318 = arith.addf %315, %317 : vector<4x256xf32>
    %cst_108 = arith.constant 0.000000e+00 : f32
    %319 = vector.broadcast %cst_108 : f32 to vector<4x256xf32>
    %320 = arith.maximumf %318, %319 : vector<4x256xf32>
    %321 = arith.truncf %320 : vector<4x256xf32> to vector<4x256xbf16>
    %cst_109 = arith.constant dense<0.000000e+00> : vector<2x256xf32>
    %322 = tpu.matmul %8, %321, %cst_109 {dimension_numbers = #tpu.dot_dimension_numbers<[1], [0], [0], [1], [0, 0, 1, 1], [], []>} : vector<2x4xbf16>, vector<4x256xbf16>, vector<2x256xf32> -> vector<2x256xf32>
    %323 = vector.broadcast %9 : vector<2x1xf32> to vector<2x256xf32>
    %324 = arith.addf %322, %323 : vector<2x256xf32>
    %325 = arith.maximumf %273, %324 : vector<2x256xf32>
    %326 = arith.subf %273, %325 : vector<2x256xf32>
    %327 = math.exp %326 : vector<2x256xf32>
    %328 = arith.subf %324, %325 : vector<2x256xf32>
    %329 = math.exp %328 : vector<2x256xf32>
    %c240_i32_110 = arith.constant 240 : i32
    %330 = tpu.dynamic_rotate %7 by %c240_i32_110 dim 1 : vector<16x256xf32>, i32 -> vector<16x256xf32>
    %c15_i32_111 = arith.constant 15 : i32
    %331 = vector.broadcast %c15_i32_111 : i32 to vector<1x256xi32>
    %332 = arith.cmpi eq, %0, %331 : vector<1x256xi32>
    %c16_i32_112 = arith.constant 16 : i32
    %333 = tpu.dynamic_rotate %7 by %c16_i32_112 dim 1 : vector<16x256xf32>, i32 -> vector<16x256xf32>
    %334 = vector.shape_cast %332 : vector<1x256xi1> to vector<1x256xi1>
    %335 = vector.broadcast %334 : vector<1x256xi1> to vector<16x256xi1>
    %336 = arith.select %335, %333, %330 : vector<16x256xi1>, vector<16x256xf32>
    %337 = vector.shape_cast %327 : vector<2x256xf32> to vector<1x2x256xf32>
    %338 = vector.broadcast %337 : vector<1x2x256xf32> to vector<8x2x256xf32>
    %339 = arith.mulf %307, %338 : vector<8x2x256xf32>
    %340 = vector.shape_cast %336 : vector<16x256xf32> to vector<8x2x256xf32>
    %341 = vector.shape_cast %329 : vector<2x256xf32> to vector<1x2x256xf32>
    %342 = vector.broadcast %341 : vector<1x2x256xf32> to vector<8x2x256xf32>
    %343 = arith.mulf %340, %342 : vector<8x2x256xf32>
    %344 = arith.addf %339, %343 : vector<8x2x256xf32>
    %345 = arith.mulf %309, %327 : vector<2x256xf32>
    %346 = arith.addf %345, %329 : vector<2x256xf32>
    %c0_113 = arith.constant 0 : index
    %c8 = arith.constant 8 : index
    %c0_114 = arith.constant 0 : index
    %c0_115 = arith.constant 0 : index
    %347 = vector.load %arg1[%c0_113, %c8, %c0_114, %c0_115] : memref<1x9x4x256xbf16, #tpu.memory_space<vmem>>, vector<1x1x4x256xbf16>
    %348 = vector.shape_cast %347 : vector<1x1x4x256xbf16> to vector<4x256xbf16>
    %349 = arith.extf %348 : vector<4x256xbf16> to vector<4x256xf32>
    %c0_116 = arith.constant 0 : index
    %c0_117 = arith.constant 0 : index
    %350 = vector.load %arg4[%c0_116, %c0_117] : memref<4x1xf32, #tpu.memory_space<vmem>>, vector<4x1xf32>
    %351 = vector.broadcast %350 : vector<4x1xf32> to vector<4x256xf32>
    %352 = arith.mulf %349, %351 : vector<4x256xf32>
    %c0_118 = arith.constant 0 : index
    %c0_119 = arith.constant 0 : index
    %353 = vector.load %arg5[%c0_118, %c0_119] : memref<4x1xf32, #tpu.memory_space<vmem>>, vector<4x1xf32>
    %354 = vector.broadcast %353 : vector<4x1xf32> to vector<4x256xf32>
    %355 = arith.addf %352, %354 : vector<4x256xf32>
    %cst_120 = arith.constant 0.000000e+00 : f32
    %356 = vector.broadcast %cst_120 : f32 to vector<4x256xf32>
    %357 = arith.maximumf %355, %356 : vector<4x256xf32>
    %358 = arith.truncf %357 : vector<4x256xf32> to vector<4x256xbf16>
    %cst_121 = arith.constant dense<0.000000e+00> : vector<2x256xf32>
    %359 = tpu.matmul %8, %358, %cst_121 {dimension_numbers = #tpu.dot_dimension_numbers<[1], [0], [0], [1], [0, 0, 1, 1], [], []>} : vector<2x4xbf16>, vector<4x256xbf16>, vector<2x256xf32> -> vector<2x256xf32>
    %360 = vector.broadcast %9 : vector<2x1xf32> to vector<2x256xf32>
    %361 = arith.addf %359, %360 : vector<2x256xf32>
    %362 = arith.maximumf %325, %361 : vector<2x256xf32>
    %363 = arith.subf %325, %362 : vector<2x256xf32>
    %364 = math.exp %363 : vector<2x256xf32>
    %365 = arith.subf %361, %362 : vector<2x256xf32>
    %366 = math.exp %365 : vector<2x256xf32>
    %c239_i32_122 = arith.constant 239 : i32
    %367 = tpu.dynamic_rotate %7 by %c239_i32_122 dim 1 : vector<16x256xf32>, i32 -> vector<16x256xf32>
    %c15_i32_123 = arith.constant 15 : i32
    %368 = vector.broadcast %c15_i32_123 : i32 to vector<1x256xi32>
    %369 = arith.cmpi eq, %1, %368 : vector<1x256xi32>
    %c241_i32_124 = arith.constant 241 : i32
    %370 = tpu.dynamic_rotate %7 by %c241_i32_124 dim 1 : vector<16x256xf32>, i32 -> vector<16x256xf32>
    %371 = vector.shape_cast %369 : vector<1x256xi1> to vector<1x256xi1>
    %372 = vector.broadcast %371 : vector<1x256xi1> to vector<16x256xi1>
    %373 = arith.select %372, %370, %367 : vector<16x256xi1>, vector<16x256xf32>
    %c15_i32_125 = arith.constant 15 : i32
    %374 = vector.broadcast %c15_i32_125 : i32 to vector<1x256xi32>
    %375 = arith.cmpi eq, %0, %374 : vector<1x256xi32>
    %c15_i32_126 = arith.constant 15 : i32
    %376 = tpu.dynamic_rotate %7 by %c15_i32_126 dim 1 : vector<16x256xf32>, i32 -> vector<16x256xf32>
    %377 = vector.shape_cast %375 : vector<1x256xi1> to vector<1x256xi1>
    %378 = vector.broadcast %377 : vector<1x256xi1> to vector<16x256xi1>
    %379 = arith.select %378, %376, %373 : vector<16x256xi1>, vector<16x256xf32>
    %c15_i32_127 = arith.constant 15 : i32
    %380 = vector.broadcast %c15_i32_127 : i32 to vector<1x256xi32>
    %381 = arith.cmpi eq, %0, %380 : vector<1x256xi32>
    %c15_i32_128 = arith.constant 15 : i32
    %382 = vector.broadcast %c15_i32_128 : i32 to vector<1x256xi32>
    %383 = arith.cmpi eq, %1, %382 : vector<1x256xi32>
    %384 = arith.andi %381, %383 : vector<1x256xi1>
    %c17_i32_129 = arith.constant 17 : i32
    %385 = tpu.dynamic_rotate %7 by %c17_i32_129 dim 1 : vector<16x256xf32>, i32 -> vector<16x256xf32>
    %386 = vector.shape_cast %384 : vector<1x256xi1> to vector<1x256xi1>
    %387 = vector.broadcast %386 : vector<1x256xi1> to vector<16x256xi1>
    %388 = arith.select %387, %385, %379 : vector<16x256xi1>, vector<16x256xf32>
    %389 = vector.shape_cast %364 : vector<2x256xf32> to vector<1x2x256xf32>
    %390 = vector.broadcast %389 : vector<1x2x256xf32> to vector<8x2x256xf32>
    %391 = arith.mulf %344, %390 : vector<8x2x256xf32>
    %392 = vector.shape_cast %388 : vector<16x256xf32> to vector<8x2x256xf32>
    %393 = vector.shape_cast %366 : vector<2x256xf32> to vector<1x2x256xf32>
    %394 = vector.broadcast %393 : vector<1x2x256xf32> to vector<8x2x256xf32>
    %395 = arith.mulf %392, %394 : vector<8x2x256xf32>
    %396 = arith.addf %391, %395 : vector<8x2x256xf32>
    %397 = arith.mulf %346, %364 : vector<2x256xf32>
    %398 = arith.addf %397, %366 : vector<2x256xf32>
    %cst_130 = arith.constant 1.000000e+00 : f32
    %399 = vector.broadcast %cst_130 : f32 to vector<2x256xf32>
    %400 = arith.divf %399, %398 : vector<2x256xf32>
    %401 = vector.shape_cast %400 : vector<2x256xf32> to vector<1x2x256xf32>
    %402 = vector.broadcast %401 : vector<1x2x256xf32> to vector<8x2x256xf32>
    %403 = arith.mulf %396, %402 : vector<8x2x256xf32>
    %404 = vector.shape_cast %403 : vector<8x2x256xf32> to vector<16x256xf32>
    %c0_131 = arith.constant 0 : index
    %c0_132 = arith.constant 0 : index
    %c0_133 = arith.constant 0 : index
    %405 = vector.load %arg8[%c0_131, %c0_132, %c0_133] : memref<1x16x256xf32, #tpu.memory_space<vmem>>, vector<1x16x256xf32>
    %406 = vector.shape_cast %405 : vector<1x16x256xf32> to vector<16x256xf32>
    %407 = vector.shape_cast %404 : vector<16x256xf32> to vector<1x16x256xf32>
    tpu.vector_store %arg8[%c0_131, %c0_132, %c0_133], %407 {strides = array<i32>} : memref<1x16x256xf32, #tpu.memory_space<vmem>>, vector<1x16x256xf32>,
    %408 = vector.broadcast %5 : vector<1x256xf32> to vector<16x256xf32>
    %409 = arith.mulf %404, %408 : vector<16x256xf32>
    %cst_134 = arith.constant dense<0.000000e+00> : vector<16xf32>
    %410 = vector.multi_reduction <add>, %409, %cst_134 [1] : vector<16x256xf32> to vector<16xf32>
    %411 = vector.shape_cast %410 : vector<16xf32> to vector<16x1xf32>
    %c0_135 = arith.constant 0 : index
    %c0_136 = arith.constant 0 : index
    %c0_137 = arith.constant 0 : index
    %412 = vector.load %arg9[%c0_135, %c0_136, %c0_137] : memref<1x16x2xf32, #tpu.memory_space<vmem>>, vector<1x16x1xf32>
    %413 = vector.shape_cast %412 : vector<1x16x1xf32> to vector<16x1xf32>
    %414 = vector.shape_cast %411 : vector<16x1xf32> to vector<1x16x1xf32>
    tpu.vector_store %arg9[%c0_135, %c0_136, %c0_137], %414 {strides = array<i32>} : memref<1x16x2xf32, #tpu.memory_space<vmem>>, vector<1x16x1xf32>,
    %415 = arith.mulf %409, %409 : vector<16x256xf32>
    %cst_138 = arith.constant dense<0.000000e+00> : vector<16xf32>
    %416 = vector.multi_reduction <add>, %415, %cst_138 [1] : vector<16x256xf32> to vector<16xf32>
    %417 = vector.shape_cast %416 : vector<16xf32> to vector<16x1xf32>
    %c0_139 = arith.constant 0 : index
    %c0_140 = arith.constant 0 : index
    %c1_141 = arith.constant 1 : index
    %418 = vector.load %arg9[%c0_139, %c0_140, %c1_141] : memref<1x16x2xf32, #tpu.memory_space<vmem>>, vector<1x16x1xf32>
    %419 = vector.shape_cast %418 : vector<1x16x1xf32> to vector<16x1xf32>
    %420 = vector.shape_cast %417 : vector<16x1xf32> to vector<1x16x1xf32>
    tpu.vector_store %arg9[%c0_139, %c0_140, %c1_141], %420 {strides = array<i32>} : memref<1x16x2xf32, #tpu.memory_space<vmem>>, vector<1x16x1xf32>,
    return
  }
  func.func @transform_0(%arg0: i32) -> (i32, i32, i32, i32) {
    %c0_i32 = arith.constant 0 : i32
    %c0_i32_0 = arith.constant 0 : i32
    %c0_i32_1 = arith.constant 0 : i32
    %c0_i32_2 = arith.constant 0 : i32
    return %arg0, %c0_i32, %c0_i32_0, %c0_i32_1 : i32, i32, i32, i32
  }
  func.func @transform_1(%arg0: i32) -> (i32, i32, i32) {
    %c0_i32 = arith.constant 0 : i32
    %c0_i32_0 = arith.constant 0 : i32
    %c0_i32_1 = arith.constant 0 : i32
    return %arg0, %c0_i32, %c0_i32_0 : i32, i32, i32
  }
  func.func @transform_2(%arg0: i32) -> (i32, i32) {
    %c0_i32 = arith.constant 0 : i32
    %c0_i32_0 = arith.constant 0 : i32
    %c0_i32_1 = arith.constant 0 : i32
    return %c0_i32, %c0_i32_0 : i32, i32
  }
  func.func @transform_3(%arg0: i32) -> (i32, i32) {
    %c0_i32 = arith.constant 0 : i32
    %c0_i32_0 = arith.constant 0 : i32
    %c0_i32_1 = arith.constant 0 : i32
    return %c0_i32, %c0_i32_0 : i32, i32
  }
  func.func @transform_4(%arg0: i32) -> (i32, i32) {
    %c0_i32 = arith.constant 0 : i32
    %c0_i32_0 = arith.constant 0 : i32
    %c0_i32_1 = arith.constant 0 : i32
    return %c0_i32, %c0_i32_0 : i32, i32
  }
  func.func @transform_5(%arg0: i32) -> (i32, i32) {
    %c0_i32 = arith.constant 0 : i32
    %c0_i32_0 = arith.constant 0 : i32
    %c0_i32_1 = arith.constant 0 : i32
    return %c0_i32, %c0_i32_0 : i32, i32
  }
  func.func @transform_6(%arg0: i32) -> (i32, i32) {
    %c0_i32 = arith.constant 0 : i32
    %c0_i32_0 = arith.constant 0 : i32
    %c0_i32_1 = arith.constant 0 : i32
    return %c0_i32, %c0_i32_0 : i32, i32
  }
  func.func @transform_7(%arg0: i32) -> (i32, i32, i32) {
    %c0_i32 = arith.constant 0 : i32
    %c0_i32_0 = arith.constant 0 : i32
    %c0_i32_1 = arith.constant 0 : i32
    return %arg0, %c0_i32, %c0_i32_0 : i32, i32, i32
  }
  func.func @transform_8(%arg0: i32) -> (i32, i32, i32) {
    %c0_i32 = arith.constant 0 : i32
    %c0_i32_0 = arith.constant 0 : i32
    %c0_i32_1 = arith.constant 0 : i32
    return %arg0, %c0_i32, %c0_i32_0 : i32, i32, i32
  }
}

</mosaic_0001>

<llo_original>
// kernel: bottleneck_forward.6
$region0: #{bottleneck_forward.6}
  #allocation0 [shape = 'u32[]', space=smem, size = 0x4, offset = 0x4, fixed_abs, tag = 'smem constant byte address 0x4 - core index']
  #allocation1 [shape = 'u32[144,128]{1,0:T(1,128)}', space=vmem, size = 0x12000, scoped, tag = 'internal scratch']
  %s0 = inlined_call_operand.vmem [shape: f32[2,16,256], index: 0, kind: input, shape index: {}]
  %s1 = inlined_call_operand.vmem [shape: f32[2,16,2], index: 1, kind: output, shape index: {}]
  %s2 = sld [smem:[#allocation0]]
  $region37: #{bottleneck_forward.6} parent=0
    _
  %s4 = ssub.s32 1, %s2
  %s5 = scalar_select 0, %s4, %s2
  loop: start=0, step=1, limit=4
  $region2: #{bottleneck_forward.6} parent=0 // loop_pre_header
    _
  $region3: #{bottleneck_forward.6} parent=0 // loop_header
    %s7 = sphi 0, %s11
    %p8 = scmp.ge.s32.totalorder %s7, 4
    %s17 = sphi 0, %s19
    %s20 = sphi 0, %s17
    %s21 = sphi 0, %s20
    %s37 = sphi 0, %s21
    %s43 = sphi 0, %s45
    %s46 = sphi 0, %s43
    %s47 = sphi 0, %s46
    %s63 = sphi 0, %s47
  $region4: #{bottleneck_forward.6} parent=0 // loop_header_branch
    %10 = sbr.rel (%p8) target = $region8
  $region5: #{bottleneck_forward.6} parent=0 // loop_body
    %s12 = ssub.s32 %s7, 1
    %s13 = ssub.s32 %s7, 2
    %s14 = sadd.s32 %s7, 1
    %s15 = ssub.s32 %s7, %s14
    %p16 = scmp.eq.s32.totalorder %s15, 0
    %s18 = sadd.s32 %s17, 1
    %s19 = scalar_select %p16, %s17, %s18
    %p22 = pneg %p16
    %p23 = scmp.eq.s32.totalorder %s7, 1
    %p24 = por %p22, %p23
    %p25 = scmp.ne.s32.totalorder %s17, %s20
    %p26 = scmp.eq.s32.totalorder %s7, 0
    %p27 = por %p25, %p26
    %p28 = scmp.ne.s32.totalorder %s17, %s20
    %p29 = scmp.eq.s32.totalorder %s12, 1
    %p30 = por %p28, %p29
    %p31 = scmp.ne.s32.totalorder %s20, %s21
    %p32 = scmp.eq.s32.totalorder %s12, 0
    %p33 = por %p31, %p32
    %p34 = scmp.ne.s32.totalorder %s20, %s21
    %p35 = scmp.eq.s32.totalorder %s13, 1
    %p36 = por %p34, %p35
    %p38 = scmp.ne.s32.totalorder %s21, %s37
    %p39 = scmp.eq.s32.totalorder %s13, 0
    %p40 = por %p38, %p39
    %s41 = ssub.s32 %s7, %s14
    %p42 = scmp.eq.s32.totalorder %s41, 0
    %s44 = sadd.s32 %s43, 1
    %s45 = scalar_select %p42, %s43, %s44
    %p48 = pneg %p42
    %p49 = scmp.eq.s32.totalorder %s7, 1
    %p50 = por %p48, %p49
    %p51 = scmp.ne.s32.totalorder %s43, %s46
    %p52 = scmp.eq.s32.totalorder %s7, 0
    %p53 = por %p51, %p52
    %p54 = scmp.ne.s32.totalorder %s43, %s46
    %p55 = scmp.eq.s32.totalorder %s12, 1
    %p56 = por %p54, %p55
    %p57 = scmp.ne.s32.totalorder %s46, %s47
    %p58 = scmp.eq.s32.totalorder %s12, 0
    %p59 = por %p57, %p58
    %p60 = scmp.ne.s32.totalorder %s46, %s47
    %p61 = scmp.eq.s32.totalorder %s13, 1
    %p62 = por %p60, %p61
    %p64 = scmp.ne.s32.totalorder %s47, %s63
    %p65 = scmp.eq.s32.totalorder %s13, 0
    %p66 = por %p64, %p65
    %p67 = scmp.le.s32.totalorder 1, %s7
    %p68 = scmp.lt.s32.totalorder %s7, 3
    %p69 = pnand %p67, %p68
    %p70 = pneg %p69
    // Predicated region
    $region9: #{bottleneck_forward.6} parent=5 // pred_check
      _
    $region10: #{bottleneck_forward.6} parent=5 // pred_check_branch
      %72 = sbr.rel (%p69) target = $region12
    $region11: #{bottleneck_forward.6} parent=5 // pred_region
      %s73 = ssub.s32 %s7, 1
    $region12: #{bottleneck_forward.6} parent=5 // pred_fallthru
      _
    %p74 = scmp.lt.s32.totalorder %s7, 2
    // Predicated region
    $region13: #{bottleneck_forward.6} parent=5 // pred_check
      %p75 = pneg %p74
    $region14: #{bottleneck_forward.6} parent=5 // pred_check_branch
      %77 = sbr.rel (%p75) target = $region16
    $region15: #{bottleneck_forward.6} parent=5 // pred_region
      // Predicated region
      $region17: #{bottleneck_forward.6} parent=15 // pred_check
        %p78 = pneg %p27
      $region18: #{bottleneck_forward.6} parent=15 // pred_check_branch
        %80 = sbr.rel (%p78) target = $region20
      $region19: #{bottleneck_forward.6} parent=15 // pred_region
        %p81 = scmp.lt.s32.totalorder %s7, 1
        %s82 = scalar_select %p81, %s7, 1
        %s83 = smul.addr %s82, 4
        %s84 = smul.addr %s83, 8
        %s85 = scalar_lea.vmem %s0, %s84
      $region20: #{bottleneck_forward.6} parent=15 // pred_fallthru
        _
    $region16: #{bottleneck_forward.6} parent=5 // pred_fallthru
      _
    %p86 = scmp.le.s32.totalorder 1, %s7
    %p87 = scmp.lt.s32.totalorder %s7, 3
    %p88 = pnand %p86, %p87
    %p89 = pneg %p88
    // Predicated region
    $region21: #{bottleneck_forward.6} parent=5 // pred_check
      _
    $region22: #{bottleneck_forward.6} parent=5 // pred_check_branch
      %91 = sbr.rel (%p88) target = $region24
    $region23: #{bottleneck_forward.6} parent=5 // pred_region
      %s92 = ssub.s32 %s7, 1
      %p93 = scmp.lt.s32.totalorder %s12, 1
      %s94 = scalar_select %p93, %s12, 1
      %s95 = smul.addr %s94, 4
      %s96 = smul.addr %s95, 8
      %s97 = scalar_lea.vmem %s0, %s96
      %p98 = pneg %p33
      %p99 = pneg %p30
      %p100 = pneg %p59
      %p101 = pneg %p56
      %p102 = scmp.lt.s32.totalorder %s12, 1
      %s103 = scalar_select %p102, %s12, 1
      %s104 = smul.addr %s103, 2
      %s105 = smul.addr %s104, 8
      %s106 = scalar_lea.vmem %s1, %s105
      %p107 = scmp.lt.s32.totalorder %s12, 1
      %s108 = scalar_select %p107, %s12, 1
      %s109 = smul.addr %s108, 4
      %s110 = smul.addr %s109, 8
      %s111 = scalar_lea.vmem %s0, %s110
      %p112 = scmp.lt.s32.totalorder %s12, 1
      %s113 = scalar_select %p112, %s12, 1
      %s114 = smul.addr %s113, 2
      %s115 = smul.addr %s114, 8
      %s116 = scalar_lea.vmem %s1, %s115
      %v117 = vld [vmem:[%s111] sm:$0xff]
      %v118 = vld [vmem:[%s111 + $0x8] sm:$0xff]
      %v119 = vld [vmem:[%s111 + $0x10] sm:$0xff]
      %v120 = vld [vmem:[%s111 + $0x18] sm:$0xff]
      %v121 = vadd.f32 %v117, %v118
      %122 = vadd.xlane.f32.xlu0 %v121
      %v123 = vpop.xlane.xlu0 %122
      %v124 = vadd.f32 %v119, %v120
      %125 = vadd.xlane.f32.xlu0 %v124
      %v126 = vpop.xlane.xlu0 %125
      %vm127 = vcmask 7168
      %128 = vst.msk [vmem:[%s116] sm:$0xff] %vm127, %v123
      %129 = vst.msk [vmem:[%s116 + $0x8] sm:$0xff] %vm127, %v126
      %v130 = vmul.f32 %v117, %v117
      %v131 = vmul.f32 %v118, %v118
      %v132 = vmul.f32 %v119, %v119
      %v133 = vmul.f32 %v120, %v120
      %v134 = vadd.f32 %v130, %v131
      %135 = vadd.xlane.f32.xlu0 %v134
      %v136 = vpop.xlane.xlu0 %135
      %v137 = vadd.f32 %v132, %v133
      %138 = vadd.xlane.f32.xlu0 %v137
      %v139 = vpop.xlane.xlu0 %138
      %vm140 = vcmask 15368
      %141 = vst.msk [vmem:[%s116] sm:$0xff] %vm140, %v136
      %142 = vst.msk [vmem:[%s116 + $0x8] sm:$0xff] %vm140, %v139
      %p143 = scmp.lt.s32.totalorder %s12, 1
      %s144 = scalar_select %p143, %s12, 1
      %s145 = smul.addr %s144, 2
      %s146 = smul.addr %s145, 8
      %s147 = scalar_lea.vmem %s1, %s146
      // Predicated region
      $region25: #{bottleneck_forward.6} parent=23 // pred_check
        %p148 = pneg %p56
      $region26: #{bottleneck_forward.6} parent=23 // pred_check_branch
        %150 = sbr.rel (%p148) target = $region28
      $region27: #{bottleneck_forward.6} parent=23 // pred_region
        _
      $region28: #{bottleneck_forward.6} parent=23 // pred_fallthru
        _
    $region24: #{bottleneck_forward.6} parent=5 // pred_fallthru
      _
    %p151 = scmp.le.s32.totalorder 2, %s7
    // Predicated region
    $region29: #{bottleneck_forward.6} parent=5 // pred_check
      %p152 = pneg %p151
    $region30: #{bottleneck_forward.6} parent=5 // pred_check_branch
      %154 = sbr.rel (%p152) target = $region32
    $region31: #{bottleneck_forward.6} parent=5 // pred_region
      %s155 = ssub.s32 %s7, 2
      // Predicated region
      $region33: #{bottleneck_forward.6} parent=31 // pred_check
        %p156 = pneg %p62
      $region34: #{bottleneck_forward.6} parent=31 // pred_check_branch
        %158 = sbr.rel (%p156) target = $region36
      $region35: #{bottleneck_forward.6} parent=31 // pred_region
        %p159 = scmp.lt.s32.totalorder %s13, 1
        %s160 = scalar_select %p159, %s13, 1
        %s161 = smul.addr %s160, 2
        %s162 = smul.addr %s161, 8
        %s163 = scalar_lea.vmem %s1, %s162
      $region36: #{bottleneck_forward.6} parent=31 // pred_fallthru
        _
    $region32: #{bottleneck_forward.6} parent=5 // pred_fallthru
      _
  $region6: #{bottleneck_forward.6} parent=0 // loop_footer
    %s11 = sadd.s32 1, %s7
  $region7: #{bottleneck_forward.6} parent=0 // loop_footer_branch
    %6 = sbr.rel target = $region3
  $region8: #{bottleneck_forward.6} parent=0 // loop_exit
    _

// kernel: bottleneck_forward.8
$region0: #{bottleneck_forward.8}
  #allocation0 [shape = 'u32[]', space=smem, size = 0x4, offset = 0x4, fixed_abs, tag = 'smem constant byte address 0x4 - core index']
  #allocation1 [shape = 'u32[144,128]{1,0:T(1,128)}', space=vmem, size = 0x12000, scoped, tag = 'internal scratch']
  %s0 = inlined_call_operand.vmem [shape: f32[2,4,256], index: 0, kind: input, shape index: {}]
  %s1 = inlined_call_operand.vmem [shape: f32[2,4,256], index: 1, kind: input, shape index: {}]
  %s2 = inlined_call_operand.vmem [shape: s32[2,256], index: 2, kind: input, shape index: {}]
  %s3 = inlined_call_operand.vmem [shape: f32[2,4,2], index: 3, kind: output, shape index: {}]
  %s4 = sld [smem:[#allocation0]]
  $region45: #{bottleneck_forward.8} parent=0
    _
  %s6 = ssub.s32 1, %s4
  %s7 = scalar_select 0, %s6, %s4
  loop: start=0, step=1, limit=4
  $region2: #{bottleneck_forward.8} parent=0 // loop_pre_header
    _
  $region3: #{bottleneck_forward.8} parent=0 // loop_header
    %s9 = sphi 0, %s13
    %p10 = scmp.ge.s32.totalorder %s9, 4
    %s19 = sphi 0, %s21
    %s22 = sphi 0, %s19
    %s23 = sphi 0, %s22
    %s39 = sphi 0, %s23
    %s45 = sphi 0, %s47
    %s48 = sphi 0, %s45
    %s49 = sphi 0, %s48
    %s65 = sphi 0, %s49
    %s69 = sphi 0, %s69
    %s71 = sphi 0, %s69
    %s72 = sphi 0, %s71
    %s86 = sphi 0, %s72
    %s92 = sphi 0, %s94
    %s95 = sphi 0, %s92
    %s96 = sphi 0, %s95
    %s112 = sphi 0, %s96
  $region4: #{bottleneck_forward.8} parent=0 // loop_header_branch
    %12 = sbr.rel (%p10) target = $region8
  $region5: #{bottleneck_forward.8} parent=0 // loop_body
    %s14 = ssub.s32 %s9, 1
    %s15 = ssub.s32 %s9, 2
    %s16 = sadd.s32 %s9, 1
    %s17 = ssub.s32 %s9, %s16
    %p18 = scmp.eq.s32.totalorder %s17, 0
    %s20 = sadd.s32 %s19, 1
    %s21 = scalar_select %p18, %s19, %s20
    %p24 = pneg %p18
    %p25 = scmp.eq.s32.totalorder %s9, 1
    %p26 = por %p24, %p25
    %p27 = scmp.ne.s32.totalorder %s19, %s22
    %p28 = scmp.eq.s32.totalorder %s9, 0
    %p29 = por %p27, %p28
    %p30 = scmp.ne.s32.totalorder %s19, %s22
    %p31 = scmp.eq.s32.totalorder %s14, 1
    %p32 = por %p30, %p31
    %p33 = scmp.ne.s32.totalorder %s22, %s23
    %p34 = scmp.eq.s32.totalorder %s14, 0
    %p35 = por %p33, %p34
    %p36 = scmp.ne.s32.totalorder %s22, %s23
    %p37 = scmp.eq.s32.totalorder %s15, 1
    %p38 = por %p36, %p37
    %p40 = scmp.ne.s32.totalorder %s23, %s39
    %p41 = scmp.eq.s32.totalorder %s15, 0
    %p42 = por %p40, %p41
    %s43 = ssub.s32 %s9, %s16
    %p44 = scmp.eq.s32.totalorder %s43, 0
    %s46 = sadd.s32 %s45, 1
    %s47 = scalar_select %p44, %s45, %s46
    %p50 = pneg %p44
    %p51 = scmp.eq.s32.totalorder %s9, 1
    %p52 = por %p50, %p51
    %p53 = scmp.ne.s32.totalorder %s45, %s48
    %p54 = scmp.eq.s32.totalorder %s9, 0
    %p55 = por %p53, %p54
    %p56 = scmp.ne.s32.totalorder %s45, %s48
    %p57 = scmp.eq.s32.totalorder %s14, 1
    %p58 = por %p56, %p57
    %p59 = scmp.ne.s32.totalorder %s48, %s49
    %p60 = scmp.eq.s32.totalorder %s14, 0
    %p61 = por %p59, %p60
    %p62 = scmp.ne.s32.totalorder %s48, %s49
    %p63 = scmp.eq.s32.totalorder %s15, 1
    %p64 = por %p62, %p63
    %p66 = scmp.ne.s32.totalorder %s49, %s65
    %p67 = scmp.eq.s32.totalorder %s15, 0
    %p68 = por %p66, %p67
    %s70 = sadd.s32 %s69, 1
    %p73 = scmp.eq.s32.totalorder %s9, 1
    %p74 = scmp.ne.s32.totalorder %s69, %s71
    %p75 = scmp.eq.s32.totalorder %s9, 0
    %p76 = por %p74, %p75
    %p77 = scmp.ne.s32.totalorder %s69, %s71
    %p78 = scmp.eq.s32.totalorder %s14, 1
    %p79 = por %p77, %p78
    %p80 = scmp.ne.s32.totalorder %s71, %s72
    %p81 = scmp.eq.s32.totalorder %s14, 0
    %p82 = por %p80, %p81
    %p83 = scmp.ne.s32.totalorder %s71, %s72
    %p84 = scmp.eq.s32.totalorder %s15, 1
    %p85 = por %p83, %p84
    %p87 = scmp.ne.s32.totalorder %s72, %s86
    %p88 = scmp.eq.s32.totalorder %s15, 0
    %p89 = por %p87, %p88
    %s90 = ssub.s32 %s9, %s16
    %p91 = scmp.eq.s32.totalorder %s90, 0
    %s93 = sadd.s32 %s92, 1
    %s94 = scalar_select %p91, %s92, %s93
    %p97 = pneg %p91
    %p98 = scmp.eq.s32.totalorder %s9, 1
    %p99 = por %p97, %p98
    %p100 = scmp.ne.s32.totalorder %s92, %s95
    %p101 = scmp.eq.s32.totalorder %s9, 0
    %p102 = por %p100, %p101
    %p103 = scmp.ne.s32.totalorder %s92, %s95
    %p104 = scmp.eq.s32.totalorder %s14, 1
    %p105 = por %p103, %p104
    %p106 = scmp.ne.s32.totalorder %s95, %s96
    %p107 = scmp.eq.s32.totalorder %s14, 0
    %p108 = por %p106, %p107
    %p109 = scmp.ne.s32.totalorder %s95, %s96
    %p110 = scmp.eq.s32.totalorder %s15, 1
    %p111 = por %p109, %p110
    %p113 = scmp.ne.s32.totalorder %s96, %s112
    %p114 = scmp.eq.s32.totalorder %s15, 0
    %p115 = por %p113, %p114
    %p116 = scmp.le.s32.totalorder 1, %s9
    %p117 = scmp.lt.s32.totalorder %s9, 3
    %p118 = pnand %p116, %p117
    %p119 = pneg %p118
    // Predicated region
    $region9: #{bottleneck_forward.8} parent=5 // pred_check
      _
    $region10: #{bottleneck_forward.8} parent=5 // pred_check_branch
      %121 = sbr.rel (%p118) target = $region12
    $region11: #{bottleneck_forward.8} parent=5 // pred_region
      %s122 = ssub.s32 %s9, 1
      // Predicated region
      $region13: #{bottleneck_forward.8} parent=11 // pred_check
        %p123 = pneg %p82
      $region14: #{bottleneck_forward.8} parent=11 // pred_check_branch
        %125 = sbr.rel (%p123) target = $region16
      $region15: #{bottleneck_forward.8} parent=11 // pred_region
        _
      $region16: #{bottleneck_forward.8} parent=11 // pred_fallthru
        _
    $region12: #{bottleneck_forward.8} parent=5 // pred_fallthru
      _
    %p126 = scmp.lt.s32.totalorder %s9, 2
    // Predicated region
    $region17: #{bottleneck_forward.8} parent=5 // pred_check
      %p127 = pneg %p126
    $region18: #{bottleneck_forward.8} parent=5 // pred_check_branch
      %129 = sbr.rel (%p127) target = $region20
    $region19: #{bottleneck_forward.8} parent=5 // pred_region
      // Predicated region
      $region21: #{bottleneck_forward.8} parent=19 // pred_check
        %p130 = pneg %p29
      $region22: #{bottleneck_forward.8} parent=19 // pred_check_branch
        %132 = sbr.rel (%p130) target = $region24
      $region23: #{bottleneck_forward.8} parent=19 // pred_region
        %p133 = scmp.lt.s32.totalorder %s9, 1
        %s134 = scalar_select %p133, %s9, 1
        %s135 = smul.addr %s134, 2
        %s136 = smul.addr %s135, 4
        %s137 = scalar_lea.vmem %s0, %s136
      $region24: #{bottleneck_forward.8} parent=19 // pred_fallthru
        _
      // Predicated region
      $region25: #{bottleneck_forward.8} parent=19 // pred_check
        %p138 = pneg %p55
      $region26: #{bottleneck_forward.8} parent=19 // pred_check_branch
        %140 = sbr.rel (%p138) target = $region28
      $region27: #{bottleneck_forward.8} parent=19 // pred_region
        %p141 = scmp.lt.s32.totalorder %s9, 1
        %s142 = scalar_select %p141, %s9, 1
        %s143 = smul.addr %s142, 2
        %s144 = smul.addr %s143, 4
        %s145 = scalar_lea.vmem %s1, %s144
      $region28: #{bottleneck_forward.8} parent=19 // pred_fallthru
        _
    $region20: #{bottleneck_forward.8} parent=5 // pred_fallthru
      _
    %p146 = scmp.le.s32.totalorder 1, %s9
    %p147 = scmp.lt.s32.totalorder %s9, 3
    %p148 = pnand %p146, %p147
    %p149 = pneg %p148
    // Predicated region
    $region29: #{bottleneck_forward.8} parent=5 // pred_check
      _
    $region30: #{bottleneck_forward.8} parent=5 // pred_check_branch
      %151 = sbr.rel (%p148) target = $region32
    $region31: #{bottleneck_forward.8} parent=5 // pred_region
      %s152 = ssub.s32 %s9, 1
      %p153 = scmp.lt.s32.totalorder %s14, 1
      %s154 = scalar_select %p153, %s14, 1
      %s155 = smul.addr %s154, 2
      %s156 = smul.addr %s155, 4
      %s157 = scalar_lea.vmem %s0, %s156
      %p158 = pneg %p35
      %p159 = pneg %p32
      %p160 = scmp.lt.s32.totalorder %s14, 1
      %s161 = scalar_select %p160, %s14, 1
      %s162 = smul.addr %s161, 2
      %s163 = smul.addr %s162, 4
      %s164 = scalar_lea.vmem %s1, %s163
      %p165 = pneg %p61
      %p166 = pneg %p58
      %p167 = pneg %p82
      %p168 = pneg %p79
      %p169 = pneg %p108
      %p170 = pneg %p105
      %p171 = scmp.lt.s32.totalorder %s14, 1
      %s172 = scalar_select %p171, %s14, 1
      %s173 = smul.addr %s172, 4
      %s174 = scalar_lea.vmem %s3, %s173
      %p175 = scmp.lt.s32.totalorder %s14, 1
      %s176 = scalar_select %p175, %s14, 1
      %s177 = smul.addr %s176, 2
      %s178 = smul.addr %s177, 4
      %s179 = scalar_lea.vmem %s0, %s178
      %p180 = scmp.lt.s32.totalorder %s14, 1
      %s181 = scalar_select %p180, %s14, 1
      %s182 = smul.addr %s181, 2
      %s183 = smul.addr %s182, 4
      %s184 = scalar_lea.vmem %s1, %s183
      %p185 = scmp.lt.s32.totalorder %s14, 1
      %s186 = scalar_select %p185, %s14, 1
      %s187 = smul.addr %s186, 4
      %s188 = scalar_lea.vmem %s3, %s187
      %v189 = vld [vmem:[%s2] ss:$2 sm:$0x3]
      %s190 = scalar_lea.vmem %s2, 1
      %v191 = vld [vmem:[%s190] ss:$2 sm:$0x3]
      %vm192 = vcmp.ge.s32.totalorder %v189, 0
      %v193 = vsel %vm192, 1, 0
      %v194 = vcvt.s32.f32 %v193
      %v195 = vld [vmem:[%s179] sm:$0xff]
      %v196 = vld [vmem:[%s184] sm:$0xff]
      %v198 = vcombine.high %v196, %v196
      %200 = vrot.lane.b32.xlu0 %v196, 17
      %v201 = vpop.permute.xlu0 %200
      %202 = vrot.lane.b32.xlu0 %v198, 17
      %v203 = vpop.permute.xlu0 %202
      %v204 = vlaneseq
      %v205 = vand.u32 %v204, 127
      %vm206 = vcmp.lt.s32.totalorder %v205, 17
      %v207 = vsel %vm206, %v201, %v203
      %v208 = vsel %vm206, %v203, %v201
      %vm209 = vcmp.eq.s32.totalorder %v191, 0
      %210 = vrot.lane.b32.xlu0 %v196, 15
      %v211 = vpop.permute.xlu0 %210
      %212 = vrot.lane.b32.xlu0 %v198, 15
      %v213 = vpop.permute.xlu0 %212
      %vm214 = vcmp.lt.s32.totalorder %v205, 15
      %v215 = vsel %vm214, %v211, %v213
      %v216 = vsel %vm214, %v213, %v211
      %v217 = vsel %vm209, 1, 0
      %v218 = vlaneseq
      %v219 = vshrl.u32 %v218, 7
      %v220 = vsub.s32 0, %v219
      %v221 = vrot.slane %v217, %v220
      %v222 = vlaneseq
      %v223 = vshrl.u32 %v222, 7
      %v224 = vsub.s32 1, %v223
      %v225 = vrot.slane %v217, %v224
      %vm226 = vcmp.eq.s32.totalorder %v221, 1
      %vm227 = vcmp.eq.s32.totalorder %v225, 1
      %v228 = vsel %vm226, %v216, %v208
      %v229 = vsel %vm227, %v215, %v207
      %vm230 = vcmp.eq.s32.totalorder %v189, 0
      %231 = vrot.lane.b32.xlu0 %v196, 113
      %v232 = vpop.permute.xlu0 %231
      %233 = vrot.lane.b32.xlu0 %v198, 113
      %v234 = vpop.permute.xlu0 %233
      %vm235 = vcmp.lt.s32.totalorder %v205, 113
      %v236 = vsel %vm235, %v232, %v234
      %v237 = vsel %vm235, %v234, %v232
      %v238 = vsel %vm230, 1, 0
      %v239 = vlaneseq
      %v240 = vshrl.u32 %v239, 7
      %v241 = vsub.s32 0, %v240
      %v242 = vrot.slane %v238, %v241
      %v243 = vlaneseq
      %v244 = vshrl.u32 %v243, 7
      %v245 = vsub.s32 1, %v244
      %v246 = vrot.slane %v238, %v245
      %vm247 = vcmp.eq.s32.totalorder %v242, 1
      %vm248 = vcmp.eq.s32.totalorder %v246, 1
      %v249 = vsel %vm247, %v236, %v228
      %v250 = vsel %vm248, %v237, %v229
      %vm251 = vmand %vm230, %vm209
      %252 = vrot.lane.b32.xlu0 %v196, 111
      %v253 = vpop.permute.xlu0 %252
      %254 = vrot.lane.b32.xlu0 %v198, 111
      %v255 = vpop.permute.xlu0 %254
      %vm256 = vcmp.lt.s32.totalorder %v205, 111
      %v257 = vsel %vm256, %v253, %v255
      %v258 = vsel %vm256, %v255, %v253
      %v259 = vsel %vm251, 1, 0
      %v260 = vlaneseq
      %v261 = vshrl.u32 %v260, 7
      %v262 = vsub.s32 0, %v261
      %v263 = vrot.slane %v259, %v262
      %v264 = vlaneseq
      %v265 = vshrl.u32 %v264, 7
      %v266 = vsub.s32 1, %v265
      %v267 = vrot.slane %v259, %v266
      %vm268 = vcmp.eq.s32.totalorder %v263, 1
      %vm269 = vcmp.eq.s32.totalorder %v267, 1
      %v270 = vsel %vm268, %v257, %v249
      %v271 = vsel %vm269, %v258, %v250
      %v274 = vcombine.low %v270, %v271
      %v276 = vsub.f32 %v195, %v274
      %v278 = vlaneseq
      %v279 = vshrl.u32 %v278, 7
      %v280 = vsub.s32 0, %v279
      %v281 = vrot.slane %v194, %v280
      %v282 = vlaneseq
      %v283 = vshrl.u32 %v282, 7
      %v284 = vsub.s32 1, %v283
      %v285 = vrot.slane %v194, %v284
      %v286 = vcombine.low %v281, %v285
      %v288 = vmul.f32 %v276, %v286
      %v290 = vcombine.high %v288, %v288
      %vm292 = vcmask 1043456
      %v293 = vsel %vm292, %v288, 0.0
      %v294 = vsel %vm292, %v290, 0.0
      %v295 = vadd.f32 %v293, %v294
      %296 = vadd.xlane.f32.xlu0 %v295
      %v297 = vpop.xlane.xlu0 %296
      %v298 = vadd.f32 %v297, 0.0
      %v299 = vmul.f32 %v288, %v288
      %v301 = vcombine.high %v299, %v299
      %v303 = vsel %vm292, %v299, 0.0
      %v304 = vsel %vm292, %v301, 0.0
      %v305 = vadd.f32 %v303, %v304
      %306 = vadd.xlane.f32.xlu0 %v305
      %v307 = vpop.xlane.xlu0 %306
      %v308 = vadd.f32 %v307, 0.0
      %309 = vrot.lane.b32.xlu0 %v196, 16
      %v310 = vpop.permute.xlu0 %309
      %311 = vrot.lane.b32.xlu0 %v198, 16
      %v312 = vpop.permute.xlu0 %311
      %vm313 = vcmp.lt.s32.totalorder %v205, 16
      %v314 = vsel %vm313, %v310, %v312
      %v315 = vsel %vm313, %v312, %v310
      %316 = vrot.lane.b32.xlu0 %v196, 112
      %v317 = vpop.permute.xlu0 %316
      %318 = vrot.lane.b32.xlu0 %v198, 112
      %v319 = vpop.permute.xlu0 %318
      %vm320 = vcmp.lt.s32.totalorder %v205, 112
      %v321 = vsel %vm320, %v317, %v319
      %v322 = vsel %vm320, %v319, %v317
      %v323 = vsel %vm247, %v321, %v315
      %v324 = vsel %vm248, %v322, %v314
      %v327 = vcombine.low %v323, %v324
      %v329 = vsub.f32 %v195, %v327
      %v330 = vmul.f32 %v329, %v286
      %v332 = vcombine.high %v330, %v330
      %v334 = vsel %vm292, %v330, 0.0
      %v335 = vsel %vm292, %v332, 0.0
      %v336 = vadd.f32 %v334, %v335
      %337 = vadd.xlane.f32.xlu0 %v336
      %v338 = vpop.xlane.xlu0 %337
      %v339 = vadd.f32 %v298, %v338
      %v340 = vmul.f32 %v330, %v330
      %v342 = vcombine.high %v340, %v340
      %v344 = vsel %vm292, %v340, 0.0
      %v345 = vsel %vm292, %v342, 0.0
      %v346 = vadd.f32 %v344, %v345
      %347 = vadd.xlane.f32.xlu0 %v346
      %v348 = vpop.xlane.xlu0 %347
      %v349 = vadd.f32 %v308, %v348
      %vm350 = vcmp.eq.s32.totalorder %v191, 15
      %v351 = vsel %vm350, 1, 0
      %v352 = vlaneseq
      %v353 = vshrl.u32 %v352, 7
      %v354 = vsub.s32 0, %v353
      %v355 = vrot.slane %v351, %v354
      %v356 = vlaneseq
      %v357 = vshrl.u32 %v356, 7
      %v358 = vsub.s32 1, %v357
      %v359 = vrot.slane %v351, %v358
      %vm360 = vcmp.eq.s32.totalorder %v355, 1
      %vm361 = vcmp.eq.s32.totalorder %v359, 1
      %v362 = vsel %vm360, %v208, %v216
      %v363 = vsel %vm361, %v207, %v215
      %v364 = vsel %vm247, %v257, %v362
      %v365 = vsel %vm248, %v258, %v363
      %vm366 = vmand %vm230, %vm350
      %v367 = vsel %vm366, 1, 0
      %v368 = vlaneseq
      %v369 = vshrl.u32 %v368, 7
      %v370 = vsub.s32 0, %v369
      %v371 = vrot.slane %v367, %v370
      %v372 = vlaneseq
      %v373 = vshrl.u32 %v372, 7
      %v374 = vsub.s32 1, %v373
      %v375 = vrot.slane %v367, %v374
      %vm376 = vcmp.eq.s32.totalorder %v371, 1
      %vm377 = vcmp.eq.s32.totalorder %v375, 1
      %v378 = vsel %vm376, %v236, %v364
      %v379 = vsel %vm377, %v237, %v365
      %v382 = vcombine.low %v378, %v379
      %v384 = vsub.f32 %v195, %v382
      %v385 = vmul.f32 %v384, %v286
      %v387 = vcombine.high %v385, %v385
      %v389 = vsel %vm292, %v385, 0.0
      %v390 = vsel %vm292, %v387, 0.0
      %v391 = vadd.f32 %v389, %v390
      %392 = vadd.xlane.f32.xlu0 %v391
      %v393 = vpop.xlane.xlu0 %392
      %v394 = vadd.f32 %v339, %v393
      %v395 = vmul.f32 %v385, %v385
      %v397 = vcombine.high %v395, %v395
      %v399 = vsel %vm292, %v395, 0.0
      %v400 = vsel %vm292, %v397, 0.0
      %v401 = vadd.f32 %v399, %v400
      %402 = vadd.xlane.f32.xlu0 %v401
      %v403 = vpop.xlane.xlu0 %402
      %v404 = vadd.f32 %v349, %v403
      %405 = vrot.lane.b32.xlu0 %v196, 1
      %v406 = vpop.permute.xlu0 %405
      %407 = vrot.lane.b32.xlu0 %v198, 1
      %v408 = vpop.permute.xlu0 %407
      %vm409 = vcmp.lt.s32.totalorder %v205, 1
      %v410 = vsel %vm409, %v406, %v408
      %v411 = vsel %vm409, %v408, %v406
      %412 = vrot.lane.b32.xlu0 %v196, 127
      %v413 = vpop.permute.xlu0 %412
      %414 = vrot.lane.b32.xlu0 %v198, 127
      %v415 = vpop.permute.xlu0 %414
      %vm416 = vcmp.lt.s32.totalorder %v205, 127
      %v417 = vsel %vm416, %v413, %v415
      %v418 = vsel %vm416, %v415, %v413
      %v419 = vsel %vm226, %v417, %v411
      %v420 = vsel %vm227, %v418, %v410
      %v423 = vcombine.low %v419, %v420
      %v425 = vsub.f32 %v195, %v423
      %v426 = vmul.f32 %v425, %v286
      %v428 = vcombine.high %v426, %v426
      %v430 = vsel %vm292, %v426, 0.0
      %v431 = vsel %vm292, %v428, 0.0
      %v432 = vadd.f32 %v430, %v431
      %433 = vadd.xlane.f32.xlu0 %v432
      %v434 = vpop.xlane.xlu0 %433
      %v435 = vadd.f32 %v394, %v434
      %v436 = vmul.f32 %v426, %v426
      %v438 = vcombine.high %v436, %v436
      %v440 = vsel %vm292, %v436, 0.0
      %v441 = vsel %vm292, %v438, 0.0
      %v442 = vadd.f32 %v440, %v441
      %443 = vadd.xlane.f32.xlu0 %v442
      %v444 = vpop.xlane.xlu0 %443
      %v445 = vadd.f32 %v404, %v444
      %v446 = vsub.f32 %v195, %v196
      %v447 = vmul.f32 %v446, %v286
      %v449 = vcombine.high %v447, %v447
      %v451 = vsel %vm292, %v447, 0.0
      %v452 = vsel %vm292, %v449, 0.0
      %v453 = vadd.f32 %v451, %v452
      %454 = vadd.xlane.f32.xlu0 %v453
      %v455 = vpop.xlane.xlu0 %454
      %v456 = vadd.f32 %v435, %v455
      %v457 = vmul.f32 %v447, %v447
      %v459 = vcombine.high %v457, %v457
      %v461 = vsel %vm292, %v457, 0.0
      %v462 = vsel %vm292, %v459, 0.0
      %v463 = vadd.f32 %v461, %v462
      %464 = vadd.xlane.f32.xlu0 %v463
      %v465 = vpop.xlane.xlu0 %464
      %v466 = vadd.f32 %v445, %v465
      %v467 = vsel %vm360, %v411, %v417
      %v468 = vsel %vm361, %v410, %v418
      %v471 = vcombine.low %v467, %v468
      %v473 = vsub.f32 %v195, %v471
      %v474 = vmul.f32 %v473, %v286
      %v476 = vcombine.high %v474, %v474
      %v478 = vsel %vm292, %v474, 0.0
      %v479 = vsel %vm292, %v476, 0.0
      %v480 = vadd.f32 %v478, %v479
      %481 = vadd.xlane.f32.xlu0 %v480
      %v482 = vpop.xlane.xlu0 %481
      %v483 = vadd.f32 %v456, %v482
      %v484 = vmul.f32 %v474, %v474
      %v486 = vcombine.high %v484, %v484
      %v488 = vsel %vm292, %v484, 0.0
      %v489 = vsel %vm292, %v486, 0.0
      %v490 = vadd.f32 %v488, %v489
      %491 = vadd.xlane.f32.xlu0 %v490
      %v492 = vpop.xlane.xlu0 %491
      %v493 = vadd.f32 %v466, %v492
      %v494 = vsel %vm226, %v257, %v236
      %v495 = vsel %vm227, %v258, %v237
      %vm496 = vcmp.eq.s32.totalorder %v189, 15
      %v497 = vsel %vm496, 1, 0
      %v498 = vlaneseq
      %v499 = vshrl.u32 %v498, 7
      %v500 = vsub.s32 0, %v499
      %v501 = vrot.slane %v497, %v500
      %v502 = vlaneseq
      %v503 = vshrl.u32 %v502, 7
      %v504 = vsub.s32 1, %v503
      %v505 = vrot.slane %v497, %v504
      %vm506 = vcmp.eq.s32.totalorder %v501, 1
      %vm507 = vcmp.eq.s32.totalorder %v505, 1
      %v508 = vsel %vm506, %v208, %v494
      %v509 = vsel %vm507, %v207, %v495
      %vm510 = vmand %vm496, %vm209
      %v511 = vsel %vm510, 1, 0
      %v512 = vlaneseq
      %v513 = vshrl.u32 %v512, 7
      %v514 = vsub.s32 0, %v513
      %v515 = vrot.slane %v511, %v514
      %v516 = vlaneseq
      %v517 = vshrl.u32 %v516, 7
      %v518 = vsub.s32 1, %v517
      %v519 = vrot.slane %v511, %v518
      %vm520 = vcmp.eq.s32.totalorder %v515, 1
      %vm521 = vcmp.eq.s32.totalorder %v519, 1
      %v522 = vsel %vm520, %v216, %v508
      %v523 = vsel %vm521, %v215, %v509
      %v526 = vcombine.low %v522, %v523
      %v528 = vsub.f32 %v195, %v526
      %v529 = vmul.f32 %v528, %v286
      %v531 = vcombine.high %v529, %v529
      %v533 = vsel %vm292, %v529, 0.0
      %v534 = vsel %vm292, %v531, 0.0
      %v535 = vadd.f32 %v533, %v534
      %536 = vadd.xlane.f32.xlu0 %v535
      %v537 = vpop.xlane.xlu0 %536
      %v538 = vadd.f32 %v483, %v537
      %v539 = vmul.f32 %v529, %v529
      %v541 = vcombine.high %v539, %v539
      %v543 = vsel %vm292, %v539, 0.0
      %v544 = vsel %vm292, %v541, 0.0
      %v545 = vadd.f32 %v543, %v544
      %546 = vadd.xlane.f32.xlu0 %v545
      %v547 = vpop.xlane.xlu0 %546
      %v548 = vadd.f32 %v493, %v547
      %v549 = vsel %vm506, %v315, %v321
      %v550 = vsel %vm507, %v314, %v322
      %v553 = vcombine.low %v549, %v550
      %v555 = vsub.f32 %v195, %v553
      %v556 = vmul.f32 %v555, %v286
      %v558 = vcombine.high %v556, %v556
      %v560 = vsel %vm292, %v556, 0.0
      %v561 = vsel %vm292, %v558, 0.0
      %v562 = vadd.f32 %v560, %v561
      %563 = vadd.xlane.f32.xlu0 %v562
      %v564 = vpop.xlane.xlu0 %563
      %v565 = vadd.f32 %v538, %v564
      %v566 = vmul.f32 %v556, %v556
      %v568 = vcombine.high %v566, %v566
      %v570 = vsel %vm292, %v566, 0.0
      %v571 = vsel %vm292, %v568, 0.0
      %v572 = vadd.f32 %v570, %v571
      %573 = vadd.xlane.f32.xlu0 %v572
      %v574 = vpop.xlane.xlu0 %573
      %v575 = vadd.f32 %v548, %v574
      %v576 = vsel %vm360, %v236, %v257
      %v577 = vsel %vm361, %v237, %v258
      %v578 = vsel %vm506, %v216, %v576
      %v579 = vsel %vm507, %v215, %v577
      %vm580 = vmand %vm496, %vm350
      %v581 = vsel %vm580, 1, 0
      %v582 = vlaneseq
      %v583 = vshrl.u32 %v582, 7
      %v584 = vsub.s32 0, %v583
      %v585 = vrot.slane %v581, %v584
      %v586 = vlaneseq
      %v587 = vshrl.u32 %v586, 7
      %v588 = vsub.s32 1, %v587
      %v589 = vrot.slane %v581, %v588
      %vm590 = vcmp.eq.s32.totalorder %v585, 1
      %vm591 = vcmp.eq.s32.totalorder %v589, 1
      %v592 = vsel %vm590, %v208, %v578
      %v593 = vsel %vm591, %v207, %v579
      %v596 = vcombine.low %v592, %v593
      %v598 = vsub.f32 %v195, %v596
      %v599 = vmul.f32 %v598, %v286
      %v601 = vcombine.high %v599, %v599
      %v603 = vsel %vm292, %v599, 0.0
      %v604 = vsel %vm292, %v601, 0.0
      %v605 = vadd.f32 %v603, %v604
      %606 = vadd.xlane.f32.xlu0 %v605
      %v607 = vpop.xlane.xlu0 %606
      %v608 = vadd.f32 %v565, %v607
      %v609 = vmul.f32 %v599, %v599
      %v611 = vcombine.high %v609, %v609
      %v613 = vsel %vm292, %v609, 0.0
      %v614 = vsel %vm292, %v611, 0.0
      %v615 = vadd.f32 %v613, %v614
      %616 = vadd.xlane.f32.xlu0 %v615
      %v617 = vpop.xlane.xlu0 %616
      %v618 = vadd.f32 %v575, %v617
      %vm619 = vcmask 3072
      %620 = vst.msk [vmem:[%s188] sm:$0xf] %vm619, %v608
      %vm621 = vcmask 11272
      %622 = vst.msk [vmem:[%s188] sm:$0xf] %vm621, %v618
      %p623 = scmp.lt.s32.totalorder %s14, 1
      %s624 = scalar_select %p623, %s14, 1
      %s625 = smul.addr %s624, 4
      %s626 = scalar_lea.vmem %s3, %s625
      // Predicated region
      $region33: #{bottleneck_forward.8} parent=31 // pred_check
        %p627 = pneg %p105
      $region34: #{bottleneck_forward.8} parent=31 // pred_check_branch
        %629 = sbr.rel (%p627) target = $region36
      $region35: #{bottleneck_forward.8} parent=31 // pred_region
        _
      $region36: #{bottleneck_forward.8} parent=31 // pred_fallthru
        _
    $region32: #{bottleneck_forward.8} parent=5 // pred_fallthru
      _
    %p630 = scmp.le.s32.totalorder 2, %s9
    // Predicated region
    $region37: #{bottleneck_forward.8} parent=5 // pred_check
      %p631 = pneg %p630
    $region38: #{bottleneck_forward.8} parent=5 // pred_check_branch
      %633 = sbr.rel (%p631) target = $region40
    $region39: #{bottleneck_forward.8} parent=5 // pred_region
      %s634 = ssub.s32 %s9, 2
      // Predicated region
      $region41: #{bottleneck_forward.8} parent=39 // pred_check
        %p635 = pneg %p111
      $region42: #{bottleneck_forward.8} parent=39 // pred_check_branch
        %637 = sbr.rel (%p635) target = $region44
      $region43: #{bottleneck_forward.8} parent=39 // pred_region
        %p638 = scmp.lt.s32.totalorder %s15, 1
        %s639 = scalar_select %p638, %s15, 1
        %s640 = smul.addr %s639, 4
        %s641 = scalar_lea.vmem %s3, %s640
      $region44: #{bottleneck_forward.8} parent=39 // pred_fallthru
        _
    $region40: #{bottleneck_forward.8} parent=5 // pred_fallthru
      _
  $region6: #{bottleneck_forward.8} parent=0 // loop_footer
    %s13 = sadd.s32 1, %s9
  $region7: #{bottleneck_forward.8} parent=0 // loop_footer_branch
    %8 = sbr.rel target = $region3
  $region8: #{bottleneck_forward.8} parent=0 // loop_exit
    _

// kernel: bottleneck_forward.7
$region0: #{bottleneck_forward.7}
  #allocation0 [shape = 'u32[]', space=smem, size = 0x4, offset = 0x4, fixed_abs, tag = 'smem constant byte address 0x4 - core index']
  #allocation1 [shape = 'u32[144,128]{1,0:T(1,128)}', space=vmem, size = 0x12000, scoped, tag = 'internal scratch']
  %s0 = inlined_call_operand.vmem [shape: f32[2,16,256], index: 0, kind: input, shape index: {}]
  %s1 = inlined_call_operand.vmem [shape: f32[16,1], index: 1, kind: input, shape index: {}]
  %s2 = inlined_call_operand.vmem [shape: f32[16,1], index: 2, kind: input, shape index: {}]
  %s3 = inlined_call_operand.vmem [shape: bf16[24,16], index: 3, kind: input, shape index: {}]
  %s4 = inlined_call_operand.vmem [shape: f32[24,1], index: 4, kind: input, shape index: {}]
  %s5 = inlined_call_operand.vmem [shape: f32[2,4,256], index: 5, kind: output, shape index: {0}]
  %s6 = inlined_call_operand.vmem [shape: f32[2,4,256], index: 6, kind: output, shape index: {1}]
  %s7 = inlined_call_operand.vmem [shape: f32[2,16,256], index: 7, kind: output, shape index: {2}]
  %8 = xla_tuple %s5, %s6, %s7
  %s9 = sld [smem:[#allocation0]]
  $region69: #{bottleneck_forward.7} parent=0
    _
  %s11 = ssub.s32 1, %s9
  %s12 = scalar_select 0, %s11, %s9
  loop: start=0, step=1, limit=4
  $region2: #{bottleneck_forward.7} parent=0 // loop_pre_header
    _
  $region3: #{bottleneck_forward.7} parent=0 // loop_header
    %s14 = sphi 0, %s18
    %p15 = scmp.ge.s32.totalorder %s14, 4
    %s21 = sphi 0, %s33
    %s22 = sphi 0, %s29
    %s23 = sphi 0, %s21
    %s24 = sphi 0, %s22
    %s25 = sphi 0, %s23
    %s26 = sphi 0, %s24
    %s38 = sphi 0, %s40
    %s41 = sphi 0, %s38
    %s42 = sphi 0, %s41
    %s58 = sphi 0, %s42
    %s62 = sphi 0, %s62
    %s64 = sphi 0, %s62
    %s65 = sphi 0, %s64
    %s79 = sphi 0, %s65
    %s83 = sphi 0, %s83
    %s85 = sphi 0, %s83
    %s86 = sphi 0, %s85
    %s100 = sphi 0, %s86
    %s104 = sphi 0, %s104
    %s106 = sphi 0, %s104
    %s107 = sphi 0, %s106
    %s121 = sphi 0, %s107
    %s125 = sphi 0, %s125
    %s127 = sphi 0, %s125
    %s128 = sphi 0, %s127
    %s142 = sphi 0, %s128
    %s150 = sphi 0, %s152
    %s153 = sphi 0, %s150
    %s154 = sphi 0, %s153
    %s170 = sphi 0, %s154
    %s178 = sphi 0, %s180
    %s181 = sphi 0, %s178
    %s182 = sphi 0, %s181
    %s198 = sphi 0, %s182
    %s206 = sphi 0, %s208
    %s209 = sphi 0, %s206
    %s210 = sphi 0, %s209
    %s226 = sphi 0, %s210
  $region4: #{bottleneck_forward.7} parent=0 // loop_header_branch
    %17 = sbr.rel (%p15) target = $region8
  $region5: #{bottleneck_forward.7} parent=0 // loop_body
    %s19 = ssub.s32 %s14, 1
    %s20 = ssub.s32 %s14, 2
    %s27 = sadd.s32 1, %s22
    %p28 = scmp.ge.s32.totalorder %s27, 1
    %s29 = scalar_select %p28, 0, %s27
    %s30 = sadd.s32 1, %s21
    %s31 = scalar_select %p28, %s30, %s21
    %p32 = scmp.ge.s32.totalorder %s31, 2
    %s33 = scalar_select %p32, 0, %s31
    %s34 = ssub.s32 %s21, %s33
    %s35 = ssub.s32 %s22, %s29
    %s36 = sor.u32 %s34, %s35
    %p37 = scmp.eq.s32.totalorder %s36, 0
    %s39 = sadd.s32 %s38, 1
    %s40 = scalar_select %p37, %s38, %s39
    %p43 = pneg %p37
    %p44 = scmp.eq.s32.totalorder %s14, 1
    %p45 = por %p43, %p44
    %p46 = scmp.ne.s32.totalorder %s38, %s41
    %p47 = scmp.eq.s32.totalorder %s14, 0
    %p48 = por %p46, %p47
    %p49 = scmp.ne.s32.totalorder %s38, %s41
    %p50 = scmp.eq.s32.totalorder %s19, 1
    %p51 = por %p49, %p50
    %p52 = scmp.ne.s32.totalorder %s41, %s42
    %p53 = scmp.eq.s32.totalorder %s19, 0
    %p54 = por %p52, %p53
    %p55 = scmp.ne.s32.totalorder %s41, %s42
    %p56 = scmp.eq.s32.totalorder %s20, 1
    %p57 = por %p55, %p56
    %p59 = scmp.ne.s32.totalorder %s42, %s58
    %p60 = scmp.eq.s32.totalorder %s20, 0
    %p61 = por %p59, %p60
    %s63 = sadd.s32 %s62, 1
    %p66 = scmp.eq.s32.totalorder %s14, 1
    %p67 = scmp.ne.s32.totalorder %s62, %s64
    %p68 = scmp.eq.s32.totalorder %s14, 0
    %p69 = por %p67, %p68
    %p70 = scmp.ne.s32.totalorder %s62, %s64
    %p71 = scmp.eq.s32.totalorder %s19, 1
    %p72 = por %p70, %p71
    %p73 = scmp.ne.s32.totalorder %s64, %s65
    %p74 = scmp.eq.s32.totalorder %s19, 0
    %p75 = por %p73, %p74
    %p76 = scmp.ne.s32.totalorder %s64, %s65
    %p77 = scmp.eq.s32.totalorder %s20, 1
    %p78 = por %p76, %p77
    %p80 = scmp.ne.s32.totalorder %s65, %s79
    %p81 = scmp.eq.s32.totalorder %s20, 0
    %p82 = por %p80, %p81
    %s84 = sadd.s32 %s83, 1
    %p87 = scmp.eq.s32.totalorder %s14, 1
    %p88 = scmp.ne.s32.totalorder %s83, %s85
    %p89 = scmp.eq.s32.totalorder %s14, 0
    %p90 = por %p88, %p89
    %p91 = scmp.ne.s32.totalorder %s83, %s85
    %p92 = scmp.eq.s32.totalorder %s19, 1
    %p93 = por %p91, %p92
    %p94 = scmp.ne.s32.totalorder %s85, %s86
    %p95 = scmp.eq.s32.totalorder %s19, 0
    %p96 = por %p94, %p95
    %p97 = scmp.ne.s32.totalorder %s85, %s86
    %p98 = scmp.eq.s32.totalorder %s20, 1
    %p99 = por %p97, %p98
    %p101 = scmp.ne.s32.totalorder %s86, %s100
    %p102 = scmp.eq.s32.totalorder %s20, 0
    %p103 = por %p101, %p102
    %s105 = sadd.s32 %s104, 1
    %p108 = scmp.eq.s32.totalorder %s14, 1
    %p109 = scmp.ne.s32.totalorder %s104, %s106
    %p110 = scmp.eq.s32.totalorder %s14, 0
    %p111 = por %p109, %p110
    %p112 = scmp.ne.s32.totalorder %s104, %s106
    %p113 = scmp.eq.s32.totalorder %s19, 1
    %p114 = por %p112, %p113
    %p115 = scmp.ne.s32.totalorder %s106, %s107
    %p116 = scmp.eq.s32.totalorder %s19, 0
    %p117 = por %p115, %p116
    %p118 = scmp.ne.s32.totalorder %s106, %s107
    %p119 = scmp.eq.s32.totalorder %s20, 1
    %p120 = por %p118, %p119
    %p122 = scmp.ne.s32.totalorder %s107, %s121
    %p123 = scmp.eq.s32.totalorder %s20, 0
    %p124 = por %p122, %p123
    %s126 = sadd.s32 %s125, 1
    %p129 = scmp.eq.s32.totalorder %s14, 1
    %p130 = scmp.ne.s32.totalorder %s125, %s127
    %p131 = scmp.eq.s32.totalorder %s14, 0
    %p132 = por %p130, %p131
    %p133 = scmp.ne.s32.totalorder %s125, %s127
    %p134 = scmp.eq.s32.totalorder %s19, 1
    %p135 = por %p133, %p134
    %p136 = scmp.ne.s32.totalorder %s127, %s128
    %p137 = scmp.eq.s32.totalorder %s19, 0
    %p138 = por %p136, %p137
    %p139 = scmp.ne.s32.totalorder %s127, %s128
    %p140 = scmp.eq.s32.totalorder %s20, 1
    %p141 = por %p139, %p140
    %p143 = scmp.ne.s32.totalorder %s128, %s142
    %p144 = scmp.eq.s32.totalorder %s20, 0
    %p145 = por %p143, %p144
    %s146 = ssub.s32 %s21, %s33
    %s147 = ssub.s32 %s22, %s29
    %s148 = sor.u32 %s146, %s147
    %p149 = scmp.eq.s32.totalorder %s148, 0
    %s151 = sadd.s32 %s150, 1
    %s152 = scalar_select %p149, %s150, %s151
    %p155 = pneg %p149
    %p156 = scmp.eq.s32.totalorder %s14, 1
    %p157 = por %p155, %p156
    %p158 = scmp.ne.s32.totalorder %s150, %s153
    %p159 = scmp.eq.s32.totalorder %s14, 0
    %p160 = por %p158, %p159
    %p161 = scmp.ne.s32.totalorder %s150, %s153
    %p162 = scmp.eq.s32.totalorder %s19, 1
    %p163 = por %p161, %p162
    %p164 = scmp.ne.s32.totalorder %s153, %s154
    %p165 = scmp.eq.s32.totalorder %s19, 0
    %p166 = por %p164, %p165
    %p167 = scmp.ne.s32.totalorder %s153, %s154
    %p168 = scmp.eq.s32.totalorder %s20, 1
    %p169 = por %p167, %p168
    %p171 = scmp.ne.s32.totalorder %s154, %s170
    %p172 = scmp.eq.s32.totalorder %s20, 0
    %p173 = por %p171, %p172
    %s174 = ssub.s32 %s21, %s33
    %s175 = ssub.s32 %s22, %s29
    %s176 = sor.u32 %s174, %s175
    %p177 = scmp.eq.s32.totalorder %s176, 0
    %s179 = sadd.s32 %s178, 1
    %s180 = scalar_select %p177, %s178, %s179
    %p183 = pneg %p177
    %p184 = scmp.eq.s32.totalorder %s14, 1
    %p185 = por %p183, %p184
    %p186 = scmp.ne.s32.totalorder %s178, %s181
    %p187 = scmp.eq.s32.totalorder %s14, 0
    %p188 = por %p186, %p187
    %p189 = scmp.ne.s32.totalorder %s178, %s181
    %p190 = scmp.eq.s32.totalorder %s19, 1
    %p191 = por %p189, %p190
    %p192 = scmp.ne.s32.totalorder %s181, %s182
    %p193 = scmp.eq.s32.totalorder %s19, 0
    %p194 = por %p192, %p193
    %p195 = scmp.ne.s32.totalorder %s181, %s182
    %p196 = scmp.eq.s32.totalorder %s20, 1
    %p197 = por %p195, %p196
    %p199 = scmp.ne.s32.totalorder %s182, %s198
    %p200 = scmp.eq.s32.totalorder %s20, 0
    %p201 = por %p199, %p200
    %s202 = ssub.s32 %s21, %s33
    %s203 = ssub.s32 %s22, %s29
    %s204 = sor.u32 %s202, %s203
    %p205 = scmp.eq.s32.totalorder %s204, 0
    %s207 = sadd.s32 %s206, 1
    %s208 = scalar_select %p205, %s206, %s207
    %p211 = pneg %p205
    %p212 = scmp.eq.s32.totalorder %s14, 1
    %p213 = por %p211, %p212
    %p214 = scmp.ne.s32.totalorder %s206, %s209
    %p215 = scmp.eq.s32.totalorder %s14, 0
    %p216 = por %p214, %p215
    %p217 = scmp.ne.s32.totalorder %s206, %s209
    %p218 = scmp.eq.s32.totalorder %s19, 1
    %p219 = por %p217, %p218
    %p220 = scmp.ne.s32.totalorder %s209, %s210
    %p221 = scmp.eq.s32.totalorder %s19, 0
    %p222 = por %p220, %p221
    %p223 = scmp.ne.s32.totalorder %s209, %s210
    %p224 = scmp.eq.s32.totalorder %s20, 1
    %p225 = por %p223, %p224
    %p227 = scmp.ne.s32.totalorder %s210, %s226
    %p228 = scmp.eq.s32.totalorder %s20, 0
    %p229 = por %p227, %p228
    %p230 = scmp.le.s32.totalorder 1, %s14
    %p231 = scmp.lt.s32.totalorder %s14, 3
    %p232 = pnand %p230, %p231
    %p233 = pneg %p232
    // Predicated region
    $region9: #{bottleneck_forward.7} parent=5 // pred_check
      _
    $region10: #{bottleneck_forward.7} parent=5 // pred_check_branch
      %235 = sbr.rel (%p232) target = $region12
    $region11: #{bottleneck_forward.7} parent=5 // pred_region
      %s236 = ssub.s32 %s14, 1
      // Predicated region
      $region13: #{bottleneck_forward.7} parent=11 // pred_check
        %p237 = pneg %p75
      $region14: #{bottleneck_forward.7} parent=11 // pred_check_branch
        %239 = sbr.rel (%p237) target = $region16
      $region15: #{bottleneck_forward.7} parent=11 // pred_region
        _
      $region16: #{bottleneck_forward.7} parent=11 // pred_fallthru
        _
      // Predicated region
      $region17: #{bottleneck_forward.7} parent=11 // pred_check
        %p240 = pneg %p96
      $region18: #{bottleneck_forward.7} parent=11 // pred_check_branch
        %242 = sbr.rel (%p240) target = $region20
      $region19: #{bottleneck_forward.7} parent=11 // pred_region
        _
      $region20: #{bottleneck_forward.7} parent=11 // pred_fallthru
        _
      // Predicated region
      $region21: #{bottleneck_forward.7} parent=11 // pred_check
        %p243 = pneg %p117
      $region22: #{bottleneck_forward.7} parent=11 // pred_check_branch
        %245 = sbr.rel (%p243) target = $region24
      $region23: #{bottleneck_forward.7} parent=11 // pred_region
        _
      $region24: #{bottleneck_forward.7} parent=11 // pred_fallthru
        _
      // Predicated region
      $region25: #{bottleneck_forward.7} parent=11 // pred_check
        %p246 = pneg %p138
      $region26: #{bottleneck_forward.7} parent=11 // pred_check_branch
        %248 = sbr.rel (%p246) target = $region28
      $region27: #{bottleneck_forward.7} parent=11 // pred_region
        _
      $region28: #{bottleneck_forward.7} parent=11 // pred_fallthru
        _
    $region12: #{bottleneck_forward.7} parent=5 // pred_fallthru
      _
    %p249 = scmp.lt.s32.totalorder %s14, 2
    // Predicated region
    $region29: #{bottleneck_forward.7} parent=5 // pred_check
      %p250 = pneg %p249
    $region30: #{bottleneck_forward.7} parent=5 // pred_check_branch
      %252 = sbr.rel (%p250) target = $region32
    $region31: #{bottleneck_forward.7} parent=5 // pred_region
      // Predicated region
      $region33: #{bottleneck_forward.7} parent=31 // pred_check
        %p253 = pneg %p48
      $region34: #{bottleneck_forward.7} parent=31 // pred_check_branch
        %255 = sbr.rel (%p253) target = $region36
      $region35: #{bottleneck_forward.7} parent=31 // pred_region
        %s256 = smul.u32 2, %s22
        %p257 = scmp.lt.s32.totalorder %s21, 1
        %s258 = scalar_select %p257, %s21, 1
        %p259 = scmp.lt.s32.totalorder %s256, 1
        %s260 = scalar_select %p259, %s256, 1
        %s261 = smul.addr %s258, 4
        %s262 = sadd.s32 %s260, %s261
        %s263 = smul.addr %s262, 8
        %s264 = scalar_lea.vmem %s0, %s263
        %s265 = smul.u32 2, %s22
      $region36: #{bottleneck_forward.7} parent=31 // pred_fallthru
        _
    $region32: #{bottleneck_forward.7} parent=5 // pred_fallthru
      _
    %p266 = scmp.le.s32.totalorder 1, %s14
    %p267 = scmp.lt.s32.totalorder %s14, 3
    %p268 = pnand %p266, %p267
    %p269 = pneg %p268
    // Predicated region
    $region37: #{bottleneck_forward.7} parent=5 // pred_check
      _
    $region38: #{bottleneck_forward.7} parent=5 // pred_check_branch
      %271 = sbr.rel (%p268) target = $region40
    $region39: #{bottleneck_forward.7} parent=5 // pred_region
      %s272 = ssub.s32 %s14, 1
      %s273 = smul.u32 2, %s24
      %p274 = scmp.lt.s32.totalorder %s23, 1
      %s275 = scalar_select %p274, %s23, 1
      %p276 = scmp.lt.s32.totalorder %s273, 1
      %s277 = scalar_select %p276, %s273, 1
      %s278 = smul.addr %s275, 4
      %s279 = sadd.s32 %s277, %s278
      %s280 = smul.addr %s279, 8
      %s281 = scalar_lea.vmem %s0, %s280
      %p282 = pneg %p54
      %p283 = pneg %p51
      %p284 = pneg %p75
      %p285 = pneg %p72
      %p286 = pneg %p96
      %p287 = pneg %p93
      %p288 = pneg %p117
      %p289 = pneg %p114
      %p290 = pneg %p138
      %p291 = pneg %p135
      %p292 = pneg %p166
      %p293 = pneg %p163
      %s294 = smul.u32 2, %s24
      %p295 = scmp.lt.s32.totalorder %s23, 1
      %s296 = scalar_select %p295, %s23, 1
      %p297 = scmp.lt.s32.totalorder %s294, 1
      %s298 = scalar_select %p297, %s294, 1
      %s299 = smul.addr %s296, 2
      %s300 = sadd.s32 %s298, %s299
      %s301 = smul.addr %s300, 4
      %s302 = scalar_lea.vmem %s5, %s301
      %p303 = pneg %p194
      %p304 = pneg %p191
      %s305 = smul.u32 2, %s24
      %p306 = scmp.lt.s32.totalorder %s23, 1
      %s307 = scalar_select %p306, %s23, 1
      %p308 = scmp.lt.s32.totalorder %s305, 1
      %s309 = scalar_select %p308, %s305, 1
      %s310 = smul.addr %s307, 2
      %s311 = sadd.s32 %s309, %s310
      %s312 = smul.addr %s311, 4
      %s313 = scalar_lea.vmem %s6, %s312
      %p314 = pneg %p222
      %p315 = pneg %p219
      %s316 = smul.u32 2, %s24
      %p317 = scmp.lt.s32.totalorder %s23, 1
      %s318 = scalar_select %p317, %s23, 1
      %p319 = scmp.lt.s32.totalorder %s316, 1
      %s320 = scalar_select %p319, %s316, 1
      %s321 = smul.addr %s318, 4
      %s322 = sadd.s32 %s320, %s321
      %s323 = smul.addr %s322, 8
      %s324 = scalar_lea.vmem %s7, %s323
      %s325 = smul.u32 2, %s24
      %p326 = scmp.lt.s32.totalorder %s23, 1
      %s327 = scalar_select %p326, %s23, 1
      %p328 = scmp.lt.s32.totalorder %s325, 1
      %s329 = scalar_select %p328, %s325, 1
      %s330 = smul.addr %s327, 4
      %s331 = sadd.s32 %s329, %s330
      %s332 = smul.addr %s331, 8
      %s333 = scalar_lea.vmem %s0, %s332
      %s334 = smul.u32 2, %s24
      %s335 = smul.u32 2, %s24
      %p336 = scmp.lt.s32.totalorder %s23, 1
      %s337 = scalar_select %p336, %s23, 1
      %p338 = scmp.lt.s32.totalorder %s335, 1
      %s339 = scalar_select %p338, %s335, 1
      %s340 = smul.addr %s337, 2
      %s341 = sadd.s32 %s339, %s340
      %s342 = smul.addr %s341, 4
      %s343 = scalar_lea.vmem %s5, %s342
      %s344 = smul.u32 2, %s24
      %s345 = smul.u32 2, %s24
      %p346 = scmp.lt.s32.totalorder %s23, 1
      %s347 = scalar_select %p346, %s23, 1
      %p348 = scmp.lt.s32.totalorder %s345, 1
      %s349 = scalar_select %p348, %s345, 1
      %s350 = smul.addr %s347, 2
      %s351 = sadd.s32 %s349, %s350
      %s352 = smul.addr %s351, 4
      %s353 = scalar_lea.vmem %s6, %s352
      %s354 = smul.u32 2, %s24
      %s355 = smul.u32 2, %s24
      %p356 = scmp.lt.s32.totalorder %s23, 1
      %s357 = scalar_select %p356, %s23, 1
      %p358 = scmp.lt.s32.totalorder %s355, 1
      %s359 = scalar_select %p358, %s355, 1
      %s360 = smul.addr %s357, 4
      %s361 = sadd.s32 %s359, %s360
      %s362 = smul.addr %s361, 8
      %s363 = scalar_lea.vmem %s7, %s362
      %s364 = smul.u32 2, %s24
      %v366 = vld [vmem:[%s333] sm:$0xff]
      %v367 = vld [vmem:[%s333 + $0x8] sm:$0xff]
      %v368 = vld [vmem:[%s333 + $0x10] sm:$0xff]
      %v369 = vld [vmem:[%s333 + $0x18] sm:$0xff]
      %v370 = vld [vmem:[%s1] sm:$0xff]
      %v371 = vld [vmem:[%s1 + $0x8] sm:$0xff]
      %373 = vset.pattern.permute.xlu0 0
      %374 = vperm.xlu0 %373, %v370
      %v375 = vpop.permute.xlu0 %374
      %378 = vset.pattern.permute.xlu0 0
      %379 = vperm.xlu0 %378, %v371
      %v380 = vpop.permute.xlu0 %379
      %v382 = vmul.f32 %v366, %v375
      %v383 = vmul.f32 %v367, %v375
      %v384 = vmul.f32 %v368, %v380
      %v385 = vmul.f32 %v369, %v380
      %v386 = vld [vmem:[%s2] sm:$0xff]
      %v387 = vld [vmem:[%s2 + $0x8] sm:$0xff]
      %389 = vset.pattern.permute.xlu0 0
      %390 = vperm.xlu0 %389, %v386
      %v391 = vpop.permute.xlu0 %390
      %394 = vset.pattern.permute.xlu0 0
      %395 = vperm.xlu0 %394, %v387
      %v396 = vpop.permute.xlu0 %395
      %v398 = vadd.f32 %v382, %v391
      %v399 = vadd.f32 %v383, %v391
      %v400 = vadd.f32 %v384, %v396
      %v401 = vadd.f32 %v385, %v396
      %v402 = vmax.f32 %v398, 0.0
      %v403 = vmax.f32 %v399, 0.0
      %v404 = vmax.f32 %v400, 0.0
      %v405 = vmax.f32 %v401, 0.0
      %v406 = vld [vmem:[%s3] sm:$0xf]
      %v407 = vld [vmem:[%s3 + $0x4] sm:$0xf]
      %v408 = vld [vmem:[%s3 + $0x8] sm:$0xf]
      %v409 = vpack.c.bf16 %v404, %v402
      %v410 = vpack.c.bf16 %v405, %v403
      %v411 = vld [vmem:[%s4] sm:$0xff]
      %v412 = vld [vmem:[%s4 + $0x8] sm:$0xff]
      %v413 = vld [vmem:[%s4 + $0x10] sm:$0xff]
      %415 = vset.pattern.permute.xlu0 0
      %416 = vperm.xlu0 %415, %v411
      %v417 = vpop.permute.xlu0 %416
      %420 = vset.pattern.permute.xlu0 0
      %421 = vperm.xlu0 %420, %v412
      %v422 = vpop.permute.xlu0 %421
      %425 = vset.pattern.permute.xlu0 0
      %426 = vperm.xlu0 %425, %v413
      %v427 = vpop.permute.xlu0 %426
      %v432 = vunpack.c.l.b16 %v406
      %v433 = vunpack.c.l.b16 %v407
      %v434 = vunpack.c.l.b16 %v408
      %v435 = vpack.c.b16 %v433, %v432
      %v436 = vpack.c.b16 %v434, %v434
      %vm437 = vcmask 130048
      %v439 = vsel %vm437, %v435, 0
      %v442 = vsel %vm437, %v436, 0
      %444 = vmatprep.subr.bf16.mxu0 0
      %445 = vmatpush1.bf16.msra.mxu0 0
      %446 = vmatprep.subr.bf16.mxu0 0
      %447 = vmatpush1.bf16.msra.mxu0 0
      %448 = vmatprep.subr.bf16.mxu0 0
      %449 = vmatpush1.bf16.msra.mxu0 0
      %450 = vmatprep.subr.bf16.mxu0 0
      %451 = vmatpush1.bf16.msra.mxu0 0
      %452 = vmatprep.subr.bf16.mxu0 0
      %453 = vmatpush1.bf16.msra.mxu0 0
      %454 = vmatprep.subr.bf16.mxu0 0
      %455 = vmatpush1.bf16.msra.mxu0 0
      %456 = vmatprep.subr.bf16.mxu0 0
      %457 = vmatpush1.bf16.msra.mxu0 0
      %458 = vmatprep.subr.bf16.mxu0 %v410
      %459 = vmatpush1.bf16.msra.mxu0 %v409
      %460 = vmatprep.subr.bf16.mxu0 0
      %461 = vmatpush2.bf16.msra.mxu0 0
      %462 = vmatprep.subr.bf16.mxu0 0
      %463 = vmatpush2.bf16.msra.mxu0 0
      %464 = vmatprep.subr.bf16.mxu0 0
      %465 = vmatpush2.bf16.msra.mxu0 0
      %466 = vmatprep.subr.bf16.mxu0 0
      %467 = vmatpush2.bf16.msra.mxu0 0
      %468 = vmatprep.subr.bf16.mxu0 0
      %469 = vmatpush2.bf16.msra.mxu0 0
      %470 = vmatprep.subr.bf16.mxu0 0
      %471 = vmatpush2.bf16.msra.mxu0 0
      %472 = vmatprep.subr.bf16.mxu0 0
      %473 = vmatpush2.bf16.msra.mxu0 0
      %474 = vmatprep.subr.bf16.mxu0 0
      %475 = vmatpush2.bf16.msra.mxu0 0
      %476 = vmatprep.mubr.bf16.mxu0 0
      %477 = vmatmul.mubr.bf16.gmra.mxu0 %v439
      %v478 = vpop.f32.mrf.mxu0
      %v479 = vadd.f32 %v417, %v478
      %v480 = vpop.f32.mrf.mxu0
      %v481 = vadd.f32 %v417, %v480
      %v482 = vpop.f32.mrf.mxu0
      %v483 = vadd.f32 %v422, %v482
      %v484 = vpop.f32.mrf.mxu0
      %v485 = vadd.f32 %v422, %v484
      %486 = vmatprep.mubr.bf16.mxu0 0
      %487 = vmatmul.mubr.bf16.gmra.mxu0 %v442
      %v488 = vpop.f32.mrf.mxu0
      %v489 = vadd.f32 %v427, %v488
      %v490 = vpop.f32.mrf.mxu0
      %v491 = vadd.f32 %v427, %v490
      %v492 = vpop.f32.mrf.mxu0
      %v493 = vpop.f32.mrf.mxu0
      %494 = vdwg.mxu0
      %v497 = vcombine.low %v479, %v481
      %499 = vst [vmem:[%s343] sm:$0xff] %v497
      %v500 = vcombine.high %v479, %v481
      %502 = vst [vmem:[%s353] sm:$0xff] %v500
      %503 = vst [vmem:[%s363] sm:$0xff] %v483
      %504 = vst [vmem:[%s363 + $0x8] sm:$0xff] %v485
      %505 = vst [vmem:[%s363 + $0x10] sm:$0xff] %v489
      %506 = vst [vmem:[%s363 + $0x18] sm:$0xff] %v491
      %s507 = smul.u32 2, %s24
      %p508 = scmp.lt.s32.totalorder %s23, 1
      %s509 = scalar_select %p508, %s23, 1
      %p510 = scmp.lt.s32.totalorder %s507, 1
      %s511 = scalar_select %p510, %s507, 1
      %s512 = smul.addr %s509, 2
      %s513 = sadd.s32 %s511, %s512
      %s514 = smul.addr %s513, 4
      %s515 = scalar_lea.vmem %s5, %s514
      %s516 = smul.u32 2, %s24
      %p517 = scmp.lt.s32.totalorder %s23, 1
      %s518 = scalar_select %p517, %s23, 1
      %p519 = scmp.lt.s32.totalorder %s516, 1
      %s520 = scalar_select %p519, %s516, 1
      %s521 = smul.addr %s518, 2
      %s522 = sadd.s32 %s520, %s521
      %s523 = smul.addr %s522, 4
      %s524 = scalar_lea.vmem %s6, %s523
      %s525 = smul.u32 2, %s24
      %p526 = scmp.lt.s32.totalorder %s23, 1
      %s527 = scalar_select %p526, %s23, 1
      %p528 = scmp.lt.s32.totalorder %s525, 1
      %s529 = scalar_select %p528, %s525, 1
      %s530 = smul.addr %s527, 4
      %s531 = sadd.s32 %s529, %s530
      %s532 = smul.addr %s531, 8
      %s533 = scalar_lea.vmem %s7, %s532
      // Predicated region
      $region41: #{bottleneck_forward.7} parent=39 // pred_check
        %p534 = pneg %p163
      $region42: #{bottleneck_forward.7} parent=39 // pred_check_branch
        %536 = sbr.rel (%p534) target = $region44
      $region43: #{bottleneck_forward.7} parent=39 // pred_region
        %s537 = smul.u32 2, %s24
      $region44: #{bottleneck_forward.7} parent=39 // pred_fallthru
        _
      // Predicated region
      $region45: #{bottleneck_forward.7} parent=39 // pred_check
        %p538 = pneg %p191
      $region46: #{bottleneck_forward.7} parent=39 // pred_check_branch
        %540 = sbr.rel (%p538) target = $region48
      $region47: #{bottleneck_forward.7} parent=39 // pred_region
        %s541 = smul.u32 2, %s24
      $region48: #{bottleneck_forward.7} parent=39 // pred_fallthru
        _
      // Predicated region
      $region49: #{bottleneck_forward.7} parent=39 // pred_check
        %p542 = pneg %p219
      $region50: #{bottleneck_forward.7} parent=39 // pred_check_branch
        %544 = sbr.rel (%p542) target = $region52
      $region51: #{bottleneck_forward.7} parent=39 // pred_region
        %s545 = smul.u32 2, %s24
      $region52: #{bottleneck_forward.7} parent=39 // pred_fallthru
        _
    $region40: #{bottleneck_forward.7} parent=5 // pred_fallthru
      _
    %p546 = scmp.le.s32.totalorder 2, %s14
    // Predicated region
    $region53: #{bottleneck_forward.7} parent=5 // pred_check
      %p547 = pneg %p546
    $region54: #{bottleneck_forward.7} parent=5 // pred_check_branch
      %549 = sbr.rel (%p547) target = $region56
    $region55: #{bottleneck_forward.7} parent=5 // pred_region
      %s550 = ssub.s32 %s14, 2
      // Predicated region
      $region57: #{bottleneck_forward.7} parent=55 // pred_check
        %p551 = pneg %p169
      $region58: #{bottleneck_forward.7} parent=55 // pred_check_branch
        %553 = sbr.rel (%p551) target = $region60
      $region59: #{bottleneck_forward.7} parent=55 // pred_region
        %s554 = smul.u32 2, %s26
        %p555 = scmp.lt.s32.totalorder %s25, 1
        %s556 = scalar_select %p555, %s25, 1
        %p557 = scmp.lt.s32.totalorder %s554, 1
        %s558 = scalar_select %p557, %s554, 1
        %s559 = smul.addr %s556, 2
        %s560 = sadd.s32 %s558, %s559
        %s561 = smul.addr %s560, 4
        %s562 = scalar_lea.vmem %s5, %s561
      $region60: #{bottleneck_forward.7} parent=55 // pred_fallthru
        _
      // Predicated region
      $region61: #{bottleneck_forward.7} parent=55 // pred_check
        %p563 = pneg %p197
      $region62: #{bottleneck_forward.7} parent=55 // pred_check_branch
        %565 = sbr.rel (%p563) target = $region64
      $region63: #{bottleneck_forward.7} parent=55 // pred_region
        %s566 = smul.u32 2, %s26
        %p567 = scmp.lt.s32.totalorder %s25, 1
        %s568 = scalar_select %p567, %s25, 1
        %p569 = scmp.lt.s32.totalorder %s566, 1
        %s570 = scalar_select %p569, %s566, 1
        %s571 = smul.addr %s568, 2
        %s572 = sadd.s32 %s570, %s571
        %s573 = smul.addr %s572, 4
        %s574 = scalar_lea.vmem %s6, %s573
      $region64: #{bottleneck_forward.7} parent=55 // pred_fallthru
        _
      // Predicated region
      $region65: #{bottleneck_forward.7} parent=55 // pred_check
        %p575 = pneg %p225
      $region66: #{bottleneck_forward.7} parent=55 // pred_check_branch
        %577 = sbr.rel (%p575) target = $region68
      $region67: #{bottleneck_forward.7} parent=55 // pred_region
        %s578 = smul.u32 2, %s26
        %p579 = scmp.lt.s32.totalorder %s25, 1
        %s580 = scalar_select %p579, %s25, 1
        %p581 = scmp.lt.s32.totalorder %s578, 1
        %s582 = scalar_select %p581, %s578, 1
        %s583 = smul.addr %s580, 4
        %s584 = sadd.s32 %s582, %s583
        %s585 = smul.addr %s584, 8
        %s586 = scalar_lea.vmem %s7, %s585
      $region68: #{bottleneck_forward.7} parent=55 // pred_fallthru
        _
    $region56: #{bottleneck_forward.7} parent=5 // pred_fallthru
      _
  $region6: #{bottleneck_forward.7} parent=0 // loop_footer
    %s18 = sadd.s32 1, %s14
  $region7: #{bottleneck_forward.7} parent=0 // loop_footer_branch
    %13 = sbr.rel target = $region3
  $region8: #{bottleneck_forward.7} parent=0 // loop_exit
    _

// kernel: mul.69
$region0: #{mul.69}
  #allocation0 [shape = 's32[1]{0}', space=sflag, size = 0x4, scoped, tag = 'scoped memory for mul.69']
  %s0 = inlined_call_operand.vmem [shape: f32[4,1], index: 0, kind: input, shape index: {}]
  %s1 = inlined_call_operand.vmem [shape: f32[4,1], index: 1, kind: input, shape index: {}]
  %s2 = inlined_call_operand.vmem [shape: f32[4,1], index: 2, kind: output, shape index: {}]
  %v3 = vld [vmem:[%s0] sm:$0xf]
  %v4 = vld [vmem:[%s1] sm:$0xf]
  %5 = xla_tuple %v3, %v4
  %6 = xla_tuple %5
  %v7 = vmul.f32 %v3, %v4
  %8 = xla_tuple %v7
  %9 = vst [vmem:[%s2] sm:$0xf] %v7

// kernel: bottleneck_forward.11
$region0: #{bottleneck_forward.11}
  #allocation0 [shape = 'u32[]', space=smem, size = 0x4, offset = 0x4, fixed_abs, tag = 'smem constant byte address 0x4 - core index']
  #allocation1 [shape = 'u32[144,128]{1,0:T(1,128)}', space=vmem, size = 0x12000, scoped, tag = 'internal scratch']
  %s0 = inlined_call_operand.vmem [shape: f32[2,16,256], index: 0, kind: input, shape index: {}]
  %s1 = inlined_call_operand.vmem [shape: f32[16,1], index: 1, kind: input, shape index: {}]
  %s2 = inlined_call_operand.vmem [shape: f32[16,1], index: 2, kind: input, shape index: {}]
  %s3 = inlined_call_operand.vmem [shape: bf16[16,16], index: 3, kind: input, shape index: {}]
  %s4 = inlined_call_operand.vmem [shape: f32[16,1], index: 4, kind: input, shape index: {}]
  %s5 = inlined_call_operand.vmem [shape: f32[2,16,256], index: 5, kind: input, shape index: {}]
  %s6 = inlined_call_operand.vmem [shape: f32[2,16,256], index: 6, kind: output, shape index: {}]
  %s7 = sld [smem:[#allocation0]]
  $region57: #{bottleneck_forward.11} parent=0
    _
  %s9 = ssub.s32 1, %s7
  %s10 = scalar_select 0, %s9, %s7
  loop: start=0, step=1, limit=4
  $region2: #{bottleneck_forward.11} parent=0 // loop_pre_header
    _
  $region3: #{bottleneck_forward.11} parent=0 // loop_header
    %s12 = sphi 0, %s16
    %p13 = scmp.ge.s32.totalorder %s12, 4
    %s19 = sphi 0, %s31
    %s20 = sphi 0, %s27
    %s21 = sphi 0, %s19
    %s22 = sphi 0, %s20
    %s23 = sphi 0, %s21
    %s24 = sphi 0, %s22
    %s36 = sphi 0, %s38
    %s39 = sphi 0, %s36
    %s40 = sphi 0, %s39
    %s56 = sphi 0, %s40
    %s60 = sphi 0, %s60
    %s62 = sphi 0, %s60
    %s63 = sphi 0, %s62
    %s77 = sphi 0, %s63
    %s81 = sphi 0, %s81
    %s83 = sphi 0, %s81
    %s84 = sphi 0, %s83
    %s98 = sphi 0, %s84
    %s102 = sphi 0, %s102
    %s104 = sphi 0, %s102
    %s105 = sphi 0, %s104
    %s119 = sphi 0, %s105
    %s123 = sphi 0, %s123
    %s125 = sphi 0, %s123
    %s126 = sphi 0, %s125
    %s140 = sphi 0, %s126
    %s148 = sphi 0, %s150
    %s151 = sphi 0, %s148
    %s152 = sphi 0, %s151
    %s168 = sphi 0, %s152
    %s176 = sphi 0, %s178
    %s179 = sphi 0, %s176
    %s180 = sphi 0, %s179
    %s196 = sphi 0, %s180
  $region4: #{bottleneck_forward.11} parent=0 // loop_header_branch
    %15 = sbr.rel (%p13) target = $region8
  $region5: #{bottleneck_forward.11} parent=0 // loop_body
    %s17 = ssub.s32 %s12, 1
    %s18 = ssub.s32 %s12, 2
    %s25 = sadd.s32 1, %s20
    %p26 = scmp.ge.s32.totalorder %s25, 1
    %s27 = scalar_select %p26, 0, %s25
    %s28 = sadd.s32 1, %s19
    %s29 = scalar_select %p26, %s28, %s19
    %p30 = scmp.ge.s32.totalorder %s29, 2
    %s31 = scalar_select %p30, 0, %s29
    %s32 = ssub.s32 %s19, %s31
    %s33 = ssub.s32 %s20, %s27
    %s34 = sor.u32 %s32, %s33
    %p35 = scmp.eq.s32.totalorder %s34, 0
    %s37 = sadd.s32 %s36, 1
    %s38 = scalar_select %p35, %s36, %s37
    %p41 = pneg %p35
    %p42 = scmp.eq.s32.totalorder %s12, 1
    %p43 = por %p41, %p42
    %p44 = scmp.ne.s32.totalorder %s36, %s39
    %p45 = scmp.eq.s32.totalorder %s12, 0
    %p46 = por %p44, %p45
    %p47 = scmp.ne.s32.totalorder %s36, %s39
    %p48 = scmp.eq.s32.totalorder %s17, 1
    %p49 = por %p47, %p48
    %p50 = scmp.ne.s32.totalorder %s39, %s40
    %p51 = scmp.eq.s32.totalorder %s17, 0
    %p52 = por %p50, %p51
    %p53 = scmp.ne.s32.totalorder %s39, %s40
    %p54 = scmp.eq.s32.totalorder %s18, 1
    %p55 = por %p53, %p54
    %p57 = scmp.ne.s32.totalorder %s40, %s56
    %p58 = scmp.eq.s32.totalorder %s18, 0
    %p59 = por %p57, %p58
    %s61 = sadd.s32 %s60, 1
    %p64 = scmp.eq.s32.totalorder %s12, 1
    %p65 = scmp.ne.s32.totalorder %s60, %s62
    %p66 = scmp.eq.s32.totalorder %s12, 0
    %p67 = por %p65, %p66
    %p68 = scmp.ne.s32.totalorder %s60, %s62
    %p69 = scmp.eq.s32.totalorder %s17, 1
    %p70 = por %p68, %p69
    %p71 = scmp.ne.s32.totalorder %s62, %s63
    %p72 = scmp.eq.s32.totalorder %s17, 0
    %p73 = por %p71, %p72
    %p74 = scmp.ne.s32.totalorder %s62, %s63
    %p75 = scmp.eq.s32.totalorder %s18, 1
    %p76 = por %p74, %p75
    %p78 = scmp.ne.s32.totalorder %s63, %s77
    %p79 = scmp.eq.s32.totalorder %s18, 0
    %p80 = por %p78, %p79
    %s82 = sadd.s32 %s81, 1
    %p85 = scmp.eq.s32.totalorder %s12, 1
    %p86 = scmp.ne.s32.totalorder %s81, %s83
    %p87 = scmp.eq.s32.totalorder %s12, 0
    %p88 = por %p86, %p87
    %p89 = scmp.ne.s32.totalorder %s81, %s83
    %p90 = scmp.eq.s32.totalorder %s17, 1
    %p91 = por %p89, %p90
    %p92 = scmp.ne.s32.totalorder %s83, %s84
    %p93 = scmp.eq.s32.totalorder %s17, 0
    %p94 = por %p92, %p93
    %p95 = scmp.ne.s32.totalorder %s83, %s84
    %p96 = scmp.eq.s32.totalorder %s18, 1
    %p97 = por %p95, %p96
    %p99 = scmp.ne.s32.totalorder %s84, %s98
    %p100 = scmp.eq.s32.totalorder %s18, 0
    %p101 = por %p99, %p100
    %s103 = sadd.s32 %s102, 1
    %p106 = scmp.eq.s32.totalorder %s12, 1
    %p107 = scmp.ne.s32.totalorder %s102, %s104
    %p108 = scmp.eq.s32.totalorder %s12, 0
    %p109 = por %p107, %p108
    %p110 = scmp.ne.s32.totalorder %s102, %s104
    %p111 = scmp.eq.s32.totalorder %s17, 1
    %p112 = por %p110, %p111
    %p113 = scmp.ne.s32.totalorder %s104, %s105
    %p114 = scmp.eq.s32.totalorder %s17, 0
    %p115 = por %p113, %p114
    %p116 = scmp.ne.s32.totalorder %s104, %s105
    %p117 = scmp.eq.s32.totalorder %s18, 1
    %p118 = por %p116, %p117
    %p120 = scmp.ne.s32.totalorder %s105, %s119
    %p121 = scmp.eq.s32.totalorder %s18, 0
    %p122 = por %p120, %p121
    %s124 = sadd.s32 %s123, 1
    %p127 = scmp.eq.s32.totalorder %s12, 1
    %p128 = scmp.ne.s32.totalorder %s123, %s125
    %p129 = scmp.eq.s32.totalorder %s12, 0
    %p130 = por %p128, %p129
    %p131 = scmp.ne.s32.totalorder %s123, %s125
    %p132 = scmp.eq.s32.totalorder %s17, 1
    %p133 = por %p131, %p132
    %p134 = scmp.ne.s32.totalorder %s125, %s126
    %p135 = scmp.eq.s32.totalorder %s17, 0
    %p136 = por %p134, %p135
    %p137 = scmp.ne.s32.totalorder %s125, %s126
    %p138 = scmp.eq.s32.totalorder %s18, 1
    %p139 = por %p137, %p138
    %p141 = scmp.ne.s32.totalorder %s126, %s140
    %p142 = scmp.eq.s32.totalorder %s18, 0
    %p143 = por %p141, %p142
    %s144 = ssub.s32 %s19, %s31
    %s145 = ssub.s32 %s20, %s27
    %s146 = sor.u32 %s144, %s145
    %p147 = scmp.eq.s32.totalorder %s146, 0
    %s149 = sadd.s32 %s148, 1
    %s150 = scalar_select %p147, %s148, %s149
    %p153 = pneg %p147
    %p154 = scmp.eq.s32.totalorder %s12, 1
    %p155 = por %p153, %p154
    %p156 = scmp.ne.s32.totalorder %s148, %s151
    %p157 = scmp.eq.s32.totalorder %s12, 0
    %p158 = por %p156, %p157
    %p159 = scmp.ne.s32.totalorder %s148, %s151
    %p160 = scmp.eq.s32.totalorder %s17, 1
    %p161 = por %p159, %p160
    %p162 = scmp.ne.s32.totalorder %s151, %s152
    %p163 = scmp.eq.s32.totalorder %s17, 0
    %p164 = por %p162, %p163
    %p165 = scmp.ne.s32.totalorder %s151, %s152
    %p166 = scmp.eq.s32.totalorder %s18, 1
    %p167 = por %p165, %p166
    %p169 = scmp.ne.s32.totalorder %s152, %s168
    %p170 = scmp.eq.s32.totalorder %s18, 0
    %p171 = por %p169, %p170
    %s172 = ssub.s32 %s19, %s31
    %s173 = ssub.s32 %s20, %s27
    %s174 = sor.u32 %s172, %s173
    %p175 = scmp.eq.s32.totalorder %s174, 0
    %s177 = sadd.s32 %s176, 1
    %s178 = scalar_select %p175, %s176, %s177
    %p181 = pneg %p175
    %p182 = scmp.eq.s32.totalorder %s12, 1
    %p183 = por %p181, %p182
    %p184 = scmp.ne.s32.totalorder %s176, %s179
    %p185 = scmp.eq.s32.totalorder %s12, 0
    %p186 = por %p184, %p185
    %p187 = scmp.ne.s32.totalorder %s176, %s179
    %p188 = scmp.eq.s32.totalorder %s17, 1
    %p189 = por %p187, %p188
    %p190 = scmp.ne.s32.totalorder %s179, %s180
    %p191 = scmp.eq.s32.totalorder %s17, 0
    %p192 = por %p190, %p191
    %p193 = scmp.ne.s32.totalorder %s179, %s180
    %p194 = scmp.eq.s32.totalorder %s18, 1
    %p195 = por %p193, %p194
    %p197 = scmp.ne.s32.totalorder %s180, %s196
    %p198 = scmp.eq.s32.totalorder %s18, 0
    %p199 = por %p197, %p198
    %p200 = scmp.le.s32.totalorder 1, %s12
    %p201 = scmp.lt.s32.totalorder %s12, 3
    %p202 = pnand %p200, %p201
    %p203 = pneg %p202
    // Predicated region
    $region9: #{bottleneck_forward.11} parent=5 // pred_check
      _
    $region10: #{bottleneck_forward.11} parent=5 // pred_check_branch
      %205 = sbr.rel (%p202) target = $region12
    $region11: #{bottleneck_forward.11} parent=5 // pred_region
      %s206 = ssub.s32 %s12, 1
      // Predicated region
      $region13: #{bottleneck_forward.11} parent=11 // pred_check
        %p207 = pneg %p73
      $region14: #{bottleneck_forward.11} parent=11 // pred_check_branch
        %209 = sbr.rel (%p207) target = $region16
      $region15: #{bottleneck_forward.11} parent=11 // pred_region
        _
      $region16: #{bottleneck_forward.11} parent=11 // pred_fallthru
        _
      // Predicated region
      $region17: #{bottleneck_forward.11} parent=11 // pred_check
        %p210 = pneg %p94
      $region18: #{bottleneck_forward.11} parent=11 // pred_check_branch
        %212 = sbr.rel (%p210) target = $region20
      $region19: #{bottleneck_forward.11} parent=11 // pred_region
        _
      $region20: #{bottleneck_forward.11} parent=11 // pred_fallthru
        _
      // Predicated region
      $region21: #{bottleneck_forward.11} parent=11 // pred_check
        %p213 = pneg %p115
      $region22: #{bottleneck_forward.11} parent=11 // pred_check_branch
        %215 = sbr.rel (%p213) target = $region24
      $region23: #{bottleneck_forward.11} parent=11 // pred_region
        _
      $region24: #{bottleneck_forward.11} parent=11 // pred_fallthru
        _
      // Predicated region
      $region25: #{bottleneck_forward.11} parent=11 // pred_check
        %p216 = pneg %p136
      $region26: #{bottleneck_forward.11} parent=11 // pred_check_branch
        %218 = sbr.rel (%p216) target = $region28
      $region27: #{bottleneck_forward.11} parent=11 // pred_region
        _
      $region28: #{bottleneck_forward.11} parent=11 // pred_fallthru
        _
    $region12: #{bottleneck_forward.11} parent=5 // pred_fallthru
      _
    %p219 = scmp.lt.s32.totalorder %s12, 2
    // Predicated region
    $region29: #{bottleneck_forward.11} parent=5 // pred_check
      %p220 = pneg %p219
    $region30: #{bottleneck_forward.11} parent=5 // pred_check_branch
      %222 = sbr.rel (%p220) target = $region32
    $region31: #{bottleneck_forward.11} parent=5 // pred_region
      // Predicated region
      $region33: #{bottleneck_forward.11} parent=31 // pred_check
        %p223 = pneg %p46
      $region34: #{bottleneck_forward.11} parent=31 // pred_check_branch
        %225 = sbr.rel (%p223) target = $region36
      $region35: #{bottleneck_forward.11} parent=31 // pred_region
        %s226 = smul.u32 2, %s20
        %p227 = scmp.lt.s32.totalorder %s19, 1
        %s228 = scalar_select %p227, %s19, 1
        %p229 = scmp.lt.s32.totalorder %s226, 1
        %s230 = scalar_select %p229, %s226, 1
        %s231 = smul.addr %s228, 4
        %s232 = sadd.s32 %s230, %s231
        %s233 = smul.addr %s232, 8
        %s234 = scalar_lea.vmem %s0, %s233
        %s235 = smul.u32 2, %s20
      $region36: #{bottleneck_forward.11} parent=31 // pred_fallthru
        _
      // Predicated region
      $region37: #{bottleneck_forward.11} parent=31 // pred_check
        %p236 = pneg %p158
      $region38: #{bottleneck_forward.11} parent=31 // pred_check_branch
        %238 = sbr.rel (%p236) target = $region40
      $region39: #{bottleneck_forward.11} parent=31 // pred_region
        %s239 = smul.u32 2, %s20
        %p240 = scmp.lt.s32.totalorder %s19, 1
        %s241 = scalar_select %p240, %s19, 1
        %p242 = scmp.lt.s32.totalorder %s239, 1
        %s243 = scalar_select %p242, %s239, 1
        %s244 = smul.addr %s241, 4
        %s245 = sadd.s32 %s243, %s244
        %s246 = smul.addr %s245, 8
        %s247 = scalar_lea.vmem %s5, %s246
        %s248 = smul.u32 2, %s20
      $region40: #{bottleneck_forward.11} parent=31 // pred_fallthru
        _
    $region32: #{bottleneck_forward.11} parent=5 // pred_fallthru
      _
    %p249 = scmp.le.s32.totalorder 1, %s12
    %p250 = scmp.lt.s32.totalorder %s12, 3
    %p251 = pnand %p249, %p250
    %p252 = pneg %p251
    // Predicated region
    $region41: #{bottleneck_forward.11} parent=5 // pred_check
      _
    $region42: #{bottleneck_forward.11} parent=5 // pred_check_branch
      %254 = sbr.rel (%p251) target = $region44
    $region43: #{bottleneck_forward.11} parent=5 // pred_region
      %s255 = ssub.s32 %s12, 1
      %s256 = smul.u32 2, %s22
      %p257 = scmp.lt.s32.totalorder %s21, 1
      %s258 = scalar_select %p257, %s21, 1
      %p259 = scmp.lt.s32.totalorder %s256, 1
      %s260 = scalar_select %p259, %s256, 1
      %s261 = smul.addr %s258, 4
      %s262 = sadd.s32 %s260, %s261
      %s263 = smul.addr %s262, 8
      %s264 = scalar_lea.vmem %s0, %s263
      %p265 = pneg %p52
      %p266 = pneg %p49
      %p267 = pneg %p73
      %p268 = pneg %p70
      %p269 = pneg %p94
      %p270 = pneg %p91
      %p271 = pneg %p115
      %p272 = pneg %p112
      %p273 = pneg %p136
      %p274 = pneg %p133
      %s275 = smul.u32 2, %s22
      %p276 = scmp.lt.s32.totalorder %s21, 1
      %s277 = scalar_select %p276, %s21, 1
      %p278 = scmp.lt.s32.totalorder %s275, 1
      %s279 = scalar_select %p278, %s275, 1
      %s280 = smul.addr %s277, 4
      %s281 = sadd.s32 %s279, %s280
      %s282 = smul.addr %s281, 8
      %s283 = scalar_lea.vmem %s5, %s282
      %p284 = pneg %p164
      %p285 = pneg %p161
      %p286 = pneg %p192
      %p287 = pneg %p189
      %s288 = smul.u32 2, %s22
      %p289 = scmp.lt.s32.totalorder %s21, 1
      %s290 = scalar_select %p289, %s21, 1
      %p291 = scmp.lt.s32.totalorder %s288, 1
      %s292 = scalar_select %p291, %s288, 1
      %s293 = smul.addr %s290, 4
      %s294 = sadd.s32 %s292, %s293
      %s295 = smul.addr %s294, 8
      %s296 = scalar_lea.vmem %s6, %s295
      %s297 = smul.u32 2, %s22
      %p298 = scmp.lt.s32.totalorder %s21, 1
      %s299 = scalar_select %p298, %s21, 1
      %p300 = scmp.lt.s32.totalorder %s297, 1
      %s301 = scalar_select %p300, %s297, 1
      %s302 = smul.addr %s299, 4
      %s303 = sadd.s32 %s301, %s302
      %s304 = smul.addr %s303, 8
      %s305 = scalar_lea.vmem %s0, %s304
      %s306 = smul.u32 2, %s22
      %s307 = smul.u32 2, %s22
      %p308 = scmp.lt.s32.totalorder %s21, 1
      %s309 = scalar_select %p308, %s21, 1
      %p310 = scmp.lt.s32.totalorder %s307, 1
      %s311 = scalar_select %p310, %s307, 1
      %s312 = smul.addr %s309, 4
      %s313 = sadd.s32 %s311, %s312
      %s314 = smul.addr %s313, 8
      %s315 = scalar_lea.vmem %s5, %s314
      %s316 = smul.u32 2, %s22
      %s317 = smul.u32 2, %s22
      %p318 = scmp.lt.s32.totalorder %s21, 1
      %s319 = scalar_select %p318, %s21, 1
      %p320 = scmp.lt.s32.totalorder %s317, 1
      %s321 = scalar_select %p320, %s317, 1
      %s322 = smul.addr %s319, 4
      %s323 = sadd.s32 %s321, %s322
      %s324 = smul.addr %s323, 8
      %s325 = scalar_lea.vmem %s6, %s324
      %s326 = smul.u32 2, %s22
      %v328 = vld [vmem:[%s305] sm:$0xff]
      %v329 = vld [vmem:[%s305 + $0x8] sm:$0xff]
      %v330 = vld [vmem:[%s305 + $0x10] sm:$0xff]
      %v331 = vld [vmem:[%s305 + $0x18] sm:$0xff]
      %v332 = vld [vmem:[%s1] sm:$0xff]
      %v333 = vld [vmem:[%s1 + $0x8] sm:$0xff]
      %335 = vset.pattern.permute.xlu0 0
      %336 = vperm.xlu0 %335, %v332
      %v337 = vpop.permute.xlu0 %336
      %340 = vset.pattern.permute.xlu0 0
      %341 = vperm.xlu0 %340, %v333
      %v342 = vpop.permute.xlu0 %341
      %v344 = vmul.f32 %v328, %v337
      %v345 = vmul.f32 %v329, %v337
      %v346 = vmul.f32 %v330, %v342
      %v347 = vmul.f32 %v331, %v342
      %v348 = vld [vmem:[%s2] sm:$0xff]
      %v349 = vld [vmem:[%s2 + $0x8] sm:$0xff]
      %351 = vset.pattern.permute.xlu0 0
      %352 = vperm.xlu0 %351, %v348
      %v353 = vpop.permute.xlu0 %352
      %356 = vset.pattern.permute.xlu0 0
      %357 = vperm.xlu0 %356, %v349
      %v358 = vpop.permute.xlu0 %357
      %v360 = vadd.f32 %v344, %v353
      %v361 = vadd.f32 %v345, %v353
      %v362 = vadd.f32 %v346, %v358
      %v363 = vadd.f32 %v347, %v358
      %v364 = vmax.f32 %v360, 0.0
      %v365 = vmax.f32 %v361, 0.0
      %v366 = vmax.f32 %v362, 0.0
      %v367 = vmax.f32 %v363, 0.0
      %v368 = vld [vmem:[%s3] sm:$0xf]
      %v369 = vld [vmem:[%s3 + $0x4] sm:$0xf]
      %v370 = vpack.c.bf16 %v366, %v364
      %v371 = vpack.c.bf16 %v367, %v365
      %v372 = vld [vmem:[%s4] sm:$0xff]
      %v373 = vld [vmem:[%s4 + $0x8] sm:$0xff]
      %375 = vset.pattern.permute.xlu0 0
      %376 = vperm.xlu0 %375, %v372
      %v377 = vpop.permute.xlu0 %376
      %380 = vset.pattern.permute.xlu0 0
      %381 = vperm.xlu0 %380, %v373
      %v382 = vpop.permute.xlu0 %381
      %v386 = vunpack.c.l.b16 %v368
      %v387 = vunpack.c.l.b16 %v369
      %v388 = vpack.c.b16 %v387, %v386
      %vm389 = vcmask 130048
      %v391 = vsel %vm389, %v388, 0
      %393 = vmatprep.subr.bf16.mxu0 0
      %394 = vmatpush1.bf16.msra.mxu0 0
      %395 = vmatprep.subr.bf16.mxu0 0
      %396 = vmatpush1.bf16.msra.mxu0 0
      %397 = vmatprep.subr.bf16.mxu0 0
      %398 = vmatpush1.bf16.msra.mxu0 0
      %399 = vmatprep.subr.bf16.mxu0 0
      %400 = vmatpush1.bf16.msra.mxu0 0
      %401 = vmatprep.subr.bf16.mxu0 0
      %402 = vmatpush1.bf16.msra.mxu0 0
      %403 = vmatprep.subr.bf16.mxu0 0
      %404 = vmatpush1.bf16.msra.mxu0 0
      %405 = vmatprep.subr.bf16.mxu0 0
      %406 = vmatpush1.bf16.msra.mxu0 0
      %407 = vmatprep.subr.bf16.mxu0 %v371
      %408 = vmatpush1.bf16.msra.mxu0 %v370
      %409 = vmatprep.subr.bf16.mxu0 0
      %410 = vmatpush2.bf16.msra.mxu0 0
      %411 = vmatprep.subr.bf16.mxu0 0
      %412 = vmatpush2.bf16.msra.mxu0 0
      %413 = vmatprep.subr.bf16.mxu0 0
      %414 = vmatpush2.bf16.msra.mxu0 0
      %415 = vmatprep.subr.bf16.mxu0 0
      %416 = vmatpush2.bf16.msra.mxu0 0
      %417 = vmatprep.subr.bf16.mxu0 0
      %418 = vmatpush2.bf16.msra.mxu0 0
      %419 = vmatprep.subr.bf16.mxu0 0
      %420 = vmatpush2.bf16.msra.mxu0 0
      %421 = vmatprep.subr.bf16.mxu0 0
      %422 = vmatpush2.bf16.msra.mxu0 0
      %423 = vmatprep.subr.bf16.mxu0 0
      %424 = vmatpush2.bf16.msra.mxu0 0
      %425 = vmatprep.mubr.bf16.mxu0 0
      %426 = vmatmul.mubr.bf16.gmra.mxu0 %v391
      %v427 = vpop.f32.mrf.mxu0
      %v428 = vadd.f32 %v377, %v427
      %v429 = vpop.f32.mrf.mxu0
      %v430 = vadd.f32 %v377, %v429
      %v431 = vpop.f32.mrf.mxu0
      %v432 = vadd.f32 %v382, %v431
      %v433 = vpop.f32.mrf.mxu0
      %v434 = vadd.f32 %v382, %v433
      %435 = vdwg.mxu0
      %v436 = vld [vmem:[%s315] sm:$0xff]
      %v437 = vld [vmem:[%s315 + $0x8] sm:$0xff]
      %v438 = vld [vmem:[%s315 + $0x10] sm:$0xff]
      %v439 = vld [vmem:[%s315 + $0x18] sm:$0xff]
      %v440 = vadd.f32 %v428, %v436
      %v441 = vadd.f32 %v430, %v437
      %v442 = vadd.f32 %v432, %v438
      %v443 = vadd.f32 %v434, %v439
      %444 = vst [vmem:[%s325] sm:$0xff] %v440
      %445 = vst [vmem:[%s325 + $0x8] sm:$0xff] %v441
      %446 = vst [vmem:[%s325 + $0x10] sm:$0xff] %v442
      %447 = vst [vmem:[%s325 + $0x18] sm:$0xff] %v443
      %s448 = smul.u32 2, %s22
      %p449 = scmp.lt.s32.totalorder %s21, 1
      %s450 = scalar_select %p449, %s21, 1
      %p451 = scmp.lt.s32.totalorder %s448, 1
      %s452 = scalar_select %p451, %s448, 1
      %s453 = smul.addr %s450, 4
      %s454 = sadd.s32 %s452, %s453
      %s455 = smul.addr %s454, 8
      %s456 = scalar_lea.vmem %s6, %s455
      // Predicated region
      $region45: #{bottleneck_forward.11} parent=43 // pred_check
        %p457 = pneg %p189
      $region46: #{bottleneck_forward.11} parent=43 // pred_check_branch
        %459 = sbr.rel (%p457) target = $region48
      $region47: #{bottleneck_forward.11} parent=43 // pred_region
        %s460 = smul.u32 2, %s22
      $region48: #{bottleneck_forward.11} parent=43 // pred_fallthru
        _
    $region44: #{bottleneck_forward.11} parent=5 // pred_fallthru
      _
    %p461 = scmp.le.s32.totalorder 2, %s12
    // Predicated region
    $region49: #{bottleneck_forward.11} parent=5 // pred_check
      %p462 = pneg %p461
    $region50: #{bottleneck_forward.11} parent=5 // pred_check_branch
      %464 = sbr.rel (%p462) target = $region52
    $region51: #{bottleneck_forward.11} parent=5 // pred_region
      %s465 = ssub.s32 %s12, 2
      // Predicated region
      $region53: #{bottleneck_forward.11} parent=51 // pred_check
        %p466 = pneg %p195
      $region54: #{bottleneck_forward.11} parent=51 // pred_check_branch
        %468 = sbr.rel (%p466) target = $region56
      $region55: #{bottleneck_forward.11} parent=51 // pred_region
        %s469 = smul.u32 2, %s24
        %p470 = scmp.lt.s32.totalorder %s23, 1
        %s471 = scalar_select %p470, %s23, 1
        %p472 = scmp.lt.s32.totalorder %s469, 1
        %s473 = scalar_select %p472, %s469, 1
        %s474 = smul.addr %s471, 4
        %s475 = sadd.s32 %s473, %s474
        %s476 = smul.addr %s475, 8
        %s477 = scalar_lea.vmem %s6, %s476
      $region56: #{bottleneck_forward.11} parent=51 // pred_fallthru
        _
    $region52: #{bottleneck_forward.11} parent=5 // pred_fallthru
      _
  $region6: #{bottleneck_forward.11} parent=0 // loop_footer
    %s16 = sadd.s32 1, %s12
  $region7: #{bottleneck_forward.11} parent=0 // loop_footer_branch
    %11 = sbr.rel target = $region3
  $region8: #{bottleneck_forward.11} parent=0 // loop_exit
    _

// kernel: bottleneck_forward.9
$region0: #{bottleneck_forward.9}
  #allocation0 [shape = 'u32[]', space=smem, size = 0x4, offset = 0x4, fixed_abs, tag = 'smem constant byte address 0x4 - core index']
  #allocation1 [shape = 'u32[144,128]{1,0:T(1,128)}', space=vmem, size = 0x12000, scoped, tag = 'internal scratch']
  %s0 = inlined_call_operand.vmem [shape: f32[2,4,256], index: 0, kind: input, shape index: {}]
  %s1 = inlined_call_operand.vmem [shape: f32[2,4,256], index: 1, kind: input, shape index: {}]
  %s2 = inlined_call_operand.vmem [shape: f32[9,2,256], index: 2, kind: input, shape index: {}]
  %s3 = inlined_call_operand.vmem [shape: s32[2,256], index: 3, kind: input, shape index: {}]
  %s4 = inlined_call_operand.vmem [shape: f32[4,1], index: 4, kind: input, shape index: {}]
  %s5 = inlined_call_operand.vmem [shape: f32[4,1], index: 5, kind: input, shape index: {}]
  %s6 = inlined_call_operand.vmem [shape: f32[2,1], index: 6, kind: input, shape index: {}]
  %s7 = inlined_call_operand.vmem [shape: f32[2,1], index: 7, kind: input, shape index: {}]
  %s8 = inlined_call_operand.vmem [shape: bf16[4,4], index: 8, kind: input, shape index: {}]
  %s9 = inlined_call_operand.vmem [shape: f32[4,2], index: 9, kind: input, shape index: {}]
  %s10 = inlined_call_operand.vmem [shape: bf16[2,9,4,256], index: 10, kind: output, shape index: {0}]
  %s11 = inlined_call_operand.vmem [shape: f32[2,4,2], index: 11, kind: output, shape index: {1}]
  %12 = xla_tuple %s10, %s11
  %s13 = sld [smem:[#allocation0]]
  $region81: #{bottleneck_forward.9} parent=0
    _
  %s15 = ssub.s32 1, %s13
  %s16 = scalar_select 0, %s15, %s13
  loop: start=0, step=1, limit=4
  $region2: #{bottleneck_forward.9} parent=0 // loop_pre_header
    _
  $region3: #{bottleneck_forward.9} parent=0 // loop_header
    %s18 = sphi 0, %s22
    %p19 = scmp.ge.s32.totalorder %s18, 4
    %s28 = sphi 0, %s30
    %s31 = sphi 0, %s28
    %s32 = sphi 0, %s31
    %s48 = sphi 0, %s32
    %s54 = sphi 0, %s56
    %s57 = sphi 0, %s54
    %s58 = sphi 0, %s57
    %s74 = sphi 0, %s58
    %s78 = sphi 0, %s78
    %s80 = sphi 0, %s78
    %s81 = sphi 0, %s80
    %s95 = sphi 0, %s81
    %s99 = sphi 0, %s99
    %s101 = sphi 0, %s99
    %s102 = sphi 0, %s101
    %s116 = sphi 0, %s102
    %s120 = sphi 0, %s120
    %s122 = sphi 0, %s120
    %s123 = sphi 0, %s122
    %s137 = sphi 0, %s123
    %s141 = sphi 0, %s141
    %s143 = sphi 0, %s141
    %s144 = sphi 0, %s143
    %s158 = sphi 0, %s144
    %s162 = sphi 0, %s162
    %s164 = sphi 0, %s162
    %s165 = sphi 0, %s164
    %s179 = sphi 0, %s165
    %s183 = sphi 0, %s183
    %s185 = sphi 0, %s183
    %s186 = sphi 0, %s185
    %s200 = sphi 0, %s186
    %s204 = sphi 0, %s204
    %s206 = sphi 0, %s204
    %s207 = sphi 0, %s206
    %s221 = sphi 0, %s207
    %s225 = sphi 0, %s225
    %s227 = sphi 0, %s225
    %s228 = sphi 0, %s227
    %s242 = sphi 0, %s228
    %s248 = sphi 0, %s250
    %s251 = sphi 0, %s248
    %s252 = sphi 0, %s251
    %s268 = sphi 0, %s252
    %s274 = sphi 0, %s276
    %s277 = sphi 0, %s274
    %s278 = sphi 0, %s277
    %s294 = sphi 0, %s278
  $region4: #{bottleneck_forward.9} parent=0 // loop_header_branch
    %21 = sbr.rel (%p19) target = $region8
  $region5: #{bottleneck_forward.9} parent=0 // loop_body
    %s23 = ssub.s32 %s18, 1
    %s24 = ssub.s32 %s18, 2
    %s25 = sadd.s32 %s18, 1
    %s26 = ssub.s32 %s18, %s25
    %p27 = scmp.eq.s32.totalorder %s26, 0
    %s29 = sadd.s32 %s28, 1
    %s30 = scalar_select %p27, %s28, %s29
    %p33 = pneg %p27
    %p34 = scmp.eq.s32.totalorder %s18, 1
    %p35 = por %p33, %p34
    %p36 = scmp.ne.s32.totalorder %s28, %s31
    %p37 = scmp.eq.s32.totalorder %s18, 0
    %p38 = por %p36, %p37
    %p39 = scmp.ne.s32.totalorder %s28, %s31
    %p40 = scmp.eq.s32.totalorder %s23, 1
    %p41 = por %p39, %p40
    %p42 = scmp.ne.s32.totalorder %s31, %s32
    %p43 = scmp.eq.s32.totalorder %s23, 0
    %p44 = por %p42, %p43
    %p45 = scmp.ne.s32.totalorder %s31, %s32
    %p46 = scmp.eq.s32.totalorder %s24, 1
    %p47 = por %p45, %p46
    %p49 = scmp.ne.s32.totalorder %s32, %s48
    %p50 = scmp.eq.s32.totalorder %s24, 0
    %p51 = por %p49, %p50
    %s52 = ssub.s32 %s18, %s25
    %p53 = scmp.eq.s32.totalorder %s52, 0
    %s55 = sadd.s32 %s54, 1
    %s56 = scalar_select %p53, %s54, %s55
    %p59 = pneg %p53
    %p60 = scmp.eq.s32.totalorder %s18, 1
    %p61 = por %p59, %p60
    %p62 = scmp.ne.s32.totalorder %s54, %s57
    %p63 = scmp.eq.s32.totalorder %s18, 0
    %p64 = por %p62, %p63
    %p65 = scmp.ne.s32.totalorder %s54, %s57
    %p66 = scmp.eq.s32.totalorder %s23, 1
    %p67 = por %p65, %p66
    %p68 = scmp.ne.s32.totalorder %s57, %s58
    %p69 = scmp.eq.s32.totalorder %s23, 0
    %p70 = por %p68, %p69
    %p71 = scmp.ne.s32.totalorder %s57, %s58
    %p72 = scmp.eq.s32.totalorder %s24, 1
    %p73 = por %p71, %p72
    %p75 = scmp.ne.s32.totalorder %s58, %s74
    %p76 = scmp.eq.s32.totalorder %s24, 0
    %p77 = por %p75, %p76
    %s79 = sadd.s32 %s78, 1
    %p82 = scmp.eq.s32.totalorder %s18, 1
    %p83 = scmp.ne.s32.totalorder %s78, %s80
    %p84 = scmp.eq.s32.totalorder %s18, 0
    %p85 = por %p83, %p84
    %p86 = scmp.ne.s32.totalorder %s78, %s80
    %p87 = scmp.eq.s32.totalorder %s23, 1
    %p88 = por %p86, %p87
    %p89 = scmp.ne.s32.totalorder %s80, %s81
    %p90 = scmp.eq.s32.totalorder %s23, 0
    %p91 = por %p89, %p90
    %p92 = scmp.ne.s32.totalorder %s80, %s81
    %p93 = scmp.eq.s32.totalorder %s24, 1
    %p94 = por %p92, %p93
    %p96 = scmp.ne.s32.totalorder %s81, %s95
    %p97 = scmp.eq.s32.totalorder %s24, 0
    %p98 = por %p96, %p97
    %s100 = sadd.s32 %s99, 1
    %p103 = scmp.eq.s32.totalorder %s18, 1
    %p104 = scmp.ne.s32.totalorder %s99, %s101
    %p105 = scmp.eq.s32.totalorder %s18, 0
    %p106 = por %p104, %p105
    %p107 = scmp.ne.s32.totalorder %s99, %s101
    %p108 = scmp.eq.s32.totalorder %s23, 1
    %p109 = por %p107, %p108
    %p110 = scmp.ne.s32.totalorder %s101, %s102
    %p111 = scmp.eq.s32.totalorder %s23, 0
    %p112 = por %p110, %p111
    %p113 = scmp.ne.s32.totalorder %s101, %s102
    %p114 = scmp.eq.s32.totalorder %s24, 1
    %p115 = por %p113, %p114
    %p117 = scmp.ne.s32.totalorder %s102, %s116
    %p118 = scmp.eq.s32.totalorder %s24, 0
    %p119 = por %p117, %p118
    %s121 = sadd.s32 %s120, 1
    %p124 = scmp.eq.s32.totalorder %s18, 1
    %p125 = scmp.ne.s32.totalorder %s120, %s122
    %p126 = scmp.eq.s32.totalorder %s18, 0
    %p127 = por %p125, %p126
    %p128 = scmp.ne.s32.totalorder %s120, %s122
    %p129 = scmp.eq.s32.totalorder %s23, 1
    %p130 = por %p128, %p129
    %p131 = scmp.ne.s32.totalorder %s122, %s123
    %p132 = scmp.eq.s32.totalorder %s23, 0
    %p133 = por %p131, %p132
    %p134 = scmp.ne.s32.totalorder %s122, %s123
    %p135 = scmp.eq.s32.totalorder %s24, 1
    %p136 = por %p134, %p135
    %p138 = scmp.ne.s32.totalorder %s123, %s137
    %p139 = scmp.eq.s32.totalorder %s24, 0
    %p140 = por %p138, %p139
    %s142 = sadd.s32 %s141, 1
    %p145 = scmp.eq.s32.totalorder %s18, 1
    %p146 = scmp.ne.s32.totalorder %s141, %s143
    %p147 = scmp.eq.s32.totalorder %s18, 0
    %p148 = por %p146, %p147
    %p149 = scmp.ne.s32.totalorder %s141, %s143
    %p150 = scmp.eq.s32.totalorder %s23, 1
    %p151 = por %p149, %p150
    %p152 = scmp.ne.s32.totalorder %s143, %s144
    %p153 = scmp.eq.s32.totalorder %s23, 0
    %p154 = por %p152, %p153
    %p155 = scmp.ne.s32.totalorder %s143, %s144
    %p156 = scmp.eq.s32.totalorder %s24, 1
    %p157 = por %p155, %p156
    %p159 = scmp.ne.s32.totalorder %s144, %s158
    %p160 = scmp.eq.s32.totalorder %s24, 0
    %p161 = por %p159, %p160
    %s163 = sadd.s32 %s162, 1
    %p166 = scmp.eq.s32.totalorder %s18, 1
    %p167 = scmp.ne.s32.totalorder %s162, %s164
    %p168 = scmp.eq.s32.totalorder %s18, 0
    %p169 = por %p167, %p168
    %p170 = scmp.ne.s32.totalorder %s162, %s164
    %p171 = scmp.eq.s32.totalorder %s23, 1
    %p172 = por %p170, %p171
    %p173 = scmp.ne.s32.totalorder %s164, %s165
    %p174 = scmp.eq.s32.totalorder %s23, 0
    %p175 = por %p173, %p174
    %p176 = scmp.ne.s32.totalorder %s164, %s165
    %p177 = scmp.eq.s32.totalorder %s24, 1
    %p178 = por %p176, %p177
    %p180 = scmp.ne.s32.totalorder %s165, %s179
    %p181 = scmp.eq.s32.totalorder %s24, 0
    %p182 = por %p180, %p181
    %s184 = sadd.s32 %s183, 1
    %p187 = scmp.eq.s32.totalorder %s18, 1
    %p188 = scmp.ne.s32.totalorder %s183, %s185
    %p189 = scmp.eq.s32.totalorder %s18, 0
    %p190 = por %p188, %p189
    %p191 = scmp.ne.s32.totalorder %s183, %s185
    %p192 = scmp.eq.s32.totalorder %s23, 1
    %p193 = por %p191, %p192
    %p194 = scmp.ne.s32.totalorder %s185, %s186
    %p195 = scmp.eq.s32.totalorder %s23, 0
    %p196 = por %p194, %p195
    %p197 = scmp.ne.s32.totalorder %s185, %s186
    %p198 = scmp.eq.s32.totalorder %s24, 1
    %p199 = por %p197, %p198
    %p201 = scmp.ne.s32.totalorder %s186, %s200
    %p202 = scmp.eq.s32.totalorder %s24, 0
    %p203 = por %p201, %p202
    %s205 = sadd.s32 %s204, 1
    %p208 = scmp.eq.s32.totalorder %s18, 1
    %p209 = scmp.ne.s32.totalorder %s204, %s206
    %p210 = scmp.eq.s32.totalorder %s18, 0
    %p211 = por %p209, %p210
    %p212 = scmp.ne.s32.totalorder %s204, %s206
    %p213 = scmp.eq.s32.totalorder %s23, 1
    %p214 = por %p212, %p213
    %p215 = scmp.ne.s32.totalorder %s206, %s207
    %p216 = scmp.eq.s32.totalorder %s23, 0
    %p217 = por %p215, %p216
    %p218 = scmp.ne.s32.totalorder %s206, %s207
    %p219 = scmp.eq.s32.totalorder %s24, 1
    %p220 = por %p218, %p219
    %p222 = scmp.ne.s32.totalorder %s207, %s221
    %p223 = scmp.eq.s32.totalorder %s24, 0
    %p224 = por %p222, %p223
    %s226 = sadd.s32 %s225, 1
    %p229 = scmp.eq.s32.totalorder %s18, 1
    %p230 = scmp.ne.s32.totalorder %s225, %s227
    %p231 = scmp.eq.s32.totalorder %s18, 0
    %p232 = por %p230, %p231
    %p233 = scmp.ne.s32.totalorder %s225, %s227
    %p234 = scmp.eq.s32.totalorder %s23, 1
    %p235 = por %p233, %p234
    %p236 = scmp.ne.s32.totalorder %s227, %s228
    %p237 = scmp.eq.s32.totalorder %s23, 0
    %p238 = por %p236, %p237
    %p239 = scmp.ne.s32.totalorder %s227, %s228
    %p240 = scmp.eq.s32.totalorder %s24, 1
    %p241 = por %p239, %p240
    %p243 = scmp.ne.s32.totalorder %s228, %s242
    %p244 = scmp.eq.s32.totalorder %s24, 0
    %p245 = por %p243, %p244
    %s246 = ssub.s32 %s18, %s25
    %p247 = scmp.eq.s32.totalorder %s246, 0
    %s249 = sadd.s32 %s248, 1
    %s250 = scalar_select %p247, %s248, %s249
    %p253 = pneg %p247
    %p254 = scmp.eq.s32.totalorder %s18, 1
    %p255 = por %p253, %p254
    %p256 = scmp.ne.s32.totalorder %s248, %s251
    %p257 = scmp.eq.s32.totalorder %s18, 0
    %p258 = por %p256, %p257
    %p259 = scmp.ne.s32.totalorder %s248, %s251
    %p260 = scmp.eq.s32.totalorder %s23, 1
    %p261 = por %p259, %p260
    %p262 = scmp.ne.s32.totalorder %s251, %s252
    %p263 = scmp.eq.s32.totalorder %s23, 0
    %p264 = por %p262, %p263
    %p265 = scmp.ne.s32.totalorder %s251, %s252
    %p266 = scmp.eq.s32.totalorder %s24, 1
    %p267 = por %p265, %p266
    %p269 = scmp.ne.s32.totalorder %s252, %s268
    %p270 = scmp.eq.s32.totalorder %s24, 0
    %p271 = por %p269, %p270
    %s272 = ssub.s32 %s18, %s25
    %p273 = scmp.eq.s32.totalorder %s272, 0
    %s275 = sadd.s32 %s274, 1
    %s276 = scalar_select %p273, %s274, %s275
    %p279 = pneg %p273
    %p280 = scmp.eq.s32.totalorder %s18, 1
    %p281 = por %p279, %p280
    %p282 = scmp.ne.s32.totalorder %s274, %s277
    %p283 = scmp.eq.s32.totalorder %s18, 0
    %p284 = por %p282, %p283
    %p285 = scmp.ne.s32.totalorder %s274, %s277
    %p286 = scmp.eq.s32.totalorder %s23, 1
    %p287 = por %p285, %p286
    %p288 = scmp.ne.s32.totalorder %s277, %s278
    %p289 = scmp.eq.s32.totalorder %s23, 0
    %p290 = por %p288, %p289
    %p291 = scmp.ne.s32.totalorder %s277, %s278
    %p292 = scmp.eq.s32.totalorder %s24, 1
    %p293 = por %p291, %p292
    %p295 = scmp.ne.s32.totalorder %s278, %s294
    %p296 = scmp.eq.s32.totalorder %s24, 0
    %p297 = por %p295, %p296
    %p298 = scmp.le.s32.totalorder 1, %s18
    %p299 = scmp.lt.s32.totalorder %s18, 3
    %p300 = pnand %p298, %p299
    %p301 = pneg %p300
    // Predicated region
    $region9: #{bottleneck_forward.9} parent=5 // pred_check
      _
    $region10: #{bottleneck_forward.9} parent=5 // pred_check_branch
      %303 = sbr.rel (%p300) target = $region12
    $region11: #{bottleneck_forward.9} parent=5 // pred_region
      %s304 = ssub.s32 %s18, 1
      // Predicated region
      $region13: #{bottleneck_forward.9} parent=11 // pred_check
        %p305 = pneg %p91
      $region14: #{bottleneck_forward.9} parent=11 // pred_check_branch
        %307 = sbr.rel (%p305) target = $region16
      $region15: #{bottleneck_forward.9} parent=11 // pred_region
        _
      $region16: #{bottleneck_forward.9} parent=11 // pred_fallthru
        _
      // Predicated region
      $region17: #{bottleneck_forward.9} parent=11 // pred_check
        %p308 = pneg %p112
      $region18: #{bottleneck_forward.9} parent=11 // pred_check_branch
        %310 = sbr.rel (%p308) target = $region20
      $region19: #{bottleneck_forward.9} parent=11 // pred_region
        _
      $region20: #{bottleneck_forward.9} parent=11 // pred_fallthru
        _
      // Predicated region
      $region21: #{bottleneck_forward.9} parent=11 // pred_check
        %p311 = pneg %p133
      $region22: #{bottleneck_forward.9} parent=11 // pred_check_branch
        %313 = sbr.rel (%p311) target = $region24
      $region23: #{bottleneck_forward.9} parent=11 // pred_region
        _
      $region24: #{bottleneck_forward.9} parent=11 // pred_fallthru
        _
      // Predicated region
      $region25: #{bottleneck_forward.9} parent=11 // pred_check
        %p314 = pneg %p154
      $region26: #{bottleneck_forward.9} parent=11 // pred_check_branch
        %316 = sbr.rel (%p314) target = $region28
      $region27: #{bottleneck_forward.9} parent=11 // pred_region
        _
      $region28: #{bottleneck_forward.9} parent=11 // pred_fallthru
        _
      // Predicated region
      $region29: #{bottleneck_forward.9} parent=11 // pred_check
        %p317 = pneg %p175
      $region30: #{bottleneck_forward.9} parent=11 // pred_check_branch
        %319 = sbr.rel (%p317) target = $region32
      $region31: #{bottleneck_forward.9} parent=11 // pred_region
        _
      $region32: #{bottleneck_forward.9} parent=11 // pred_fallthru
        _
      // Predicated region
      $region33: #{bottleneck_forward.9} parent=11 // pred_check
        %p320 = pneg %p196
      $region34: #{bottleneck_forward.9} parent=11 // pred_check_branch
        %322 = sbr.rel (%p320) target = $region36
      $region35: #{bottleneck_forward.9} parent=11 // pred_region
        _
      $region36: #{bottleneck_forward.9} parent=11 // pred_fallthru
        _
      // Predicated region
      $region37: #{bottleneck_forward.9} parent=11 // pred_check
        %p323 = pneg %p217
      $region38: #{bottleneck_forward.9} parent=11 // pred_check_branch
        %325 = sbr.rel (%p323) target = $region40
      $region39: #{bottleneck_forward.9} parent=11 // pred_region
        _
      $region40: #{bottleneck_forward.9} parent=11 // pred_fallthru
        _
      // Predicated region
      $region41: #{bottleneck_forward.9} parent=11 // pred_check
        %p326 = pneg %p238
      $region42: #{bottleneck_forward.9} parent=11 // pred_check_branch
        %328 = sbr.rel (%p326) target = $region44
      $region43: #{bottleneck_forward.9} parent=11 // pred_region
        _
      $region44: #{bottleneck_forward.9} parent=11 // pred_fallthru
        _
    $region12: #{bottleneck_forward.9} parent=5 // pred_fallthru
      _
    %p329 = scmp.lt.s32.totalorder %s18, 2
    // Predicated region
    $region45: #{bottleneck_forward.9} parent=5 // pred_check
      %p330 = pneg %p329
    $region46: #{bottleneck_forward.9} parent=5 // pred_check_branch
      %332 = sbr.rel (%p330) target = $region48
    $region47: #{bottleneck_forward.9} parent=5 // pred_region
      // Predicated region
      $region49: #{bottleneck_forward.9} parent=47 // pred_check
        %p333 = pneg %p38
      $region50: #{bottleneck_forward.9} parent=47 // pred_check_branch
        %335 = sbr.rel (%p333) target = $region52
      $region51: #{bottleneck_forward.9} parent=47 // pred_region
        %p336 = scmp.lt.s32.totalorder %s18, 1
        %s337 = scalar_select %p336, %s18, 1
        %s338 = smul.addr %s337, 2
        %s339 = smul.addr %s338, 4
        %s340 = scalar_lea.vmem %s0, %s339
      $region52: #{bottleneck_forward.9} parent=47 // pred_fallthru
        _
      // Predicated region
      $region53: #{bottleneck_forward.9} parent=47 // pred_check
        %p341 = pneg %p64
      $region54: #{bottleneck_forward.9} parent=47 // pred_check_branch
        %343 = sbr.rel (%p341) target = $region56
      $region55: #{bottleneck_forward.9} parent=47 // pred_region
        %p344 = scmp.lt.s32.totalorder %s18, 1
        %s345 = scalar_select %p344, %s18, 1
        %s346 = smul.addr %s345, 2
        %s347 = smul.addr %s346, 4
        %s348 = scalar_lea.vmem %s1, %s347
      $region56: #{bottleneck_forward.9} parent=47 // pred_fallthru
        _
    $region48: #{bottleneck_forward.9} parent=5 // pred_fallthru
      _
    %p349 = scmp.le.s32.totalorder 1, %s18
    %p350 = scmp.lt.s32.totalorder %s18, 3
    %p351 = pnand %p349, %p350
    %p352 = pneg %p351
    // Predicated region
    $region57: #{bottleneck_forward.9} parent=5 // pred_check
      _
    $region58: #{bottleneck_forward.9} parent=5 // pred_check_branch
      %354 = sbr.rel (%p351) target = $region60
    $region59: #{bottleneck_forward.9} parent=5 // pred_region
      %s355 = ssub.s32 %s18, 1
      %p356 = scmp.lt.s32.totalorder %s23, 1
      %s357 = scalar_select %p356, %s23, 1
      %s358 = smul.addr %s357, 2
      %s359 = smul.addr %s358, 4
      %s360 = scalar_lea.vmem %s0, %s359
      %p361 = pneg %p44
      %p362 = pneg %p41
      %p363 = scmp.lt.s32.totalorder %s23, 1
      %s364 = scalar_select %p363, %s23, 1
      %s365 = smul.addr %s364, 2
      %s366 = smul.addr %s365, 4
      %s367 = scalar_lea.vmem %s1, %s366
      %p368 = pneg %p70
      %p369 = pneg %p67
      %p370 = pneg %p91
      %p371 = pneg %p88
      %p372 = pneg %p112
      %p373 = pneg %p109
      %p374 = pneg %p133
      %p375 = pneg %p130
      %p376 = pneg %p154
      %p377 = pneg %p151
      %p378 = pneg %p175
      %p379 = pneg %p172
      %p380 = pneg %p196
      %p381 = pneg %p193
      %p382 = pneg %p217
      %p383 = pneg %p214
      %p384 = pneg %p238
      %p385 = pneg %p235
      %p386 = pneg %p264
      %p387 = pneg %p261
      %p388 = scmp.lt.s32.totalorder %s23, 1
      %s389 = scalar_select %p388, %s23, 1
      %s390 = smul.addr %s389, 18
      %s391 = smul.addr %s390, 2
      %s392 = scalar_lea.vmem %s10, %s391
      %p393 = pneg %p290
      %p394 = pneg %p287
      %p395 = scmp.lt.s32.totalorder %s23, 1
      %s396 = scalar_select %p395, %s23, 1
      %s397 = smul.addr %s396, 4
      %s398 = scalar_lea.vmem %s11, %s397
      %p399 = scmp.lt.s32.totalorder %s23, 1
      %s400 = scalar_select %p399, %s23, 1
      %s401 = smul.addr %s400, 2
      %s402 = smul.addr %s401, 4
      %s403 = scalar_lea.vmem %s0, %s402
      %p404 = scmp.lt.s32.totalorder %s23, 1
      %s405 = scalar_select %p404, %s23, 1
      %s406 = smul.addr %s405, 2
      %s407 = smul.addr %s406, 4
      %s408 = scalar_lea.vmem %s1, %s407
      %p409 = scmp.lt.s32.totalorder %s23, 1
      %s410 = scalar_select %p409, %s23, 1
      %s411 = smul.addr %s410, 18
      %s412 = smul.addr %s411, 2
      %s413 = scalar_lea.vmem %s10, %s412
      %p414 = scmp.lt.s32.totalorder %s23, 1
      %s415 = scalar_select %p414, %s23, 1
      %s416 = smul.addr %s415, 4
      %s417 = scalar_lea.vmem %s11, %s416
      %v419 = vld [vmem:[%s3] ss:$2 sm:$0x3]
      %s420 = scalar_lea.vmem %s3, 1
      %v421 = vld [vmem:[%s420] ss:$2 sm:$0x3]
      %vm422 = vcmp.ge.s32.totalorder %v419, 0
      %v423 = vsel %vm422, 1, 0
      %v424 = vcvt.s32.f32 %v423
      %v425 = vld [vmem:[%s403] sm:$0xff]
      %v426 = vld [vmem:[%s408] sm:$0xff]
      %v427 = vld [vmem:[%s8] sm:$0x3]
      %v428 = vld [vmem:[%s9] sm:$0xf]
      %v430 = vcombine.high %v426, %v426
      %432 = vrot.lane.b32.xlu0 %v426, 17
      %v433 = vpop.permute.xlu0 %432
      %434 = vrot.lane.b32.xlu0 %v430, 17
      %v435 = vpop.permute.xlu0 %434
      %v436 = vlaneseq
      %v437 = vand.u32 %v436, 127
      %vm438 = vcmp.lt.s32.totalorder %v437, 17
      %v439 = vsel %vm438, %v433, %v435
      %v440 = vsel %vm438, %v435, %v433
      %vm441 = vcmp.eq.s32.totalorder %v421, 0
      %442 = vrot.lane.b32.xlu0 %v426, 15
      %v443 = vpop.permute.xlu0 %442
      %444 = vrot.lane.b32.xlu0 %v430, 15
      %v445 = vpop.permute.xlu0 %444
      %vm446 = vcmp.lt.s32.totalorder %v437, 15
      %v447 = vsel %vm446, %v443, %v445
      %v448 = vsel %vm446, %v445, %v443
      %v449 = vsel %vm441, 1, 0
      %v450 = vlaneseq
      %v451 = vshrl.u32 %v450, 7
      %v452 = vsub.s32 0, %v451
      %v453 = vrot.slane %v449, %v452
      %v454 = vlaneseq
      %v455 = vshrl.u32 %v454, 7
      %v456 = vsub.s32 1, %v455
      %v457 = vrot.slane %v449, %v456
      %vm458 = vcmp.eq.s32.totalorder %v453, 1
      %vm459 = vcmp.eq.s32.totalorder %v457, 1
      %v460 = vsel %vm458, %v448, %v440
      %v461 = vsel %vm459, %v447, %v439
      %vm462 = vcmp.eq.s32.totalorder %v419, 0
      %463 = vrot.lane.b32.xlu0 %v426, 113
      %v464 = vpop.permute.xlu0 %463
      %465 = vrot.lane.b32.xlu0 %v430, 113
      %v466 = vpop.permute.xlu0 %465
      %vm467 = vcmp.lt.s32.totalorder %v437, 113
      %v468 = vsel %vm467, %v464, %v466
      %v469 = vsel %vm467, %v466, %v464
      %v470 = vsel %vm462, 1, 0
      %v471 = vlaneseq
      %v472 = vshrl.u32 %v471, 7
      %v473 = vsub.s32 0, %v472
      %v474 = vrot.slane %v470, %v473
      %v475 = vlaneseq
      %v476 = vshrl.u32 %v475, 7
      %v477 = vsub.s32 1, %v476
      %v478 = vrot.slane %v470, %v477
      %vm479 = vcmp.eq.s32.totalorder %v474, 1
      %vm480 = vcmp.eq.s32.totalorder %v478, 1
      %v481 = vsel %vm479, %v468, %v460
      %v482 = vsel %vm480, %v469, %v461
      %vm483 = vmand %vm462, %vm441
      %484 = vrot.lane.b32.xlu0 %v426, 111
      %v485 = vpop.permute.xlu0 %484
      %486 = vrot.lane.b32.xlu0 %v430, 111
      %v487 = vpop.permute.xlu0 %486
      %vm488 = vcmp.lt.s32.totalorder %v437, 111
      %v489 = vsel %vm488, %v485, %v487
      %v490 = vsel %vm488, %v487, %v485
      %v491 = vsel %vm483, 1, 0
      %v492 = vlaneseq
      %v493 = vshrl.u32 %v492, 7
      %v494 = vsub.s32 0, %v493
      %v495 = vrot.slane %v491, %v494
      %v496 = vlaneseq
      %v497 = vshrl.u32 %v496, 7
      %v498 = vsub.s32 1, %v497
      %v499 = vrot.slane %v491, %v498
      %vm500 = vcmp.eq.s32.totalorder %v495, 1
      %vm501 = vcmp.eq.s32.totalorder %v499, 1
      %v502 = vsel %vm500, %v489, %v481
      %v503 = vsel %vm501, %v490, %v482
      %v506 = vcombine.low %v502, %v503
      %v508 = vsub.f32 %v425, %v506
      %v509 = vld [vmem:[%s4] sm:$0xf]
      %511 = vset.pattern.permute.xlu0 0
      %512 = vperm.xlu0 %511, %v509
      %v513 = vpop.permute.xlu0 %512
      %v515 = vunpack.c.l.s4 839922192
      %v516 = vunpack.c.0.s8 %v515
      %v517 = vlaneseq
      %v518 = vshrl.u32 %v517, 7
      %v519 = vsub.s32 %v516, %v518
      %v520 = vrot.slane %v513, %v519
      %v522 = vmul.f32 %v508, %v520
      %v523 = vld [vmem:[%s5] sm:$0xf]
      %525 = vset.pattern.permute.xlu0 0
      %526 = vperm.xlu0 %525, %v523
      %v527 = vpop.permute.xlu0 %526
      %v529 = vunpack.c.l.s4 839922192
      %v530 = vunpack.c.0.s8 %v529
      %v531 = vlaneseq
      %v532 = vshrl.u32 %v531, 7
      %v533 = vsub.s32 %v530, %v532
      %v534 = vrot.slane %v527, %v533
      %v536 = vadd.f32 %v522, %v534
      %v537 = vmax.f32 %v536, 0.0
      %v538 = vld [vmem:[%s2] sm:$0xf]
      %v539 = vld [vmem:[%s6] sm:$0x3]
      %541 = vset.pattern.permute.xlu0 0
      %542 = vperm.xlu0 %541, %v539
      %v543 = vpop.permute.xlu0 %542
      %v545 = vunpack.c.l.s4 269488144
      %v546 = vunpack.c.0.s8 %v545
      %v547 = vlaneseq
      %v548 = vshrl.u32 %v547, 7
      %v549 = vsub.s32 %v546, %v548
      %v550 = vrot.slane %v543, %v549
      %v552 = vmul.f32 %v538, %v550
      %v553 = vld [vmem:[%s7] sm:$0x3]
      %555 = vset.pattern.permute.xlu0 0
      %556 = vperm.xlu0 %555, %v553
      %v557 = vpop.permute.xlu0 %556
      %v559 = vunpack.c.l.s4 269488144
      %v560 = vunpack.c.0.s8 %v559
      %v561 = vlaneseq
      %v562 = vshrl.u32 %v561, 7
      %v563 = vsub.s32 %v560, %v562
      %v564 = vrot.slane %v557, %v563
      %v566 = vadd.f32 %v552, %v564
      %v567 = vmax.f32 %v566, 0.0
      %v569 = vcombine.high %v537, %v537
      %v571 = vpack.c.bf16 %v537, %v537
      %v572 = vpack.c.bf16 %v569, %v569
      %574 = vset.pattern.permute.xlu0 0
      %575 = vperm.xlu0 %574, %v428
      %v576 = vpop.permute.xlu0 %575
      %v579 = vlaneseq
      %v580 = vshrl.u32 %v579, 7
      %v581 = vsub.s32 0, %v580
      %v582 = vrot.slane %v567, %v581
      %v583 = vlaneseq
      %v584 = vshrl.u32 %v583, 7
      %v585 = vsub.s32 2, %v584
      %v586 = vrot.slane %v567, %v585
      %v589 = vlaneseq
      %v590 = vshrl.u32 %v589, 7
      %v591 = vsub.s32 0, %v590
      %v592 = vrot.slane %v582, %v591
      %v593 = vlaneseq
      %v594 = vshrl.u32 %v593, 7
      %v595 = vsub.s32 0, %v594
      %v596 = vrot.slane %v586, %v595
      %v597 = vmul.f32 %v576, %v592
      %v598 = vmul.f32 %v576, %v596
      %vm599 = vcmask 31744
      %v601 = vsel %vm599, %v427, 0
      %vm603 = vcmask 1041408
      %v605 = vsel %vm603, %v571, 0
      %v608 = vsel %vm603, %v572, 0
      %610 = vmatprep.subr.bf16.mxu0 0
      %611 = vmatpush1.bf16.msra.mxu0 0
      %612 = vmatprep.subr.bf16.mxu0 0
      %613 = vmatpush1.bf16.msra.mxu0 0
      %614 = vmatprep.subr.bf16.mxu0 0
      %615 = vmatpush1.bf16.msra.mxu0 0
      %616 = vmatprep.subr.bf16.mxu0 0
      %617 = vmatpush1.bf16.msra.mxu0 0
      %618 = vmatprep.subr.bf16.mxu0 0
      %619 = vmatpush1.bf16.msra.mxu0 0
      %620 = vmatprep.subr.bf16.mxu0 0
      %621 = vmatpush1.bf16.msra.mxu0 0
      %622 = vmatprep.subr.bf16.mxu0 0
      %623 = vmatpush1.bf16.msra.mxu0 0
      %624 = vmatprep.subr.bf16.mxu0 %v608
      %625 = vmatpush1.bf16.msra.mxu0 %v605
      %626 = vmatprep.subr.bf16.mxu0 0
      %627 = vmatpush2.bf16.msra.mxu0 0
      %628 = vmatprep.subr.bf16.mxu0 0
      %629 = vmatpush2.bf16.msra.mxu0 0
      %630 = vmatprep.subr.bf16.mxu0 0
      %631 = vmatpush2.bf16.msra.mxu0 0
      %632 = vmatprep.subr.bf16.mxu0 0
      %633 = vmatpush2.bf16.msra.mxu0 0
      %634 = vmatprep.subr.bf16.mxu0 0
      %635 = vmatpush2.bf16.msra.mxu0 0
      %636 = vmatprep.subr.bf16.mxu0 0
      %637 = vmatpush2.bf16.msra.mxu0 0
      %638 = vmatprep.subr.bf16.mxu0 0
      %639 = vmatpush2.bf16.msra.mxu0 0
      %640 = vmatprep.subr.bf16.mxu0 0
      %641 = vmatpush2.bf16.msra.mxu0 0
      %642 = vmatprep.mubr.bf16.mxu0 0
      %643 = vmatmul.mubr.bf16.gmra.mxu0 %v601
      %v644 = vpop.f32.mrf.mxu0
      %v645 = vadd.f32 %v597, %v644
      %v646 = vpop.f32.mrf.mxu0
      %v647 = vadd.f32 %v598, %v646
      %v648 = vpop.f32.mrf.mxu0
      %v649 = vpop.f32.mrf.mxu0
      %650 = vdwg.mxu0
      %651 = vset.pattern.permute.xlu0 1
      %652 = vperm.xlu0 %651, %v428
      %v653 = vpop.permute.xlu0 %652
      %v655 = vlaneseq
      %v656 = vshrl.u32 %v655, 7
      %v657 = vsub.s32 1, %v656
      %v658 = vrot.slane %v567, %v657
      %v659 = vlaneseq
      %v660 = vshrl.u32 %v659, 7
      %v661 = vsub.s32 3, %v660
      %v662 = vrot.slane %v567, %v661
      %v665 = vlaneseq
      %v666 = vshrl.u32 %v665, 7
      %v667 = vsub.s32 1, %v666
      %v668 = vrot.slane %v658, %v667
      %v669 = vlaneseq
      %v670 = vshrl.u32 %v669, 7
      %v671 = vsub.s32 1, %v670
      %v672 = vrot.slane %v662, %v671
      %v673 = vmul.f32 %v653, %v668
      %v674 = vmul.f32 %v653, %v672
      %v675 = vadd.f32 %v645, %v673
      %v676 = vadd.f32 %v647, %v674
      %v677 = vpack.c.bf16 %v675, %v675
      %v678 = vpack.c.bf16 %v676, %v676
      %v681 = vcombine.low %v677, %v678
      %v683 = vunpack.c.l.s4 1983009808
      %v684 = vunpack.c.0.s8 %v683
      %v685 = vlaneseq
      %v686 = vshrl.u32 %v685, 7
      %v687 = vsub.s32 %v684, %v686
      %v688 = vrot.slane %v681, %v687
      %690 = vst [vmem:[%s413] sm:$0xf] %v688
      %v692 = vlaneseq
      %v693 = vshrl.u32 %v692, 7
      %v694 = vsub.s32 0, %v693
      %v695 = vrot.slane %v424, %v694
      %v696 = vlaneseq
      %v697 = vshrl.u32 %v696, 7
      %v698 = vsub.s32 1, %v697
      %v699 = vrot.slane %v424, %v698
      %v702 = vmul.f32 %v675, %v695
      %v703 = vmul.f32 %v676, %v699
      %vm704 = vcmask 1043456
      %v705 = vsel %vm704, %v702, 0.0
      %v706 = vsel %vm704, %v703, 0.0
      %v707 = vadd.f32 %v705, %v706
      %708 = vadd.xlane.f32.xlu0 %v707
      %v709 = vpop.xlane.xlu0 %708
      %v710 = vadd.f32 %v709, 0.0
      %v711 = vmul.f32 %v702, %v702
      %v712 = vmul.f32 %v703, %v703
      %v713 = vsel %vm704, %v711, 0.0
      %v714 = vsel %vm704, %v712, 0.0
      %v715 = vadd.f32 %v713, %v714
      %716 = vadd.xlane.f32.xlu0 %v715
      %v717 = vpop.xlane.xlu0 %716
      %v718 = vadd.f32 %v717, 0.0
      %719 = vrot.lane.b32.xlu0 %v426, 16
      %v720 = vpop.permute.xlu0 %719
      %721 = vrot.lane.b32.xlu0 %v430, 16
      %v722 = vpop.permute.xlu0 %721
      %vm723 = vcmp.lt.s32.totalorder %v437, 16
      %v724 = vsel %vm723, %v720, %v722
      %v725 = vsel %vm723, %v722, %v720
      %726 = vrot.lane.b32.xlu0 %v426, 112
      %v727 = vpop.permute.xlu0 %726
      %728 = vrot.lane.b32.xlu0 %v430, 112
      %v729 = vpop.permute.xlu0 %728
      %vm730 = vcmp.lt.s32.totalorder %v437, 112
      %v731 = vsel %vm730, %v727, %v729
      %v732 = vsel %vm730, %v729, %v727
      %v733 = vsel %vm479, %v731, %v725
      %v734 = vsel %vm480, %v732, %v724
      %v737 = vcombine.low %v733, %v734
      %v739 = vsub.f32 %v425, %v737
      %v740 = vld [vmem:[%s4] sm:$0xf]
      %742 = vset.pattern.permute.xlu0 0
      %743 = vperm.xlu0 %742, %v740
      %v744 = vpop.permute.xlu0 %743
      %v746 = vunpack.c.l.s4 839922192
      %v747 = vunpack.c.0.s8 %v746
      %v748 = vlaneseq
      %v749 = vshrl.u32 %v748, 7
      %v750 = vsub.s32 %v747, %v749
      %v751 = vrot.slane %v744, %v750
      %v753 = vmul.f32 %v739, %v751
      %v754 = vld [vmem:[%s5] sm:$0xf]
      %756 = vset.pattern.permute.xlu0 0
      %757 = vperm.xlu0 %756, %v754
      %v758 = vpop.permute.xlu0 %757
      %v760 = vunpack.c.l.s4 839922192
      %v761 = vunpack.c.0.s8 %v760
      %v762 = vlaneseq
      %v763 = vshrl.u32 %v762, 7
      %v764 = vsub.s32 %v761, %v763
      %v765 = vrot.slane %v758, %v764
      %v767 = vadd.f32 %v753, %v765
      %v768 = vmax.f32 %v767, 0.0
      %s769 = scalar_lea.vmem %s2, 4
      %v770 = vld [vmem:[%s769] sm:$0xf]
      %v771 = vld [vmem:[%s6] sm:$0x3]
      %773 = vset.pattern.permute.xlu0 0
      %774 = vperm.xlu0 %773, %v771
      %v775 = vpop.permute.xlu0 %774
      %v777 = vunpack.c.l.s4 269488144
      %v778 = vunpack.c.0.s8 %v777
      %v779 = vlaneseq
      %v780 = vshrl.u32 %v779, 7
      %v781 = vsub.s32 %v778, %v780
      %v782 = vrot.slane %v775, %v781
      %v784 = vmul.f32 %v770, %v782
      %v785 = vld [vmem:[%s7] sm:$0x3]
      %787 = vset.pattern.permute.xlu0 0
      %788 = vperm.xlu0 %787, %v785
      %v789 = vpop.permute.xlu0 %788
      %v791 = vunpack.c.l.s4 269488144
      %v792 = vunpack.c.0.s8 %v791
      %v793 = vlaneseq
      %v794 = vshrl.u32 %v793, 7
      %v795 = vsub.s32 %v792, %v794
      %v796 = vrot.slane %v789, %v795
      %v798 = vadd.f32 %v784, %v796
      %v799 = vmax.f32 %v798, 0.0
      %v801 = vcombine.high %v768, %v768
      %v803 = vpack.c.bf16 %v768, %v768
      %v804 = vpack.c.bf16 %v801, %v801
      %v806 = vlaneseq
      %v807 = vshrl.u32 %v806, 7
      %v808 = vsub.s32 0, %v807
      %v809 = vrot.slane %v799, %v808
      %v810 = vlaneseq
      %v811 = vshrl.u32 %v810, 7
      %v812 = vsub.s32 2, %v811
      %v813 = vrot.slane %v799, %v812
      %v816 = vlaneseq
      %v817 = vshrl.u32 %v816, 7
      %v818 = vsub.s32 0, %v817
      %v819 = vrot.slane %v809, %v818
      %v820 = vlaneseq
      %v821 = vshrl.u32 %v820, 7
      %v822 = vsub.s32 0, %v821
      %v823 = vrot.slane %v813, %v822
      %v824 = vmul.f32 %v576, %v819
      %v825 = vmul.f32 %v576, %v823
      %v827 = vsel %vm603, %v803, 0
      %v830 = vsel %vm603, %v804, 0
      %832 = vmatprep.subr.bf16.mxu0 0
      %833 = vmatpush1.bf16.msra.mxu0 0
      %834 = vmatprep.subr.bf16.mxu0 0
      %835 = vmatpush1.bf16.msra.mxu0 0
      %836 = vmatprep.subr.bf16.mxu0 0
      %837 = vmatpush1.bf16.msra.mxu0 0
      %838 = vmatprep.subr.bf16.mxu0 0
      %839 = vmatpush1.bf16.msra.mxu0 0
      %840 = vmatprep.subr.bf16.mxu0 0
      %841 = vmatpush1.bf16.msra.mxu0 0
      %842 = vmatprep.subr.bf16.mxu0 0
      %843 = vmatpush1.bf16.msra.mxu0 0
      %844 = vmatprep.subr.bf16.mxu0 0
      %845 = vmatpush1.bf16.msra.mxu0 0
      %846 = vmatprep.subr.bf16.mxu0 %v830
      %847 = vmatpush1.bf16.msra.mxu0 %v827
      %848 = vmatprep.subr.bf16.mxu0 0
      %849 = vmatpush2.bf16.msra.mxu0 0
      %850 = vmatprep.subr.bf16.mxu0 0
      %851 = vmatpush2.bf16.msra.mxu0 0
      %852 = vmatprep.subr.bf16.mxu0 0
      %853 = vmatpush2.bf16.msra.mxu0 0
      %854 = vmatprep.subr.bf16.mxu0 0
      %855 = vmatpush2.bf16.msra.mxu0 0
      %856 = vmatprep.subr.bf16.mxu0 0
      %857 = vmatpush2.bf16.msra.mxu0 0
      %858 = vmatprep.subr.bf16.mxu0 0
      %859 = vmatpush2.bf16.msra.mxu0 0
      %860 = vmatprep.subr.bf16.mxu0 0
      %861 = vmatpush2.bf16.msra.mxu0 0
      %862 = vmatprep.subr.bf16.mxu0 0
      %863 = vmatpush2.bf16.msra.mxu0 0
      %864 = vmatprep.mubr.bf16.mxu0 0
      %865 = vmatmul.mubr.bf16.gmra.mxu0 %v601
      %v866 = vpop.f32.mrf.mxu0
      %v867 = vadd.f32 %v824, %v866
      %v868 = vpop.f32.mrf.mxu0
      %v869 = vadd.f32 %v825, %v868
      %v870 = vpop.f32.mrf.mxu0
      %v871 = vpop.f32.mrf.mxu0
      %872 = vdwg.mxu0
      %v873 = vlaneseq
      %v874 = vshrl.u32 %v873, 7
      %v875 = vsub.s32 1, %v874
      %v876 = vrot.slane %v799, %v875
      %v877 = vlaneseq
      %v878 = vshrl.u32 %v877, 7
      %v879 = vsub.s32 3, %v878
      %v880 = vrot.slane %v799, %v879
      %v883 = vlaneseq
      %v884 = vshrl.u32 %v883, 7
      %v885 = vsub.s32 1, %v884
      %v886 = vrot.slane %v876, %v885
      %v887 = vlaneseq
      %v888 = vshrl.u32 %v887, 7
      %v889 = vsub.s32 1, %v888
      %v890 = vrot.slane %v880, %v889
      %v891 = vmul.f32 %v653, %v886
      %v892 = vmul.f32 %v653, %v890
      %v893 = vadd.f32 %v867, %v891
      %v894 = vadd.f32 %v869, %v892
      %v895 = vpack.c.bf16 %v893, %v893
      %v896 = vpack.c.bf16 %v894, %v894
      %v899 = vcombine.low %v895, %v896
      %v901 = vunpack.c.l.s4 1983009808
      %v902 = vunpack.c.0.s8 %v901
      %v903 = vlaneseq
      %v904 = vshrl.u32 %v903, 7
      %v905 = vsub.s32 %v902, %v904
      %v906 = vrot.slane %v899, %v905
      %s908 = scalar_lea.vmem %s413, 4
      %909 = vst [vmem:[%s908] sm:$0xf] %v906
      %v910 = vmul.f32 %v893, %v695
      %v911 = vmul.f32 %v894, %v699
      %v912 = vsel %vm704, %v910, 0.0
      %v913 = vsel %vm704, %v911, 0.0
      %v914 = vadd.f32 %v912, %v913
      %915 = vadd.xlane.f32.xlu0 %v914
      %v916 = vpop.xlane.xlu0 %915
      %v917 = vadd.f32 %v710, %v916
      %v918 = vmul.f32 %v910, %v910
      %v919 = vmul.f32 %v911, %v911
      %v920 = vsel %vm704, %v918, 0.0
      %v921 = vsel %vm704, %v919, 0.0
      %v922 = vadd.f32 %v920, %v921
      %923 = vadd.xlane.f32.xlu0 %v922
      %v924 = vpop.xlane.xlu0 %923
      %v925 = vadd.f32 %v718, %v924
      %vm926 = vcmp.eq.s32.totalorder %v421, 15
      %v927 = vsel %vm926, 1, 0
      %v928 = vlaneseq
      %v929 = vshrl.u32 %v928, 7
      %v930 = vsub.s32 0, %v929
      %v931 = vrot.slane %v927, %v930
      %v932 = vlaneseq
      %v933 = vshrl.u32 %v932, 7
      %v934 = vsub.s32 1, %v933
      %v935 = vrot.slane %v927, %v934
      %vm936 = vcmp.eq.s32.totalorder %v931, 1
      %vm937 = vcmp.eq.s32.totalorder %v935, 1
      %v938 = vsel %vm936, %v440, %v448
      %v939 = vsel %vm937, %v439, %v447
      %v940 = vsel %vm479, %v489, %v938
      %v941 = vsel %vm480, %v490, %v939
      %vm942 = vmand %vm462, %vm926
      %v943 = vsel %vm942, 1, 0
      %v944 = vlaneseq
      %v945 = vshrl.u32 %v944, 7
      %v946 = vsub.s32 0, %v945
      %v947 = vrot.slane %v943, %v946
      %v948 = vlaneseq
      %v949 = vshrl.u32 %v948, 7
      %v950 = vsub.s32 1, %v949
      %v951 = vrot.slane %v943, %v950
      %vm952 = vcmp.eq.s32.totalorder %v947, 1
      %vm953 = vcmp.eq.s32.totalorder %v951, 1
      %v954 = vsel %vm952, %v468, %v940
      %v955 = vsel %vm953, %v469, %v941
      %v958 = vcombine.low %v954, %v955
      %v960 = vsub.f32 %v425, %v958
      %v961 = vld [vmem:[%s4] sm:$0xf]
      %963 = vset.pattern.permute.xlu0 0
      %964 = vperm.xlu0 %963, %v961
      %v965 = vpop.permute.xlu0 %964
      %v967 = vunpack.c.l.s4 839922192
      %v968 = vunpack.c.0.s8 %v967
      %v969 = vlaneseq
      %v970 = vshrl.u32 %v969, 7
      %v971 = vsub.s32 %v968, %v970
      %v972 = vrot.slane %v965, %v971
      %v974 = vmul.f32 %v960, %v972
      %v975 = vld [vmem:[%s5] sm:$0xf]
      %977 = vset.pattern.permute.xlu0 0
      %978 = vperm.xlu0 %977, %v975
      %v979 = vpop.permute.xlu0 %978
      %v981 = vunpack.c.l.s4 839922192
      %v982 = vunpack.c.0.s8 %v981
      %v983 = vlaneseq
      %v984 = vshrl.u32 %v983, 7
      %v985 = vsub.s32 %v982, %v984
      %v986 = vrot.slane %v979, %v985
      %v988 = vadd.f32 %v974, %v986
      %v989 = vmax.f32 %v988, 0.0
      %s990 = scalar_lea.vmem %s2, 8
      %v991 = vld [vmem:[%s990] sm:$0xf]
      %v992 = vld [vmem:[%s6] sm:$0x3]
      %994 = vset.pattern.permute.xlu0 0
      %995 = vperm.xlu0 %994, %v992
      %v996 = vpop.permute.xlu0 %995
      %v998 = vunpack.c.l.s4 269488144
      %v999 = vunpack.c.0.s8 %v998
      %v1000 = vlaneseq
      %v1001 = vshrl.u32 %v1000, 7
      %v1002 = vsub.s32 %v999, %v1001
      %v1003 = vrot.slane %v996, %v1002
      %v1005 = vmul.f32 %v991, %v1003
      %v1006 = vld [vmem:[%s7] sm:$0x3]
      %1008 = vset.pattern.permute.xlu0 0
      %1009 = vperm.xlu0 %1008, %v1006
      %v1010 = vpop.permute.xlu0 %1009
      %v1012 = vunpack.c.l.s4 269488144
      %v1013 = vunpack.c.0.s8 %v1012
      %v1014 = vlaneseq
      %v1015 = vshrl.u32 %v1014, 7
      %v1016 = vsub.s32 %v1013, %v1015
      %v1017 = vrot.slane %v1010, %v1016
      %v1019 = vadd.f32 %v1005, %v1017
      %v1020 = vmax.f32 %v1019, 0.0
      %v1022 = vcombine.high %v989, %v989
      %v1024 = vpack.c.bf16 %v989, %v989
      %v1025 = vpack.c.bf16 %v1022, %v1022
      %v1027 = vlaneseq
      %v1028 = vshrl.u32 %v1027, 7
      %v1029 = vsub.s32 0, %v1028
      %v1030 = vrot.slane %v1020, %v1029
      %v1031 = vlaneseq
      %v1032 = vshrl.u32 %v1031, 7
      %v1033 = vsub.s32 2, %v1032
      %v1034 = vrot.slane %v1020, %v1033
      %v1037 = vlaneseq
      %v1038 = vshrl.u32 %v1037, 7
      %v1039 = vsub.s32 0, %v1038
      %v1040 = vrot.slane %v1030, %v1039
      %v1041 = vlaneseq
      %v1042 = vshrl.u32 %v1041, 7
      %v1043 = vsub.s32 0, %v1042
      %v1044 = vrot.slane %v1034, %v1043
      %v1045 = vmul.f32 %v576, %v1040
      %v1046 = vmul.f32 %v576, %v1044
      %v1048 = vsel %vm603, %v1024, 0
      %v1051 = vsel %vm603, %v1025, 0
      %1053 = vmatprep.subr.bf16.mxu0 0
      %1054 = vmatpush1.bf16.msra.mxu0 0
      %1055 = vmatprep.subr.bf16.mxu0 0
      %1056 = vmatpush1.bf16.msra.mxu0 0
      %1057 = vmatprep.subr.bf16.mxu0 0
      %1058 = vmatpush1.bf16.msra.mxu0 0
      %1059 = vmatprep.subr.bf16.mxu0 0
      %1060 = vmatpush1.bf16.msra.mxu0 0
      %1061 = vmatprep.subr.bf16.mxu0 0
      %1062 = vmatpush1.bf16.msra.mxu0 0
      %1063 = vmatprep.subr.bf16.mxu0 0
      %1064 = vmatpush1.bf16.msra.mxu0 0
      %1065 = vmatprep.subr.bf16.mxu0 0
      %1066 = vmatpush1.bf16.msra.mxu0 0
      %1067 = vmatprep.subr.bf16.mxu0 %v1051
      %1068 = vmatpush1.bf16.msra.mxu0 %v1048
      %1069 = vmatprep.subr.bf16.mxu0 0
      %1070 = vmatpush2.bf16.msra.mxu0 0
      %1071 = vmatprep.subr.bf16.mxu0 0
      %1072 = vmatpush2.bf16.msra.mxu0 0
      %1073 = vmatprep.subr.bf16.mxu0 0
      %1074 = vmatpush2.bf16.msra.mxu0 0
      %1075 = vmatprep.subr.bf16.mxu0 0
      %1076 = vmatpush2.bf16.msra.mxu0 0
      %1077 = vmatprep.subr.bf16.mxu0 0
      %1078 = vmatpush2.bf16.msra.mxu0 0
      %1079 = vmatprep.subr.bf16.mxu0 0
      %1080 = vmatpush2.bf16.msra.mxu0 0
      %1081 = vmatprep.subr.bf16.mxu0 0
      %1082 = vmatpush2.bf16.msra.mxu0 0
      %1083 = vmatprep.subr.bf16.mxu0 0
      %1084 = vmatpush2.bf16.msra.mxu0 0
      %1085 = vmatprep.mubr.bf16.mxu0 0
      %1086 = vmatmul.mubr.bf16.gmra.mxu0 %v601
      %v1087 = vpop.f32.mrf.mxu0
      %v1088 = vadd.f32 %v1045, %v1087
      %v1089 = vpop.f32.mrf.mxu0
      %v1090 = vadd.f32 %v1046, %v1089
      %v1091 = vpop.f32.mrf.mxu0
      %v1092 = vpop.f32.mrf.mxu0
      %1093 = vdwg.mxu0
      %v1094 = vlaneseq
      %v1095 = vshrl.u32 %v1094, 7
      %v1096 = vsub.s32 1, %v1095
      %v1097 = vrot.slane %v1020, %v1096
      %v1098 = vlaneseq
      %v1099 = vshrl.u32 %v1098, 7
      %v1100 = vsub.s32 3, %v1099
      %v1101 = vrot.slane %v1020, %v1100
      %v1104 = vlaneseq
      %v1105 = vshrl.u32 %v1104, 7
      %v1106 = vsub.s32 1, %v1105
      %v1107 = vrot.slane %v1097, %v1106
      %v1108 = vlaneseq
      %v1109 = vshrl.u32 %v1108, 7
      %v1110 = vsub.s32 1, %v1109
      %v1111 = vrot.slane %v1101, %v1110
      %v1112 = vmul.f32 %v653, %v1107
      %v1113 = vmul.f32 %v653, %v1111
      %v1114 = vadd.f32 %v1088, %v1112
      %v1115 = vadd.f32 %v1090, %v1113
      %v1116 = vpack.c.bf16 %v1114, %v1114
      %v1117 = vpack.c.bf16 %v1115, %v1115
      %v1120 = vcombine.low %v1116, %v1117
      %v1122 = vunpack.c.l.s4 1983009808
      %v1123 = vunpack.c.0.s8 %v1122
      %v1124 = vlaneseq
      %v1125 = vshrl.u32 %v1124, 7
      %v1126 = vsub.s32 %v1123, %v1125
      %v1127 = vrot.slane %v1120, %v1126
      %s1129 = scalar_lea.vmem %s413, 8
      %1130 = vst [vmem:[%s1129] sm:$0xf] %v1127
      %v1131 = vmul.f32 %v1114, %v695
      %v1132 = vmul.f32 %v1115, %v699
      %v1133 = vsel %vm704, %v1131, 0.0
      %v1134 = vsel %vm704, %v1132, 0.0
      %v1135 = vadd.f32 %v1133, %v1134
      %1136 = vadd.xlane.f32.xlu0 %v1135
      %v1137 = vpop.xlane.xlu0 %1136
      %v1138 = vadd.f32 %v917, %v1137
      %v1139 = vmul.f32 %v1131, %v1131
      %v1140 = vmul.f32 %v1132, %v1132
      %v1141 = vsel %vm704, %v1139, 0.0
      %v1142 = vsel %vm704, %v1140, 0.0
      %v1143 = vadd.f32 %v1141, %v1142
      %1144 = vadd.xlane.f32.xlu0 %v1143
      %v1145 = vpop.xlane.xlu0 %1144
      %v1146 = vadd.f32 %v925, %v1145
      %1147 = vrot.lane.b32.xlu0 %v426, 1
      %v1148 = vpop.permute.xlu0 %1147
      %1149 = vrot.lane.b32.xlu0 %v430, 1
      %v1150 = vpop.permute.xlu0 %1149
      %vm1151 = vcmp.lt.s32.totalorder %v437, 1
      %v1152 = vsel %vm1151, %v1148, %v1150
      %v1153 = vsel %vm1151, %v1150, %v1148
      %1154 = vrot.lane.b32.xlu0 %v426, 127
      %v1155 = vpop.permute.xlu0 %1154
      %1156 = vrot.lane.b32.xlu0 %v430, 127
      %v1157 = vpop.permute.xlu0 %1156
      %vm1158 = vcmp.lt.s32.totalorder %v437, 127
      %v1159 = vsel %vm1158, %v1155, %v1157
      %v1160 = vsel %vm1158, %v1157, %v1155
      %v1161 = vsel %vm458, %v1159, %v1153
      %v1162 = vsel %vm459, %v1160, %v1152
      %v1165 = vcombine.low %v1161, %v1162
      %v1167 = vsub.f32 %v425, %v1165
      %v1168 = vld [vmem:[%s4] sm:$0xf]
      %1170 = vset.pattern.permute.xlu0 0
      %1171 = vperm.xlu0 %1170, %v1168
      %v1172 = vpop.permute.xlu0 %1171
      %v1174 = vunpack.c.l.s4 839922192
      %v1175 = vunpack.c.0.s8 %v1174
      %v1176 = vlaneseq
      %v1177 = vshrl.u32 %v1176, 7
      %v1178 = vsub.s32 %v1175, %v1177
      %v1179 = vrot.slane %v1172, %v1178
      %v1181 = vmul.f32 %v1167, %v1179
      %v1182 = vld [vmem:[%s5] sm:$0xf]
      %1184 = vset.pattern.permute.xlu0 0
      %1185 = vperm.xlu0 %1184, %v1182
      %v1186 = vpop.permute.xlu0 %1185
      %v1188 = vunpack.c.l.s4 839922192
      %v1189 = vunpack.c.0.s8 %v1188
      %v1190 = vlaneseq
      %v1191 = vshrl.u32 %v1190, 7
      %v1192 = vsub.s32 %v1189, %v1191
      %v1193 = vrot.slane %v1186, %v1192
      %v1195 = vadd.f32 %v1181, %v1193
      %v1196 = vmax.f32 %v1195, 0.0
      %s1197 = scalar_lea.vmem %s2, 12
      %v1198 = vld [vmem:[%s1197] sm:$0xf]
      %v1199 = vld [vmem:[%s6] sm:$0x3]
      %1201 = vset.pattern.permute.xlu0 0
      %1202 = vperm.xlu0 %1201, %v1199
      %v1203 = vpop.permute.xlu0 %1202
      %v1205 = vunpack.c.l.s4 269488144
      %v1206 = vunpack.c.0.s8 %v1205
      %v1207 = vlaneseq
      %v1208 = vshrl.u32 %v1207, 7
      %v1209 = vsub.s32 %v1206, %v1208
      %v1210 = vrot.slane %v1203, %v1209
      %v1212 = vmul.f32 %v1198, %v1210
      %v1213 = vld [vmem:[%s7] sm:$0x3]
      %1215 = vset.pattern.permute.xlu0 0
      %1216 = vperm.xlu0 %1215, %v1213
      %v1217 = vpop.permute.xlu0 %1216
      %v1219 = vunpack.c.l.s4 269488144
      %v1220 = vunpack.c.0.s8 %v1219
      %v1221 = vlaneseq
      %v1222 = vshrl.u32 %v1221, 7
      %v1223 = vsub.s32 %v1220, %v1222
      %v1224 = vrot.slane %v1217, %v1223
      %v1226 = vadd.f32 %v1212, %v1224
      %v1227 = vmax.f32 %v1226, 0.0
      %v1229 = vcombine.high %v1196, %v1196
      %v1231 = vpack.c.bf16 %v1196, %v1196
      %v1232 = vpack.c.bf16 %v1229, %v1229
      %v1234 = vlaneseq
      %v1235 = vshrl.u32 %v1234, 7
      %v1236 = vsub.s32 0, %v1235
      %v1237 = vrot.slane %v1227, %v1236
      %v1238 = vlaneseq
      %v1239 = vshrl.u32 %v1238, 7
      %v1240 = vsub.s32 2, %v1239
      %v1241 = vrot.slane %v1227, %v1240
      %v1244 = vlaneseq
      %v1245 = vshrl.u32 %v1244, 7
      %v1246 = vsub.s32 0, %v1245
      %v1247 = vrot.slane %v1237, %v1246
      %v1248 = vlaneseq
      %v1249 = vshrl.u32 %v1248, 7
      %v1250 = vsub.s32 0, %v1249
      %v1251 = vrot.slane %v1241, %v1250
      %v1252 = vmul.f32 %v576, %v1247
      %v1253 = vmul.f32 %v576, %v1251
      %v1255 = vsel %vm603, %v1231, 0
      %v1258 = vsel %vm603, %v1232, 0
      %1260 = vmatprep.subr.bf16.mxu0 0
      %1261 = vmatpush1.bf16.msra.mxu0 0
      %1262 = vmatprep.subr.bf16.mxu0 0
      %1263 = vmatpush1.bf16.msra.mxu0 0
      %1264 = vmatprep.subr.bf16.mxu0 0
      %1265 = vmatpush1.bf16.msra.mxu0 0
      %1266 = vmatprep.subr.bf16.mxu0 0
      %1267 = vmatpush1.bf16.msra.mxu0 0
      %1268 = vmatprep.subr.bf16.mxu0 0
      %1269 = vmatpush1.bf16.msra.mxu0 0
      %1270 = vmatprep.subr.bf16.mxu0 0
      %1271 = vmatpush1.bf16.msra.mxu0 0
      %1272 = vmatprep.subr.bf16.mxu0 0
      %1273 = vmatpush1.bf16.msra.mxu0 0
      %1274 = vmatprep.subr.bf16.mxu0 %v1258
      %1275 = vmatpush1.bf16.msra.mxu0 %v1255
      %1276 = vmatprep.subr.bf16.mxu0 0
      %1277 = vmatpush2.bf16.msra.mxu0 0
      %1278 = vmatprep.subr.bf16.mxu0 0
      %1279 = vmatpush2.bf16.msra.mxu0 0
      %1280 = vmatprep.subr.bf16.mxu0 0
      %1281 = vmatpush2.bf16.msra.mxu0 0
      %1282 = vmatprep.subr.bf16.mxu0 0
      %1283 = vmatpush2.bf16.msra.mxu0 0
      %1284 = vmatprep.subr.bf16.mxu0 0
      %1285 = vmatpush2.bf16.msra.mxu0 0
      %1286 = vmatprep.subr.bf16.mxu0 0
      %1287 = vmatpush2.bf16.msra.mxu0 0
      %1288 = vmatprep.subr.bf16.mxu0 0
      %1289 = vmatpush2.bf16.msra.mxu0 0
      %1290 = vmatprep.subr.bf16.mxu0 0
      %1291 = vmatpush2.bf16.msra.mxu0 0
      %1292 = vmatprep.mubr.bf16.mxu0 0
      %1293 = vmatmul.mubr.bf16.gmra.mxu0 %v601
      %v1294 = vpop.f32.mrf.mxu0
      %v1295 = vadd.f32 %v1252, %v1294
      %v1296 = vpop.f32.mrf.mxu0
      %v1297 = vadd.f32 %v1253, %v1296
      %v1298 = vpop.f32.mrf.mxu0
      %v1299 = vpop.f32.mrf.mxu0
      %1300 = vdwg.mxu0
      %v1301 = vlaneseq
      %v1302 = vshrl.u32 %v1301, 7
      %v1303 = vsub.s32 1, %v1302
      %v1304 = vrot.slane %v1227, %v1303
      %v1305 = vlaneseq
      %v1306 = vshrl.u32 %v1305, 7
      %v1307 = vsub.s32 3, %v1306
      %v1308 = vrot.slane %v1227, %v1307
      %v1311 = vlaneseq
      %v1312 = vshrl.u32 %v1311, 7
      %v1313 = vsub.s32 1, %v1312
      %v1314 = vrot.slane %v1304, %v1313
      %v1315 = vlaneseq
      %v1316 = vshrl.u32 %v1315, 7
      %v1317 = vsub.s32 1, %v1316
      %v1318 = vrot.slane %v1308, %v1317
      %v1319 = vmul.f32 %v653, %v1314
      %v1320 = vmul.f32 %v653, %v1318
      %v1321 = vadd.f32 %v1295, %v1319
      %v1322 = vadd.f32 %v1297, %v1320
      %v1323 = vpack.c.bf16 %v1321, %v1321
      %v1324 = vpack.c.bf16 %v1322, %v1322
      %v1327 = vcombine.low %v1323, %v1324
      %v1329 = vunpack.c.l.s4 1983009808
      %v1330 = vunpack.c.0.s8 %v1329
      %v1331 = vlaneseq
      %v1332 = vshrl.u32 %v1331, 7
      %v1333 = vsub.s32 %v1330, %v1332
      %v1334 = vrot.slane %v1327, %v1333
      %s1336 = scalar_lea.vmem %s413, 12
      %1337 = vst [vmem:[%s1336] sm:$0xf] %v1334
      %v1338 = vmul.f32 %v1321, %v695
      %v1339 = vmul.f32 %v1322, %v699
      %v1340 = vsel %vm704, %v1338, 0.0
      %v1341 = vsel %vm704, %v1339, 0.0
      %v1342 = vadd.f32 %v1340, %v1341
      %1343 = vadd.xlane.f32.xlu0 %v1342
      %v1344 = vpop.xlane.xlu0 %1343
      %v1345 = vadd.f32 %v1138, %v1344
      %v1346 = vmul.f32 %v1338, %v1338
      %v1347 = vmul.f32 %v1339, %v1339
      %v1348 = vsel %vm704, %v1346, 0.0
      %v1349 = vsel %vm704, %v1347, 0.0
      %v1350 = vadd.f32 %v1348, %v1349
      %1351 = vadd.xlane.f32.xlu0 %v1350
      %v1352 = vpop.xlane.xlu0 %1351
      %v1353 = vadd.f32 %v1146, %v1352
      %v1354 = vsub.f32 %v425, %v426
      %v1355 = vld [vmem:[%s4] sm:$0xf]
      %1357 = vset.pattern.permute.xlu0 0
      %1358 = vperm.xlu0 %1357, %v1355
      %v1359 = vpop.permute.xlu0 %1358
      %v1361 = vunpack.c.l.s4 839922192
      %v1362 = vunpack.c.0.s8 %v1361
      %v1363 = vlaneseq
      %v1364 = vshrl.u32 %v1363, 7
      %v1365 = vsub.s32 %v1362, %v1364
      %v1366 = vrot.slane %v1359, %v1365
      %v1368 = vmul.f32 %v1354, %v1366
      %v1369 = vld [vmem:[%s5] sm:$0xf]
      %1371 = vset.pattern.permute.xlu0 0
      %1372 = vperm.xlu0 %1371, %v1369
      %v1373 = vpop.permute.xlu0 %1372
      %v1375 = vunpack.c.l.s4 839922192
      %v1376 = vunpack.c.0.s8 %v1375
      %v1377 = vlaneseq
      %v1378 = vshrl.u32 %v1377, 7
      %v1379 = vsub.s32 %v1376, %v1378
      %v1380 = vrot.slane %v1373, %v1379
      %v1382 = vadd.f32 %v1368, %v1380
      %v1383 = vmax.f32 %v1382, 0.0
      %s1384 = scalar_lea.vmem %s2, 16
      %v1385 = vld [vmem:[%s1384] sm:$0xf]
      %v1386 = vld [vmem:[%s6] sm:$0x3]
      %1388 = vset.pattern.permute.xlu0 0
      %1389 = vperm.xlu0 %1388, %v1386
      %v1390 = vpop.permute.xlu0 %1389
      %v1392 = vunpack.c.l.s4 269488144
      %v1393 = vunpack.c.0.s8 %v1392
      %v1394 = vlaneseq
      %v1395 = vshrl.u32 %v1394, 7
      %v1396 = vsub.s32 %v1393, %v1395
      %v1397 = vrot.slane %v1390, %v1396
      %v1399 = vmul.f32 %v1385, %v1397
      %v1400 = vld [vmem:[%s7] sm:$0x3]
      %1402 = vset.pattern.permute.xlu0 0
      %1403 = vperm.xlu0 %1402, %v1400
      %v1404 = vpop.permute.xlu0 %1403
      %v1406 = vunpack.c.l.s4 269488144
      %v1407 = vunpack.c.0.s8 %v1406
      %v1408 = vlaneseq
      %v1409 = vshrl.u32 %v1408, 7
      %v1410 = vsub.s32 %v1407, %v1409
      %v1411 = vrot.slane %v1404, %v1410
      %v1413 = vadd.f32 %v1399, %v1411
      %v1414 = vmax.f32 %v1413, 0.0
      %v1416 = vcombine.high %v1383, %v1383
      %v1418 = vpack.c.bf16 %v1383, %v1383
      %v1419 = vpack.c.bf16 %v1416, %v1416
      %v1421 = vlaneseq
      %v1422 = vshrl.u32 %v1421, 7
      %v1423 = vsub.s32 0, %v1422
      %v1424 = vrot.slane %v1414, %v1423
      %v1425 = vlaneseq
      %v1426 = vshrl.u32 %v1425, 7
      %v1427 = vsub.s32 2, %v1426
      %v1428 = vrot.slane %v1414, %v1427
      %v1431 = vlaneseq
      %v1432 = vshrl.u32 %v1431, 7
      %v1433 = vsub.s32 0, %v1432
      %v1434 = vrot.slane %v1424, %v1433
      %v1435 = vlaneseq
      %v1436 = vshrl.u32 %v1435, 7
      %v1437 = vsub.s32 0, %v1436
      %v1438 = vrot.slane %v1428, %v1437
      %v1439 = vmul.f32 %v576, %v1434
      %v1440 = vmul.f32 %v576, %v1438
      %v1442 = vsel %vm603, %v1418, 0
      %v1445 = vsel %vm603, %v1419, 0
      %1447 = vmatprep.subr.bf16.mxu0 0
      %1448 = vmatpush1.bf16.msra.mxu0 0
      %1449 = vmatprep.subr.bf16.mxu0 0
      %1450 = vmatpush1.bf16.msra.mxu0 0
      %1451 = vmatprep.subr.bf16.mxu0 0
      %1452 = vmatpush1.bf16.msra.mxu0 0
      %1453 = vmatprep.subr.bf16.mxu0 0
      %1454 = vmatpush1.bf16.msra.mxu0 0
      %1455 = vmatprep.subr.bf16.mxu0 0
      %1456 = vmatpush1.bf16.msra.mxu0 0
      %1457 = vmatprep.subr.bf16.mxu0 0
      %1458 = vmatpush1.bf16.msra.mxu0 0
      %1459 = vmatprep.subr.bf16.mxu0 0
      %1460 = vmatpush1.bf16.msra.mxu0 0
      %1461 = vmatprep.subr.bf16.mxu0 %v1445
      %1462 = vmatpush1.bf16.msra.mxu0 %v1442
      %1463 = vmatprep.subr.bf16.mxu0 0
      %1464 = vmatpush2.bf16.msra.mxu0 0
      %1465 = vmatprep.subr.bf16.mxu0 0
      %1466 = vmatpush2.bf16.msra.mxu0 0
      %1467 = vmatprep.subr.bf16.mxu0 0
      %1468 = vmatpush2.bf16.msra.mxu0 0
      %1469 = vmatprep.subr.bf16.mxu0 0
      %1470 = vmatpush2.bf16.msra.mxu0 0
      %1471 = vmatprep.subr.bf16.mxu0 0
      %1472 = vmatpush2.bf16.msra.mxu0 0
      %1473 = vmatprep.subr.bf16.mxu0 0
      %1474 = vmatpush2.bf16.msra.mxu0 0
      %1475 = vmatprep.subr.bf16.mxu0 0
      %1476 = vmatpush2.bf16.msra.mxu0 0
      %1477 = vmatprep.subr.bf16.mxu0 0
      %1478 = vmatpush2.bf16.msra.mxu0 0
      %1479 = vmatprep.mubr.bf16.mxu0 0
      %1480 = vmatmul.mubr.bf16.gmra.mxu0 %v601
      %v1481 = vpop.f32.mrf.mxu0
      %v1482 = vadd.f32 %v1439, %v1481
      %v1483 = vpop.f32.mrf.mxu0
      %v1484 = vadd.f32 %v1440, %v1483
      %v1485 = vpop.f32.mrf.mxu0
      %v1486 = vpop.f32.mrf.mxu0
      %1487 = vdwg.mxu0
      %v1488 = vlaneseq
      %v1489 = vshrl.u32 %v1488, 7
      %v1490 = vsub.s32 1, %v1489
      %v1491 = vrot.slane %v1414, %v1490
      %v1492 = vlaneseq
      %v1493 = vshrl.u32 %v1492, 7
      %v1494 = vsub.s32 3, %v1493
      %v1495 = vrot.slane %v1414, %v1494
      %v1498 = vlaneseq
      %v1499 = vshrl.u32 %v1498, 7
      %v1500 = vsub.s32 1, %v1499
      %v1501 = vrot.slane %v1491, %v1500
      %v1502 = vlaneseq
      %v1503 = vshrl.u32 %v1502, 7
      %v1504 = vsub.s32 1, %v1503
      %v1505 = vrot.slane %v1495, %v1504
      %v1506 = vmul.f32 %v653, %v1501
      %v1507 = vmul.f32 %v653, %v1505
      %v1508 = vadd.f32 %v1482, %v1506
      %v1509 = vadd.f32 %v1484, %v1507
      %v1510 = vpack.c.bf16 %v1508, %v1508
      %v1511 = vpack.c.bf16 %v1509, %v1509
      %v1514 = vcombine.low %v1510, %v1511
      %v1516 = vunpack.c.l.s4 1983009808
      %v1517 = vunpack.c.0.s8 %v1516
      %v1518 = vlaneseq
      %v1519 = vshrl.u32 %v1518, 7
      %v1520 = vsub.s32 %v1517, %v1519
      %v1521 = vrot.slane %v1514, %v1520
      %s1523 = scalar_lea.vmem %s413, 16
      %1524 = vst [vmem:[%s1523] sm:$0xf] %v1521
      %v1525 = vmul.f32 %v1508, %v695
      %v1526 = vmul.f32 %v1509, %v699
      %v1527 = vsel %vm704, %v1525, 0.0
      %v1528 = vsel %vm704, %v1526, 0.0
      %v1529 = vadd.f32 %v1527, %v1528
      %1530 = vadd.xlane.f32.xlu0 %v1529
      %v1531 = vpop.xlane.xlu0 %1530
      %v1532 = vadd.f32 %v1345, %v1531
      %v1533 = vmul.f32 %v1525, %v1525
      %v1534 = vmul.f32 %v1526, %v1526
      %v1535 = vsel %vm704, %v1533, 0.0
      %v1536 = vsel %vm704, %v1534, 0.0
      %v1537 = vadd.f32 %v1535, %v1536
      %1538 = vadd.xlane.f32.xlu0 %v1537
      %v1539 = vpop.xlane.xlu0 %1538
      %v1540 = vadd.f32 %v1353, %v1539
      %v1541 = vsel %vm936, %v1153, %v1159
      %v1542 = vsel %vm937, %v1152, %v1160
      %v1545 = vcombine.low %v1541, %v1542
      %v1547 = vsub.f32 %v425, %v1545
      %v1548 = vld [vmem:[%s4] sm:$0xf]
      %1550 = vset.pattern.permute.xlu0 0
      %1551 = vperm.xlu0 %1550, %v1548
      %v1552 = vpop.permute.xlu0 %1551
      %v1554 = vunpack.c.l.s4 839922192
      %v1555 = vunpack.c.0.s8 %v1554
      %v1556 = vlaneseq
      %v1557 = vshrl.u32 %v1556, 7
      %v1558 = vsub.s32 %v1555, %v1557
      %v1559 = vrot.slane %v1552, %v1558
      %v1561 = vmul.f32 %v1547, %v1559
      %v1562 = vld [vmem:[%s5] sm:$0xf]
      %1564 = vset.pattern.permute.xlu0 0
      %1565 = vperm.xlu0 %1564, %v1562
      %v1566 = vpop.permute.xlu0 %1565
      %v1568 = vunpack.c.l.s4 839922192
      %v1569 = vunpack.c.0.s8 %v1568
      %v1570 = vlaneseq
      %v1571 = vshrl.u32 %v1570, 7
      %v1572 = vsub.s32 %v1569, %v1571
      %v1573 = vrot.slane %v1566, %v1572
      %v1575 = vadd.f32 %v1561, %v1573
      %v1576 = vmax.f32 %v1575, 0.0
      %s1577 = scalar_lea.vmem %s2, 20
      %v1578 = vld [vmem:[%s1577] sm:$0xf]
      %v1579 = vld [vmem:[%s6] sm:$0x3]
      %1581 = vset.pattern.permute.xlu0 0
      %1582 = vperm.xlu0 %1581, %v1579
      %v1583 = vpop.permute.xlu0 %1582
      %v1585 = vunpack.c.l.s4 269488144
      %v1586 = vunpack.c.0.s8 %v1585
      %v1587 = vlaneseq
      %v1588 = vshrl.u32 %v1587, 7
      %v1589 = vsub.s32 %v1586, %v1588
      %v1590 = vrot.slane %v1583, %v1589
      %v1592 = vmul.f32 %v1578, %v1590
      %v1593 = vld [vmem:[%s7] sm:$0x3]
      %1595 = vset.pattern.permute.xlu0 0
      %1596 = vperm.xlu0 %1595, %v1593
      %v1597 = vpop.permute.xlu0 %1596
      %v1599 = vunpack.c.l.s4 269488144
      %v1600 = vunpack.c.0.s8 %v1599
      %v1601 = vlaneseq
      %v1602 = vshrl.u32 %v1601, 7
      %v1603 = vsub.s32 %v1600, %v1602
      %v1604 = vrot.slane %v1597, %v1603
      %v1606 = vadd.f32 %v1592, %v1604
      %v1607 = vmax.f32 %v1606, 0.0
      %v1609 = vcombine.high %v1576, %v1576
      %v1611 = vpack.c.bf16 %v1576, %v1576
      %v1612 = vpack.c.bf16 %v1609, %v1609
      %v1614 = vlaneseq
      %v1615 = vshrl.u32 %v1614, 7
      %v1616 = vsub.s32 0, %v1615
      %v1617 = vrot.slane %v1607, %v1616
      %v1618 = vlaneseq
      %v1619 = vshrl.u32 %v1618, 7
      %v1620 = vsub.s32 2, %v1619
      %v1621 = vrot.slane %v1607, %v1620
      %v1624 = vlaneseq
      %v1625 = vshrl.u32 %v1624, 7
      %v1626 = vsub.s32 0, %v1625
      %v1627 = vrot.slane %v1617, %v1626
      %v1628 = vlaneseq
      %v1629 = vshrl.u32 %v1628, 7
      %v1630 = vsub.s32 0, %v1629
      %v1631 = vrot.slane %v1621, %v1630
      %v1632 = vmul.f32 %v576, %v1627
      %v1633 = vmul.f32 %v576, %v1631
      %v1635 = vsel %vm603, %v1611, 0
      %v1638 = vsel %vm603, %v1612, 0
      %1640 = vmatprep.subr.bf16.mxu0 0
      %1641 = vmatpush1.bf16.msra.mxu0 0
      %1642 = vmatprep.subr.bf16.mxu0 0
      %1643 = vmatpush1.bf16.msra.mxu0 0
      %1644 = vmatprep.subr.bf16.mxu0 0
      %1645 = vmatpush1.bf16.msra.mxu0 0
      %1646 = vmatprep.subr.bf16.mxu0 0
      %1647 = vmatpush1.bf16.msra.mxu0 0
      %1648 = vmatprep.subr.bf16.mxu0 0
      %1649 = vmatpush1.bf16.msra.mxu0 0
      %1650 = vmatprep.subr.bf16.mxu0 0
      %1651 = vmatpush1.bf16.msra.mxu0 0
      %1652 = vmatprep.subr.bf16.mxu0 0
      %1653 = vmatpush1.bf16.msra.mxu0 0
      %1654 = vmatprep.subr.bf16.mxu0 %v1638
      %1655 = vmatpush1.bf16.msra.mxu0 %v1635
      %1656 = vmatprep.subr.bf16.mxu0 0
      %1657 = vmatpush2.bf16.msra.mxu0 0
      %1658 = vmatprep.subr.bf16.mxu0 0
      %1659 = vmatpush2.bf16.msra.mxu0 0
      %1660 = vmatprep.subr.bf16.mxu0 0
      %1661 = vmatpush2.bf16.msra.mxu0 0
      %1662 = vmatprep.subr.bf16.mxu0 0
      %1663 = vmatpush2.bf16.msra.mxu0 0
      %1664 = vmatprep.subr.bf16.mxu0 0
      %1665 = vmatpush2.bf16.msra.mxu0 0
      %1666 = vmatprep.subr.bf16.mxu0 0
      %1667 = vmatpush2.bf16.msra.mxu0 0
      %1668 = vmatprep.subr.bf16.mxu0 0
      %1669 = vmatpush2.bf16.msra.mxu0 0
      %1670 = vmatprep.subr.bf16.mxu0 0
      %1671 = vmatpush2.bf16.msra.mxu0 0
      %1672 = vmatprep.mubr.bf16.mxu0 0
      %1673 = vmatmul.mubr.bf16.gmra.mxu0 %v601
      %v1674 = vpop.f32.mrf.mxu0
      %v1675 = vadd.f32 %v1632, %v1674
      %v1676 = vpop.f32.mrf.mxu0
      %v1677 = vadd.f32 %v1633, %v1676
      %v1678 = vpop.f32.mrf.mxu0
      %v1679 = vpop.f32.mrf.mxu0
      %1680 = vdwg.mxu0
      %v1681 = vlaneseq
      %v1682 = vshrl.u32 %v1681, 7
      %v1683 = vsub.s32 1, %v1682
      %v1684 = vrot.slane %v1607, %v1683
      %v1685 = vlaneseq
      %v1686 = vshrl.u32 %v1685, 7
      %v1687 = vsub.s32 3, %v1686
      %v1688 = vrot.slane %v1607, %v1687
      %v1691 = vlaneseq
      %v1692 = vshrl.u32 %v1691, 7
      %v1693 = vsub.s32 1, %v1692
      %v1694 = vrot.slane %v1684, %v1693
      %v1695 = vlaneseq
      %v1696 = vshrl.u32 %v1695, 7
      %v1697 = vsub.s32 1, %v1696
      %v1698 = vrot.slane %v1688, %v1697
      %v1699 = vmul.f32 %v653, %v1694
      %v1700 = vmul.f32 %v653, %v1698
      %v1701 = vadd.f32 %v1675, %v1699
      %v1702 = vadd.f32 %v1677, %v1700
      %v1703 = vpack.c.bf16 %v1701, %v1701
      %v1704 = vpack.c.bf16 %v1702, %v1702
      %v1707 = vcombine.low %v1703, %v1704
      %v1709 = vunpack.c.l.s4 1983009808
      %v1710 = vunpack.c.0.s8 %v1709
      %v1711 = vlaneseq
      %v1712 = vshrl.u32 %v1711, 7
      %v1713 = vsub.s32 %v1710, %v1712
      %v1714 = vrot.slane %v1707, %v1713
      %s1716 = scalar_lea.vmem %s413, 20
      %1717 = vst [vmem:[%s1716] sm:$0xf] %v1714
      %v1718 = vmul.f32 %v1701, %v695
      %v1719 = vmul.f32 %v1702, %v699
      %v1720 = vsel %vm704, %v1718, 0.0
      %v1721 = vsel %vm704, %v1719, 0.0
      %v1722 = vadd.f32 %v1720, %v1721
      %1723 = vadd.xlane.f32.xlu0 %v1722
      %v1724 = vpop.xlane.xlu0 %1723
      %v1725 = vadd.f32 %v1532, %v1724
      %v1726 = vmul.f32 %v1718, %v1718
      %v1727 = vmul.f32 %v1719, %v1719
      %v1728 = vsel %vm704, %v1726, 0.0
      %v1729 = vsel %vm704, %v1727, 0.0
      %v1730 = vadd.f32 %v1728, %v1729
      %1731 = vadd.xlane.f32.xlu0 %v1730
      %v1732 = vpop.xlane.xlu0 %1731
      %v1733 = vadd.f32 %v1540, %v1732
      %v1734 = vsel %vm458, %v489, %v468
      %v1735 = vsel %vm459, %v490, %v469
      %vm1736 = vcmp.eq.s32.totalorder %v419, 15
      %v1737 = vsel %vm1736, 1, 0
      %v1738 = vlaneseq
      %v1739 = vshrl.u32 %v1738, 7
      %v1740 = vsub.s32 0, %v1739
      %v1741 = vrot.slane %v1737, %v1740
      %v1742 = vlaneseq
      %v1743 = vshrl.u32 %v1742, 7
      %v1744 = vsub.s32 1, %v1743
      %v1745 = vrot.slane %v1737, %v1744
      %vm1746 = vcmp.eq.s32.totalorder %v1741, 1
      %vm1747 = vcmp.eq.s32.totalorder %v1745, 1
      %v1748 = vsel %vm1746, %v440, %v1734
      %v1749 = vsel %vm1747, %v439, %v1735
      %vm1750 = vmand %vm1736, %vm441
      %v1751 = vsel %vm1750, 1, 0
      %v1752 = vlaneseq
      %v1753 = vshrl.u32 %v1752, 7
      %v1754 = vsub.s32 0, %v1753
      %v1755 = vrot.slane %v1751, %v1754
      %v1756 = vlaneseq
      %v1757 = vshrl.u32 %v1756, 7
      %v1758 = vsub.s32 1, %v1757
      %v1759 = vrot.slane %v1751, %v1758
      %vm1760 = vcmp.eq.s32.totalorder %v1755, 1
      %vm1761 = vcmp.eq.s32.totalorder %v1759, 1
      %v1762 = vsel %vm1760, %v448, %v1748
      %v1763 = vsel %vm1761, %v447, %v1749
      %v1766 = vcombine.low %v1762, %v1763
      %v1768 = vsub.f32 %v425, %v1766
      %v1769 = vld [vmem:[%s4] sm:$0xf]
      %1771 = vset.pattern.permute.xlu0 0
      %1772 = vperm.xlu0 %1771, %v1769
      %v1773 = vpop.permute.xlu0 %1772
      %v1775 = vunpack.c.l.s4 839922192
      %v1776 = vunpack.c.0.s8 %v1775
      %v1777 = vlaneseq
      %v1778 = vshrl.u32 %v1777, 7
      %v1779 = vsub.s32 %v1776, %v1778
      %v1780 = vrot.slane %v1773, %v1779
      %v1782 = vmul.f32 %v1768, %v1780
      %v1783 = vld [vmem:[%s5] sm:$0xf]
      %1785 = vset.pattern.permute.xlu0 0
      %1786 = vperm.xlu0 %1785, %v1783
      %v1787 = vpop.permute.xlu0 %1786
      %v1789 = vunpack.c.l.s4 839922192
      %v1790 = vunpack.c.0.s8 %v1789
      %v1791 = vlaneseq
      %v1792 = vshrl.u32 %v1791, 7
      %v1793 = vsub.s32 %v1790, %v1792
      %v1794 = vrot.slane %v1787, %v1793
      %v1796 = vadd.f32 %v1782, %v1794
      %v1797 = vmax.f32 %v1796, 0.0
      %s1798 = scalar_lea.vmem %s2, 24
      %v1799 = vld [vmem:[%s1798] sm:$0xf]
      %v1800 = vld [vmem:[%s6] sm:$0x3]
      %1802 = vset.pattern.permute.xlu0 0
      %1803 = vperm.xlu0 %1802, %v1800
      %v1804 = vpop.permute.xlu0 %1803
      %v1806 = vunpack.c.l.s4 269488144
      %v1807 = vunpack.c.0.s8 %v1806
      %v1808 = vlaneseq
      %v1809 = vshrl.u32 %v1808, 7
      %v1810 = vsub.s32 %v1807, %v1809
      %v1811 = vrot.slane %v1804, %v1810
      %v1813 = vmul.f32 %v1799, %v1811
      %v1814 = vld [vmem:[%s7] sm:$0x3]
      %1816 = vset.pattern.permute.xlu0 0
      %1817 = vperm.xlu0 %1816, %v1814
      %v1818 = vpop.permute.xlu0 %1817
      %v1820 = vunpack.c.l.s4 269488144
      %v1821 = vunpack.c.0.s8 %v1820
      %v1822 = vlaneseq
      %v1823 = vshrl.u32 %v1822, 7
      %v1824 = vsub.s32 %v1821, %v1823
      %v1825 = vrot.slane %v1818, %v1824
      %v1827 = vadd.f32 %v1813, %v1825
      %v1828 = vmax.f32 %v1827, 0.0
      %v1830 = vcombine.high %v1797, %v1797
      %v1832 = vpack.c.bf16 %v1797, %v1797
      %v1833 = vpack.c.bf16 %v1830, %v1830
      %v1835 = vlaneseq
      %v1836 = vshrl.u32 %v1835, 7
      %v1837 = vsub.s32 0, %v1836
      %v1838 = vrot.slane %v1828, %v1837
      %v1839 = vlaneseq
      %v1840 = vshrl.u32 %v1839, 7
      %v1841 = vsub.s32 2, %v1840
      %v1842 = vrot.slane %v1828, %v1841
      %v1845 = vlaneseq
      %v1846 = vshrl.u32 %v1845, 7
      %v1847 = vsub.s32 0, %v1846
      %v1848 = vrot.slane %v1838, %v1847
      %v1849 = vlaneseq
      %v1850 = vshrl.u32 %v1849, 7
      %v1851 = vsub.s32 0, %v1850
      %v1852 = vrot.slane %v1842, %v1851
      %v1853 = vmul.f32 %v576, %v1848
      %v1854 = vmul.f32 %v576, %v1852
      %v1856 = vsel %vm603, %v1832, 0
      %v1859 = vsel %vm603, %v1833, 0
      %1861 = vmatprep.subr.bf16.mxu0 0
      %1862 = vmatpush1.bf16.msra.mxu0 0
      %1863 = vmatprep.subr.bf16.mxu0 0
      %1864 = vmatpush1.bf16.msra.mxu0 0
      %1865 = vmatprep.subr.bf16.mxu0 0
      %1866 = vmatpush1.bf16.msra.mxu0 0
      %1867 = vmatprep.subr.bf16.mxu0 0
      %1868 = vmatpush1.bf16.msra.mxu0 0
      %1869 = vmatprep.subr.bf16.mxu0 0
      %1870 = vmatpush1.bf16.msra.mxu0 0
      %1871 = vmatprep.subr.bf16.mxu0 0
      %1872 = vmatpush1.bf16.msra.mxu0 0
      %1873 = vmatprep.subr.bf16.mxu0 0
      %1874 = vmatpush1.bf16.msra.mxu0 0
      %1875 = vmatprep.subr.bf16.mxu0 %v1859
      %1876 = vmatpush1.bf16.msra.mxu0 %v1856
      %1877 = vmatprep.subr.bf16.mxu0 0
      %1878 = vmatpush2.bf16.msra.mxu0 0
      %1879 = vmatprep.subr.bf16.mxu0 0
      %1880 = vmatpush2.bf16.msra.mxu0 0
      %1881 = vmatprep.subr.bf16.mxu0 0
      %1882 = vmatpush2.bf16.msra.mxu0 0
      %1883 = vmatprep.subr.bf16.mxu0 0
      %1884 = vmatpush2.bf16.msra.mxu0 0
      %1885 = vmatprep.subr.bf16.mxu0 0
      %1886 = vmatpush2.bf16.msra.mxu0 0
      %1887 = vmatprep.subr.bf16.mxu0 0
      %1888 = vmatpush2.bf16.msra.mxu0 0
      %1889 = vmatprep.subr.bf16.mxu0 0
      %1890 = vmatpush2.bf16.msra.mxu0 0
      %1891 = vmatprep.subr.bf16.mxu0 0
      %1892 = vmatpush2.bf16.msra.mxu0 0
      %1893 = vmatprep.mubr.bf16.mxu0 0
      %1894 = vmatmul.mubr.bf16.gmra.mxu0 %v601
      %v1895 = vpop.f32.mrf.mxu0
      %v1896 = vadd.f32 %v1853, %v1895
      %v1897 = vpop.f32.mrf.mxu0
      %v1898 = vadd.f32 %v1854, %v1897
      %v1899 = vpop.f32.mrf.mxu0
      %v1900 = vpop.f32.mrf.mxu0
      %1901 = vdwg.mxu0
      %v1902 = vlaneseq
      %v1903 = vshrl.u32 %v1902, 7
      %v1904 = vsub.s32 1, %v1903
      %v1905 = vrot.slane %v1828, %v1904
      %v1906 = vlaneseq
      %v1907 = vshrl.u32 %v1906, 7
      %v1908 = vsub.s32 3, %v1907
      %v1909 = vrot.slane %v1828, %v1908
      %v1912 = vlaneseq
      %v1913 = vshrl.u32 %v1912, 7
      %v1914 = vsub.s32 1, %v1913
      %v1915 = vrot.slane %v1905, %v1914
      %v1916 = vlaneseq
      %v1917 = vshrl.u32 %v1916, 7
      %v1918 = vsub.s32 1, %v1917
      %v1919 = vrot.slane %v1909, %v1918
      %v1920 = vmul.f32 %v653, %v1915
      %v1921 = vmul.f32 %v653, %v1919
      %v1922 = vadd.f32 %v1896, %v1920
      %v1923 = vadd.f32 %v1898, %v1921
      %v1924 = vpack.c.bf16 %v1922, %v1922
      %v1925 = vpack.c.bf16 %v1923, %v1923
      %v1928 = vcombine.low %v1924, %v1925
      %v1930 = vunpack.c.l.s4 1983009808
      %v1931 = vunpack.c.0.s8 %v1930
      %v1932 = vlaneseq
      %v1933 = vshrl.u32 %v1932, 7
      %v1934 = vsub.s32 %v1931, %v1933
      %v1935 = vrot.slane %v1928, %v1934
      %s1937 = scalar_lea.vmem %s413, 24
      %1938 = vst [vmem:[%s1937] sm:$0xf] %v1935
      %v1939 = vmul.f32 %v1922, %v695
      %v1940 = vmul.f32 %v1923, %v699
      %v1941 = vsel %vm704, %v1939, 0.0
      %v1942 = vsel %vm704, %v1940, 0.0
      %v1943 = vadd.f32 %v1941, %v1942
      %1944 = vadd.xlane.f32.xlu0 %v1943
      %v1945 = vpop.xlane.xlu0 %1944
      %v1946 = vadd.f32 %v1725, %v1945
      %v1947 = vmul.f32 %v1939, %v1939
      %v1948 = vmul.f32 %v1940, %v1940
      %v1949 = vsel %vm704, %v1947, 0.0
      %v1950 = vsel %vm704, %v1948, 0.0
      %v1951 = vadd.f32 %v1949, %v1950
      %1952 = vadd.xlane.f32.xlu0 %v1951
      %v1953 = vpop.xlane.xlu0 %1952
      %v1954 = vadd.f32 %v1733, %v1953
      %v1955 = vsel %vm1746, %v725, %v731
      %v1956 = vsel %vm1747, %v724, %v732
      %v1959 = vcombine.low %v1955, %v1956
      %v1961 = vsub.f32 %v425, %v1959
      %v1962 = vld [vmem:[%s4] sm:$0xf]
      %1964 = vset.pattern.permute.xlu0 0
      %1965 = vperm.xlu0 %1964, %v1962
      %v1966 = vpop.permute.xlu0 %1965
      %v1968 = vunpack.c.l.s4 839922192
      %v1969 = vunpack.c.0.s8 %v1968
      %v1970 = vlaneseq
      %v1971 = vshrl.u32 %v1970, 7
      %v1972 = vsub.s32 %v1969, %v1971
      %v1973 = vrot.slane %v1966, %v1972
      %v1975 = vmul.f32 %v1961, %v1973
      %v1976 = vld [vmem:[%s5] sm:$0xf]
      %1978 = vset.pattern.permute.xlu0 0
      %1979 = vperm.xlu0 %1978, %v1976
      %v1980 = vpop.permute.xlu0 %1979
      %v1982 = vunpack.c.l.s4 839922192
      %v1983 = vunpack.c.0.s8 %v1982
      %v1984 = vlaneseq
      %v1985 = vshrl.u32 %v1984, 7
      %v1986 = vsub.s32 %v1983, %v1985
      %v1987 = vrot.slane %v1980, %v1986
      %v1989 = vadd.f32 %v1975, %v1987
      %v1990 = vmax.f32 %v1989, 0.0
      %s1991 = scalar_lea.vmem %s2, 28
      %v1992 = vld [vmem:[%s1991] sm:$0xf]
      %v1993 = vld [vmem:[%s6] sm:$0x3]
      %1995 = vset.pattern.permute.xlu0 0
      %1996 = vperm.xlu0 %1995, %v1993
      %v1997 = vpop.permute.xlu0 %1996
      %v1999 = vunpack.c.l.s4 269488144
      %v2000 = vunpack.c.0.s8 %v1999
      %v2001 = vlaneseq
      %v2002 = vshrl.u32 %v2001, 7
      %v2003 = vsub.s32 %v2000, %v2002
      %v2004 = vrot.slane %v1997, %v2003
      %v2006 = vmul.f32 %v1992, %v2004
      %v2007 = vld [vmem:[%s7] sm:$0x3]
      %2009 = vset.pattern.permute.xlu0 0
      %2010 = vperm.xlu0 %2009, %v2007
      %v2011 = vpop.permute.xlu0 %2010
      %v2013 = vunpack.c.l.s4 269488144
      %v2014 = vunpack.c.0.s8 %v2013
      %v2015 = vlaneseq
      %v2016 = vshrl.u32 %v2015, 7
      %v2017 = vsub.s32 %v2014, %v2016
      %v2018 = vrot.slane %v2011, %v2017
      %v2020 = vadd.f32 %v2006, %v2018
      %v2021 = vmax.f32 %v2020, 0.0
      %v2023 = vcombine.high %v1990, %v1990
      %v2025 = vpack.c.bf16 %v1990, %v1990
      %v2026 = vpack.c.bf16 %v2023, %v2023
      %v2028 = vlaneseq
      %v2029 = vshrl.u32 %v2028, 7
      %v2030 = vsub.s32 0, %v2029
      %v2031 = vrot.slane %v2021, %v2030
      %v2032 = vlaneseq
      %v2033 = vshrl.u32 %v2032, 7
      %v2034 = vsub.s32 2, %v2033
      %v2035 = vrot.slane %v2021, %v2034
      %v2038 = vlaneseq
      %v2039 = vshrl.u32 %v2038, 7
      %v2040 = vsub.s32 0, %v2039
      %v2041 = vrot.slane %v2031, %v2040
      %v2042 = vlaneseq
      %v2043 = vshrl.u32 %v2042, 7
      %v2044 = vsub.s32 0, %v2043
      %v2045 = vrot.slane %v2035, %v2044
      %v2046 = vmul.f32 %v576, %v2041
      %v2047 = vmul.f32 %v576, %v2045
      %v2049 = vsel %vm603, %v2025, 0
      %v2052 = vsel %vm603, %v2026, 0
      %2054 = vmatprep.subr.bf16.mxu0 0
      %2055 = vmatpush1.bf16.msra.mxu0 0
      %2056 = vmatprep.subr.bf16.mxu0 0
      %2057 = vmatpush1.bf16.msra.mxu0 0
      %2058 = vmatprep.subr.bf16.mxu0 0
      %2059 = vmatpush1.bf16.msra.mxu0 0
      %2060 = vmatprep.subr.bf16.mxu0 0
      %2061 = vmatpush1.bf16.msra.mxu0 0
      %2062 = vmatprep.subr.bf16.mxu0 0
      %2063 = vmatpush1.bf16.msra.mxu0 0
      %2064 = vmatprep.subr.bf16.mxu0 0
      %2065 = vmatpush1.bf16.msra.mxu0 0
      %2066 = vmatprep.subr.bf16.mxu0 0
      %2067 = vmatpush1.bf16.msra.mxu0 0
      %2068 = vmatprep.subr.bf16.mxu0 %v2052
      %2069 = vmatpush1.bf16.msra.mxu0 %v2049
      %2070 = vmatprep.subr.bf16.mxu0 0
      %2071 = vmatpush2.bf16.msra.mxu0 0
      %2072 = vmatprep.subr.bf16.mxu0 0
      %2073 = vmatpush2.bf16.msra.mxu0 0
      %2074 = vmatprep.subr.bf16.mxu0 0
      %2075 = vmatpush2.bf16.msra.mxu0 0
      %2076 = vmatprep.subr.bf16.mxu0 0
      %2077 = vmatpush2.bf16.msra.mxu0 0
      %2078 = vmatprep.subr.bf16.mxu0 0
      %2079 = vmatpush2.bf16.msra.mxu0 0
      %2080 = vmatprep.subr.bf16.mxu0 0
      %2081 = vmatpush2.bf16.msra.mxu0 0
      %2082 = vmatprep.subr.bf16.mxu0 0
      %2083 = vmatpush2.bf16.msra.mxu0 0
      %2084 = vmatprep.subr.bf16.mxu0 0
      %2085 = vmatpush2.bf16.msra.mxu0 0
      %2086 = vmatprep.mubr.bf16.mxu0 0
      %2087 = vmatmul.mubr.bf16.gmra.mxu0 %v601
      %v2088 = vpop.f32.mrf.mxu0
      %v2089 = vadd.f32 %v2046, %v2088
      %v2090 = vpop.f32.mrf.mxu0
      %v2091 = vadd.f32 %v2047, %v2090
      %v2092 = vpop.f32.mrf.mxu0
      %v2093 = vpop.f32.mrf.mxu0
      %2094 = vdwg.mxu0
      %v2095 = vlaneseq
      %v2096 = vshrl.u32 %v2095, 7
      %v2097 = vsub.s32 1, %v2096
      %v2098 = vrot.slane %v2021, %v2097
      %v2099 = vlaneseq
      %v2100 = vshrl.u32 %v2099, 7
      %v2101 = vsub.s32 3, %v2100
      %v2102 = vrot.slane %v2021, %v2101
      %v2105 = vlaneseq
      %v2106 = vshrl.u32 %v2105, 7
      %v2107 = vsub.s32 1, %v2106
      %v2108 = vrot.slane %v2098, %v2107
      %v2109 = vlaneseq
      %v2110 = vshrl.u32 %v2109, 7
      %v2111 = vsub.s32 1, %v2110
      %v2112 = vrot.slane %v2102, %v2111
      %v2113 = vmul.f32 %v653, %v2108
      %v2114 = vmul.f32 %v653, %v2112
      %v2115 = vadd.f32 %v2089, %v2113
      %v2116 = vadd.f32 %v2091, %v2114
      %v2117 = vpack.c.bf16 %v2115, %v2115
      %v2118 = vpack.c.bf16 %v2116, %v2116
      %v2121 = vcombine.low %v2117, %v2118
      %v2123 = vunpack.c.l.s4 1983009808
      %v2124 = vunpack.c.0.s8 %v2123
      %v2125 = vlaneseq
      %v2126 = vshrl.u32 %v2125, 7
      %v2127 = vsub.s32 %v2124, %v2126
      %v2128 = vrot.slane %v2121, %v2127
      %s2130 = scalar_lea.vmem %s413, 28
      %2131 = vst [vmem:[%s2130] sm:$0xf] %v2128
      %v2132 = vmul.f32 %v2115, %v695
      %v2133 = vmul.f32 %v2116, %v699
      %v2134 = vsel %vm704, %v2132, 0.0
      %v2135 = vsel %vm704, %v2133, 0.0
      %v2136 = vadd.f32 %v2134, %v2135
      %2137 = vadd.xlane.f32.xlu0 %v2136
      %v2138 = vpop.xlane.xlu0 %2137
      %v2139 = vadd.f32 %v1946, %v2138
      %v2140 = vmul.f32 %v2132, %v2132
      %v2141 = vmul.f32 %v2133, %v2133
      %v2142 = vsel %vm704, %v2140, 0.0
      %v2143 = vsel %vm704, %v2141, 0.0
      %v2144 = vadd.f32 %v2142, %v2143
      %2145 = vadd.xlane.f32.xlu0 %v2144
      %v2146 = vpop.xlane.xlu0 %2145
      %v2147 = vadd.f32 %v1954, %v2146
      %v2148 = vsel %vm936, %v468, %v489
      %v2149 = vsel %vm937, %v469, %v490
      %v2150 = vsel %vm1746, %v448, %v2148
      %v2151 = vsel %vm1747, %v447, %v2149
      %vm2152 = vmand %vm1736, %vm926
      %v2153 = vsel %vm2152, 1, 0
      %v2154 = vlaneseq
      %v2155 = vshrl.u32 %v2154, 7
      %v2156 = vsub.s32 0, %v2155
      %v2157 = vrot.slane %v2153, %v2156
      %v2158 = vlaneseq
      %v2159 = vshrl.u32 %v2158, 7
      %v2160 = vsub.s32 1, %v2159
      %v2161 = vrot.slane %v2153, %v2160
      %vm2162 = vcmp.eq.s32.totalorder %v2157, 1
      %vm2163 = vcmp.eq.s32.totalorder %v2161, 1
      %v2164 = vsel %vm2162, %v440, %v2150
      %v2165 = vsel %vm2163, %v439, %v2151
      %v2168 = vcombine.low %v2164, %v2165
      %v2170 = vsub.f32 %v425, %v2168
      %v2171 = vld [vmem:[%s4] sm:$0xf]
      %2173 = vset.pattern.permute.xlu0 0
      %2174 = vperm.xlu0 %2173, %v2171
      %v2175 = vpop.permute.xlu0 %2174
      %v2177 = vunpack.c.l.s4 839922192
      %v2178 = vunpack.c.0.s8 %v2177
      %v2179 = vlaneseq
      %v2180 = vshrl.u32 %v2179, 7
      %v2181 = vsub.s32 %v2178, %v2180
      %v2182 = vrot.slane %v2175, %v2181
      %v2184 = vmul.f32 %v2170, %v2182
      %v2185 = vld [vmem:[%s5] sm:$0xf]
      %2187 = vset.pattern.permute.xlu0 0
      %2188 = vperm.xlu0 %2187, %v2185
      %v2189 = vpop.permute.xlu0 %2188
      %v2191 = vunpack.c.l.s4 839922192
      %v2192 = vunpack.c.0.s8 %v2191
      %v2193 = vlaneseq
      %v2194 = vshrl.u32 %v2193, 7
      %v2195 = vsub.s32 %v2192, %v2194
      %v2196 = vrot.slane %v2189, %v2195
      %v2198 = vadd.f32 %v2184, %v2196
      %v2199 = vmax.f32 %v2198, 0.0
      %s2200 = scalar_lea.vmem %s2, 32
      %v2201 = vld [vmem:[%s2200] sm:$0xf]
      %v2202 = vld [vmem:[%s6] sm:$0x3]
      %2204 = vset.pattern.permute.xlu0 0
      %2205 = vperm.xlu0 %2204, %v2202
      %v2206 = vpop.permute.xlu0 %2205
      %v2208 = vunpack.c.l.s4 269488144
      %v2209 = vunpack.c.0.s8 %v2208
      %v2210 = vlaneseq
      %v2211 = vshrl.u32 %v2210, 7
      %v2212 = vsub.s32 %v2209, %v2211
      %v2213 = vrot.slane %v2206, %v2212
      %v2215 = vmul.f32 %v2201, %v2213
      %v2216 = vld [vmem:[%s7] sm:$0x3]
      %2218 = vset.pattern.permute.xlu0 0
      %2219 = vperm.xlu0 %2218, %v2216
      %v2220 = vpop.permute.xlu0 %2219
      %v2222 = vunpack.c.l.s4 269488144
      %v2223 = vunpack.c.0.s8 %v2222
      %v2224 = vlaneseq
      %v2225 = vshrl.u32 %v2224, 7
      %v2226 = vsub.s32 %v2223, %v2225
      %v2227 = vrot.slane %v2220, %v2226
      %v2229 = vadd.f32 %v2215, %v2227
      %v2230 = vmax.f32 %v2229, 0.0
      %v2232 = vcombine.high %v2199, %v2199
      %v2234 = vpack.c.bf16 %v2199, %v2199
      %v2235 = vpack.c.bf16 %v2232, %v2232
      %v2237 = vlaneseq
      %v2238 = vshrl.u32 %v2237, 7
      %v2239 = vsub.s32 0, %v2238
      %v2240 = vrot.slane %v2230, %v2239
      %v2241 = vlaneseq
      %v2242 = vshrl.u32 %v2241, 7
      %v2243 = vsub.s32 2, %v2242
      %v2244 = vrot.slane %v2230, %v2243
      %v2247 = vlaneseq
      %v2248 = vshrl.u32 %v2247, 7
      %v2249 = vsub.s32 0, %v2248
      %v2250 = vrot.slane %v2240, %v2249
      %v2251 = vlaneseq
      %v2252 = vshrl.u32 %v2251, 7
      %v2253 = vsub.s32 0, %v2252
      %v2254 = vrot.slane %v2244, %v2253
      %v2255 = vmul.f32 %v576, %v2250
      %v2256 = vmul.f32 %v576, %v2254
      %v2258 = vsel %vm603, %v2234, 0
      %v2261 = vsel %vm603, %v2235, 0
      %2263 = vmatprep.subr.bf16.mxu0 0
      %2264 = vmatpush1.bf16.msra.mxu0 0
      %2265 = vmatprep.subr.bf16.mxu0 0
      %2266 = vmatpush1.bf16.msra.mxu0 0
      %2267 = vmatprep.subr.bf16.mxu0 0
      %2268 = vmatpush1.bf16.msra.mxu0 0
      %2269 = vmatprep.subr.bf16.mxu0 0
      %2270 = vmatpush1.bf16.msra.mxu0 0
      %2271 = vmatprep.subr.bf16.mxu0 0
      %2272 = vmatpush1.bf16.msra.mxu0 0
      %2273 = vmatprep.subr.bf16.mxu0 0
      %2274 = vmatpush1.bf16.msra.mxu0 0
      %2275 = vmatprep.subr.bf16.mxu0 0
      %2276 = vmatpush1.bf16.msra.mxu0 0
      %2277 = vmatprep.subr.bf16.mxu0 %v2261
      %2278 = vmatpush1.bf16.msra.mxu0 %v2258
      %2279 = vmatprep.subr.bf16.mxu0 0
      %2280 = vmatpush2.bf16.msra.mxu0 0
      %2281 = vmatprep.subr.bf16.mxu0 0
      %2282 = vmatpush2.bf16.msra.mxu0 0
      %2283 = vmatprep.subr.bf16.mxu0 0
      %2284 = vmatpush2.bf16.msra.mxu0 0
      %2285 = vmatprep.subr.bf16.mxu0 0
      %2286 = vmatpush2.bf16.msra.mxu0 0
      %2287 = vmatprep.subr.bf16.mxu0 0
      %2288 = vmatpush2.bf16.msra.mxu0 0
      %2289 = vmatprep.subr.bf16.mxu0 0
      %2290 = vmatpush2.bf16.msra.mxu0 0
      %2291 = vmatprep.subr.bf16.mxu0 0
      %2292 = vmatpush2.bf16.msra.mxu0 0
      %2293 = vmatprep.subr.bf16.mxu0 0
      %2294 = vmatpush2.bf16.msra.mxu0 0
      %2295 = vmatprep.mubr.bf16.mxu0 0
      %2296 = vmatmul.mubr.bf16.gmra.mxu0 %v601
      %v2297 = vpop.f32.mrf.mxu0
      %v2298 = vadd.f32 %v2255, %v2297
      %v2299 = vpop.f32.mrf.mxu0
      %v2300 = vadd.f32 %v2256, %v2299
      %v2301 = vpop.f32.mrf.mxu0
      %v2302 = vpop.f32.mrf.mxu0
      %2303 = vdwg.mxu0
      %v2304 = vlaneseq
      %v2305 = vshrl.u32 %v2304, 7
      %v2306 = vsub.s32 1, %v2305
      %v2307 = vrot.slane %v2230, %v2306
      %v2308 = vlaneseq
      %v2309 = vshrl.u32 %v2308, 7
      %v2310 = vsub.s32 3, %v2309
      %v2311 = vrot.slane %v2230, %v2310
      %v2314 = vlaneseq
      %v2315 = vshrl.u32 %v2314, 7
      %v2316 = vsub.s32 1, %v2315
      %v2317 = vrot.slane %v2307, %v2316
      %v2318 = vlaneseq
      %v2319 = vshrl.u32 %v2318, 7
      %v2320 = vsub.s32 1, %v2319
      %v2321 = vrot.slane %v2311, %v2320
      %v2322 = vmul.f32 %v653, %v2317
      %v2323 = vmul.f32 %v653, %v2321
      %v2324 = vadd.f32 %v2298, %v2322
      %v2325 = vadd.f32 %v2300, %v2323
      %v2326 = vpack.c.bf16 %v2324, %v2324
      %v2327 = vpack.c.bf16 %v2325, %v2325
      %v2330 = vcombine.low %v2326, %v2327
      %v2332 = vunpack.c.l.s4 1983009808
      %v2333 = vunpack.c.0.s8 %v2332
      %v2334 = vlaneseq
      %v2335 = vshrl.u32 %v2334, 7
      %v2336 = vsub.s32 %v2333, %v2335
      %v2337 = vrot.slane %v2330, %v2336
      %s2339 = scalar_lea.vmem %s413, 32
      %2340 = vst [vmem:[%s2339] sm:$0xf] %v2337
      %v2341 = vmul.f32 %v2324, %v695
      %v2342 = vmul.f32 %v2325, %v699
      %v2343 = vsel %vm704, %v2341, 0.0
      %v2344 = vsel %vm704, %v2342, 0.0
      %v2345 = vadd.f32 %v2343, %v2344
      %2346 = vadd.xlane.f32.xlu0 %v2345
      %v2347 = vpop.xlane.xlu0 %2346
      %v2348 = vadd.f32 %v2139, %v2347
      %v2349 = vmul.f32 %v2341, %v2341
      %v2350 = vmul.f32 %v2342, %v2342
      %v2351 = vsel %vm704, %v2349, 0.0
      %v2352 = vsel %vm704, %v2350, 0.0
      %v2353 = vadd.f32 %v2351, %v2352
      %2354 = vadd.xlane.f32.xlu0 %v2353
      %v2355 = vpop.xlane.xlu0 %2354
      %v2356 = vadd.f32 %v2147, %v2355
      %vm2357 = vcmask 3072
      %2358 = vst.msk [vmem:[%s417] sm:$0xf] %vm2357, %v2348
      %vm2359 = vcmask 11272
      %2360 = vst.msk [vmem:[%s417] sm:$0xf] %vm2359, %v2356
      %p2361 = scmp.lt.s32.totalorder %s23, 1
      %s2362 = scalar_select %p2361, %s23, 1
      %s2363 = smul.addr %s2362, 18
      %s2364 = smul.addr %s2363, 2
      %s2365 = scalar_lea.vmem %s10, %s2364
      %p2366 = scmp.lt.s32.totalorder %s23, 1
      %s2367 = scalar_select %p2366, %s23, 1
      %s2368 = smul.addr %s2367, 4
      %s2369 = scalar_lea.vmem %s11, %s2368
      // Predicated region
      $region61: #{bottleneck_forward.9} parent=59 // pred_check
        %p2370 = pneg %p261
      $region62: #{bottleneck_forward.9} parent=59 // pred_check_branch
        %2372 = sbr.rel (%p2370) target = $region64
      $region63: #{bottleneck_forward.9} parent=59 // pred_region
        _
      $region64: #{bottleneck_forward.9} parent=59 // pred_fallthru
        _
      // Predicated region
      $region65: #{bottleneck_forward.9} parent=59 // pred_check
        %p2373 = pneg %p287
      $region66: #{bottleneck_forward.9} parent=59 // pred_check_branch
        %2375 = sbr.rel (%p2373) target = $region68
      $region67: #{bottleneck_forward.9} parent=59 // pred_region
        _
      $region68: #{bottleneck_forward.9} parent=59 // pred_fallthru
        _
    $region60: #{bottleneck_forward.9} parent=5 // pred_fallthru
      _
    %p2376 = scmp.le.s32.totalorder 2, %s18
    // Predicated region
    $region69: #{bottleneck_forward.9} parent=5 // pred_check
      %p2377 = pneg %p2376
    $region70: #{bottleneck_forward.9} parent=5 // pred_check_branch
      %2379 = sbr.rel (%p2377) target = $region72
    $region71: #{bottleneck_forward.9} parent=5 // pred_region
      %s2380 = ssub.s32 %s18, 2
      // Predicated region
      $region73: #{bottleneck_forward.9} parent=71 // pred_check
        %p2381 = pneg %p267
      $region74: #{bottleneck_forward.9} parent=71 // pred_check_branch
        %2383 = sbr.rel (%p2381) target = $region76
      $region75: #{bottleneck_forward.9} parent=71 // pred_region
        %p2384 = scmp.lt.s32.totalorder %s24, 1
        %s2385 = scalar_select %p2384, %s24, 1
        %s2386 = smul.addr %s2385, 18
        %s2387 = smul.addr %s2386, 2
        %s2388 = scalar_lea.vmem %s10, %s2387
      $region76: #{bottleneck_forward.9} parent=71 // pred_fallthru
        _
      // Predicated region
      $region77: #{bottleneck_forward.9} parent=71 // pred_check
        %p2389 = pneg %p293
      $region78: #{bottleneck_forward.9} parent=71 // pred_check_branch
        %2391 = sbr.rel (%p2389) target = $region80
      $region79: #{bottleneck_forward.9} parent=71 // pred_region
        %p2392 = scmp.lt.s32.totalorder %s24, 1
        %s2393 = scalar_select %p2392, %s24, 1
        %s2394 = smul.addr %s2393, 4
        %s2395 = scalar_lea.vmem %s11, %s2394
      $region80: #{bottleneck_forward.9} parent=71 // pred_fallthru
        _
    $region72: #{bottleneck_forward.9} parent=5 // pred_fallthru
      _
  $region6: #{bottleneck_forward.9} parent=0 // loop_footer
    %s22 = sadd.s32 1, %s18
  $region7: #{bottleneck_forward.9} parent=0 // loop_footer_branch
    %17 = sbr.rel target = $region3
  $region8: #{bottleneck_forward.9} parent=0 // loop_exit
    _

// kernel: bottleneck_forward.10
$region0: #{bottleneck_forward.10}
  #allocation0 [shape = 'u32[]', space=smem, size = 0x4, offset = 0x4, fixed_abs, tag = 'smem constant byte address 0x4 - core index']
  #allocation1 [shape = 'u32[144,128]{1,0:T(1,128)}', space=vmem, size = 0x12000, scoped, tag = 'internal scratch']
  %s0 = inlined_call_operand.vmem [shape: bf16[2,9,4,256], index: 0, kind: input, shape index: {}]
  %s1 = inlined_call_operand.vmem [shape: f32[2,16,256], index: 1, kind: input, shape index: {}]
  %s2 = inlined_call_operand.vmem [shape: s32[2,256], index: 2, kind: input, shape index: {}]
  %s3 = inlined_call_operand.vmem [shape: f32[4,1], index: 3, kind: input, shape index: {}]
  %s4 = inlined_call_operand.vmem [shape: f32[4,1], index: 4, kind: input, shape index: {}]
  %s5 = inlined_call_operand.vmem [shape: bf16[2,4], index: 5, kind: input, shape index: {}]
  %s6 = inlined_call_operand.vmem [shape: f32[2,1], index: 6, kind: input, shape index: {}]
  %s7 = inlined_call_operand.vmem [shape: f32[2,16,256], index: 7, kind: output, shape index: {0}]
  %s8 = inlined_call_operand.vmem [shape: f32[2,16,2], index: 8, kind: output, shape index: {1}]
  %9 = xla_tuple %s7, %s8
  %s10 = sld [smem:[#allocation0]]
  $region69: #{bottleneck_forward.10} parent=0
    _
  %s12 = ssub.s32 1, %s10
  %s13 = scalar_select 0, %s12, %s10
  loop: start=0, step=1, limit=4
  $region2: #{bottleneck_forward.10} parent=0 // loop_pre_header
    _
  $region3: #{bottleneck_forward.10} parent=0 // loop_header
    %s15 = sphi 0, %s19
    %p16 = scmp.ge.s32.totalorder %s15, 4
    %s25 = sphi 0, %s27
    %s28 = sphi 0, %s25
    %s29 = sphi 0, %s28
    %s45 = sphi 0, %s29
    %s51 = sphi 0, %s53
    %s54 = sphi 0, %s51
    %s55 = sphi 0, %s54
    %s71 = sphi 0, %s55
    %s75 = sphi 0, %s75
    %s77 = sphi 0, %s75
    %s78 = sphi 0, %s77
    %s92 = sphi 0, %s78
    %s96 = sphi 0, %s96
    %s98 = sphi 0, %s96
    %s99 = sphi 0, %s98
    %s113 = sphi 0, %s99
    %s117 = sphi 0, %s117
    %s119 = sphi 0, %s117
    %s120 = sphi 0, %s119
    %s134 = sphi 0, %s120
    %s138 = sphi 0, %s138
    %s140 = sphi 0, %s138
    %s141 = sphi 0, %s140
    %s155 = sphi 0, %s141
    %s159 = sphi 0, %s159
    %s161 = sphi 0, %s159
    %s162 = sphi 0, %s161
    %s176 = sphi 0, %s162
    %s182 = sphi 0, %s184
    %s185 = sphi 0, %s182
    %s186 = sphi 0, %s185
    %s202 = sphi 0, %s186
    %s208 = sphi 0, %s210
    %s211 = sphi 0, %s208
    %s212 = sphi 0, %s211
    %s228 = sphi 0, %s212
  $region4: #{bottleneck_forward.10} parent=0 // loop_header_branch
    %18 = sbr.rel (%p16) target = $region8
  $region5: #{bottleneck_forward.10} parent=0 // loop_body
    %s20 = ssub.s32 %s15, 1
    %s21 = ssub.s32 %s15, 2
    %s22 = sadd.s32 %s15, 1
    %s23 = ssub.s32 %s15, %s22
    %p24 = scmp.eq.s32.totalorder %s23, 0
    %s26 = sadd.s32 %s25, 1
    %s27 = scalar_select %p24, %s25, %s26
    %p30 = pneg %p24
    %p31 = scmp.eq.s32.totalorder %s15, 1
    %p32 = por %p30, %p31
    %p33 = scmp.ne.s32.totalorder %s25, %s28
    %p34 = scmp.eq.s32.totalorder %s15, 0
    %p35 = por %p33, %p34
    %p36 = scmp.ne.s32.totalorder %s25, %s28
    %p37 = scmp.eq.s32.totalorder %s20, 1
    %p38 = por %p36, %p37
    %p39 = scmp.ne.s32.totalorder %s28, %s29
    %p40 = scmp.eq.s32.totalorder %s20, 0
    %p41 = por %p39, %p40
    %p42 = scmp.ne.s32.totalorder %s28, %s29
    %p43 = scmp.eq.s32.totalorder %s21, 1
    %p44 = por %p42, %p43
    %p46 = scmp.ne.s32.totalorder %s29, %s45
    %p47 = scmp.eq.s32.totalorder %s21, 0
    %p48 = por %p46, %p47
    %s49 = ssub.s32 %s15, %s22
    %p50 = scmp.eq.s32.totalorder %s49, 0
    %s52 = sadd.s32 %s51, 1
    %s53 = scalar_select %p50, %s51, %s52
    %p56 = pneg %p50
    %p57 = scmp.eq.s32.totalorder %s15, 1
    %p58 = por %p56, %p57
    %p59 = scmp.ne.s32.totalorder %s51, %s54
    %p60 = scmp.eq.s32.totalorder %s15, 0
    %p61 = por %p59, %p60
    %p62 = scmp.ne.s32.totalorder %s51, %s54
    %p63 = scmp.eq.s32.totalorder %s20, 1
    %p64 = por %p62, %p63
    %p65 = scmp.ne.s32.totalorder %s54, %s55
    %p66 = scmp.eq.s32.totalorder %s20, 0
    %p67 = por %p65, %p66
    %p68 = scmp.ne.s32.totalorder %s54, %s55
    %p69 = scmp.eq.s32.totalorder %s21, 1
    %p70 = por %p68, %p69
    %p72 = scmp.ne.s32.totalorder %s55, %s71
    %p73 = scmp.eq.s32.totalorder %s21, 0
    %p74 = por %p72, %p73
    %s76 = sadd.s32 %s75, 1
    %p79 = scmp.eq.s32.totalorder %s15, 1
    %p80 = scmp.ne.s32.totalorder %s75, %s77
    %p81 = scmp.eq.s32.totalorder %s15, 0
    %p82 = por %p80, %p81
    %p83 = scmp.ne.s32.totalorder %s75, %s77
    %p84 = scmp.eq.s32.totalorder %s20, 1
    %p85 = por %p83, %p84
    %p86 = scmp.ne.s32.totalorder %s77, %s78
    %p87 = scmp.eq.s32.totalorder %s20, 0
    %p88 = por %p86, %p87
    %p89 = scmp.ne.s32.totalorder %s77, %s78
    %p90 = scmp.eq.s32.totalorder %s21, 1
    %p91 = por %p89, %p90
    %p93 = scmp.ne.s32.totalorder %s78, %s92
    %p94 = scmp.eq.s32.totalorder %s21, 0
    %p95 = por %p93, %p94
    %s97 = sadd.s32 %s96, 1
    %p100 = scmp.eq.s32.totalorder %s15, 1
    %p101 = scmp.ne.s32.totalorder %s96, %s98
    %p102 = scmp.eq.s32.totalorder %s15, 0
    %p103 = por %p101, %p102
    %p104 = scmp.ne.s32.totalorder %s96, %s98
    %p105 = scmp.eq.s32.totalorder %s20, 1
    %p106 = por %p104, %p105
    %p107 = scmp.ne.s32.totalorder %s98, %s99
    %p108 = scmp.eq.s32.totalorder %s20, 0
    %p109 = por %p107, %p108
    %p110 = scmp.ne.s32.totalorder %s98, %s99
    %p111 = scmp.eq.s32.totalorder %s21, 1
    %p112 = por %p110, %p111
    %p114 = scmp.ne.s32.totalorder %s99, %s113
    %p115 = scmp.eq.s32.totalorder %s21, 0
    %p116 = por %p114, %p115
    %s118 = sadd.s32 %s117, 1
    %p121 = scmp.eq.s32.totalorder %s15, 1
    %p122 = scmp.ne.s32.totalorder %s117, %s119
    %p123 = scmp.eq.s32.totalorder %s15, 0
    %p124 = por %p122, %p123
    %p125 = scmp.ne.s32.totalorder %s117, %s119
    %p126 = scmp.eq.s32.totalorder %s20, 1
    %p127 = por %p125, %p126
    %p128 = scmp.ne.s32.totalorder %s119, %s120
    %p129 = scmp.eq.s32.totalorder %s20, 0
    %p130 = por %p128, %p129
    %p131 = scmp.ne.s32.totalorder %s119, %s120
    %p132 = scmp.eq.s32.totalorder %s21, 1
    %p133 = por %p131, %p132
    %p135 = scmp.ne.s32.totalorder %s120, %s134
    %p136 = scmp.eq.s32.totalorder %s21, 0
    %p137 = por %p135, %p136
    %s139 = sadd.s32 %s138, 1
    %p142 = scmp.eq.s32.totalorder %s15, 1
    %p143 = scmp.ne.s32.totalorder %s138, %s140
    %p144 = scmp.eq.s32.totalorder %s15, 0
    %p145 = por %p143, %p144
    %p146 = scmp.ne.s32.totalorder %s138, %s140
    %p147 = scmp.eq.s32.totalorder %s20, 1
    %p148 = por %p146, %p147
    %p149 = scmp.ne.s32.totalorder %s140, %s141
    %p150 = scmp.eq.s32.totalorder %s20, 0
    %p151 = por %p149, %p150
    %p152 = scmp.ne.s32.totalorder %s140, %s141
    %p153 = scmp.eq.s32.totalorder %s21, 1
    %p154 = por %p152, %p153
    %p156 = scmp.ne.s32.totalorder %s141, %s155
    %p157 = scmp.eq.s32.totalorder %s21, 0
    %p158 = por %p156, %p157
    %s160 = sadd.s32 %s159, 1
    %p163 = scmp.eq.s32.totalorder %s15, 1
    %p164 = scmp.ne.s32.totalorder %s159, %s161
    %p165 = scmp.eq.s32.totalorder %s15, 0
    %p166 = por %p164, %p165
    %p167 = scmp.ne.s32.totalorder %s159, %s161
    %p168 = scmp.eq.s32.totalorder %s20, 1
    %p169 = por %p167, %p168
    %p170 = scmp.ne.s32.totalorder %s161, %s162
    %p171 = scmp.eq.s32.totalorder %s20, 0
    %p172 = por %p170, %p171
    %p173 = scmp.ne.s32.totalorder %s161, %s162
    %p174 = scmp.eq.s32.totalorder %s21, 1
    %p175 = por %p173, %p174
    %p177 = scmp.ne.s32.totalorder %s162, %s176
    %p178 = scmp.eq.s32.totalorder %s21, 0
    %p179 = por %p177, %p178
    %s180 = ssub.s32 %s15, %s22
    %p181 = scmp.eq.s32.totalorder %s180, 0
    %s183 = sadd.s32 %s182, 1
    %s184 = scalar_select %p181, %s182, %s183
    %p187 = pneg %p181
    %p188 = scmp.eq.s32.totalorder %s15, 1
    %p189 = por %p187, %p188
    %p190 = scmp.ne.s32.totalorder %s182, %s185
    %p191 = scmp.eq.s32.totalorder %s15, 0
    %p192 = por %p190, %p191
    %p193 = scmp.ne.s32.totalorder %s182, %s185
    %p194 = scmp.eq.s32.totalorder %s20, 1
    %p195 = por %p193, %p194
    %p196 = scmp.ne.s32.totalorder %s185, %s186
    %p197 = scmp.eq.s32.totalorder %s20, 0
    %p198 = por %p196, %p197
    %p199 = scmp.ne.s32.totalorder %s185, %s186
    %p200 = scmp.eq.s32.totalorder %s21, 1
    %p201 = por %p199, %p200
    %p203 = scmp.ne.s32.totalorder %s186, %s202
    %p204 = scmp.eq.s32.totalorder %s21, 0
    %p205 = por %p203, %p204
    %s206 = ssub.s32 %s15, %s22
    %p207 = scmp.eq.s32.totalorder %s206, 0
    %s209 = sadd.s32 %s208, 1
    %s210 = scalar_select %p207, %s208, %s209
    %p213 = pneg %p207
    %p214 = scmp.eq.s32.totalorder %s15, 1
    %p215 = por %p213, %p214
    %p216 = scmp.ne.s32.totalorder %s208, %s211
    %p217 = scmp.eq.s32.totalorder %s15, 0
    %p218 = por %p216, %p217
    %p219 = scmp.ne.s32.totalorder %s208, %s211
    %p220 = scmp.eq.s32.totalorder %s20, 1
    %p221 = por %p219, %p220
    %p222 = scmp.ne.s32.totalorder %s211, %s212
    %p223 = scmp.eq.s32.totalorder %s20, 0
    %p224 = por %p222, %p223
    %p225 = scmp.ne.s32.totalorder %s211, %s212
    %p226 = scmp.eq.s32.totalorder %s21, 1
    %p227 = por %p225, %p226
    %p229 = scmp.ne.s32.totalorder %s212, %s228
    %p230 = scmp.eq.s32.totalorder %s21, 0
    %p231 = por %p229, %p230
    %p232 = scmp.le.s32.totalorder 1, %s15
    %p233 = scmp.lt.s32.totalorder %s15, 3
    %p234 = pnand %p232, %p233
    %p235 = pneg %p234
    // Predicated region
    $region9: #{bottleneck_forward.10} parent=5 // pred_check
      _
    $region10: #{bottleneck_forward.10} parent=5 // pred_check_branch
      %237 = sbr.rel (%p234) target = $region12
    $region11: #{bottleneck_forward.10} parent=5 // pred_region
      %s238 = ssub.s32 %s15, 1
      // Predicated region
      $region13: #{bottleneck_forward.10} parent=11 // pred_check
        %p239 = pneg %p88
      $region14: #{bottleneck_forward.10} parent=11 // pred_check_branch
        %241 = sbr.rel (%p239) target = $region16
      $region15: #{bottleneck_forward.10} parent=11 // pred_region
        _
      $region16: #{bottleneck_forward.10} parent=11 // pred_fallthru
        _
      // Predicated region
      $region17: #{bottleneck_forward.10} parent=11 // pred_check
        %p242 = pneg %p109
      $region18: #{bottleneck_forward.10} parent=11 // pred_check_branch
        %244 = sbr.rel (%p242) target = $region20
      $region19: #{bottleneck_forward.10} parent=11 // pred_region
        _
      $region20: #{bottleneck_forward.10} parent=11 // pred_fallthru
        _
      // Predicated region
      $region21: #{bottleneck_forward.10} parent=11 // pred_check
        %p245 = pneg %p130
      $region22: #{bottleneck_forward.10} parent=11 // pred_check_branch
        %247 = sbr.rel (%p245) target = $region24
      $region23: #{bottleneck_forward.10} parent=11 // pred_region
        _
      $region24: #{bottleneck_forward.10} parent=11 // pred_fallthru
        _
      // Predicated region
      $region25: #{bottleneck_forward.10} parent=11 // pred_check
        %p248 = pneg %p151
      $region26: #{bottleneck_forward.10} parent=11 // pred_check_branch
        %250 = sbr.rel (%p248) target = $region28
      $region27: #{bottleneck_forward.10} parent=11 // pred_region
        _
      $region28: #{bottleneck_forward.10} parent=11 // pred_fallthru
        _
      // Predicated region
      $region29: #{bottleneck_forward.10} parent=11 // pred_check
        %p251 = pneg %p172
      $region30: #{bottleneck_forward.10} parent=11 // pred_check_branch
        %253 = sbr.rel (%p251) target = $region32
      $region31: #{bottleneck_forward.10} parent=11 // pred_region
        _
      $region32: #{bottleneck_forward.10} parent=11 // pred_fallthru
        _
    $region12: #{bottleneck_forward.10} parent=5 // pred_fallthru
      _
    %p254 = scmp.lt.s32.totalorder %s15, 2
    // Predicated region
    $region33: #{bottleneck_forward.10} parent=5 // pred_check
      %p255 = pneg %p254
    $region34: #{bottleneck_forward.10} parent=5 // pred_check_branch
      %257 = sbr.rel (%p255) target = $region36
    $region35: #{bottleneck_forward.10} parent=5 // pred_region
      // Predicated region
      $region37: #{bottleneck_forward.10} parent=35 // pred_check
        %p258 = pneg %p35
      $region38: #{bottleneck_forward.10} parent=35 // pred_check_branch
        %260 = sbr.rel (%p258) target = $region40
      $region39: #{bottleneck_forward.10} parent=35 // pred_region
        %p261 = scmp.lt.s32.totalorder %s15, 1
        %s262 = scalar_select %p261, %s15, 1
        %s263 = smul.addr %s262, 18
        %s264 = smul.addr %s263, 2
        %s265 = scalar_lea.vmem %s0, %s264
      $region40: #{bottleneck_forward.10} parent=35 // pred_fallthru
        _
      // Predicated region
      $region41: #{bottleneck_forward.10} parent=35 // pred_check
        %p266 = pneg %p61
      $region42: #{bottleneck_forward.10} parent=35 // pred_check_branch
        %268 = sbr.rel (%p266) target = $region44
      $region43: #{bottleneck_forward.10} parent=35 // pred_region
        %p269 = scmp.lt.s32.totalorder %s15, 1
        %s270 = scalar_select %p269, %s15, 1
        %s271 = smul.addr %s270, 4
        %s272 = smul.addr %s271, 8
        %s273 = scalar_lea.vmem %s1, %s272
      $region44: #{bottleneck_forward.10} parent=35 // pred_fallthru
        _
    $region36: #{bottleneck_forward.10} parent=5 // pred_fallthru
      _
    %p274 = scmp.le.s32.totalorder 1, %s15
    %p275 = scmp.lt.s32.totalorder %s15, 3
    %p276 = pnand %p274, %p275
    %p277 = pneg %p276
    // Predicated region
    $region45: #{bottleneck_forward.10} parent=5 // pred_check
      _
    $region46: #{bottleneck_forward.10} parent=5 // pred_check_branch
      %279 = sbr.rel (%p276) target = $region48
    $region47: #{bottleneck_forward.10} parent=5 // pred_region
      %s280 = ssub.s32 %s15, 1
      %p281 = scmp.lt.s32.totalorder %s20, 1
      %s282 = scalar_select %p281, %s20, 1
      %s283 = smul.addr %s282, 18
      %s284 = smul.addr %s283, 2
      %s285 = scalar_lea.vmem %s0, %s284
      %p286 = pneg %p41
      %p287 = pneg %p38
      %p288 = scmp.lt.s32.totalorder %s20, 1
      %s289 = scalar_select %p288, %s20, 1
      %s290 = smul.addr %s289, 4
      %s291 = smul.addr %s290, 8
      %s292 = scalar_lea.vmem %s1, %s291
      %p293 = pneg %p67
      %p294 = pneg %p64
      %p295 = pneg %p88
      %p296 = pneg %p85
      %p297 = pneg %p109
      %p298 = pneg %p106
      %p299 = pneg %p130
      %p300 = pneg %p127
      %p301 = pneg %p151
      %p302 = pneg %p148
      %p303 = pneg %p172
      %p304 = pneg %p169
      %p305 = pneg %p198
      %p306 = pneg %p195
      %p307 = scmp.lt.s32.totalorder %s20, 1
      %s308 = scalar_select %p307, %s20, 1
      %s309 = smul.addr %s308, 4
      %s310 = smul.addr %s309, 8
      %s311 = scalar_lea.vmem %s7, %s310
      %p312 = pneg %p224
      %p313 = pneg %p221
      %p314 = scmp.lt.s32.totalorder %s20, 1
      %s315 = scalar_select %p314, %s20, 1
      %s316 = smul.addr %s315, 2
      %s317 = smul.addr %s316, 8
      %s318 = scalar_lea.vmem %s8, %s317
      %p319 = scmp.lt.s32.totalorder %s20, 1
      %s320 = scalar_select %p319, %s20, 1
      %s321 = smul.addr %s320, 18
      %s322 = smul.addr %s321, 2
      %s323 = scalar_lea.vmem %s0, %s322
      %p324 = scmp.lt.s32.totalorder %s20, 1
      %s325 = scalar_select %p324, %s20, 1
      %s326 = smul.addr %s325, 4
      %s327 = smul.addr %s326, 8
      %s328 = scalar_lea.vmem %s1, %s327
      %p329 = scmp.lt.s32.totalorder %s20, 1
      %s330 = scalar_select %p329, %s20, 1
      %s331 = smul.addr %s330, 4
      %s332 = smul.addr %s331, 8
      %s333 = scalar_lea.vmem %s7, %s332
      %p334 = scmp.lt.s32.totalorder %s20, 1
      %s335 = scalar_select %p334, %s20, 1
      %s336 = smul.addr %s335, 2
      %s337 = smul.addr %s336, 8
      %s338 = scalar_lea.vmem %s8, %s337
      %v340 = vld [vmem:[%s2] ss:$2 sm:$0x3]
      %s341 = scalar_lea.vmem %s2, 1
      %v342 = vld [vmem:[%s341] ss:$2 sm:$0x3]
      %vm343 = vcmp.ge.s32.totalorder %v340, 0
      %v344 = vsel %vm343, 1, 0
      %v345 = vcvt.s32.f32 %v344
      %v346 = vld [vmem:[%s328] sm:$0xff]
      %v347 = vld [vmem:[%s328 + $0x8] sm:$0xff]
      %v348 = vld [vmem:[%s328 + $0x10] sm:$0xff]
      %v349 = vld [vmem:[%s328 + $0x18] sm:$0xff]
      %v350 = vld [vmem:[%s5] sm:$0x1]
      %v351 = vld [vmem:[%s6] sm:$0x3]
      %v352 = vld [vmem:[%s323] sm:$0xf]
      %v353 = vunpack.c.l.bf16 %v352
      %v354 = vld [vmem:[%s3] sm:$0xf]
      %356 = vset.pattern.permute.xlu0 0
      %357 = vperm.xlu0 %356, %v354
      %v358 = vpop.permute.xlu0 %357
      %v360 = vunpack.c.l.s4 839922192
      %v361 = vunpack.c.0.s8 %v360
      %v362 = vlaneseq
      %v363 = vshrl.u32 %v362, 7
      %v364 = vsub.s32 %v361, %v363
      %v365 = vrot.slane %v358, %v364
      %v367 = vmul.f32 %v353, %v365
      %v368 = vld [vmem:[%s4] sm:$0xf]
      %370 = vset.pattern.permute.xlu0 0
      %371 = vperm.xlu0 %370, %v368
      %v372 = vpop.permute.xlu0 %371
      %v374 = vunpack.c.l.s4 839922192
      %v375 = vunpack.c.0.s8 %v374
      %v376 = vlaneseq
      %v377 = vshrl.u32 %v376, 7
      %v378 = vsub.s32 %v375, %v377
      %v379 = vrot.slane %v372, %v378
      %v381 = vadd.f32 %v367, %v379
      %v382 = vmax.f32 %v381, 0.0
      %v384 = vcombine.high %v382, %v382
      %v386 = vpack.c.bf16 %v382, %v382
      %v387 = vpack.c.bf16 %v384, %v384
      %389 = vset.pattern.permute.xlu0 0
      %390 = vperm.xlu0 %389, %v351
      %v391 = vpop.permute.xlu0 %390
      %vm393 = vcmask 31744
      %v395 = vsel %vm393, %v350, 0
      %vm397 = vcmask 1041408
      %v399 = vsel %vm397, %v386, 0
      %v402 = vsel %vm397, %v387, 0
      %404 = vmatprep.subr.bf16.mxu0 0
      %405 = vmatpush1.bf16.msra.mxu0 0
      %406 = vmatprep.subr.bf16.mxu0 0
      %407 = vmatpush1.bf16.msra.mxu0 0
      %408 = vmatprep.subr.bf16.mxu0 0
      %409 = vmatpush1.bf16.msra.mxu0 0
      %410 = vmatprep.subr.bf16.mxu0 0
      %411 = vmatpush1.bf16.msra.mxu0 0
      %412 = vmatprep.subr.bf16.mxu0 0
      %413 = vmatpush1.bf16.msra.mxu0 0
      %414 = vmatprep.subr.bf16.mxu0 0
      %415 = vmatpush1.bf16.msra.mxu0 0
      %416 = vmatprep.subr.bf16.mxu0 0
      %417 = vmatpush1.bf16.msra.mxu0 0
      %418 = vmatprep.subr.bf16.mxu0 %v402
      %419 = vmatpush1.bf16.msra.mxu0 %v399
      %420 = vmatprep.subr.bf16.mxu0 0
      %421 = vmatpush2.bf16.msra.mxu0 0
      %422 = vmatprep.subr.bf16.mxu0 0
      %423 = vmatpush2.bf16.msra.mxu0 0
      %424 = vmatprep.subr.bf16.mxu0 0
      %425 = vmatpush2.bf16.msra.mxu0 0
      %426 = vmatprep.subr.bf16.mxu0 0
      %427 = vmatpush2.bf16.msra.mxu0 0
      %428 = vmatprep.subr.bf16.mxu0 0
      %429 = vmatpush2.bf16.msra.mxu0 0
      %430 = vmatprep.subr.bf16.mxu0 0
      %431 = vmatpush2.bf16.msra.mxu0 0
      %432 = vmatprep.subr.bf16.mxu0 0
      %433 = vmatpush2.bf16.msra.mxu0 0
      %434 = vmatprep.subr.bf16.mxu0 0
      %435 = vmatpush2.bf16.msra.mxu0 0
      %436 = vmatprep.mubr.bf16.mxu0 0
      %437 = vmatmul.mubr.bf16.gmra.mxu0 %v395
      %v438 = vpop.f32.mrf.mxu0
      %v439 = vadd.f32 %v391, %v438
      %v440 = vpop.f32.mrf.mxu0
      %v441 = vadd.f32 %v391, %v440
      %v442 = vpop.f32.mrf.mxu0
      %v443 = vpop.f32.mrf.mxu0
      %444 = vdwg.mxu0
      %v445 = vsub.f32 -inf, %v439
      %v446 = vsub.f32 -inf, %v441
      %v447 = vmul.f32 %v445, 1.442695
      %v448 = vpow.pop %v447
      %v449 = vmul.f32 %v446, 1.442695
      %v450 = vpow.pop %v449
      %v451 = vsub.f32 %v439, %v439
      %v452 = vsub.f32 %v441, %v441
      %v453 = vmul.f32 %v451, 1.442695
      %v454 = vpow.pop %v453
      %v455 = vmul.f32 %v452, 1.442695
      %v456 = vpow.pop %v455
      %457 = vrot.lane.b32.xlu0 %v346, 17
      %v458 = vpop.permute.xlu0 %457
      %459 = vrot.lane.b32.xlu0 %v348, 17
      %v460 = vpop.permute.xlu0 %459
      %461 = vrot.lane.b32.xlu0 %v347, 17
      %v462 = vpop.permute.xlu0 %461
      %463 = vrot.lane.b32.xlu0 %v349, 17
      %v464 = vpop.permute.xlu0 %463
      %v465 = vlaneseq
      %v466 = vand.u32 %v465, 127
      %vm467 = vcmp.lt.s32.totalorder %v466, 17
      %v468 = vsel %vm467, %v458, %v462
      %v469 = vsel %vm467, %v460, %v464
      %v470 = vsel %vm467, %v462, %v458
      %v471 = vsel %vm467, %v464, %v460
      %vm472 = vcmp.eq.s32.totalorder %v342, 0
      %473 = vrot.lane.b32.xlu0 %v346, 15
      %v474 = vpop.permute.xlu0 %473
      %475 = vrot.lane.b32.xlu0 %v348, 15
      %v476 = vpop.permute.xlu0 %475
      %477 = vrot.lane.b32.xlu0 %v347, 15
      %v478 = vpop.permute.xlu0 %477
      %479 = vrot.lane.b32.xlu0 %v349, 15
      %v480 = vpop.permute.xlu0 %479
      %vm481 = vcmp.lt.s32.totalorder %v466, 15
      %v482 = vsel %vm481, %v474, %v478
      %v483 = vsel %vm481, %v476, %v480
      %v484 = vsel %vm481, %v478, %v474
      %v485 = vsel %vm481, %v480, %v476
      %v486 = vsel %vm472, 1, 0
      %v487 = vlaneseq
      %v488 = vshrl.u32 %v487, 7
      %v489 = vsub.s32 0, %v488
      %v490 = vrot.slane %v486, %v489
      %v491 = vlaneseq
      %v492 = vshrl.u32 %v491, 7
      %v493 = vsub.s32 1, %v492
      %v494 = vrot.slane %v486, %v493
      %vm495 = vcmp.eq.s32.totalorder %v490, 1
      %vm496 = vcmp.eq.s32.totalorder %v494, 1
      %v497 = vsel %vm495, %v484, %v470
      %v498 = vsel %vm496, %v482, %v468
      %v499 = vsel %vm495, %v485, %v471
      %v500 = vsel %vm496, %v483, %v469
      %vm501 = vcmp.eq.s32.totalorder %v340, 0
      %502 = vrot.lane.b32.xlu0 %v346, 113
      %v503 = vpop.permute.xlu0 %502
      %504 = vrot.lane.b32.xlu0 %v348, 113
      %v505 = vpop.permute.xlu0 %504
      %506 = vrot.lane.b32.xlu0 %v347, 113
      %v507 = vpop.permute.xlu0 %506
      %508 = vrot.lane.b32.xlu0 %v349, 113
      %v509 = vpop.permute.xlu0 %508
      %vm510 = vcmp.lt.s32.totalorder %v466, 113
      %v511 = vsel %vm510, %v503, %v507
      %v512 = vsel %vm510, %v505, %v509
      %v513 = vsel %vm510, %v507, %v503
      %v514 = vsel %vm510, %v509, %v505
      %v515 = vsel %vm501, 1, 0
      %v516 = vlaneseq
      %v517 = vshrl.u32 %v516, 7
      %v518 = vsub.s32 0, %v517
      %v519 = vrot.slane %v515, %v518
      %v520 = vlaneseq
      %v521 = vshrl.u32 %v520, 7
      %v522 = vsub.s32 1, %v521
      %v523 = vrot.slane %v515, %v522
      %vm524 = vcmp.eq.s32.totalorder %v519, 1
      %vm525 = vcmp.eq.s32.totalorder %v523, 1
      %v526 = vsel %vm524, %v511, %v497
      %v527 = vsel %vm525, %v513, %v498
      %v528 = vsel %vm524, %v512, %v499
      %v529 = vsel %vm525, %v514, %v500
      %vm530 = vmand %vm501, %vm472
      %531 = vrot.lane.b32.xlu0 %v346, 111
      %v532 = vpop.permute.xlu0 %531
      %533 = vrot.lane.b32.xlu0 %v348, 111
      %v534 = vpop.permute.xlu0 %533
      %535 = vrot.lane.b32.xlu0 %v347, 111
      %v536 = vpop.permute.xlu0 %535
      %537 = vrot.lane.b32.xlu0 %v349, 111
      %v538 = vpop.permute.xlu0 %537
      %vm539 = vcmp.lt.s32.totalorder %v466, 111
      %v540 = vsel %vm539, %v532, %v536
      %v541 = vsel %vm539, %v534, %v538
      %v542 = vsel %vm539, %v536, %v532
      %v543 = vsel %vm539, %v538, %v534
      %v544 = vsel %vm530, 1, 0
      %v545 = vlaneseq
      %v546 = vshrl.u32 %v545, 7
      %v547 = vsub.s32 0, %v546
      %v548 = vrot.slane %v544, %v547
      %v549 = vlaneseq
      %v550 = vshrl.u32 %v549, 7
      %v551 = vsub.s32 1, %v550
      %v552 = vrot.slane %v544, %v551
      %vm553 = vcmp.eq.s32.totalorder %v548, 1
      %vm554 = vcmp.eq.s32.totalorder %v552, 1
      %v555 = vsel %vm553, %v540, %v526
      %v556 = vsel %vm554, %v542, %v527
      %v557 = vsel %vm553, %v541, %v528
      %v558 = vsel %vm554, %v543, %v529
      %v559 = vmul.f32 %v448, 0.0
      %v560 = vmul.f32 %v450, 0.0
      %v565 = vcombine.low %v555, %v556
      %v566 = vcombine.high %v555, %v556
      %v568 = vunpack.c.l.s4 1983009808
      %v569 = vunpack.c.0.s8 %v568
      %v570 = vlaneseq
      %v571 = vshrl.u32 %v570, 7
      %v572 = vsub.s32 %v569, %v571
      %v573 = vrot.slane %v565, %v572
      %v575 = vunpack.c.l.s4 1983009808
      %v576 = vunpack.c.0.s8 %v575
      %v577 = vlaneseq
      %v578 = vshrl.u32 %v577, 7
      %v579 = vsub.s32 %v576, %v578
      %v580 = vrot.slane %v566, %v579
      %v581 = vcombine.high %v573, %v573
      %v582 = vcombine.high %v580, %v580
      %v583 = vcombine.low %v557, %v558
      %v584 = vcombine.high %v557, %v558
      %v586 = vunpack.c.l.s4 1983009808
      %v587 = vunpack.c.0.s8 %v586
      %v588 = vlaneseq
      %v589 = vshrl.u32 %v588, 7
      %v590 = vsub.s32 %v587, %v589
      %v591 = vrot.slane %v583, %v590
      %v593 = vunpack.c.l.s4 1983009808
      %v594 = vunpack.c.0.s8 %v593
      %v595 = vlaneseq
      %v596 = vshrl.u32 %v595, 7
      %v597 = vsub.s32 %v594, %v596
      %v598 = vrot.slane %v584, %v597
      %v599 = vcombine.high %v591, %v591
      %v600 = vcombine.high %v598, %v598
      %v611 = vcombine.low %v454, %v456
      %v613 = vunpack.c.l.s4 1983009808
      %v614 = vunpack.c.0.s8 %v613
      %v615 = vlaneseq
      %v616 = vshrl.u32 %v615, 7
      %v617 = vsub.s32 %v614, %v616
      %v618 = vrot.slane %v611, %v617
      %v620 = vmul.f32 %v573, %v618
      %v621 = vmul.f32 %v581, %v618
      %v622 = vmul.f32 %v580, %v618
      %v623 = vmul.f32 %v582, %v618
      %v624 = vmul.f32 %v591, %v618
      %v625 = vmul.f32 %v599, %v618
      %v626 = vmul.f32 %v598, %v618
      %v627 = vmul.f32 %v600, %v618
      %v637 = vunpack.c.l.s4 1983009808
      %v638 = vunpack.c.0.s8 %v637
      %v639 = vlaneseq
      %v640 = vshrl.u32 %v639, 7
      %v641 = vsub.s32 %v638, %v640
      %v642 = vrot.slane %v620, %v641
      %v643 = vcombine.high %v642, %v642
      %v645 = vunpack.c.l.s4 1983009808
      %v646 = vunpack.c.0.s8 %v645
      %v647 = vlaneseq
      %v648 = vshrl.u32 %v647, 7
      %v649 = vsub.s32 %v646, %v648
      %v650 = vrot.slane %v621, %v649
      %v651 = vcombine.high %v650, %v650
      %v653 = vunpack.c.l.s4 1983009808
      %v654 = vunpack.c.0.s8 %v653
      %v655 = vlaneseq
      %v656 = vshrl.u32 %v655, 7
      %v657 = vsub.s32 %v654, %v656
      %v658 = vrot.slane %v622, %v657
      %v659 = vcombine.high %v658, %v658
      %v661 = vunpack.c.l.s4 1983009808
      %v662 = vunpack.c.0.s8 %v661
      %v663 = vlaneseq
      %v664 = vshrl.u32 %v663, 7
      %v665 = vsub.s32 %v662, %v664
      %v666 = vrot.slane %v623, %v665
      %v667 = vcombine.high %v666, %v666
      %v669 = vunpack.c.l.s4 1983009808
      %v670 = vunpack.c.0.s8 %v669
      %v671 = vlaneseq
      %v672 = vshrl.u32 %v671, 7
      %v673 = vsub.s32 %v670, %v672
      %v674 = vrot.slane %v624, %v673
      %v675 = vcombine.high %v674, %v674
      %v677 = vunpack.c.l.s4 1983009808
      %v678 = vunpack.c.0.s8 %v677
      %v679 = vlaneseq
      %v680 = vshrl.u32 %v679, 7
      %v681 = vsub.s32 %v678, %v680
      %v682 = vrot.slane %v625, %v681
      %v683 = vcombine.high %v682, %v682
      %v685 = vunpack.c.l.s4 1983009808
      %v686 = vunpack.c.0.s8 %v685
      %v687 = vlaneseq
      %v688 = vshrl.u32 %v687, 7
      %v689 = vsub.s32 %v686, %v688
      %v690 = vrot.slane %v626, %v689
      %v691 = vcombine.high %v690, %v690
      %v693 = vunpack.c.l.s4 1983009808
      %v694 = vunpack.c.0.s8 %v693
      %v695 = vlaneseq
      %v696 = vshrl.u32 %v695, 7
      %v697 = vsub.s32 %v694, %v696
      %v698 = vrot.slane %v627, %v697
      %v699 = vcombine.high %v698, %v698
      %v716 = vadd.f32 %v559, %v642
      %v717 = vadd.f32 %v560, %v643
      %v718 = vadd.f32 %v559, %v650
      %v719 = vadd.f32 %v560, %v651
      %v720 = vadd.f32 %v559, %v658
      %v721 = vadd.f32 %v560, %v659
      %v722 = vadd.f32 %v559, %v666
      %v723 = vadd.f32 %v560, %v667
      %v724 = vadd.f32 %v559, %v674
      %v725 = vadd.f32 %v560, %v675
      %v726 = vadd.f32 %v559, %v682
      %v727 = vadd.f32 %v560, %v683
      %v728 = vadd.f32 %v559, %v690
      %v729 = vadd.f32 %v560, %v691
      %v730 = vadd.f32 %v559, %v698
      %v731 = vadd.f32 %v560, %v699
      %v732 = vadd.f32 %v559, %v454
      %v733 = vadd.f32 %v560, %v456
      %s734 = scalar_lea.vmem %s323, 4
      %v735 = vld [vmem:[%s734] sm:$0xf]
      %v736 = vunpack.c.l.bf16 %v735
      %v737 = vmul.f32 %v736, %v365
      %v738 = vadd.f32 %v737, %v379
      %v739 = vmax.f32 %v738, 0.0
      %v741 = vcombine.high %v739, %v739
      %v743 = vpack.c.bf16 %v739, %v739
      %v744 = vpack.c.bf16 %v741, %v741
      %v746 = vsel %vm397, %v743, 0
      %v749 = vsel %vm397, %v744, 0
      %751 = vmatprep.subr.bf16.mxu0 0
      %752 = vmatpush1.bf16.msra.mxu0 0
      %753 = vmatprep.subr.bf16.mxu0 0
      %754 = vmatpush1.bf16.msra.mxu0 0
      %755 = vmatprep.subr.bf16.mxu0 0
      %756 = vmatpush1.bf16.msra.mxu0 0
      %757 = vmatprep.subr.bf16.mxu0 0
      %758 = vmatpush1.bf16.msra.mxu0 0
      %759 = vmatprep.subr.bf16.mxu0 0
      %760 = vmatpush1.bf16.msra.mxu0 0
      %761 = vmatprep.subr.bf16.mxu0 0
      %762 = vmatpush1.bf16.msra.mxu0 0
      %763 = vmatprep.subr.bf16.mxu0 0
      %764 = vmatpush1.bf16.msra.mxu0 0
      %765 = vmatprep.subr.bf16.mxu0 %v749
      %766 = vmatpush1.bf16.msra.mxu0 %v746
      %767 = vmatprep.subr.bf16.mxu0 0
      %768 = vmatpush2.bf16.msra.mxu0 0
      %769 = vmatprep.subr.bf16.mxu0 0
      %770 = vmatpush2.bf16.msra.mxu0 0
      %771 = vmatprep.subr.bf16.mxu0 0
      %772 = vmatpush2.bf16.msra.mxu0 0
      %773 = vmatprep.subr.bf16.mxu0 0
      %774 = vmatpush2.bf16.msra.mxu0 0
      %775 = vmatprep.subr.bf16.mxu0 0
      %776 = vmatpush2.bf16.msra.mxu0 0
      %777 = vmatprep.subr.bf16.mxu0 0
      %778 = vmatpush2.bf16.msra.mxu0 0
      %779 = vmatprep.subr.bf16.mxu0 0
      %780 = vmatpush2.bf16.msra.mxu0 0
      %781 = vmatprep.subr.bf16.mxu0 0
      %782 = vmatpush2.bf16.msra.mxu0 0
      %783 = vmatprep.mubr.bf16.mxu0 0
      %784 = vmatmul.mubr.bf16.gmra.mxu0 %v395
      %v785 = vpop.f32.mrf.mxu0
      %v786 = vadd.f32 %v391, %v785
      %v787 = vpop.f32.mrf.mxu0
      %v788 = vadd.f32 %v391, %v787
      %v789 = vpop.f32.mrf.mxu0
      %v790 = vpop.f32.mrf.mxu0
      %791 = vdwg.mxu0
      %v792 = vmax.f32 %v439, %v786
      %v793 = vmax.f32 %v441, %v788
      %v794 = vsub.f32 %v439, %v792
      %v795 = vsub.f32 %v441, %v793
      %v796 = vmul.f32 %v794, 1.442695
      %v797 = vpow.pop %v796
      %v798 = vmul.f32 %v795, 1.442695
      %v799 = vpow.pop %v798
      %v800 = vsub.f32 %v786, %v792
      %v801 = vsub.f32 %v788, %v793
      %v802 = vmul.f32 %v800, 1.442695
      %v803 = vpow.pop %v802
      %v804 = vmul.f32 %v801, 1.442695
      %v805 = vpow.pop %v804
      %806 = vrot.lane.b32.xlu0 %v346, 16
      %v807 = vpop.permute.xlu0 %806
      %808 = vrot.lane.b32.xlu0 %v348, 16
      %v809 = vpop.permute.xlu0 %808
      %810 = vrot.lane.b32.xlu0 %v347, 16
      %v811 = vpop.permute.xlu0 %810
      %812 = vrot.lane.b32.xlu0 %v349, 16
      %v813 = vpop.permute.xlu0 %812
      %vm814 = vcmp.lt.s32.totalorder %v466, 16
      %v815 = vsel %vm814, %v807, %v811
      %v816 = vsel %vm814, %v809, %v813
      %v817 = vsel %vm814, %v811, %v807
      %v818 = vsel %vm814, %v813, %v809
      %819 = vrot.lane.b32.xlu0 %v346, 112
      %v820 = vpop.permute.xlu0 %819
      %821 = vrot.lane.b32.xlu0 %v348, 112
      %v822 = vpop.permute.xlu0 %821
      %823 = vrot.lane.b32.xlu0 %v347, 112
      %v824 = vpop.permute.xlu0 %823
      %825 = vrot.lane.b32.xlu0 %v349, 112
      %v826 = vpop.permute.xlu0 %825
      %vm827 = vcmp.lt.s32.totalorder %v466, 112
      %v828 = vsel %vm827, %v820, %v824
      %v829 = vsel %vm827, %v822, %v826
      %v830 = vsel %vm827, %v824, %v820
      %v831 = vsel %vm827, %v826, %v822
      %v832 = vsel %vm524, %v828, %v817
      %v833 = vsel %vm525, %v830, %v815
      %v834 = vsel %vm524, %v829, %v818
      %v835 = vsel %vm525, %v831, %v816
      %v836 = vmul.f32 %v716, %v797
      %v837 = vmul.f32 %v717, %v799
      %v838 = vmul.f32 %v718, %v797
      %v839 = vmul.f32 %v719, %v799
      %v840 = vmul.f32 %v720, %v797
      %v841 = vmul.f32 %v721, %v799
      %v842 = vmul.f32 %v722, %v797
      %v843 = vmul.f32 %v723, %v799
      %v844 = vmul.f32 %v724, %v797
      %v845 = vmul.f32 %v725, %v799
      %v846 = vmul.f32 %v726, %v797
      %v847 = vmul.f32 %v727, %v799
      %v848 = vmul.f32 %v728, %v797
      %v849 = vmul.f32 %v729, %v799
      %v850 = vmul.f32 %v730, %v797
      %v851 = vmul.f32 %v731, %v799
      %v856 = vcombine.low %v832, %v833
      %v857 = vcombine.high %v832, %v833
      %v859 = vunpack.c.l.s4 1983009808
      %v860 = vunpack.c.0.s8 %v859
      %v861 = vlaneseq
      %v862 = vshrl.u32 %v861, 7
      %v863 = vsub.s32 %v860, %v862
      %v864 = vrot.slane %v856, %v863
      %v866 = vunpack.c.l.s4 1983009808
      %v867 = vunpack.c.0.s8 %v866
      %v868 = vlaneseq
      %v869 = vshrl.u32 %v868, 7
      %v870 = vsub.s32 %v867, %v869
      %v871 = vrot.slane %v857, %v870
      %v872 = vcombine.high %v864, %v864
      %v873 = vcombine.high %v871, %v871
      %v874 = vcombine.low %v834, %v835
      %v875 = vcombine.high %v834, %v835
      %v877 = vunpack.c.l.s4 1983009808
      %v878 = vunpack.c.0.s8 %v877
      %v879 = vlaneseq
      %v880 = vshrl.u32 %v879, 7
      %v881 = vsub.s32 %v878, %v880
      %v882 = vrot.slane %v874, %v881
      %v884 = vunpack.c.l.s4 1983009808
      %v885 = vunpack.c.0.s8 %v884
      %v886 = vlaneseq
      %v887 = vshrl.u32 %v886, 7
      %v888 = vsub.s32 %v885, %v887
      %v889 = vrot.slane %v875, %v888
      %v890 = vcombine.high %v882, %v882
      %v891 = vcombine.high %v889, %v889
      %v902 = vcombine.low %v803, %v805
      %v904 = vunpack.c.l.s4 1983009808
      %v905 = vunpack.c.0.s8 %v904
      %v906 = vlaneseq
      %v907 = vshrl.u32 %v906, 7
      %v908 = vsub.s32 %v905, %v907
      %v909 = vrot.slane %v902, %v908
      %v911 = vmul.f32 %v864, %v909
      %v912 = vmul.f32 %v872, %v909
      %v913 = vmul.f32 %v871, %v909
      %v914 = vmul.f32 %v873, %v909
      %v915 = vmul.f32 %v882, %v909
      %v916 = vmul.f32 %v890, %v909
      %v917 = vmul.f32 %v889, %v909
      %v918 = vmul.f32 %v891, %v909
      %v928 = vunpack.c.l.s4 1983009808
      %v929 = vunpack.c.0.s8 %v928
      %v930 = vlaneseq
      %v931 = vshrl.u32 %v930, 7
      %v932 = vsub.s32 %v929, %v931
      %v933 = vrot.slane %v911, %v932
      %v934 = vcombine.high %v933, %v933
      %v936 = vunpack.c.l.s4 1983009808
      %v937 = vunpack.c.0.s8 %v936
      %v938 = vlaneseq
      %v939 = vshrl.u32 %v938, 7
      %v940 = vsub.s32 %v937, %v939
      %v941 = vrot.slane %v912, %v940
      %v942 = vcombine.high %v941, %v941
      %v944 = vunpack.c.l.s4 1983009808
      %v945 = vunpack.c.0.s8 %v944
      %v946 = vlaneseq
      %v947 = vshrl.u32 %v946, 7
      %v948 = vsub.s32 %v945, %v947
      %v949 = vrot.slane %v913, %v948
      %v950 = vcombine.high %v949, %v949
      %v952 = vunpack.c.l.s4 1983009808
      %v953 = vunpack.c.0.s8 %v952
      %v954 = vlaneseq
      %v955 = vshrl.u32 %v954, 7
      %v956 = vsub.s32 %v953, %v955
      %v957 = vrot.slane %v914, %v956
      %v958 = vcombine.high %v957, %v957
      %v960 = vunpack.c.l.s4 1983009808
      %v961 = vunpack.c.0.s8 %v960
      %v962 = vlaneseq
      %v963 = vshrl.u32 %v962, 7
      %v964 = vsub.s32 %v961, %v963
      %v965 = vrot.slane %v915, %v964
      %v966 = vcombine.high %v965, %v965
      %v968 = vunpack.c.l.s4 1983009808
      %v969 = vunpack.c.0.s8 %v968
      %v970 = vlaneseq
      %v971 = vshrl.u32 %v970, 7
      %v972 = vsub.s32 %v969, %v971
      %v973 = vrot.slane %v916, %v972
      %v974 = vcombine.high %v973, %v973
      %v976 = vunpack.c.l.s4 1983009808
      %v977 = vunpack.c.0.s8 %v976
      %v978 = vlaneseq
      %v979 = vshrl.u32 %v978, 7
      %v980 = vsub.s32 %v977, %v979
      %v981 = vrot.slane %v917, %v980
      %v982 = vcombine.high %v981, %v981
      %v984 = vunpack.c.l.s4 1983009808
      %v985 = vunpack.c.0.s8 %v984
      %v986 = vlaneseq
      %v987 = vshrl.u32 %v986, 7
      %v988 = vsub.s32 %v985, %v987
      %v989 = vrot.slane %v918, %v988
      %v990 = vcombine.high %v989, %v989
      %v1007 = vadd.f32 %v836, %v933
      %v1008 = vadd.f32 %v837, %v934
      %v1009 = vadd.f32 %v838, %v941
      %v1010 = vadd.f32 %v839, %v942
      %v1011 = vadd.f32 %v840, %v949
      %v1012 = vadd.f32 %v841, %v950
      %v1013 = vadd.f32 %v842, %v957
      %v1014 = vadd.f32 %v843, %v958
      %v1015 = vadd.f32 %v844, %v965
      %v1016 = vadd.f32 %v845, %v966
      %v1017 = vadd.f32 %v846, %v973
      %v1018 = vadd.f32 %v847, %v974
      %v1019 = vadd.f32 %v848, %v981
      %v1020 = vadd.f32 %v849, %v982
      %v1021 = vadd.f32 %v850, %v989
      %v1022 = vadd.f32 %v851, %v990
      %v1023 = vmul.f32 %v732, %v797
      %v1024 = vmul.f32 %v733, %v799
      %v1025 = vadd.f32 %v1023, %v803
      %v1026 = vadd.f32 %v1024, %v805
      %s1027 = scalar_lea.vmem %s323, 8
      %v1028 = vld [vmem:[%s1027] sm:$0xf]
      %v1029 = vunpack.c.l.bf16 %v1028
      %v1030 = vmul.f32 %v1029, %v365
      %v1031 = vadd.f32 %v1030, %v379
      %v1032 = vmax.f32 %v1031, 0.0
      %v1034 = vcombine.high %v1032, %v1032
      %v1036 = vpack.c.bf16 %v1032, %v1032
      %v1037 = vpack.c.bf16 %v1034, %v1034
      %v1039 = vsel %vm397, %v1036, 0
      %v1042 = vsel %vm397, %v1037, 0
      %1044 = vmatprep.subr.bf16.mxu0 0
      %1045 = vmatpush1.bf16.msra.mxu0 0
      %1046 = vmatprep.subr.bf16.mxu0 0
      %1047 = vmatpush1.bf16.msra.mxu0 0
      %1048 = vmatprep.subr.bf16.mxu0 0
      %1049 = vmatpush1.bf16.msra.mxu0 0
      %1050 = vmatprep.subr.bf16.mxu0 0
      %1051 = vmatpush1.bf16.msra.mxu0 0
      %1052 = vmatprep.subr.bf16.mxu0 0
      %1053 = vmatpush1.bf16.msra.mxu0 0
      %1054 = vmatprep.subr.bf16.mxu0 0
      %1055 = vmatpush1.bf16.msra.mxu0 0
      %1056 = vmatprep.subr.bf16.mxu0 0
      %1057 = vmatpush1.bf16.msra.mxu0 0
      %1058 = vmatprep.subr.bf16.mxu0 %v1042
      %1059 = vmatpush1.bf16.msra.mxu0 %v1039
      %1060 = vmatprep.subr.bf16.mxu0 0
      %1061 = vmatpush2.bf16.msra.mxu0 0
      %1062 = vmatprep.subr.bf16.mxu0 0
      %1063 = vmatpush2.bf16.msra.mxu0 0
      %1064 = vmatprep.subr.bf16.mxu0 0
      %1065 = vmatpush2.bf16.msra.mxu0 0
      %1066 = vmatprep.subr.bf16.mxu0 0
      %1067 = vmatpush2.bf16.msra.mxu0 0
      %1068 = vmatprep.subr.bf16.mxu0 0
      %1069 = vmatpush2.bf16.msra.mxu0 0
      %1070 = vmatprep.subr.bf16.mxu0 0
      %1071 = vmatpush2.bf16.msra.mxu0 0
      %1072 = vmatprep.subr.bf16.mxu0 0
      %1073 = vmatpush2.bf16.msra.mxu0 0
      %1074 = vmatprep.subr.bf16.mxu0 0
      %1075 = vmatpush2.bf16.msra.mxu0 0
      %1076 = vmatprep.mubr.bf16.mxu0 0
      %1077 = vmatmul.mubr.bf16.gmra.mxu0 %v395
      %v1078 = vpop.f32.mrf.mxu0
      %v1079 = vadd.f32 %v391, %v1078
      %v1080 = vpop.f32.mrf.mxu0
      %v1081 = vadd.f32 %v391, %v1080
      %v1082 = vpop.f32.mrf.mxu0
      %v1083 = vpop.f32.mrf.mxu0
      %1084 = vdwg.mxu0
      %v1085 = vmax.f32 %v792, %v1079
      %v1086 = vmax.f32 %v793, %v1081
      %v1087 = vsub.f32 %v792, %v1085
      %v1088 = vsub.f32 %v793, %v1086
      %v1089 = vmul.f32 %v1087, 1.442695
      %v1090 = vpow.pop %v1089
      %v1091 = vmul.f32 %v1088, 1.442695
      %v1092 = vpow.pop %v1091
      %v1093 = vsub.f32 %v1079, %v1085
      %v1094 = vsub.f32 %v1081, %v1086
      %v1095 = vmul.f32 %v1093, 1.442695
      %v1096 = vpow.pop %v1095
      %v1097 = vmul.f32 %v1094, 1.442695
      %v1098 = vpow.pop %v1097
      %vm1099 = vcmp.eq.s32.totalorder %v342, 15
      %v1100 = vsel %vm1099, 1, 0
      %v1101 = vlaneseq
      %v1102 = vshrl.u32 %v1101, 7
      %v1103 = vsub.s32 0, %v1102
      %v1104 = vrot.slane %v1100, %v1103
      %v1105 = vlaneseq
      %v1106 = vshrl.u32 %v1105, 7
      %v1107 = vsub.s32 1, %v1106
      %v1108 = vrot.slane %v1100, %v1107
      %vm1109 = vcmp.eq.s32.totalorder %v1104, 1
      %vm1110 = vcmp.eq.s32.totalorder %v1108, 1
      %v1111 = vsel %vm1109, %v470, %v484
      %v1112 = vsel %vm1110, %v468, %v482
      %v1113 = vsel %vm1109, %v471, %v485
      %v1114 = vsel %vm1110, %v469, %v483
      %v1115 = vsel %vm524, %v540, %v1111
      %v1116 = vsel %vm525, %v542, %v1112
      %v1117 = vsel %vm524, %v541, %v1113
      %v1118 = vsel %vm525, %v543, %v1114
      %vm1119 = vmand %vm501, %vm1099
      %v1120 = vsel %vm1119, 1, 0
      %v1121 = vlaneseq
      %v1122 = vshrl.u32 %v1121, 7
      %v1123 = vsub.s32 0, %v1122
      %v1124 = vrot.slane %v1120, %v1123
      %v1125 = vlaneseq
      %v1126 = vshrl.u32 %v1125, 7
      %v1127 = vsub.s32 1, %v1126
      %v1128 = vrot.slane %v1120, %v1127
      %vm1129 = vcmp.eq.s32.totalorder %v1124, 1
      %vm1130 = vcmp.eq.s32.totalorder %v1128, 1
      %v1131 = vsel %vm1129, %v511, %v1115
      %v1132 = vsel %vm1130, %v513, %v1116
      %v1133 = vsel %vm1129, %v512, %v1117
      %v1134 = vsel %vm1130, %v514, %v1118
      %v1135 = vmul.f32 %v1007, %v1090
      %v1136 = vmul.f32 %v1008, %v1092
      %v1137 = vmul.f32 %v1009, %v1090
      %v1138 = vmul.f32 %v1010, %v1092
      %v1139 = vmul.f32 %v1011, %v1090
      %v1140 = vmul.f32 %v1012, %v1092
      %v1141 = vmul.f32 %v1013, %v1090
      %v1142 = vmul.f32 %v1014, %v1092
      %v1143 = vmul.f32 %v1015, %v1090
      %v1144 = vmul.f32 %v1016, %v1092
      %v1145 = vmul.f32 %v1017, %v1090
      %v1146 = vmul.f32 %v1018, %v1092
      %v1147 = vmul.f32 %v1019, %v1090
      %v1148 = vmul.f32 %v1020, %v1092
      %v1149 = vmul.f32 %v1021, %v1090
      %v1150 = vmul.f32 %v1022, %v1092
      %v1155 = vcombine.low %v1131, %v1132
      %v1156 = vcombine.high %v1131, %v1132
      %v1158 = vunpack.c.l.s4 1983009808
      %v1159 = vunpack.c.0.s8 %v1158
      %v1160 = vlaneseq
      %v1161 = vshrl.u32 %v1160, 7
      %v1162 = vsub.s32 %v1159, %v1161
      %v1163 = vrot.slane %v1155, %v1162
      %v1165 = vunpack.c.l.s4 1983009808
      %v1166 = vunpack.c.0.s8 %v1165
      %v1167 = vlaneseq
      %v1168 = vshrl.u32 %v1167, 7
      %v1169 = vsub.s32 %v1166, %v1168
      %v1170 = vrot.slane %v1156, %v1169
      %v1171 = vcombine.high %v1163, %v1163
      %v1172 = vcombine.high %v1170, %v1170
      %v1173 = vcombine.low %v1133, %v1134
      %v1174 = vcombine.high %v1133, %v1134
      %v1176 = vunpack.c.l.s4 1983009808
      %v1177 = vunpack.c.0.s8 %v1176
      %v1178 = vlaneseq
      %v1179 = vshrl.u32 %v1178, 7
      %v1180 = vsub.s32 %v1177, %v1179
      %v1181 = vrot.slane %v1173, %v1180
      %v1183 = vunpack.c.l.s4 1983009808
      %v1184 = vunpack.c.0.s8 %v1183
      %v1185 = vlaneseq
      %v1186 = vshrl.u32 %v1185, 7
      %v1187 = vsub.s32 %v1184, %v1186
      %v1188 = vrot.slane %v1174, %v1187
      %v1189 = vcombine.high %v1181, %v1181
      %v1190 = vcombine.high %v1188, %v1188
      %v1201 = vcombine.low %v1096, %v1098
      %v1203 = vunpack.c.l.s4 1983009808
      %v1204 = vunpack.c.0.s8 %v1203
      %v1205 = vlaneseq
      %v1206 = vshrl.u32 %v1205, 7
      %v1207 = vsub.s32 %v1204, %v1206
      %v1208 = vrot.slane %v1201, %v1207
      %v1210 = vmul.f32 %v1163, %v1208
      %v1211 = vmul.f32 %v1171, %v1208
      %v1212 = vmul.f32 %v1170, %v1208
      %v1213 = vmul.f32 %v1172, %v1208
      %v1214 = vmul.f32 %v1181, %v1208
      %v1215 = vmul.f32 %v1189, %v1208
      %v1216 = vmul.f32 %v1188, %v1208
      %v1217 = vmul.f32 %v1190, %v1208
      %v1227 = vunpack.c.l.s4 1983009808
      %v1228 = vunpack.c.0.s8 %v1227
      %v1229 = vlaneseq
      %v1230 = vshrl.u32 %v1229, 7
      %v1231 = vsub.s32 %v1228, %v1230
      %v1232 = vrot.slane %v1210, %v1231
      %v1233 = vcombine.high %v1232, %v1232
      %v1235 = vunpack.c.l.s4 1983009808
      %v1236 = vunpack.c.0.s8 %v1235
      %v1237 = vlaneseq
      %v1238 = vshrl.u32 %v1237, 7
      %v1239 = vsub.s32 %v1236, %v1238
      %v1240 = vrot.slane %v1211, %v1239
      %v1241 = vcombine.high %v1240, %v1240
      %v1243 = vunpack.c.l.s4 1983009808
      %v1244 = vunpack.c.0.s8 %v1243
      %v1245 = vlaneseq
      %v1246 = vshrl.u32 %v1245, 7
      %v1247 = vsub.s32 %v1244, %v1246
      %v1248 = vrot.slane %v1212, %v1247
      %v1249 = vcombine.high %v1248, %v1248
      %v1251 = vunpack.c.l.s4 1983009808
      %v1252 = vunpack.c.0.s8 %v1251
      %v1253 = vlaneseq
      %v1254 = vshrl.u32 %v1253, 7
      %v1255 = vsub.s32 %v1252, %v1254
      %v1256 = vrot.slane %v1213, %v1255
      %v1257 = vcombine.high %v1256, %v1256
      %v1259 = vunpack.c.l.s4 1983009808
      %v1260 = vunpack.c.0.s8 %v1259
      %v1261 = vlaneseq
      %v1262 = vshrl.u32 %v1261, 7
      %v1263 = vsub.s32 %v1260, %v1262
      %v1264 = vrot.slane %v1214, %v1263
      %v1265 = vcombine.high %v1264, %v1264
      %v1267 = vunpack.c.l.s4 1983009808
      %v1268 = vunpack.c.0.s8 %v1267
      %v1269 = vlaneseq
      %v1270 = vshrl.u32 %v1269, 7
      %v1271 = vsub.s32 %v1268, %v1270
      %v1272 = vrot.slane %v1215, %v1271
      %v1273 = vcombine.high %v1272, %v1272
      %v1275 = vunpack.c.l.s4 1983009808
      %v1276 = vunpack.c.0.s8 %v1275
      %v1277 = vlaneseq
      %v1278 = vshrl.u32 %v1277, 7
      %v1279 = vsub.s32 %v1276, %v1278
      %v1280 = vrot.slane %v1216, %v1279
      %v1281 = vcombine.high %v1280, %v1280
      %v1283 = vunpack.c.l.s4 1983009808
      %v1284 = vunpack.c.0.s8 %v1283
      %v1285 = vlaneseq
      %v1286 = vshrl.u32 %v1285, 7
      %v1287 = vsub.s32 %v1284, %v1286
      %v1288 = vrot.slane %v1217, %v1287
      %v1289 = vcombine.high %v1288, %v1288
      %v1306 = vadd.f32 %v1135, %v1232
      %v1307 = vadd.f32 %v1136, %v1233
      %v1308 = vadd.f32 %v1137, %v1240
      %v1309 = vadd.f32 %v1138, %v1241
      %v1310 = vadd.f32 %v1139, %v1248
      %v1311 = vadd.f32 %v1140, %v1249
      %v1312 = vadd.f32 %v1141, %v1256
      %v1313 = vadd.f32 %v1142, %v1257
      %v1314 = vadd.f32 %v1143, %v1264
      %v1315 = vadd.f32 %v1144, %v1265
      %v1316 = vadd.f32 %v1145, %v1272
      %v1317 = vadd.f32 %v1146, %v1273
      %v1318 = vadd.f32 %v1147, %v1280
      %v1319 = vadd.f32 %v1148, %v1281
      %v1320 = vadd.f32 %v1149, %v1288
      %v1321 = vadd.f32 %v1150, %v1289
      %v1322 = vmul.f32 %v1025, %v1090
      %v1323 = vmul.f32 %v1026, %v1092
      %v1324 = vadd.f32 %v1322, %v1096
      %v1325 = vadd.f32 %v1323, %v1098
      %s1326 = scalar_lea.vmem %s323, 12
      %v1327 = vld [vmem:[%s1326] sm:$0xf]
      %v1328 = vunpack.c.l.bf16 %v1327
      %v1329 = vmul.f32 %v1328, %v365
      %v1330 = vadd.f32 %v1329, %v379
      %v1331 = vmax.f32 %v1330, 0.0
      %v1333 = vcombine.high %v1331, %v1331
      %v1335 = vpack.c.bf16 %v1331, %v1331
      %v1336 = vpack.c.bf16 %v1333, %v1333
      %v1338 = vsel %vm397, %v1335, 0
      %v1341 = vsel %vm397, %v1336, 0
      %1343 = vmatprep.subr.bf16.mxu0 0
      %1344 = vmatpush1.bf16.msra.mxu0 0
      %1345 = vmatprep.subr.bf16.mxu0 0
      %1346 = vmatpush1.bf16.msra.mxu0 0
      %1347 = vmatprep.subr.bf16.mxu0 0
      %1348 = vmatpush1.bf16.msra.mxu0 0
      %1349 = vmatprep.subr.bf16.mxu0 0
      %1350 = vmatpush1.bf16.msra.mxu0 0
      %1351 = vmatprep.subr.bf16.mxu0 0
      %1352 = vmatpush1.bf16.msra.mxu0 0
      %1353 = vmatprep.subr.bf16.mxu0 0
      %1354 = vmatpush1.bf16.msra.mxu0 0
      %1355 = vmatprep.subr.bf16.mxu0 0
      %1356 = vmatpush1.bf16.msra.mxu0 0
      %1357 = vmatprep.subr.bf16.mxu0 %v1341
      %1358 = vmatpush1.bf16.msra.mxu0 %v1338
      %1359 = vmatprep.subr.bf16.mxu0 0
      %1360 = vmatpush2.bf16.msra.mxu0 0
      %1361 = vmatprep.subr.bf16.mxu0 0
      %1362 = vmatpush2.bf16.msra.mxu0 0
      %1363 = vmatprep.subr.bf16.mxu0 0
      %1364 = vmatpush2.bf16.msra.mxu0 0
      %1365 = vmatprep.subr.bf16.mxu0 0
      %1366 = vmatpush2.bf16.msra.mxu0 0
      %1367 = vmatprep.subr.bf16.mxu0 0
      %1368 = vmatpush2.bf16.msra.mxu0 0
      %1369 = vmatprep.subr.bf16.mxu0 0
      %1370 = vmatpush2.bf16.msra.mxu0 0
      %1371 = vmatprep.subr.bf16.mxu0 0
      %1372 = vmatpush2.bf16.msra.mxu0 0
      %1373 = vmatprep.subr.bf16.mxu0 0
      %1374 = vmatpush2.bf16.msra.mxu0 0
      %1375 = vmatprep.mubr.bf16.mxu0 0
      %1376 = vmatmul.mubr.bf16.gmra.mxu0 %v395
      %v1377 = vpop.f32.mrf.mxu0
      %v1378 = vadd.f32 %v391, %v1377
      %v1379 = vpop.f32.mrf.mxu0
      %v1380 = vadd.f32 %v391, %v1379
      %v1381 = vpop.f32.mrf.mxu0
      %v1382 = vpop.f32.mrf.mxu0
      %1383 = vdwg.mxu0
      %v1384 = vmax.f32 %v1085, %v1378
      %v1385 = vmax.f32 %v1086, %v1380
      %v1386 = vsub.f32 %v1085, %v1384
      %v1387 = vsub.f32 %v1086, %v1385
      %v1388 = vmul.f32 %v1386, 1.442695
      %v1389 = vpow.pop %v1388
      %v1390 = vmul.f32 %v1387, 1.442695
      %v1391 = vpow.pop %v1390
      %v1392 = vsub.f32 %v1378, %v1384
      %v1393 = vsub.f32 %v1380, %v1385
      %v1394 = vmul.f32 %v1392, 1.442695
      %v1395 = vpow.pop %v1394
      %v1396 = vmul.f32 %v1393, 1.442695
      %v1397 = vpow.pop %v1396
      %1398 = vrot.lane.b32.xlu0 %v346, 1
      %v1399 = vpop.permute.xlu0 %1398
      %1400 = vrot.lane.b32.xlu0 %v348, 1
      %v1401 = vpop.permute.xlu0 %1400
      %1402 = vrot.lane.b32.xlu0 %v347, 1
      %v1403 = vpop.permute.xlu0 %1402
      %1404 = vrot.lane.b32.xlu0 %v349, 1
      %v1405 = vpop.permute.xlu0 %1404
      %vm1406 = vcmp.lt.s32.totalorder %v466, 1
      %v1407 = vsel %vm1406, %v1399, %v1403
      %v1408 = vsel %vm1406, %v1401, %v1405
      %v1409 = vsel %vm1406, %v1403, %v1399
      %v1410 = vsel %vm1406, %v1405, %v1401
      %1411 = vrot.lane.b32.xlu0 %v346, 127
      %v1412 = vpop.permute.xlu0 %1411
      %1413 = vrot.lane.b32.xlu0 %v348, 127
      %v1414 = vpop.permute.xlu0 %1413
      %1415 = vrot.lane.b32.xlu0 %v347, 127
      %v1416 = vpop.permute.xlu0 %1415
      %1417 = vrot.lane.b32.xlu0 %v349, 127
      %v1418 = vpop.permute.xlu0 %1417
      %vm1419 = vcmp.lt.s32.totalorder %v466, 127
      %v1420 = vsel %vm1419, %v1412, %v1416
      %v1421 = vsel %vm1419, %v1414, %v1418
      %v1422 = vsel %vm1419, %v1416, %v1412
      %v1423 = vsel %vm1419, %v1418, %v1414
      %v1424 = vsel %vm495, %v1420, %v1409
      %v1425 = vsel %vm496, %v1422, %v1407
      %v1426 = vsel %vm495, %v1421, %v1410
      %v1427 = vsel %vm496, %v1423, %v1408
      %v1428 = vmul.f32 %v1306, %v1389
      %v1429 = vmul.f32 %v1307, %v1391
      %v1430 = vmul.f32 %v1308, %v1389
      %v1431 = vmul.f32 %v1309, %v1391
      %v1432 = vmul.f32 %v1310, %v1389
      %v1433 = vmul.f32 %v1311, %v1391
      %v1434 = vmul.f32 %v1312, %v1389
      %v1435 = vmul.f32 %v1313, %v1391
      %v1436 = vmul.f32 %v1314, %v1389
      %v1437 = vmul.f32 %v1315, %v1391
      %v1438 = vmul.f32 %v1316, %v1389
      %v1439 = vmul.f32 %v1317, %v1391
      %v1440 = vmul.f32 %v1318, %v1389
      %v1441 = vmul.f32 %v1319, %v1391
      %v1442 = vmul.f32 %v1320, %v1389
      %v1443 = vmul.f32 %v1321, %v1391
      %v1448 = vcombine.low %v1424, %v1425
      %v1449 = vcombine.high %v1424, %v1425
      %v1451 = vunpack.c.l.s4 1983009808
      %v1452 = vunpack.c.0.s8 %v1451
      %v1453 = vlaneseq
      %v1454 = vshrl.u32 %v1453, 7
      %v1455 = vsub.s32 %v1452, %v1454
      %v1456 = vrot.slane %v1448, %v1455
      %v1458 = vunpack.c.l.s4 1983009808
      %v1459 = vunpack.c.0.s8 %v1458
      %v1460 = vlaneseq
      %v1461 = vshrl.u32 %v1460, 7
      %v1462 = vsub.s32 %v1459, %v1461
      %v1463 = vrot.slane %v1449, %v1462
      %v1464 = vcombine.high %v1456, %v1456
      %v1465 = vcombine.high %v1463, %v1463
      %v1466 = vcombine.low %v1426, %v1427
      %v1467 = vcombine.high %v1426, %v1427
      %v1469 = vunpack.c.l.s4 1983009808
      %v1470 = vunpack.c.0.s8 %v1469
      %v1471 = vlaneseq
      %v1472 = vshrl.u32 %v1471, 7
      %v1473 = vsub.s32 %v1470, %v1472
      %v1474 = vrot.slane %v1466, %v1473
      %v1476 = vunpack.c.l.s4 1983009808
      %v1477 = vunpack.c.0.s8 %v1476
      %v1478 = vlaneseq
      %v1479 = vshrl.u32 %v1478, 7
      %v1480 = vsub.s32 %v1477, %v1479
      %v1481 = vrot.slane %v1467, %v1480
      %v1482 = vcombine.high %v1474, %v1474
      %v1483 = vcombine.high %v1481, %v1481
      %v1494 = vcombine.low %v1395, %v1397
      %v1496 = vunpack.c.l.s4 1983009808
      %v1497 = vunpack.c.0.s8 %v1496
      %v1498 = vlaneseq
      %v1499 = vshrl.u32 %v1498, 7
      %v1500 = vsub.s32 %v1497, %v1499
      %v1501 = vrot.slane %v1494, %v1500
      %v1503 = vmul.f32 %v1456, %v1501
      %v1504 = vmul.f32 %v1464, %v1501
      %v1505 = vmul.f32 %v1463, %v1501
      %v1506 = vmul.f32 %v1465, %v1501
      %v1507 = vmul.f32 %v1474, %v1501
      %v1508 = vmul.f32 %v1482, %v1501
      %v1509 = vmul.f32 %v1481, %v1501
      %v1510 = vmul.f32 %v1483, %v1501
      %v1520 = vunpack.c.l.s4 1983009808
      %v1521 = vunpack.c.0.s8 %v1520
      %v1522 = vlaneseq
      %v1523 = vshrl.u32 %v1522, 7
      %v1524 = vsub.s32 %v1521, %v1523
      %v1525 = vrot.slane %v1503, %v1524
      %v1526 = vcombine.high %v1525, %v1525
      %v1528 = vunpack.c.l.s4 1983009808
      %v1529 = vunpack.c.0.s8 %v1528
      %v1530 = vlaneseq
      %v1531 = vshrl.u32 %v1530, 7
      %v1532 = vsub.s32 %v1529, %v1531
      %v1533 = vrot.slane %v1504, %v1532
      %v1534 = vcombine.high %v1533, %v1533
      %v1536 = vunpack.c.l.s4 1983009808
      %v1537 = vunpack.c.0.s8 %v1536
      %v1538 = vlaneseq
      %v1539 = vshrl.u32 %v1538, 7
      %v1540 = vsub.s32 %v1537, %v1539
      %v1541 = vrot.slane %v1505, %v1540
      %v1542 = vcombine.high %v1541, %v1541
      %v1544 = vunpack.c.l.s4 1983009808
      %v1545 = vunpack.c.0.s8 %v1544
      %v1546 = vlaneseq
      %v1547 = vshrl.u32 %v1546, 7
      %v1548 = vsub.s32 %v1545, %v1547
      %v1549 = vrot.slane %v1506, %v1548
      %v1550 = vcombine.high %v1549, %v1549
      %v1552 = vunpack.c.l.s4 1983009808
      %v1553 = vunpack.c.0.s8 %v1552
      %v1554 = vlaneseq
      %v1555 = vshrl.u32 %v1554, 7
      %v1556 = vsub.s32 %v1553, %v1555
      %v1557 = vrot.slane %v1507, %v1556
      %v1558 = vcombine.high %v1557, %v1557
      %v1560 = vunpack.c.l.s4 1983009808
      %v1561 = vunpack.c.0.s8 %v1560
      %v1562 = vlaneseq
      %v1563 = vshrl.u32 %v1562, 7
      %v1564 = vsub.s32 %v1561, %v1563
      %v1565 = vrot.slane %v1508, %v1564
      %v1566 = vcombine.high %v1565, %v1565
      %v1568 = vunpack.c.l.s4 1983009808
      %v1569 = vunpack.c.0.s8 %v1568
      %v1570 = vlaneseq
      %v1571 = vshrl.u32 %v1570, 7
      %v1572 = vsub.s32 %v1569, %v1571
      %v1573 = vrot.slane %v1509, %v1572
      %v1574 = vcombine.high %v1573, %v1573
      %v1576 = vunpack.c.l.s4 1983009808
      %v1577 = vunpack.c.0.s8 %v1576
      %v1578 = vlaneseq
      %v1579 = vshrl.u32 %v1578, 7
      %v1580 = vsub.s32 %v1577, %v1579
      %v1581 = vrot.slane %v1510, %v1580
      %v1582 = vcombine.high %v1581, %v1581
      %v1599 = vadd.f32 %v1428, %v1525
      %v1600 = vadd.f32 %v1429, %v1526
      %v1601 = vadd.f32 %v1430, %v1533
      %v1602 = vadd.f32 %v1431, %v1534
      %v1603 = vadd.f32 %v1432, %v1541
      %v1604 = vadd.f32 %v1433, %v1542
      %v1605 = vadd.f32 %v1434, %v1549
      %v1606 = vadd.f32 %v1435, %v1550
      %v1607 = vadd.f32 %v1436, %v1557
      %v1608 = vadd.f32 %v1437, %v1558
      %v1609 = vadd.f32 %v1438, %v1565
      %v1610 = vadd.f32 %v1439, %v1566
      %v1611 = vadd.f32 %v1440, %v1573
      %v1612 = vadd.f32 %v1441, %v1574
      %v1613 = vadd.f32 %v1442, %v1581
      %v1614 = vadd.f32 %v1443, %v1582
      %v1615 = vmul.f32 %v1324, %v1389
      %v1616 = vmul.f32 %v1325, %v1391
      %v1617 = vadd.f32 %v1615, %v1395
      %v1618 = vadd.f32 %v1616, %v1397
      %s1619 = scalar_lea.vmem %s323, 16
      %v1620 = vld [vmem:[%s1619] sm:$0xf]
      %v1621 = vunpack.c.l.bf16 %v1620
      %v1622 = vmul.f32 %v1621, %v365
      %v1623 = vadd.f32 %v1622, %v379
      %v1624 = vmax.f32 %v1623, 0.0
      %v1626 = vcombine.high %v1624, %v1624
      %v1628 = vpack.c.bf16 %v1624, %v1624
      %v1629 = vpack.c.bf16 %v1626, %v1626
      %v1631 = vsel %vm397, %v1628, 0
      %v1634 = vsel %vm397, %v1629, 0
      %1636 = vmatprep.subr.bf16.mxu0 0
      %1637 = vmatpush1.bf16.msra.mxu0 0
      %1638 = vmatprep.subr.bf16.mxu0 0
      %1639 = vmatpush1.bf16.msra.mxu0 0
      %1640 = vmatprep.subr.bf16.mxu0 0
      %1641 = vmatpush1.bf16.msra.mxu0 0
      %1642 = vmatprep.subr.bf16.mxu0 0
      %1643 = vmatpush1.bf16.msra.mxu0 0
      %1644 = vmatprep.subr.bf16.mxu0 0
      %1645 = vmatpush1.bf16.msra.mxu0 0
      %1646 = vmatprep.subr.bf16.mxu0 0
      %1647 = vmatpush1.bf16.msra.mxu0 0
      %1648 = vmatprep.subr.bf16.mxu0 0
      %1649 = vmatpush1.bf16.msra.mxu0 0
      %1650 = vmatprep.subr.bf16.mxu0 %v1634
      %1651 = vmatpush1.bf16.msra.mxu0 %v1631
      %1652 = vmatprep.subr.bf16.mxu0 0
      %1653 = vmatpush2.bf16.msra.mxu0 0
      %1654 = vmatprep.subr.bf16.mxu0 0
      %1655 = vmatpush2.bf16.msra.mxu0 0
      %1656 = vmatprep.subr.bf16.mxu0 0
      %1657 = vmatpush2.bf16.msra.mxu0 0
      %1658 = vmatprep.subr.bf16.mxu0 0
      %1659 = vmatpush2.bf16.msra.mxu0 0
      %1660 = vmatprep.subr.bf16.mxu0 0
      %1661 = vmatpush2.bf16.msra.mxu0 0
      %1662 = vmatprep.subr.bf16.mxu0 0
      %1663 = vmatpush2.bf16.msra.mxu0 0
      %1664 = vmatprep.subr.bf16.mxu0 0
      %1665 = vmatpush2.bf16.msra.mxu0 0
      %1666 = vmatprep.subr.bf16.mxu0 0
      %1667 = vmatpush2.bf16.msra.mxu0 0
      %1668 = vmatprep.mubr.bf16.mxu0 0
      %1669 = vmatmul.mubr.bf16.gmra.mxu0 %v395
      %v1670 = vpop.f32.mrf.mxu0
      %v1671 = vadd.f32 %v391, %v1670
      %v1672 = vpop.f32.mrf.mxu0
      %v1673 = vadd.f32 %v391, %v1672
      %v1674 = vpop.f32.mrf.mxu0
      %v1675 = vpop.f32.mrf.mxu0
      %1676 = vdwg.mxu0
      %v1677 = vmax.f32 %v1384, %v1671
      %v1678 = vmax.f32 %v1385, %v1673
      %v1679 = vsub.f32 %v1384, %v1677
      %v1680 = vsub.f32 %v1385, %v1678
      %v1681 = vmul.f32 %v1679, 1.442695
      %v1682 = vpow.pop %v1681
      %v1683 = vmul.f32 %v1680, 1.442695
      %v1684 = vpow.pop %v1683
      %v1685 = vsub.f32 %v1671, %v1677
      %v1686 = vsub.f32 %v1673, %v1678
      %v1687 = vmul.f32 %v1685, 1.442695
      %v1688 = vpow.pop %v1687
      %v1689 = vmul.f32 %v1686, 1.442695
      %v1690 = vpow.pop %v1689
      %v1691 = vmul.f32 %v1599, %v1682
      %v1692 = vmul.f32 %v1600, %v1684
      %v1693 = vmul.f32 %v1601, %v1682
      %v1694 = vmul.f32 %v1602, %v1684
      %v1695 = vmul.f32 %v1603, %v1682
      %v1696 = vmul.f32 %v1604, %v1684
      %v1697 = vmul.f32 %v1605, %v1682
      %v1698 = vmul.f32 %v1606, %v1684
      %v1699 = vmul.f32 %v1607, %v1682
      %v1700 = vmul.f32 %v1608, %v1684
      %v1701 = vmul.f32 %v1609, %v1682
      %v1702 = vmul.f32 %v1610, %v1684
      %v1703 = vmul.f32 %v1611, %v1682
      %v1704 = vmul.f32 %v1612, %v1684
      %v1705 = vmul.f32 %v1613, %v1682
      %v1706 = vmul.f32 %v1614, %v1684
      %v1711 = vcombine.low %v346, %v347
      %v1712 = vcombine.high %v346, %v347
      %v1714 = vunpack.c.l.s4 1983009808
      %v1715 = vunpack.c.0.s8 %v1714
      %v1716 = vlaneseq
      %v1717 = vshrl.u32 %v1716, 7
      %v1718 = vsub.s32 %v1715, %v1717
      %v1719 = vrot.slane %v1711, %v1718
      %v1721 = vunpack.c.l.s4 1983009808
      %v1722 = vunpack.c.0.s8 %v1721
      %v1723 = vlaneseq
      %v1724 = vshrl.u32 %v1723, 7
      %v1725 = vsub.s32 %v1722, %v1724
      %v1726 = vrot.slane %v1712, %v1725
      %v1727 = vcombine.high %v1719, %v1719
      %v1728 = vcombine.high %v1726, %v1726
      %v1729 = vcombine.low %v348, %v349
      %v1730 = vcombine.high %v348, %v349
      %v1732 = vunpack.c.l.s4 1983009808
      %v1733 = vunpack.c.0.s8 %v1732
      %v1734 = vlaneseq
      %v1735 = vshrl.u32 %v1734, 7
      %v1736 = vsub.s32 %v1733, %v1735
      %v1737 = vrot.slane %v1729, %v1736
      %v1739 = vunpack.c.l.s4 1983009808
      %v1740 = vunpack.c.0.s8 %v1739
      %v1741 = vlaneseq
      %v1742 = vshrl.u32 %v1741, 7
      %v1743 = vsub.s32 %v1740, %v1742
      %v1744 = vrot.slane %v1730, %v1743
      %v1745 = vcombine.high %v1737, %v1737
      %v1746 = vcombine.high %v1744, %v1744
      %v1757 = vcombine.low %v1688, %v1690
      %v1759 = vunpack.c.l.s4 1983009808
      %v1760 = vunpack.c.0.s8 %v1759
      %v1761 = vlaneseq
      %v1762 = vshrl.u32 %v1761, 7
      %v1763 = vsub.s32 %v1760, %v1762
      %v1764 = vrot.slane %v1757, %v1763
      %v1766 = vmul.f32 %v1719, %v1764
      %v1767 = vmul.f32 %v1727, %v1764
      %v1768 = vmul.f32 %v1726, %v1764
      %v1769 = vmul.f32 %v1728, %v1764
      %v1770 = vmul.f32 %v1737, %v1764
      %v1771 = vmul.f32 %v1745, %v1764
      %v1772 = vmul.f32 %v1744, %v1764
      %v1773 = vmul.f32 %v1746, %v1764
      %v1783 = vunpack.c.l.s4 1983009808
      %v1784 = vunpack.c.0.s8 %v1783
      %v1785 = vlaneseq
      %v1786 = vshrl.u32 %v1785, 7
      %v1787 = vsub.s32 %v1784, %v1786
      %v1788 = vrot.slane %v1766, %v1787
      %v1789 = vcombine.high %v1788, %v1788
      %v1791 = vunpack.c.l.s4 1983009808
      %v1792 = vunpack.c.0.s8 %v1791
      %v1793 = vlaneseq
      %v1794 = vshrl.u32 %v1793, 7
      %v1795 = vsub.s32 %v1792, %v1794
      %v1796 = vrot.slane %v1767, %v1795
      %v1797 = vcombine.high %v1796, %v1796
      %v1799 = vunpack.c.l.s4 1983009808
      %v1800 = vunpack.c.0.s8 %v1799
      %v1801 = vlaneseq
      %v1802 = vshrl.u32 %v1801, 7
      %v1803 = vsub.s32 %v1800, %v1802
      %v1804 = vrot.slane %v1768, %v1803
      %v1805 = vcombine.high %v1804, %v1804
      %v1807 = vunpack.c.l.s4 1983009808
      %v1808 = vunpack.c.0.s8 %v1807
      %v1809 = vlaneseq
      %v1810 = vshrl.u32 %v1809, 7
      %v1811 = vsub.s32 %v1808, %v1810
      %v1812 = vrot.slane %v1769, %v1811
      %v1813 = vcombine.high %v1812, %v1812
      %v1815 = vunpack.c.l.s4 1983009808
      %v1816 = vunpack.c.0.s8 %v1815
      %v1817 = vlaneseq
      %v1818 = vshrl.u32 %v1817, 7
      %v1819 = vsub.s32 %v1816, %v1818
      %v1820 = vrot.slane %v1770, %v1819
      %v1821 = vcombine.high %v1820, %v1820
      %v1823 = vunpack.c.l.s4 1983009808
      %v1824 = vunpack.c.0.s8 %v1823
      %v1825 = vlaneseq
      %v1826 = vshrl.u32 %v1825, 7
      %v1827 = vsub.s32 %v1824, %v1826
      %v1828 = vrot.slane %v1771, %v1827
      %v1829 = vcombine.high %v1828, %v1828
      %v1831 = vunpack.c.l.s4 1983009808
      %v1832 = vunpack.c.0.s8 %v1831
      %v1833 = vlaneseq
      %v1834 = vshrl.u32 %v1833, 7
      %v1835 = vsub.s32 %v1832, %v1834
      %v1836 = vrot.slane %v1772, %v1835
      %v1837 = vcombine.high %v1836, %v1836
      %v1839 = vunpack.c.l.s4 1983009808
      %v1840 = vunpack.c.0.s8 %v1839
      %v1841 = vlaneseq
      %v1842 = vshrl.u32 %v1841, 7
      %v1843 = vsub.s32 %v1840, %v1842
      %v1844 = vrot.slane %v1773, %v1843
      %v1845 = vcombine.high %v1844, %v1844
      %v1862 = vadd.f32 %v1691, %v1788
      %v1863 = vadd.f32 %v1692, %v1789
      %v1864 = vadd.f32 %v1693, %v1796
      %v1865 = vadd.f32 %v1694, %v1797
      %v1866 = vadd.f32 %v1695, %v1804
      %v1867 = vadd.f32 %v1696, %v1805
      %v1868 = vadd.f32 %v1697, %v1812
      %v1869 = vadd.f32 %v1698, %v1813
      %v1870 = vadd.f32 %v1699, %v1820
      %v1871 = vadd.f32 %v1700, %v1821
      %v1872 = vadd.f32 %v1701, %v1828
      %v1873 = vadd.f32 %v1702, %v1829
      %v1874 = vadd.f32 %v1703, %v1836
      %v1875 = vadd.f32 %v1704, %v1837
      %v1876 = vadd.f32 %v1705, %v1844
      %v1877 = vadd.f32 %v1706, %v1845
      %v1878 = vmul.f32 %v1617, %v1682
      %v1879 = vmul.f32 %v1618, %v1684
      %v1880 = vadd.f32 %v1878, %v1688
      %v1881 = vadd.f32 %v1879, %v1690
      %s1882 = scalar_lea.vmem %s323, 20
      %v1883 = vld [vmem:[%s1882] sm:$0xf]
      %v1884 = vunpack.c.l.bf16 %v1883
      %v1885 = vmul.f32 %v1884, %v365
      %v1886 = vadd.f32 %v1885, %v379
      %v1887 = vmax.f32 %v1886, 0.0
      %v1889 = vcombine.high %v1887, %v1887
      %v1891 = vpack.c.bf16 %v1887, %v1887
      %v1892 = vpack.c.bf16 %v1889, %v1889
      %v1894 = vsel %vm397, %v1891, 0
      %v1897 = vsel %vm397, %v1892, 0
      %1899 = vmatprep.subr.bf16.mxu0 0
      %1900 = vmatpush1.bf16.msra.mxu0 0
      %1901 = vmatprep.subr.bf16.mxu0 0
      %1902 = vmatpush1.bf16.msra.mxu0 0
      %1903 = vmatprep.subr.bf16.mxu0 0
      %1904 = vmatpush1.bf16.msra.mxu0 0
      %1905 = vmatprep.subr.bf16.mxu0 0
      %1906 = vmatpush1.bf16.msra.mxu0 0
      %1907 = vmatprep.subr.bf16.mxu0 0
      %1908 = vmatpush1.bf16.msra.mxu0 0
      %1909 = vmatprep.subr.bf16.mxu0 0
      %1910 = vmatpush1.bf16.msra.mxu0 0
      %1911 = vmatprep.subr.bf16.mxu0 0
      %1912 = vmatpush1.bf16.msra.mxu0 0
      %1913 = vmatprep.subr.bf16.mxu0 %v1897
      %1914 = vmatpush1.bf16.msra.mxu0 %v1894
      %1915 = vmatprep.subr.bf16.mxu0 0
      %1916 = vmatpush2.bf16.msra.mxu0 0
      %1917 = vmatprep.subr.bf16.mxu0 0
      %1918 = vmatpush2.bf16.msra.mxu0 0
      %1919 = vmatprep.subr.bf16.mxu0 0
      %1920 = vmatpush2.bf16.msra.mxu0 0
      %1921 = vmatprep.subr.bf16.mxu0 0
      %1922 = vmatpush2.bf16.msra.mxu0 0
      %1923 = vmatprep.subr.bf16.mxu0 0
      %1924 = vmatpush2.bf16.msra.mxu0 0
      %1925 = vmatprep.subr.bf16.mxu0 0
      %1926 = vmatpush2.bf16.msra.mxu0 0
      %1927 = vmatprep.subr.bf16.mxu0 0
      %1928 = vmatpush2.bf16.msra.mxu0 0
      %1929 = vmatprep.subr.bf16.mxu0 0
      %1930 = vmatpush2.bf16.msra.mxu0 0
      %1931 = vmatprep.mubr.bf16.mxu0 0
      %1932 = vmatmul.mubr.bf16.gmra.mxu0 %v395
      %v1933 = vpop.f32.mrf.mxu0
      %v1934 = vadd.f32 %v391, %v1933
      %v1935 = vpop.f32.mrf.mxu0
      %v1936 = vadd.f32 %v391, %v1935
      %v1937 = vpop.f32.mrf.mxu0
      %v1938 = vpop.f32.mrf.mxu0
      %1939 = vdwg.mxu0
      %v1940 = vmax.f32 %v1677, %v1934
      %v1941 = vmax.f32 %v1678, %v1936
      %v1942 = vsub.f32 %v1677, %v1940
      %v1943 = vsub.f32 %v1678, %v1941
      %v1944 = vmul.f32 %v1942, 1.442695
      %v1945 = vpow.pop %v1944
      %v1946 = vmul.f32 %v1943, 1.442695
      %v1947 = vpow.pop %v1946
      %v1948 = vsub.f32 %v1934, %v1940
      %v1949 = vsub.f32 %v1936, %v1941
      %v1950 = vmul.f32 %v1948, 1.442695
      %v1951 = vpow.pop %v1950
      %v1952 = vmul.f32 %v1949, 1.442695
      %v1953 = vpow.pop %v1952
      %v1954 = vsel %vm1109, %v1409, %v1420
      %v1955 = vsel %vm1110, %v1407, %v1422
      %v1956 = vsel %vm1109, %v1410, %v1421
      %v1957 = vsel %vm1110, %v1408, %v1423
      %v1958 = vmul.f32 %v1862, %v1945
      %v1959 = vmul.f32 %v1863, %v1947
      %v1960 = vmul.f32 %v1864, %v1945
      %v1961 = vmul.f32 %v1865, %v1947
      %v1962 = vmul.f32 %v1866, %v1945
      %v1963 = vmul.f32 %v1867, %v1947
      %v1964 = vmul.f32 %v1868, %v1945
      %v1965 = vmul.f32 %v1869, %v1947
      %v1966 = vmul.f32 %v1870, %v1945
      %v1967 = vmul.f32 %v1871, %v1947
      %v1968 = vmul.f32 %v1872, %v1945
      %v1969 = vmul.f32 %v1873, %v1947
      %v1970 = vmul.f32 %v1874, %v1945
      %v1971 = vmul.f32 %v1875, %v1947
      %v1972 = vmul.f32 %v1876, %v1945
      %v1973 = vmul.f32 %v1877, %v1947
      %v1978 = vcombine.low %v1954, %v1955
      %v1979 = vcombine.high %v1954, %v1955
      %v1981 = vunpack.c.l.s4 1983009808
      %v1982 = vunpack.c.0.s8 %v1981
      %v1983 = vlaneseq
      %v1984 = vshrl.u32 %v1983, 7
      %v1985 = vsub.s32 %v1982, %v1984
      %v1986 = vrot.slane %v1978, %v1985
      %v1988 = vunpack.c.l.s4 1983009808
      %v1989 = vunpack.c.0.s8 %v1988
      %v1990 = vlaneseq
      %v1991 = vshrl.u32 %v1990, 7
      %v1992 = vsub.s32 %v1989, %v1991
      %v1993 = vrot.slane %v1979, %v1992
      %v1994 = vcombine.high %v1986, %v1986
      %v1995 = vcombine.high %v1993, %v1993
      %v1996 = vcombine.low %v1956, %v1957
      %v1997 = vcombine.high %v1956, %v1957
      %v1999 = vunpack.c.l.s4 1983009808
      %v2000 = vunpack.c.0.s8 %v1999
      %v2001 = vlaneseq
      %v2002 = vshrl.u32 %v2001, 7
      %v2003 = vsub.s32 %v2000, %v2002
      %v2004 = vrot.slane %v1996, %v2003
      %v2006 = vunpack.c.l.s4 1983009808
      %v2007 = vunpack.c.0.s8 %v2006
      %v2008 = vlaneseq
      %v2009 = vshrl.u32 %v2008, 7
      %v2010 = vsub.s32 %v2007, %v2009
      %v2011 = vrot.slane %v1997, %v2010
      %v2012 = vcombine.high %v2004, %v2004
      %v2013 = vcombine.high %v2011, %v2011
      %v2024 = vcombine.low %v1951, %v1953
      %v2026 = vunpack.c.l.s4 1983009808
      %v2027 = vunpack.c.0.s8 %v2026
      %v2028 = vlaneseq
      %v2029 = vshrl.u32 %v2028, 7
      %v2030 = vsub.s32 %v2027, %v2029
      %v2031 = vrot.slane %v2024, %v2030
      %v2033 = vmul.f32 %v1986, %v2031
      %v2034 = vmul.f32 %v1994, %v2031
      %v2035 = vmul.f32 %v1993, %v2031
      %v2036 = vmul.f32 %v1995, %v2031
      %v2037 = vmul.f32 %v2004, %v2031
      %v2038 = vmul.f32 %v2012, %v2031
      %v2039 = vmul.f32 %v2011, %v2031
      %v2040 = vmul.f32 %v2013, %v2031
      %v2050 = vunpack.c.l.s4 1983009808
      %v2051 = vunpack.c.0.s8 %v2050
      %v2052 = vlaneseq
      %v2053 = vshrl.u32 %v2052, 7
      %v2054 = vsub.s32 %v2051, %v2053
      %v2055 = vrot.slane %v2033, %v2054
      %v2056 = vcombine.high %v2055, %v2055
      %v2058 = vunpack.c.l.s4 1983009808
      %v2059 = vunpack.c.0.s8 %v2058
      %v2060 = vlaneseq
      %v2061 = vshrl.u32 %v2060, 7
      %v2062 = vsub.s32 %v2059, %v2061
      %v2063 = vrot.slane %v2034, %v2062
      %v2064 = vcombine.high %v2063, %v2063
      %v2066 = vunpack.c.l.s4 1983009808
      %v2067 = vunpack.c.0.s8 %v2066
      %v2068 = vlaneseq
      %v2069 = vshrl.u32 %v2068, 7
      %v2070 = vsub.s32 %v2067, %v2069
      %v2071 = vrot.slane %v2035, %v2070
      %v2072 = vcombine.high %v2071, %v2071
      %v2074 = vunpack.c.l.s4 1983009808
      %v2075 = vunpack.c.0.s8 %v2074
      %v2076 = vlaneseq
      %v2077 = vshrl.u32 %v2076, 7
      %v2078 = vsub.s32 %v2075, %v2077
      %v2079 = vrot.slane %v2036, %v2078
      %v2080 = vcombine.high %v2079, %v2079
      %v2082 = vunpack.c.l.s4 1983009808
      %v2083 = vunpack.c.0.s8 %v2082
      %v2084 = vlaneseq
      %v2085 = vshrl.u32 %v2084, 7
      %v2086 = vsub.s32 %v2083, %v2085
      %v2087 = vrot.slane %v2037, %v2086
      %v2088 = vcombine.high %v2087, %v2087
      %v2090 = vunpack.c.l.s4 1983009808
      %v2091 = vunpack.c.0.s8 %v2090
      %v2092 = vlaneseq
      %v2093 = vshrl.u32 %v2092, 7
      %v2094 = vsub.s32 %v2091, %v2093
      %v2095 = vrot.slane %v2038, %v2094
      %v2096 = vcombine.high %v2095, %v2095
      %v2098 = vunpack.c.l.s4 1983009808
      %v2099 = vunpack.c.0.s8 %v2098
      %v2100 = vlaneseq
      %v2101 = vshrl.u32 %v2100, 7
      %v2102 = vsub.s32 %v2099, %v2101
      %v2103 = vrot.slane %v2039, %v2102
      %v2104 = vcombine.high %v2103, %v2103
      %v2106 = vunpack.c.l.s4 1983009808
      %v2107 = vunpack.c.0.s8 %v2106
      %v2108 = vlaneseq
      %v2109 = vshrl.u32 %v2108, 7
      %v2110 = vsub.s32 %v2107, %v2109
      %v2111 = vrot.slane %v2040, %v2110
      %v2112 = vcombine.high %v2111, %v2111
      %v2129 = vadd.f32 %v1958, %v2055
      %v2130 = vadd.f32 %v1959, %v2056
      %v2131 = vadd.f32 %v1960, %v2063
      %v2132 = vadd.f32 %v1961, %v2064
      %v2133 = vadd.f32 %v1962, %v2071
      %v2134 = vadd.f32 %v1963, %v2072
      %v2135 = vadd.f32 %v1964, %v2079
      %v2136 = vadd.f32 %v1965, %v2080
      %v2137 = vadd.f32 %v1966, %v2087
      %v2138 = vadd.f32 %v1967, %v2088
      %v2139 = vadd.f32 %v1968, %v2095
      %v2140 = vadd.f32 %v1969, %v2096
      %v2141 = vadd.f32 %v1970, %v2103
      %v2142 = vadd.f32 %v1971, %v2104
      %v2143 = vadd.f32 %v1972, %v2111
      %v2144 = vadd.f32 %v1973, %v2112
      %v2145 = vmul.f32 %v1880, %v1945
      %v2146 = vmul.f32 %v1881, %v1947
      %v2147 = vadd.f32 %v2145, %v1951
      %v2148 = vadd.f32 %v2146, %v1953
      %s2149 = scalar_lea.vmem %s323, 24
      %v2150 = vld [vmem:[%s2149] sm:$0xf]
      %v2151 = vunpack.c.l.bf16 %v2150
      %v2152 = vmul.f32 %v2151, %v365
      %v2153 = vadd.f32 %v2152, %v379
      %v2154 = vmax.f32 %v2153, 0.0
      %v2156 = vcombine.high %v2154, %v2154
      %v2158 = vpack.c.bf16 %v2154, %v2154
      %v2159 = vpack.c.bf16 %v2156, %v2156
      %v2161 = vsel %vm397, %v2158, 0
      %v2164 = vsel %vm397, %v2159, 0
      %2166 = vmatprep.subr.bf16.mxu0 0
      %2167 = vmatpush1.bf16.msra.mxu0 0
      %2168 = vmatprep.subr.bf16.mxu0 0
      %2169 = vmatpush1.bf16.msra.mxu0 0
      %2170 = vmatprep.subr.bf16.mxu0 0
      %2171 = vmatpush1.bf16.msra.mxu0 0
      %2172 = vmatprep.subr.bf16.mxu0 0
      %2173 = vmatpush1.bf16.msra.mxu0 0
      %2174 = vmatprep.subr.bf16.mxu0 0
      %2175 = vmatpush1.bf16.msra.mxu0 0
      %2176 = vmatprep.subr.bf16.mxu0 0
      %2177 = vmatpush1.bf16.msra.mxu0 0
      %2178 = vmatprep.subr.bf16.mxu0 0
      %2179 = vmatpush1.bf16.msra.mxu0 0
      %2180 = vmatprep.subr.bf16.mxu0 %v2164
      %2181 = vmatpush1.bf16.msra.mxu0 %v2161
      %2182 = vmatprep.subr.bf16.mxu0 0
      %2183 = vmatpush2.bf16.msra.mxu0 0
      %2184 = vmatprep.subr.bf16.mxu0 0
      %2185 = vmatpush2.bf16.msra.mxu0 0
      %2186 = vmatprep.subr.bf16.mxu0 0
      %2187 = vmatpush2.bf16.msra.mxu0 0
      %2188 = vmatprep.subr.bf16.mxu0 0
      %2189 = vmatpush2.bf16.msra.mxu0 0
      %2190 = vmatprep.subr.bf16.mxu0 0
      %2191 = vmatpush2.bf16.msra.mxu0 0
      %2192 = vmatprep.subr.bf16.mxu0 0
      %2193 = vmatpush2.bf16.msra.mxu0 0
      %2194 = vmatprep.subr.bf16.mxu0 0
      %2195 = vmatpush2.bf16.msra.mxu0 0
      %2196 = vmatprep.subr.bf16.mxu0 0
      %2197 = vmatpush2.bf16.msra.mxu0 0
      %2198 = vmatprep.mubr.bf16.mxu0 0
      %2199 = vmatmul.mubr.bf16.gmra.mxu0 %v395
      %v2200 = vpop.f32.mrf.mxu0
      %v2201 = vadd.f32 %v391, %v2200
      %v2202 = vpop.f32.mrf.mxu0
      %v2203 = vadd.f32 %v391, %v2202
      %v2204 = vpop.f32.mrf.mxu0
      %v2205 = vpop.f32.mrf.mxu0
      %2206 = vdwg.mxu0
      %v2207 = vmax.f32 %v1940, %v2201
      %v2208 = vmax.f32 %v1941, %v2203
      %v2209 = vsub.f32 %v1940, %v2207
      %v2210 = vsub.f32 %v1941, %v2208
      %v2211 = vmul.f32 %v2209, 1.442695
      %v2212 = vpow.pop %v2211
      %v2213 = vmul.f32 %v2210, 1.442695
      %v2214 = vpow.pop %v2213
      %v2215 = vsub.f32 %v2201, %v2207
      %v2216 = vsub.f32 %v2203, %v2208
      %v2217 = vmul.f32 %v2215, 1.442695
      %v2218 = vpow.pop %v2217
      %v2219 = vmul.f32 %v2216, 1.442695
      %v2220 = vpow.pop %v2219
      %v2221 = vsel %vm495, %v540, %v511
      %v2222 = vsel %vm496, %v542, %v513
      %v2223 = vsel %vm495, %v541, %v512
      %v2224 = vsel %vm496, %v543, %v514
      %vm2225 = vcmp.eq.s32.totalorder %v340, 15
      %v2226 = vsel %vm2225, 1, 0
      %v2227 = vlaneseq
      %v2228 = vshrl.u32 %v2227, 7
      %v2229 = vsub.s32 0, %v2228
      %v2230 = vrot.slane %v2226, %v2229
      %v2231 = vlaneseq
      %v2232 = vshrl.u32 %v2231, 7
      %v2233 = vsub.s32 1, %v2232
      %v2234 = vrot.slane %v2226, %v2233
      %vm2235 = vcmp.eq.s32.totalorder %v2230, 1
      %vm2236 = vcmp.eq.s32.totalorder %v2234, 1
      %v2237 = vsel %vm2235, %v470, %v2221
      %v2238 = vsel %vm2236, %v468, %v2222
      %v2239 = vsel %vm2235, %v471, %v2223
      %v2240 = vsel %vm2236, %v469, %v2224
      %vm2241 = vmand %vm2225, %vm472
      %v2242 = vsel %vm2241, 1, 0
      %v2243 = vlaneseq
      %v2244 = vshrl.u32 %v2243, 7
      %v2245 = vsub.s32 0, %v2244
      %v2246 = vrot.slane %v2242, %v2245
      %v2247 = vlaneseq
      %v2248 = vshrl.u32 %v2247, 7
      %v2249 = vsub.s32 1, %v2248
      %v2250 = vrot.slane %v2242, %v2249
      %vm2251 = vcmp.eq.s32.totalorder %v2246, 1
      %vm2252 = vcmp.eq.s32.totalorder %v2250, 1
      %v2253 = vsel %vm2251, %v484, %v2237
      %v2254 = vsel %vm2252, %v482, %v2238
      %v2255 = vsel %vm2251, %v485, %v2239
      %v2256 = vsel %vm2252, %v483, %v2240
      %v2257 = vmul.f32 %v2129, %v2212
      %v2258 = vmul.f32 %v2130, %v2214
      %v2259 = vmul.f32 %v2131, %v2212
      %v2260 = vmul.f32 %v2132, %v2214
      %v2261 = vmul.f32 %v2133, %v2212
      %v2262 = vmul.f32 %v2134, %v2214
      %v2263 = vmul.f32 %v2135, %v2212
      %v2264 = vmul.f32 %v2136, %v2214
      %v2265 = vmul.f32 %v2137, %v2212
      %v2266 = vmul.f32 %v2138, %v2214
      %v2267 = vmul.f32 %v2139, %v2212
      %v2268 = vmul.f32 %v2140, %v2214
      %v2269 = vmul.f32 %v2141, %v2212
      %v2270 = vmul.f32 %v2142, %v2214
      %v2271 = vmul.f32 %v2143, %v2212
      %v2272 = vmul.f32 %v2144, %v2214
      %v2277 = vcombine.low %v2253, %v2254
      %v2278 = vcombine.high %v2253, %v2254
      %v2280 = vunpack.c.l.s4 1983009808
      %v2281 = vunpack.c.0.s8 %v2280
      %v2282 = vlaneseq
      %v2283 = vshrl.u32 %v2282, 7
      %v2284 = vsub.s32 %v2281, %v2283
      %v2285 = vrot.slane %v2277, %v2284
      %v2287 = vunpack.c.l.s4 1983009808
      %v2288 = vunpack.c.0.s8 %v2287
      %v2289 = vlaneseq
      %v2290 = vshrl.u32 %v2289, 7
      %v2291 = vsub.s32 %v2288, %v2290
      %v2292 = vrot.slane %v2278, %v2291
      %v2293 = vcombine.high %v2285, %v2285
      %v2294 = vcombine.high %v2292, %v2292
      %v2295 = vcombine.low %v2255, %v2256
      %v2296 = vcombine.high %v2255, %v2256
      %v2298 = vunpack.c.l.s4 1983009808
      %v2299 = vunpack.c.0.s8 %v2298
      %v2300 = vlaneseq
      %v2301 = vshrl.u32 %v2300, 7
      %v2302 = vsub.s32 %v2299, %v2301
      %v2303 = vrot.slane %v2295, %v2302
      %v2305 = vunpack.c.l.s4 1983009808
      %v2306 = vunpack.c.0.s8 %v2305
      %v2307 = vlaneseq
      %v2308 = vshrl.u32 %v2307, 7
      %v2309 = vsub.s32 %v2306, %v2308
      %v2310 = vrot.slane %v2296, %v2309
      %v2311 = vcombine.high %v2303, %v2303
      %v2312 = vcombine.high %v2310, %v2310
      %v2323 = vcombine.low %v2218, %v2220
      %v2325 = vunpack.c.l.s4 1983009808
      %v2326 = vunpack.c.0.s8 %v2325
      %v2327 = vlaneseq
      %v2328 = vshrl.u32 %v2327, 7
      %v2329 = vsub.s32 %v2326, %v2328
      %v2330 = vrot.slane %v2323, %v2329
      %v2332 = vmul.f32 %v2285, %v2330
      %v2333 = vmul.f32 %v2293, %v2330
      %v2334 = vmul.f32 %v2292, %v2330
      %v2335 = vmul.f32 %v2294, %v2330
      %v2336 = vmul.f32 %v2303, %v2330
      %v2337 = vmul.f32 %v2311, %v2330
      %v2338 = vmul.f32 %v2310, %v2330
      %v2339 = vmul.f32 %v2312, %v2330
      %v2349 = vunpack.c.l.s4 1983009808
      %v2350 = vunpack.c.0.s8 %v2349
      %v2351 = vlaneseq
      %v2352 = vshrl.u32 %v2351, 7
      %v2353 = vsub.s32 %v2350, %v2352
      %v2354 = vrot.slane %v2332, %v2353
      %v2355 = vcombine.high %v2354, %v2354
      %v2357 = vunpack.c.l.s4 1983009808
      %v2358 = vunpack.c.0.s8 %v2357
      %v2359 = vlaneseq
      %v2360 = vshrl.u32 %v2359, 7
      %v2361 = vsub.s32 %v2358, %v2360
      %v2362 = vrot.slane %v2333, %v2361
      %v2363 = vcombine.high %v2362, %v2362
      %v2365 = vunpack.c.l.s4 1983009808
      %v2366 = vunpack.c.0.s8 %v2365
      %v2367 = vlaneseq
      %v2368 = vshrl.u32 %v2367, 7
      %v2369 = vsub.s32 %v2366, %v2368
      %v2370 = vrot.slane %v2334, %v2369
      %v2371 = vcombine.high %v2370, %v2370
      %v2373 = vunpack.c.l.s4 1983009808
      %v2374 = vunpack.c.0.s8 %v2373
      %v2375 = vlaneseq
      %v2376 = vshrl.u32 %v2375, 7
      %v2377 = vsub.s32 %v2374, %v2376
      %v2378 = vrot.slane %v2335, %v2377
      %v2379 = vcombine.high %v2378, %v2378
      %v2381 = vunpack.c.l.s4 1983009808
      %v2382 = vunpack.c.0.s8 %v2381
      %v2383 = vlaneseq
      %v2384 = vshrl.u32 %v2383, 7
      %v2385 = vsub.s32 %v2382, %v2384
      %v2386 = vrot.slane %v2336, %v2385
      %v2387 = vcombine.high %v2386, %v2386
      %v2389 = vunpack.c.l.s4 1983009808
      %v2390 = vunpack.c.0.s8 %v2389
      %v2391 = vlaneseq
      %v2392 = vshrl.u32 %v2391, 7
      %v2393 = vsub.s32 %v2390, %v2392
      %v2394 = vrot.slane %v2337, %v2393
      %v2395 = vcombine.high %v2394, %v2394
      %v2397 = vunpack.c.l.s4 1983009808
      %v2398 = vunpack.c.0.s8 %v2397
      %v2399 = vlaneseq
      %v2400 = vshrl.u32 %v2399, 7
      %v2401 = vsub.s32 %v2398, %v2400
      %v2402 = vrot.slane %v2338, %v2401
      %v2403 = vcombine.high %v2402, %v2402
      %v2405 = vunpack.c.l.s4 1983009808
      %v2406 = vunpack.c.0.s8 %v2405
      %v2407 = vlaneseq
      %v2408 = vshrl.u32 %v2407, 7
      %v2409 = vsub.s32 %v2406, %v2408
      %v2410 = vrot.slane %v2339, %v2409
      %v2411 = vcombine.high %v2410, %v2410
      %v2428 = vadd.f32 %v2257, %v2354
      %v2429 = vadd.f32 %v2258, %v2355
      %v2430 = vadd.f32 %v2259, %v2362
      %v2431 = vadd.f32 %v2260, %v2363
      %v2432 = vadd.f32 %v2261, %v2370
      %v2433 = vadd.f32 %v2262, %v2371
      %v2434 = vadd.f32 %v2263, %v2378
      %v2435 = vadd.f32 %v2264, %v2379
      %v2436 = vadd.f32 %v2265, %v2386
      %v2437 = vadd.f32 %v2266, %v2387
      %v2438 = vadd.f32 %v2267, %v2394
      %v2439 = vadd.f32 %v2268, %v2395
      %v2440 = vadd.f32 %v2269, %v2402
      %v2441 = vadd.f32 %v2270, %v2403
      %v2442 = vadd.f32 %v2271, %v2410
      %v2443 = vadd.f32 %v2272, %v2411
      %v2444 = vmul.f32 %v2147, %v2212
      %v2445 = vmul.f32 %v2148, %v2214
      %v2446 = vadd.f32 %v2444, %v2218
      %v2447 = vadd.f32 %v2445, %v2220
      %s2448 = scalar_lea.vmem %s323, 28
      %v2449 = vld [vmem:[%s2448] sm:$0xf]
      %v2450 = vunpack.c.l.bf16 %v2449
      %v2451 = vmul.f32 %v2450, %v365
      %v2452 = vadd.f32 %v2451, %v379
      %v2453 = vmax.f32 %v2452, 0.0
      %v2455 = vcombine.high %v2453, %v2453
      %v2457 = vpack.c.bf16 %v2453, %v2453
      %v2458 = vpack.c.bf16 %v2455, %v2455
      %v2460 = vsel %vm397, %v2457, 0
      %v2463 = vsel %vm397, %v2458, 0
      %2465 = vmatprep.subr.bf16.mxu0 0
      %2466 = vmatpush1.bf16.msra.mxu0 0
      %2467 = vmatprep.subr.bf16.mxu0 0
      %2468 = vmatpush1.bf16.msra.mxu0 0
      %2469 = vmatprep.subr.bf16.mxu0 0
      %2470 = vmatpush1.bf16.msra.mxu0 0
      %2471 = vmatprep.subr.bf16.mxu0 0
      %2472 = vmatpush1.bf16.msra.mxu0 0
      %2473 = vmatprep.subr.bf16.mxu0 0
      %2474 = vmatpush1.bf16.msra.mxu0 0
      %2475 = vmatprep.subr.bf16.mxu0 0
      %2476 = vmatpush1.bf16.msra.mxu0 0
      %2477 = vmatprep.subr.bf16.mxu0 0
      %2478 = vmatpush1.bf16.msra.mxu0 0
      %2479 = vmatprep.subr.bf16.mxu0 %v2463
      %2480 = vmatpush1.bf16.msra.mxu0 %v2460
      %2481 = vmatprep.subr.bf16.mxu0 0
      %2482 = vmatpush2.bf16.msra.mxu0 0
      %2483 = vmatprep.subr.bf16.mxu0 0
      %2484 = vmatpush2.bf16.msra.mxu0 0
      %2485 = vmatprep.subr.bf16.mxu0 0
      %2486 = vmatpush2.bf16.msra.mxu0 0
      %2487 = vmatprep.subr.bf16.mxu0 0
      %2488 = vmatpush2.bf16.msra.mxu0 0
      %2489 = vmatprep.subr.bf16.mxu0 0
      %2490 = vmatpush2.bf16.msra.mxu0 0
      %2491 = vmatprep.subr.bf16.mxu0 0
      %2492 = vmatpush2.bf16.msra.mxu0 0
      %2493 = vmatprep.subr.bf16.mxu0 0
      %2494 = vmatpush2.bf16.msra.mxu0 0
      %2495 = vmatprep.subr.bf16.mxu0 0
      %2496 = vmatpush2.bf16.msra.mxu0 0
      %2497 = vmatprep.mubr.bf16.mxu0 0
      %2498 = vmatmul.mubr.bf16.gmra.mxu0 %v395
      %v2499 = vpop.f32.mrf.mxu0
      %v2500 = vadd.f32 %v391, %v2499
      %v2501 = vpop.f32.mrf.mxu0
      %v2502 = vadd.f32 %v391, %v2501
      %v2503 = vpop.f32.mrf.mxu0
      %v2504 = vpop.f32.mrf.mxu0
      %2505 = vdwg.mxu0
      %v2506 = vmax.f32 %v2207, %v2500
      %v2507 = vmax.f32 %v2208, %v2502
      %v2508 = vsub.f32 %v2207, %v2506
      %v2509 = vsub.f32 %v2208, %v2507
      %v2510 = vmul.f32 %v2508, 1.442695
      %v2511 = vpow.pop %v2510
      %v2512 = vmul.f32 %v2509, 1.442695
      %v2513 = vpow.pop %v2512
      %v2514 = vsub.f32 %v2500, %v2506
      %v2515 = vsub.f32 %v2502, %v2507
      %v2516 = vmul.f32 %v2514, 1.442695
      %v2517 = vpow.pop %v2516
      %v2518 = vmul.f32 %v2515, 1.442695
      %v2519 = vpow.pop %v2518
      %v2520 = vsel %vm2235, %v817, %v828
      %v2521 = vsel %vm2236, %v815, %v830
      %v2522 = vsel %vm2235, %v818, %v829
      %v2523 = vsel %vm2236, %v816, %v831
      %v2524 = vmul.f32 %v2428, %v2511
      %v2525 = vmul.f32 %v2429, %v2513
      %v2526 = vmul.f32 %v2430, %v2511
      %v2527 = vmul.f32 %v2431, %v2513
      %v2528 = vmul.f32 %v2432, %v2511
      %v2529 = vmul.f32 %v2433, %v2513
      %v2530 = vmul.f32 %v2434, %v2511
      %v2531 = vmul.f32 %v2435, %v2513
      %v2532 = vmul.f32 %v2436, %v2511
      %v2533 = vmul.f32 %v2437, %v2513
      %v2534 = vmul.f32 %v2438, %v2511
      %v2535 = vmul.f32 %v2439, %v2513
      %v2536 = vmul.f32 %v2440, %v2511
      %v2537 = vmul.f32 %v2441, %v2513
      %v2538 = vmul.f32 %v2442, %v2511
      %v2539 = vmul.f32 %v2443, %v2513
      %v2544 = vcombine.low %v2520, %v2521
      %v2545 = vcombine.high %v2520, %v2521
      %v2547 = vunpack.c.l.s4 1983009808
      %v2548 = vunpack.c.0.s8 %v2547
      %v2549 = vlaneseq
      %v2550 = vshrl.u32 %v2549, 7
      %v2551 = vsub.s32 %v2548, %v2550
      %v2552 = vrot.slane %v2544, %v2551
      %v2554 = vunpack.c.l.s4 1983009808
      %v2555 = vunpack.c.0.s8 %v2554
      %v2556 = vlaneseq
      %v2557 = vshrl.u32 %v2556, 7
      %v2558 = vsub.s32 %v2555, %v2557
      %v2559 = vrot.slane %v2545, %v2558
      %v2560 = vcombine.high %v2552, %v2552
      %v2561 = vcombine.high %v2559, %v2559
      %v2562 = vcombine.low %v2522, %v2523
      %v2563 = vcombine.high %v2522, %v2523
      %v2565 = vunpack.c.l.s4 1983009808
      %v2566 = vunpack.c.0.s8 %v2565
      %v2567 = vlaneseq
      %v2568 = vshrl.u32 %v2567, 7
      %v2569 = vsub.s32 %v2566, %v2568
      %v2570 = vrot.slane %v2562, %v2569
      %v2572 = vunpack.c.l.s4 1983009808
      %v2573 = vunpack.c.0.s8 %v2572
      %v2574 = vlaneseq
      %v2575 = vshrl.u32 %v2574, 7
      %v2576 = vsub.s32 %v2573, %v2575
      %v2577 = vrot.slane %v2563, %v2576
      %v2578 = vcombine.high %v2570, %v2570
      %v2579 = vcombine.high %v2577, %v2577
      %v2590 = vcombine.low %v2517, %v2519
      %v2592 = vunpack.c.l.s4 1983009808
      %v2593 = vunpack.c.0.s8 %v2592
      %v2594 = vlaneseq
      %v2595 = vshrl.u32 %v2594, 7
      %v2596 = vsub.s32 %v2593, %v2595
      %v2597 = vrot.slane %v2590, %v2596
      %v2599 = vmul.f32 %v2552, %v2597
      %v2600 = vmul.f32 %v2560, %v2597
      %v2601 = vmul.f32 %v2559, %v2597
      %v2602 = vmul.f32 %v2561, %v2597
      %v2603 = vmul.f32 %v2570, %v2597
      %v2604 = vmul.f32 %v2578, %v2597
      %v2605 = vmul.f32 %v2577, %v2597
      %v2606 = vmul.f32 %v2579, %v2597
      %v2616 = vunpack.c.l.s4 1983009808
      %v2617 = vunpack.c.0.s8 %v2616
      %v2618 = vlaneseq
      %v2619 = vshrl.u32 %v2618, 7
      %v2620 = vsub.s32 %v2617, %v2619
      %v2621 = vrot.slane %v2599, %v2620
      %v2622 = vcombine.high %v2621, %v2621
      %v2624 = vunpack.c.l.s4 1983009808
      %v2625 = vunpack.c.0.s8 %v2624
      %v2626 = vlaneseq
      %v2627 = vshrl.u32 %v2626, 7
      %v2628 = vsub.s32 %v2625, %v2627
      %v2629 = vrot.slane %v2600, %v2628
      %v2630 = vcombine.high %v2629, %v2629
      %v2632 = vunpack.c.l.s4 1983009808
      %v2633 = vunpack.c.0.s8 %v2632
      %v2634 = vlaneseq
      %v2635 = vshrl.u32 %v2634, 7
      %v2636 = vsub.s32 %v2633, %v2635
      %v2637 = vrot.slane %v2601, %v2636
      %v2638 = vcombine.high %v2637, %v2637
      %v2640 = vunpack.c.l.s4 1983009808
      %v2641 = vunpack.c.0.s8 %v2640
      %v2642 = vlaneseq
      %v2643 = vshrl.u32 %v2642, 7
      %v2644 = vsub.s32 %v2641, %v2643
      %v2645 = vrot.slane %v2602, %v2644
      %v2646 = vcombine.high %v2645, %v2645
      %v2648 = vunpack.c.l.s4 1983009808
      %v2649 = vunpack.c.0.s8 %v2648
      %v2650 = vlaneseq
      %v2651 = vshrl.u32 %v2650, 7
      %v2652 = vsub.s32 %v2649, %v2651
      %v2653 = vrot.slane %v2603, %v2652
      %v2654 = vcombine.high %v2653, %v2653
      %v2656 = vunpack.c.l.s4 1983009808
      %v2657 = vunpack.c.0.s8 %v2656
      %v2658 = vlaneseq
      %v2659 = vshrl.u32 %v2658, 7
      %v2660 = vsub.s32 %v2657, %v2659
      %v2661 = vrot.slane %v2604, %v2660
      %v2662 = vcombine.high %v2661, %v2661
      %v2664 = vunpack.c.l.s4 1983009808
      %v2665 = vunpack.c.0.s8 %v2664
      %v2666 = vlaneseq
      %v2667 = vshrl.u32 %v2666, 7
      %v2668 = vsub.s32 %v2665, %v2667
      %v2669 = vrot.slane %v2605, %v2668
      %v2670 = vcombine.high %v2669, %v2669
      %v2672 = vunpack.c.l.s4 1983009808
      %v2673 = vunpack.c.0.s8 %v2672
      %v2674 = vlaneseq
      %v2675 = vshrl.u32 %v2674, 7
      %v2676 = vsub.s32 %v2673, %v2675
      %v2677 = vrot.slane %v2606, %v2676
      %v2678 = vcombine.high %v2677, %v2677
      %v2695 = vadd.f32 %v2524, %v2621
      %v2696 = vadd.f32 %v2525, %v2622
      %v2697 = vadd.f32 %v2526, %v2629
      %v2698 = vadd.f32 %v2527, %v2630
      %v2699 = vadd.f32 %v2528, %v2637
      %v2700 = vadd.f32 %v2529, %v2638
      %v2701 = vadd.f32 %v2530, %v2645
      %v2702 = vadd.f32 %v2531, %v2646
      %v2703 = vadd.f32 %v2532, %v2653
      %v2704 = vadd.f32 %v2533, %v2654
      %v2705 = vadd.f32 %v2534, %v2661
      %v2706 = vadd.f32 %v2535, %v2662
      %v2707 = vadd.f32 %v2536, %v2669
      %v2708 = vadd.f32 %v2537, %v2670
      %v2709 = vadd.f32 %v2538, %v2677
      %v2710 = vadd.f32 %v2539, %v2678
      %v2711 = vmul.f32 %v2446, %v2511
      %v2712 = vmul.f32 %v2447, %v2513
      %v2713 = vadd.f32 %v2711, %v2517
      %v2714 = vadd.f32 %v2712, %v2519
      %s2715 = scalar_lea.vmem %s323, 32
      %v2716 = vld [vmem:[%s2715] sm:$0xf]
      %v2717 = vunpack.c.l.bf16 %v2716
      %v2718 = vmul.f32 %v2717, %v365
      %v2719 = vadd.f32 %v2718, %v379
      %v2720 = vmax.f32 %v2719, 0.0
      %v2722 = vcombine.high %v2720, %v2720
      %v2724 = vpack.c.bf16 %v2720, %v2720
      %v2725 = vpack.c.bf16 %v2722, %v2722
      %v2727 = vsel %vm397, %v2724, 0
      %v2730 = vsel %vm397, %v2725, 0
      %2732 = vmatprep.subr.bf16.mxu0 0
      %2733 = vmatpush1.bf16.msra.mxu0 0
      %2734 = vmatprep.subr.bf16.mxu0 0
      %2735 = vmatpush1.bf16.msra.mxu0 0
      %2736 = vmatprep.subr.bf16.mxu0 0
      %2737 = vmatpush1.bf16.msra.mxu0 0
      %2738 = vmatprep.subr.bf16.mxu0 0
      %2739 = vmatpush1.bf16.msra.mxu0 0
      %2740 = vmatprep.subr.bf16.mxu0 0
      %2741 = vmatpush1.bf16.msra.mxu0 0
      %2742 = vmatprep.subr.bf16.mxu0 0
      %2743 = vmatpush1.bf16.msra.mxu0 0
      %2744 = vmatprep.subr.bf16.mxu0 0
      %2745 = vmatpush1.bf16.msra.mxu0 0
      %2746 = vmatprep.subr.bf16.mxu0 %v2730
      %2747 = vmatpush1.bf16.msra.mxu0 %v2727
      %2748 = vmatprep.subr.bf16.mxu0 0
      %2749 = vmatpush2.bf16.msra.mxu0 0
      %2750 = vmatprep.subr.bf16.mxu0 0
      %2751 = vmatpush2.bf16.msra.mxu0 0
      %2752 = vmatprep.subr.bf16.mxu0 0
      %2753 = vmatpush2.bf16.msra.mxu0 0
      %2754 = vmatprep.subr.bf16.mxu0 0
      %2755 = vmatpush2.bf16.msra.mxu0 0
      %2756 = vmatprep.subr.bf16.mxu0 0
      %2757 = vmatpush2.bf16.msra.mxu0 0
      %2758 = vmatprep.subr.bf16.mxu0 0
      %2759 = vmatpush2.bf16.msra.mxu0 0
      %2760 = vmatprep.subr.bf16.mxu0 0
      %2761 = vmatpush2.bf16.msra.mxu0 0
      %2762 = vmatprep.subr.bf16.mxu0 0
      %2763 = vmatpush2.bf16.msra.mxu0 0
      %2764 = vmatprep.mubr.bf16.mxu0 0
      %2765 = vmatmul.mubr.bf16.gmra.mxu0 %v395
      %v2766 = vpop.f32.mrf.mxu0
      %v2767 = vadd.f32 %v391, %v2766
      %v2768 = vpop.f32.mrf.mxu0
      %v2769 = vadd.f32 %v391, %v2768
      %v2770 = vpop.f32.mrf.mxu0
      %v2771 = vpop.f32.mrf.mxu0
      %2772 = vdwg.mxu0
      %v2773 = vmax.f32 %v2506, %v2767
      %v2774 = vmax.f32 %v2507, %v2769
      %v2775 = vsub.f32 %v2506, %v2773
      %v2776 = vsub.f32 %v2507, %v2774
      %v2777 = vmul.f32 %v2775, 1.442695
      %v2778 = vpow.pop %v2777
      %v2779 = vmul.f32 %v2776, 1.442695
      %v2780 = vpow.pop %v2779
      %v2781 = vsub.f32 %v2767, %v2773
      %v2782 = vsub.f32 %v2769, %v2774
      %v2783 = vmul.f32 %v2781, 1.442695
      %v2784 = vpow.pop %v2783
      %v2785 = vmul.f32 %v2782, 1.442695
      %v2786 = vpow.pop %v2785
      %v2787 = vsel %vm1109, %v511, %v540
      %v2788 = vsel %vm1110, %v513, %v542
      %v2789 = vsel %vm1109, %v512, %v541
      %v2790 = vsel %vm1110, %v514, %v543
      %v2791 = vsel %vm2235, %v484, %v2787
      %v2792 = vsel %vm2236, %v482, %v2788
      %v2793 = vsel %vm2235, %v485, %v2789
      %v2794 = vsel %vm2236, %v483, %v2790
      %vm2795 = vmand %vm2225, %vm1099
      %v2796 = vsel %vm2795, 1, 0
      %v2797 = vlaneseq
      %v2798 = vshrl.u32 %v2797, 7
      %v2799 = vsub.s32 0, %v2798
      %v2800 = vrot.slane %v2796, %v2799
      %v2801 = vlaneseq
      %v2802 = vshrl.u32 %v2801, 7
      %v2803 = vsub.s32 1, %v2802
      %v2804 = vrot.slane %v2796, %v2803
      %vm2805 = vcmp.eq.s32.totalorder %v2800, 1
      %vm2806 = vcmp.eq.s32.totalorder %v2804, 1
      %v2807 = vsel %vm2805, %v470, %v2791
      %v2808 = vsel %vm2806, %v468, %v2792
      %v2809 = vsel %vm2805, %v471, %v2793
      %v2810 = vsel %vm2806, %v469, %v2794
      %v2811 = vmul.f32 %v2695, %v2778
      %v2812 = vmul.f32 %v2696, %v2780
      %v2813 = vmul.f32 %v2697, %v2778
      %v2814 = vmul.f32 %v2698, %v2780
      %v2815 = vmul.f32 %v2699, %v2778
      %v2816 = vmul.f32 %v2700, %v2780
      %v2817 = vmul.f32 %v2701, %v2778
      %v2818 = vmul.f32 %v2702, %v2780
      %v2819 = vmul.f32 %v2703, %v2778
      %v2820 = vmul.f32 %v2704, %v2780
      %v2821 = vmul.f32 %v2705, %v2778
      %v2822 = vmul.f32 %v2706, %v2780
      %v2823 = vmul.f32 %v2707, %v2778
      %v2824 = vmul.f32 %v2708, %v2780
      %v2825 = vmul.f32 %v2709, %v2778
      %v2826 = vmul.f32 %v2710, %v2780
      %v2831 = vcombine.low %v2807, %v2808
      %v2832 = vcombine.high %v2807, %v2808
      %v2834 = vunpack.c.l.s4 1983009808
      %v2835 = vunpack.c.0.s8 %v2834
      %v2836 = vlaneseq
      %v2837 = vshrl.u32 %v2836, 7
      %v2838 = vsub.s32 %v2835, %v2837
      %v2839 = vrot.slane %v2831, %v2838
      %v2841 = vunpack.c.l.s4 1983009808
      %v2842 = vunpack.c.0.s8 %v2841
      %v2843 = vlaneseq
      %v2844 = vshrl.u32 %v2843, 7
      %v2845 = vsub.s32 %v2842, %v2844
      %v2846 = vrot.slane %v2832, %v2845
      %v2847 = vcombine.high %v2839, %v2839
      %v2848 = vcombine.high %v2846, %v2846
      %v2849 = vcombine.low %v2809, %v2810
      %v2850 = vcombine.high %v2809, %v2810
      %v2852 = vunpack.c.l.s4 1983009808
      %v2853 = vunpack.c.0.s8 %v2852
      %v2854 = vlaneseq
      %v2855 = vshrl.u32 %v2854, 7
      %v2856 = vsub.s32 %v2853, %v2855
      %v2857 = vrot.slane %v2849, %v2856
      %v2859 = vunpack.c.l.s4 1983009808
      %v2860 = vunpack.c.0.s8 %v2859
      %v2861 = vlaneseq
      %v2862 = vshrl.u32 %v2861, 7
      %v2863 = vsub.s32 %v2860, %v2862
      %v2864 = vrot.slane %v2850, %v2863
      %v2865 = vcombine.high %v2857, %v2857
      %v2866 = vcombine.high %v2864, %v2864
      %v2877 = vcombine.low %v2784, %v2786
      %v2879 = vunpack.c.l.s4 1983009808
      %v2880 = vunpack.c.0.s8 %v2879
      %v2881 = vlaneseq
      %v2882 = vshrl.u32 %v2881, 7
      %v2883 = vsub.s32 %v2880, %v2882
      %v2884 = vrot.slane %v2877, %v2883
      %v2886 = vmul.f32 %v2839, %v2884
      %v2887 = vmul.f32 %v2847, %v2884
      %v2888 = vmul.f32 %v2846, %v2884
      %v2889 = vmul.f32 %v2848, %v2884
      %v2890 = vmul.f32 %v2857, %v2884
      %v2891 = vmul.f32 %v2865, %v2884
      %v2892 = vmul.f32 %v2864, %v2884
      %v2893 = vmul.f32 %v2866, %v2884
      %v2903 = vunpack.c.l.s4 1983009808
      %v2904 = vunpack.c.0.s8 %v2903
      %v2905 = vlaneseq
      %v2906 = vshrl.u32 %v2905, 7
      %v2907 = vsub.s32 %v2904, %v2906
      %v2908 = vrot.slane %v2886, %v2907
      %v2909 = vcombine.high %v2908, %v2908
      %v2911 = vunpack.c.l.s4 1983009808
      %v2912 = vunpack.c.0.s8 %v2911
      %v2913 = vlaneseq
      %v2914 = vshrl.u32 %v2913, 7
      %v2915 = vsub.s32 %v2912, %v2914
      %v2916 = vrot.slane %v2887, %v2915
      %v2917 = vcombine.high %v2916, %v2916
      %v2919 = vunpack.c.l.s4 1983009808
      %v2920 = vunpack.c.0.s8 %v2919
      %v2921 = vlaneseq
      %v2922 = vshrl.u32 %v2921, 7
      %v2923 = vsub.s32 %v2920, %v2922
      %v2924 = vrot.slane %v2888, %v2923
      %v2925 = vcombine.high %v2924, %v2924
      %v2927 = vunpack.c.l.s4 1983009808
      %v2928 = vunpack.c.0.s8 %v2927
      %v2929 = vlaneseq
      %v2930 = vshrl.u32 %v2929, 7
      %v2931 = vsub.s32 %v2928, %v2930
      %v2932 = vrot.slane %v2889, %v2931
      %v2933 = vcombine.high %v2932, %v2932
      %v2935 = vunpack.c.l.s4 1983009808
      %v2936 = vunpack.c.0.s8 %v2935
      %v2937 = vlaneseq
      %v2938 = vshrl.u32 %v2937, 7
      %v2939 = vsub.s32 %v2936, %v2938
      %v2940 = vrot.slane %v2890, %v2939
      %v2941 = vcombine.high %v2940, %v2940
      %v2943 = vunpack.c.l.s4 1983009808
      %v2944 = vunpack.c.0.s8 %v2943
      %v2945 = vlaneseq
      %v2946 = vshrl.u32 %v2945, 7
      %v2947 = vsub.s32 %v2944, %v2946
      %v2948 = vrot.slane %v2891, %v2947
      %v2949 = vcombine.high %v2948, %v2948
      %v2951 = vunpack.c.l.s4 1983009808
      %v2952 = vunpack.c.0.s8 %v2951
      %v2953 = vlaneseq
      %v2954 = vshrl.u32 %v2953, 7
      %v2955 = vsub.s32 %v2952, %v2954
      %v2956 = vrot.slane %v2892, %v2955
      %v2957 = vcombine.high %v2956, %v2956
      %v2959 = vunpack.c.l.s4 1983009808
      %v2960 = vunpack.c.0.s8 %v2959
      %v2961 = vlaneseq
      %v2962 = vshrl.u32 %v2961, 7
      %v2963 = vsub.s32 %v2960, %v2962
      %v2964 = vrot.slane %v2893, %v2963
      %v2965 = vcombine.high %v2964, %v2964
      %v2982 = vadd.f32 %v2811, %v2908
      %v2983 = vadd.f32 %v2812, %v2909
      %v2984 = vadd.f32 %v2813, %v2916
      %v2985 = vadd.f32 %v2814, %v2917
      %v2986 = vadd.f32 %v2815, %v2924
      %v2987 = vadd.f32 %v2816, %v2925
      %v2988 = vadd.f32 %v2817, %v2932
      %v2989 = vadd.f32 %v2818, %v2933
      %v2990 = vadd.f32 %v2819, %v2940
      %v2991 = vadd.f32 %v2820, %v2941
      %v2992 = vadd.f32 %v2821, %v2948
      %v2993 = vadd.f32 %v2822, %v2949
      %v2994 = vadd.f32 %v2823, %v2956
      %v2995 = vadd.f32 %v2824, %v2957
      %v2996 = vadd.f32 %v2825, %v2964
      %v2997 = vadd.f32 %v2826, %v2965
      %v2998 = vmul.f32 %v2713, %v2778
      %v2999 = vmul.f32 %v2714, %v2780
      %v3000 = vadd.f32 %v2998, %v2784
      %v3001 = vadd.f32 %v2999, %v2786
      %v3002 = vrcp.pop %v3000
      %v3003 = vmul.f32 1.0, %v3002
      %v3004 = vrcp.pop %v3001
      %v3005 = vmul.f32 1.0, %v3004
      %v3006 = vmul.f32 %v2982, %v3003
      %v3007 = vmul.f32 %v2983, %v3005
      %v3008 = vmul.f32 %v2984, %v3003
      %v3009 = vmul.f32 %v2985, %v3005
      %v3010 = vmul.f32 %v2986, %v3003
      %v3011 = vmul.f32 %v2987, %v3005
      %v3012 = vmul.f32 %v2988, %v3003
      %v3013 = vmul.f32 %v2989, %v3005
      %v3014 = vmul.f32 %v2990, %v3003
      %v3015 = vmul.f32 %v2991, %v3005
      %v3016 = vmul.f32 %v2992, %v3003
      %v3017 = vmul.f32 %v2993, %v3005
      %v3018 = vmul.f32 %v2994, %v3003
      %v3019 = vmul.f32 %v2995, %v3005
      %v3020 = vmul.f32 %v2996, %v3003
      %v3021 = vmul.f32 %v2997, %v3005
      %v3038 = vcombine.low %v3006, %v3007
      %v3040 = vunpack.c.l.s4 1983009808
      %v3041 = vunpack.c.0.s8 %v3040
      %v3042 = vlaneseq
      %v3043 = vshrl.u32 %v3042, 7
      %v3044 = vsub.s32 %v3041, %v3043
      %v3045 = vrot.slane %v3038, %v3044
      %v3046 = vcombine.low %v3008, %v3009
      %v3048 = vunpack.c.l.s4 1983009808
      %v3049 = vunpack.c.0.s8 %v3048
      %v3050 = vlaneseq
      %v3051 = vshrl.u32 %v3050, 7
      %v3052 = vsub.s32 %v3049, %v3051
      %v3053 = vrot.slane %v3046, %v3052
      %v3054 = vcombine.low %v3010, %v3011
      %v3056 = vunpack.c.l.s4 1983009808
      %v3057 = vunpack.c.0.s8 %v3056
      %v3058 = vlaneseq
      %v3059 = vshrl.u32 %v3058, 7
      %v3060 = vsub.s32 %v3057, %v3059
      %v3061 = vrot.slane %v3054, %v3060
      %v3062 = vcombine.low %v3012, %v3013
      %v3064 = vunpack.c.l.s4 1983009808
      %v3065 = vunpack.c.0.s8 %v3064
      %v3066 = vlaneseq
      %v3067 = vshrl.u32 %v3066, 7
      %v3068 = vsub.s32 %v3065, %v3067
      %v3069 = vrot.slane %v3062, %v3068
      %v3070 = vcombine.low %v3014, %v3015
      %v3072 = vunpack.c.l.s4 1983009808
      %v3073 = vunpack.c.0.s8 %v3072
      %v3074 = vlaneseq
      %v3075 = vshrl.u32 %v3074, 7
      %v3076 = vsub.s32 %v3073, %v3075
      %v3077 = vrot.slane %v3070, %v3076
      %v3078 = vcombine.low %v3016, %v3017
      %v3080 = vunpack.c.l.s4 1983009808
      %v3081 = vunpack.c.0.s8 %v3080
      %v3082 = vlaneseq
      %v3083 = vshrl.u32 %v3082, 7
      %v3084 = vsub.s32 %v3081, %v3083
      %v3085 = vrot.slane %v3078, %v3084
      %v3086 = vcombine.low %v3018, %v3019
      %v3088 = vunpack.c.l.s4 1983009808
      %v3089 = vunpack.c.0.s8 %v3088
      %v3090 = vlaneseq
      %v3091 = vshrl.u32 %v3090, 7
      %v3092 = vsub.s32 %v3089, %v3091
      %v3093 = vrot.slane %v3086, %v3092
      %v3094 = vcombine.low %v3020, %v3021
      %v3096 = vunpack.c.l.s4 1983009808
      %v3097 = vunpack.c.0.s8 %v3096
      %v3098 = vlaneseq
      %v3099 = vshrl.u32 %v3098, 7
      %v3100 = vsub.s32 %v3097, %v3099
      %v3101 = vrot.slane %v3094, %v3100
      %v3110 = vcombine.low %v3045, %v3053
      %v3111 = vcombine.low %v3061, %v3069
      %v3113 = vunpack.c.l.s4 1983009808
      %v3114 = vunpack.c.0.s8 %v3113
      %v3115 = vlaneseq
      %v3116 = vshrl.u32 %v3115, 7
      %v3117 = vsub.s32 %v3114, %v3116
      %v3118 = vrot.slane %v3110, %v3117
      %v3120 = vunpack.c.l.s4 1983009808
      %v3121 = vunpack.c.0.s8 %v3120
      %v3122 = vlaneseq
      %v3123 = vshrl.u32 %v3122, 7
      %v3124 = vsub.s32 %v3121, %v3123
      %v3125 = vrot.slane %v3111, %v3124
      %v3126 = vcombine.low %v3118, %v3125
      %v3127 = vcombine.high %v3118, %v3125
      %v3128 = vcombine.low %v3077, %v3085
      %v3129 = vcombine.low %v3093, %v3101
      %v3131 = vunpack.c.l.s4 1983009808
      %v3132 = vunpack.c.0.s8 %v3131
      %v3133 = vlaneseq
      %v3134 = vshrl.u32 %v3133, 7
      %v3135 = vsub.s32 %v3132, %v3134
      %v3136 = vrot.slane %v3128, %v3135
      %v3138 = vunpack.c.l.s4 1983009808
      %v3139 = vunpack.c.0.s8 %v3138
      %v3140 = vlaneseq
      %v3141 = vshrl.u32 %v3140, 7
      %v3142 = vsub.s32 %v3139, %v3141
      %v3143 = vrot.slane %v3129, %v3142
      %v3144 = vcombine.low %v3136, %v3143
      %v3145 = vcombine.high %v3136, %v3143
      %3150 = vst [vmem:[%s333] sm:$0xff] %v3126
      %3151 = vst [vmem:[%s333 + $0x8] sm:$0xff] %v3127
      %3152 = vst [vmem:[%s333 + $0x10] sm:$0xff] %v3144
      %3153 = vst [vmem:[%s333 + $0x18] sm:$0xff] %v3145
      %v3155 = vlaneseq
      %v3156 = vshrl.u32 %v3155, 7
      %v3157 = vsub.s32 0, %v3156
      %v3158 = vrot.slane %v345, %v3157
      %v3159 = vlaneseq
      %v3160 = vshrl.u32 %v3159, 7
      %v3161 = vsub.s32 1, %v3160
      %v3162 = vrot.slane %v345, %v3161
      %v3163 = vcombine.low %v3158, %v3162
      %v3164 = vcombine.high %v3158, %v3162
      %v3166 = vunpack.c.l.s4 1983009808
      %v3167 = vunpack.c.0.s8 %v3166
      %v3168 = vlaneseq
      %v3169 = vshrl.u32 %v3168, 7
      %v3170 = vsub.s32 %v3167, %v3169
      %v3171 = vrot.slane %v3163, %v3170
      %v3173 = vunpack.c.l.s4 1983009808
      %v3174 = vunpack.c.0.s8 %v3173
      %v3175 = vlaneseq
      %v3176 = vshrl.u32 %v3175, 7
      %v3177 = vsub.s32 %v3174, %v3176
      %v3178 = vrot.slane %v3164, %v3177
      %v3179 = vcombine.high %v3171, %v3171
      %v3180 = vcombine.high %v3178, %v3178
      %v3185 = vmul.f32 %v3045, %v3171
      %v3186 = vmul.f32 %v3053, %v3179
      %v3187 = vmul.f32 %v3061, %v3178
      %v3188 = vmul.f32 %v3069, %v3180
      %v3189 = vmul.f32 %v3077, %v3171
      %v3190 = vmul.f32 %v3085, %v3179
      %v3191 = vmul.f32 %v3093, %v3178
      %v3192 = vmul.f32 %v3101, %v3180
      %v3201 = vcombine.low %v3185, %v3186
      %v3202 = vcombine.low %v3187, %v3188
      %v3204 = vunpack.c.l.s4 1983009808
      %v3205 = vunpack.c.0.s8 %v3204
      %v3206 = vlaneseq
      %v3207 = vshrl.u32 %v3206, 7
      %v3208 = vsub.s32 %v3205, %v3207
      %v3209 = vrot.slane %v3201, %v3208
      %v3211 = vunpack.c.l.s4 1983009808
      %v3212 = vunpack.c.0.s8 %v3211
      %v3213 = vlaneseq
      %v3214 = vshrl.u32 %v3213, 7
      %v3215 = vsub.s32 %v3212, %v3214
      %v3216 = vrot.slane %v3202, %v3215
      %v3217 = vcombine.low %v3209, %v3216
      %v3218 = vcombine.high %v3209, %v3216
      %v3219 = vcombine.low %v3189, %v3190
      %v3220 = vcombine.low %v3191, %v3192
      %v3222 = vunpack.c.l.s4 1983009808
      %v3223 = vunpack.c.0.s8 %v3222
      %v3224 = vlaneseq
      %v3225 = vshrl.u32 %v3224, 7
      %v3226 = vsub.s32 %v3223, %v3225
      %v3227 = vrot.slane %v3219, %v3226
      %v3229 = vunpack.c.l.s4 1983009808
      %v3230 = vunpack.c.0.s8 %v3229
      %v3231 = vlaneseq
      %v3232 = vshrl.u32 %v3231, 7
      %v3233 = vsub.s32 %v3230, %v3232
      %v3234 = vrot.slane %v3220, %v3233
      %v3235 = vcombine.low %v3227, %v3234
      %v3236 = vcombine.high %v3227, %v3234
      %v3241 = vadd.f32 %v3217, %v3218
      %3242 = vadd.xlane.f32.xlu0 %v3241
      %v3243 = vpop.xlane.xlu0 %3242
      %v3244 = vadd.f32 %v3235, %v3236
      %3245 = vadd.xlane.f32.xlu0 %v3244
      %v3246 = vpop.xlane.xlu0 %3245
      %vm3247 = vcmask 7168
      %3248 = vst.msk [vmem:[%s338] sm:$0xff] %vm3247, %v3243
      %3249 = vst.msk [vmem:[%s338 + $0x8] sm:$0xff] %vm3247, %v3246
      %v3250 = vmul.f32 %v3185, %v3185
      %v3251 = vmul.f32 %v3186, %v3186
      %v3252 = vmul.f32 %v3187, %v3187
      %v3253 = vmul.f32 %v3188, %v3188
      %v3254 = vmul.f32 %v3189, %v3189
      %v3255 = vmul.f32 %v3190, %v3190
      %v3256 = vmul.f32 %v3191, %v3191
      %v3257 = vmul.f32 %v3192, %v3192
      %v3266 = vcombine.low %v3250, %v3251
      %v3267 = vcombine.low %v3252, %v3253
      %v3269 = vunpack.c.l.s4 1983009808
      %v3270 = vunpack.c.0.s8 %v3269
      %v3271 = vlaneseq
      %v3272 = vshrl.u32 %v3271, 7
      %v3273 = vsub.s32 %v3270, %v3272
      %v3274 = vrot.slane %v3266, %v3273
      %v3276 = vunpack.c.l.s4 1983009808
      %v3277 = vunpack.c.0.s8 %v3276
      %v3278 = vlaneseq
      %v3279 = vshrl.u32 %v3278, 7
      %v3280 = vsub.s32 %v3277, %v3279
      %v3281 = vrot.slane %v3267, %v3280
      %v3282 = vcombine.low %v3274, %v3281
      %v3283 = vcombine.high %v3274, %v3281
      %v3284 = vcombine.low %v3254, %v3255
      %v3285 = vcombine.low %v3256, %v3257
      %v3287 = vunpack.c.l.s4 1983009808
      %v3288 = vunpack.c.0.s8 %v3287
      %v3289 = vlaneseq
      %v3290 = vshrl.u32 %v3289, 7
      %v3291 = vsub.s32 %v3288, %v3290
      %v3292 = vrot.slane %v3284, %v3291
      %v3294 = vunpack.c.l.s4 1983009808
      %v3295 = vunpack.c.0.s8 %v3294
      %v3296 = vlaneseq
      %v3297 = vshrl.u32 %v3296, 7
      %v3298 = vsub.s32 %v3295, %v3297
      %v3299 = vrot.slane %v3285, %v3298
      %v3300 = vcombine.low %v3292, %v3299
      %v3301 = vcombine.high %v3292, %v3299
      %v3306 = vadd.f32 %v3282, %v3283
      %3307 = vadd.xlane.f32.xlu0 %v3306
      %v3308 = vpop.xlane.xlu0 %3307
      %v3309 = vadd.f32 %v3300, %v3301
      %3310 = vadd.xlane.f32.xlu0 %v3309
      %v3311 = vpop.xlane.xlu0 %3310
      %vm3312 = vcmask 15368
      %3313 = vst.msk [vmem:[%s338] sm:$0xff] %vm3312, %v3308
      %3314 = vst.msk [vmem:[%s338 + $0x8] sm:$0xff] %vm3312, %v3311
      %p3315 = scmp.lt.s32.totalorder %s20, 1
      %s3316 = scalar_select %p3315, %s20, 1
      %s3317 = smul.addr %s3316, 4
      %s3318 = smul.addr %s3317, 8
      %s3319 = scalar_lea.vmem %s7, %s3318
      %p3320 = scmp.lt.s32.totalorder %s20, 1
      %s3321 = scalar_select %p3320, %s20, 1
      %s3322 = smul.addr %s3321, 2
      %s3323 = smul.addr %s3322, 8
      %s3324 = scalar_lea.vmem %s8, %s3323
      // Predicated region
      $region49: #{bottleneck_forward.10} parent=47 // pred_check
        %p3325 = pneg %p195
      $region50: #{bottleneck_forward.10} parent=47 // pred_check_branch
        %3327 = sbr.rel (%p3325) target = $region52
      $region51: #{bottleneck_forward.10} parent=47 // pred_region
        _
      $region52: #{bottleneck_forward.10} parent=47 // pred_fallthru
        _
      // Predicated region
      $region53: #{bottleneck_forward.10} parent=47 // pred_check
        %p3328 = pneg %p221
      $region54: #{bottleneck_forward.10} parent=47 // pred_check_branch
        %3330 = sbr.rel (%p3328) target = $region56
      $region55: #{bottleneck_forward.10} parent=47 // pred_region
        _
      $region56: #{bottleneck_forward.10} parent=47 // pred_fallthru
        _
    $region48: #{bottleneck_forward.10} parent=5 // pred_fallthru
      _
    %p3331 = scmp.le.s32.totalorder 2, %s15
    // Predicated region
    $region57: #{bottleneck_forward.10} parent=5 // pred_check
      %p3332 = pneg %p3331
    $region58: #{bottleneck_forward.10} parent=5 // pred_check_branch
      %3334 = sbr.rel (%p3332) target = $region60
    $region59: #{bottleneck_forward.10} parent=5 // pred_region
      %s3335 = ssub.s32 %s15, 2
      // Predicated region
      $region61: #{bottleneck_forward.10} parent=59 // pred_check
        %p3336 = pneg %p201
      $region62: #{bottleneck_forward.10} parent=59 // pred_check_branch
        %3338 = sbr.rel (%p3336) target = $region64
      $region63: #{bottleneck_forward.10} parent=59 // pred_region
        %p3339 = scmp.lt.s32.totalorder %s21, 1
        %s3340 = scalar_select %p3339, %s21, 1
        %s3341 = smul.addr %s3340, 4
        %s3342 = smul.addr %s3341, 8
        %s3343 = scalar_lea.vmem %s7, %s3342
      $region64: #{bottleneck_forward.10} parent=59 // pred_fallthru
        _
      // Predicated region
      $region65: #{bottleneck_forward.10} parent=59 // pred_check
        %p3344 = pneg %p227
      $region66: #{bottleneck_forward.10} parent=59 // pred_check_branch
        %3346 = sbr.rel (%p3344) target = $region68
      $region67: #{bottleneck_forward.10} parent=59 // pred_region
        %p3347 = scmp.lt.s32.totalorder %s21, 1
        %s3348 = scalar_select %p3347, %s21, 1
        %s3349 = smul.addr %s3348, 2
        %s3350 = smul.addr %s3349, 8
        %s3351 = scalar_lea.vmem %s8, %s3350
      $region68: #{bottleneck_forward.10} parent=59 // pred_fallthru
        _
    $region60: #{bottleneck_forward.10} parent=5 // pred_fallthru
      _
  $region6: #{bottleneck_forward.10} parent=0 // loop_footer
    %s19 = sadd.s32 1, %s15
  $region7: #{bottleneck_forward.10} parent=0 // loop_footer_branch
    %14 = sbr.rel target = $region3
  $region8: #{bottleneck_forward.10} parent=0 // loop_exit
    _

</llo_original>
